<compile_context>
chip_gen: v7x
topology: tpu7x:2x2x1
jax: 0.10.0
libtpu: 0.0.40
codegen_flags: <defaults>
</compile_context>

<pallas_src>
import jax
import jax.numpy as jnp
import numpy as np
from jax.experimental import pallas as pl
from jax.experimental.pallas import tpu as pltpu


# ----------------------------------------------------------------------------
# helpers
# ----------------------------------------------------------------------------
def _round_up(x, m):
    return (x + m - 1) // m * m


def _pick_tt(T, cap=32):
    """Largest divisor of T that is <= cap (time-chunk size)."""
    for tt in range(min(T, cap), 0, -1):
        if T % tt == 0:
            return tt
    return 1


def _pack_gates(w_t, in_pad, H, Hp):
    """(in_size, 4H) -> (in_pad, 4*Hp); per-gate column blocks zero-padded.

    PyTorch gate order [i, f, g, o] is preserved; padded hidden columns get
    zero weights / zero bias so padded h/c lanes stay exactly 0.
    """
    in_size = w_t.shape[0]
    blocks = []
    for k in range(4):
        blk = w_t[:, k * H:(k + 1) * H]
        blk = jnp.pad(blk, ((0, in_pad - in_size), (0, Hp - H)))
        blocks.append(blk)
    return jnp.concatenate(blocks, axis=1)


def _pack_gate_bias(b, H, Hp):
    blocks = [jnp.pad(b[k * H:(k + 1) * H], (0, Hp - H)) for k in range(4)]
    return jnp.concatenate(blocks).reshape(1, 4 * Hp)


# ----------------------------------------------------------------------------
# Tiled matmul + bias kernel (used for input projection and the decoder).
# lhs is f32 (cast to bf16 for the MXU), rhs is pre-cast bf16, accumulate f32.
# ----------------------------------------------------------------------------
def _matmul_bias_kernel(x_ref, w_ref, b_ref, o_ref):
    x = x_ref[...].astype(jnp.bfloat16)
    o_ref[...] = (jnp.dot(x, w_ref[...], preferred_element_type=jnp.float32)
                  + b_ref[...])


def matmul_bias(x, w_bf16, bias, tm=256, tn=512):
    """x: (M, K) f32 ; w_bf16: (K, N) bf16 ; bias: (1, N) f32 -> (M, N) f32."""
    M, K = x.shape
    N = w_bf16.shape[1]
    tm = min(tm, _round_up(M, 8))
    tn = min(tn, _round_up(N, 128))
    Mp, Np = _round_up(M, tm), _round_up(N, tn)
    xp = x if Mp == M else jnp.pad(x, ((0, Mp - M), (0, 0)))
    wp = w_bf16 if Np == N else jnp.pad(w_bf16, ((0, 0), (0, Np - N)))
    bp = bias if Np == N else jnp.pad(bias, ((0, 0), (0, Np - N)))
    grid = (Mp // tm, Np // tn)
    # K is kept as a single block (fine for ninp/nhid-sized contractions).
    out = pl.pallas_call(
        _matmul_bias_kernel,
        out_shape=jax.ShapeDtypeStruct((Mp, Np), jnp.float32),
        grid_spec=pltpu.PrefetchScalarGridSpec(
            num_scalar_prefetch=0,
            grid=grid,
            in_specs=[
                pl.BlockSpec((tm, K), lambda i, j: (i, 0)),
                pl.BlockSpec((K, tn), lambda i, j: (0, j)),
                pl.BlockSpec((1, tn), lambda i, j: (0, j)),
            ],
            out_specs=pl.BlockSpec((tm, tn), lambda i, j: (i, j)),
        ),
        compiler_params=pltpu.CompilerParams(
            dimension_semantics=("parallel", "parallel")),
        cost_estimate=pl.CostEstimate(
            flops=2 * Mp * Np * K,
            transcendentals=0,
            bytes_accessed=Mp * K * 4 + K * Np * 2 + Mp * Np * 4),
    )(xp, wp, bp)
    return out[:M, :N]


# ----------------------------------------------------------------------------
# LSTM recurrent kernel. Grid over time chunks; h/c carried in VMEM scratch
# across grid iterations (sequential recurrence -> "arbitrary"). Per step only
# h @ W_hh^T is computed; the x projection (+bias) is precomputed (hoisted).
# ----------------------------------------------------------------------------
def _lstm_rec_kernel(xp_ref, whh_ref, h0_ref, c0_ref, y_ref, cT_ref, h_sc, c_sc):
    blk = pl.program_id(0)

    @pl.when(blk == 0)
    def _():
        h_sc[...] = h0_ref[...]
        c_sc[...] = c0_ref[...]

    Hp = h_sc.shape[-1]
    tt = xp_ref.shape[0]

    def step(t, carry):
        gates = (jnp.dot(h_sc[...].astype(jnp.bfloat16), whh_ref[...],
                         preferred_element_type=jnp.float32)
                 + xp_ref[t])                     # (Bp, 4Hp), f32
        # Lane-aligned gate slices, PyTorch order [i, f, g, o]; f32 elementwise.
        i = jax.nn.sigmoid(gates[:, 0 * Hp:1 * Hp])
        f = jax.nn.sigmoid(gates[:, 1 * Hp:2 * Hp])
        g = jnp.tanh(gates[:, 2 * Hp:3 * Hp])
        o = jax.nn.sigmoid(gates[:, 3 * Hp:4 * Hp])
        c_new = f * c_sc[...] + i * g
        h_new = o * jnp.tanh(c_new)
        c_sc[...] = c_new
        h_sc[...] = h_new
        y_ref[t] = h_new
        return carry

    jax.lax.fori_loop(0, tt, step, 0, unroll=True)

    # cT is a resident output block (constant index map); only the last grid
    # step's write is the final value.  h_T is recovered from y[-1] outside.
    @pl.when(blk == pl.num_programs(0) - 1)
    def _():
        cT_ref[...] = c_sc[...]


def lstm_recurrent(x_proj, whh_t_bf16, h0, c0):
    """x_proj: (T, Bp, 4Hp) f32 ; whh_t: (Hp, 4Hp) bf16 ; h0,c0: (Bp, Hp) f32."""
    T, Bp, G4 = x_proj.shape
    Hp = G4 // 4
    tt = _pick_tt(T)
    grid = (T // tt,)
    y, cT = pl.pallas_call(
        _lstm_rec_kernel,
        out_shape=(jax.ShapeDtypeStruct((T, Bp, Hp), jnp.float32),
                   jax.ShapeDtypeStruct((Bp, Hp), jnp.float32)),
        grid_spec=pltpu.PrefetchScalarGridSpec(
            num_scalar_prefetch=0,
            grid=grid,
            in_specs=[
                pl.BlockSpec((tt, Bp, G4), lambda b: (b, 0, 0)),   # x_proj chunk
                pl.BlockSpec((Hp, G4), lambda b: (0, 0)),          # W_hh^T (resident)
                pl.BlockSpec((Bp, Hp), lambda b: (0, 0)),          # h0
                pl.BlockSpec((Bp, Hp), lambda b: (0, 0)),          # c0
            ],
            out_specs=[
                pl.BlockSpec((tt, Bp, Hp), lambda b: (b, 0, 0)),   # y chunk
                pl.BlockSpec((Bp, Hp), lambda b: (0, 0)),          # c_T (resident)
            ],
            scratch_shapes=[pltpu.VMEM((Bp, Hp), jnp.float32),
                            pltpu.VMEM((Bp, Hp), jnp.float32)],
        ),
        compiler_params=pltpu.CompilerParams(
            dimension_semantics=("arbitrary",)),
    )(x_proj, whh_t_bf16, h0, c0)
    return y, cT


# ----------------------------------------------------------------------------
# Parameter init (matches PyTorch module init) and kernel-layout preparation
# ----------------------------------------------------------------------------
def init_params(key, ntoken, ninp, nhid, nlayers):
    ks = jax.random.split(key, 2 + 4 * nlayers)
    initrange = 0.1
    params = {
        "enc_w": jax.random.uniform(ks[0], (ntoken, ninp), jnp.float32,
                                    -initrange, initrange),
        "dec_w": jax.random.uniform(ks[1], (ntoken, nhid), jnp.float32,
                                    -initrange, initrange),
        "dec_b": jnp.zeros((ntoken,), jnp.float32),
        "lstm": [],
    }
    stdv = 1.0 / np.sqrt(nhid)
    for l in range(nlayers):
        in_size = ninp if l == 0 else nhid
        k0, k1, k2, k3 = ks[2 + 4 * l: 6 + 4 * l]
        params["lstm"].append({
            "w_ih": jax.random.uniform(k0, (4 * nhid, in_size), jnp.float32, -stdv, stdv),
            "w_hh": jax.random.uniform(k1, (4 * nhid, nhid), jnp.float32, -stdv, stdv),
            "b_ih": jax.random.uniform(k2, (4 * nhid,), jnp.float32, -stdv, stdv),
            "b_hh": jax.random.uniform(k3, (4 * nhid,), jnp.float32, -stdv, stdv),
        })
    return params


def prepare_params(params):
    """One-time layout prep: transpose, gate-block pad to lane-aligned Hp, bf16-cast weights."""
    nhid = params["lstm"][0]["w_hh"].shape[1]
    Hp = _round_up(nhid, 128)
    prepared = {
        "enc_w": params["enc_w"].astype(jnp.float32),
        "dec_w_t": params["dec_w"].T.astype(jnp.bfloat16),          # (nhid, ntoken)
        "dec_b": params["dec_b"].reshape(1, -1).astype(jnp.float32),
        "lstm": [],
    }
    for l, p in enumerate(params["lstm"]):
        in_size = p["w_ih"].shape[1]
        in_pad = in_size if l == 0 else Hp      # layer>0 consumes Hp-padded y
        wih_t = _pack_gates(p["w_ih"].T, in_pad, nhid, Hp).astype(jnp.bfloat16)
        whh_t = _pack_gates(p["w_hh"].T, Hp, nhid, Hp).astype(jnp.bfloat16)
        bias = _pack_gate_bias(p["b_ih"] + p["b_hh"], nhid, Hp).astype(jnp.float32)
        prepared["lstm"].append({"wih_t": wih_t, "whh_t": whh_t, "bias": bias})
    return prepared


# ----------------------------------------------------------------------------
# Full model forward (JAX glue around the Pallas kernels)
# ----------------------------------------------------------------------------
@jax.jit
def hflstmlm_forward(prepared, input_ids):
    T, B = input_ids.shape
    nhid, ntoken = prepared["dec_w_t"].shape
    Hp = prepared["lstm"][0]["whh_t"].shape[0]
    Bp = _round_up(B, 8)
    nlayers = len(prepared["lstm"])

    # encoder (embedding gather) + dropout (identity, eval mode)
    x = jnp.take(prepared["enc_w"], input_ids, axis=0)              # (T, B, ninp)
    if Bp != B:
        x = jnp.pad(x, ((0, 0), (0, Bp - B), (0, 0)))               # (T, Bp, ninp)

    h_list, c_list = [], []
    for l in range(nlayers):
        lw = prepared["lstm"][l]
        Fin = x.shape[-1]
        # Hoisted input projection: one big MXU matmul over all timesteps.
        x_proj = matmul_bias(x.reshape(T * Bp, Fin), lw["wih_t"], lw["bias"])
        x_proj = x_proj.reshape(T, Bp, 4 * Hp)
        h0 = jnp.zeros((Bp, Hp), jnp.float32)
        c0 = jnp.zeros((Bp, Hp), jnp.float32)
        y, cT = lstm_recurrent(x_proj, lw["whh_t"], h0, c0)
        h_list.append(y[-1, :B, :nhid])
        c_list.append(cT[:B, :nhid])
        x = y                                                        # inter-layer dropout: identity

    output = x[:, :B, :nhid].reshape(T * B, nhid)                    # dropout: identity
    decoded = matmul_bias(output, prepared["dec_w_t"], prepared["dec_b"])
    hidden = (jnp.stack(h_list), jnp.stack(c_list))                  # (nlayers, B, nhid) each
    return decoded, hidden


# ----------------------------------------------------------------------------
# Pure-JAX reference (lax.scan LSTM).  Mirrors the kernel's bf16 matmul-operand
# precision (f32 accumulation, f32 elementwise) so the check can be tight.
# ----------------------------------------------------------------------------
def ref_forward(params, input_ids):
    nhid = params["lstm"][0]["w_hh"].shape[1]
    T, B = input_ids.shape
    x = jnp.take(params["enc_w"], input_ids, axis=0)
    hs, cs = [], []
    for p in params["lstm"]:
        wih_t = p["w_ih"].T.astype(jnp.bfloat16)
        whh_t = p["w_hh"].T.astype(jnp.bfloat16)
        b = (p["b_ih"] + p["b_hh"]).astype(jnp.float32)

        def step(carry, x_t, wih_t=wih_t, whh_t=whh_t, b=b):
            h, c = carry
            g = (jnp.dot(x_t.astype(jnp.bfloat16), wih_t, preferred_element_type=jnp.float32)
                 + jnp.dot(h.astype(jnp.bfloat16), whh_t, preferred_element_type=jnp.float32)
                 + b)
            i = jax.nn.sigmoid(g[:, 0 * nhid:1 * nhid])
            f = jax.nn.sigmoid(g[:, 1 * nhid:2 * nhid])
            gg = jnp.tanh(g[:, 2 * nhid:3 * nhid])
            o = jax.nn.sigmoid(g[:, 3 * nhid:4 * nhid])
            c_new = f * c + i * gg
            h_new = o * jnp.tanh(c_new)
            return (h_new, c_new), h_new

        (hT, cT), y = jax.lax.scan(
            step, (jnp.zeros((B, nhid), jnp.float32),
                   jnp.zeros((B, nhid), jnp.float32)), x)
        hs.append(hT)
        cs.append(cT)
        x = y
    decoded = (jnp.dot(x.reshape(T * B, nhid).astype(jnp.bfloat16),
                       params["dec_w"].T.astype(jnp.bfloat16),
                       preferred_element_type=jnp.float32)
               + params["dec_b"])
    return decoded, (jnp.stack(hs), jnp.stack(cs))


if __name__ == "__main__":
    # Small but lane/sublane-aligned shapes consistent with the module.
    ntoken, ninp, nhid, nlayers = 512, 128, 128, 2
    T, B = 16, 8

    key = jax.random.PRNGKey(0)
    kp, ki = jax.random.split(key)
    params = init_params(kp, ntoken, ninp, nhid, nlayers)
    prepared = prepare_params(params)
    input_ids = jax.random.randint(ki, (T, B), 0, ntoken, dtype=jnp.int32)

    decoded, hidden = hflstmlm_forward(prepared, input_ids)
    jax.block_until_ready(decoded)
    jax.block_until_ready(hidden)

    assert decoded.shape == (T * B, ntoken)
    assert hidden[0].shape == (nlayers, B, nhid)
    assert hidden[1].shape == (nlayers, B, nhid)

    ref_dec, ref_hid = ref_forward(params, input_ids)
    np.testing.assert_allclose(np.asarray(decoded), np.asarray(ref_dec),
                               atol=1e-3, rtol=1e-2)
    np.testing.assert_allclose(np.asarray(hidden[0]), np.asarray(ref_hid[0]),
                               atol=1e-3, rtol=1e-2)
    np.testing.assert_allclose(np.asarray(hidden[1]), np.asarray(ref_hid[1]),
                               atol=1e-3, rtol=1e-2)

    print("KERNEL_OK")
</pallas_src>

<mosaic_0001>
module attributes {stable_mosaic.version = 11 : i64} {
  func.func @_matmul_bias_kernel(%arg0: i32, %arg1: i32, %arg2: memref<128x128xf32, #tpu.memory_space<vmem>>, %arg3: memref<128x512xbf16, #tpu.memory_space<vmem>>, %arg4: memref<1x512xf32, #tpu.memory_space<vmem>>, %arg5: memref<128x512xf32, #tpu.memory_space<vmem>>) attributes {dimension_semantics = [#tpu.dimension_semantics<parallel>, #tpu.dimension_semantics<parallel>], iteration_bounds = array<i64: 1, 1>, scalar_prefetch = 0 : i64, scratch_operands = 0 : i64, tpu.core_type = #tpu.core_type<tc>, window_params = [{transform_indices = @transform_0, window_bounds = array<i64: 128, 128>}, {transform_indices = @transform_1, window_bounds = array<i64: 128, 512>}, {transform_indices = @transform_2, window_bounds = array<i64: 1, 512>}, {transform_indices = @transform_3, window_bounds = array<i64: 128, 512>}]} {
    %c0 = arith.constant 0 : index
    %c0_0 = arith.constant 0 : index
    %0 = vector.load %arg2[%c0, %c0_0] : memref<128x128xf32, #tpu.memory_space<vmem>>, vector<128x128xf32>
    %1 = arith.truncf %0 : vector<128x128xf32> to vector<128x128xbf16>
    %c0_1 = arith.constant 0 : index
    %c0_2 = arith.constant 0 : index
    %2 = vector.load %arg3[%c0_1, %c0_2] : memref<128x512xbf16, #tpu.memory_space<vmem>>, vector<128x512xbf16>
    %cst = arith.constant dense<0.000000e+00> : vector<128x512xf32>
    %3 = tpu.matmul %1, %2, %cst {dimension_numbers = #tpu.dot_dimension_numbers<[1], [0], [0], [1], [0, 0, 1, 1], [], []>} : vector<128x128xbf16>, vector<128x512xbf16>, vector<128x512xf32> -> vector<128x512xf32>
    %c0_3 = arith.constant 0 : index
    %c0_4 = arith.constant 0 : index
    %4 = vector.load %arg4[%c0_3, %c0_4] : memref<1x512xf32, #tpu.memory_space<vmem>>, vector<1x512xf32>
    %5 = vector.broadcast %4 : vector<1x512xf32> to vector<128x512xf32>
    %6 = arith.addf %3, %5 : vector<128x512xf32>
    %c0_5 = arith.constant 0 : index
    %c0_6 = arith.constant 0 : index
    %7 = vector.load %arg5[%c0_5, %c0_6] : memref<128x512xf32, #tpu.memory_space<vmem>>, vector<128x512xf32>
    tpu.vector_store %arg5[%c0_5, %c0_6], %6 {strides = array<i32>} : memref<128x512xf32, #tpu.memory_space<vmem>>, vector<128x512xf32>,
    return
  }
  func.func @transform_0(%arg0: i32, %arg1: i32) -> (i32, i32) {
    %c0_i32 = arith.constant 0 : i32
    %c0_i32_0 = arith.constant 0 : i32
    return %arg0, %c0_i32 : i32, i32
  }
  func.func @transform_1(%arg0: i32, %arg1: i32) -> (i32, i32) {
    %c0_i32 = arith.constant 0 : i32
    %c0_i32_0 = arith.constant 0 : i32
    return %c0_i32, %arg1 : i32, i32
  }
  func.func @transform_2(%arg0: i32, %arg1: i32) -> (i32, i32) {
    %c0_i32 = arith.constant 0 : i32
    %c0_i32_0 = arith.constant 0 : i32
    return %c0_i32, %arg1 : i32, i32
  }
  func.func @transform_3(%arg0: i32, %arg1: i32) -> (i32, i32) {
    %c0_i32 = arith.constant 0 : i32
    return %arg0, %arg1 : i32, i32
  }
}

module attributes {stable_mosaic.version = 11 : i64} {
  func.func @_lstm_rec_kernel(%arg0: i32, %arg1: memref<16x8x512xf32, #tpu.memory_space<vmem>>, %arg2: memref<128x512xbf16, #tpu.memory_space<vmem>>, %arg3: memref<8x128xf32, #tpu.memory_space<vmem>>, %arg4: memref<8x128xf32, #tpu.memory_space<vmem>>, %arg5: memref<16x8x128xf32, #tpu.memory_space<vmem>>, %arg6: memref<8x128xf32, #tpu.memory_space<vmem>>, %arg7: memref<8x128xf32, #tpu.memory_space<vmem>>, %arg8: memref<8x128xf32, #tpu.memory_space<vmem>>) attributes {dimension_semantics = [#tpu.dimension_semantics<arbitrary>], iteration_bounds = array<i64: 1>, scalar_prefetch = 0 : i64, scratch_operands = 2 : i64, tpu.core_type = #tpu.core_type<tc>, window_params = [{transform_indices = @transform_0, window_bounds = array<i64: 16, 8, 512>}, {pipeline_mode = #tpu.pipeline_mode<synchronous>, transform_indices = @transform_1, window_bounds = array<i64: 128, 512>}, {pipeline_mode = #tpu.pipeline_mode<synchronous>, transform_indices = @transform_2, window_bounds = array<i64: 8, 128>}, {pipeline_mode = #tpu.pipeline_mode<synchronous>, transform_indices = @transform_3, window_bounds = array<i64: 8, 128>}, {transform_indices = @transform_4, window_bounds = array<i64: 16, 8, 128>}, {pipeline_mode = #tpu.pipeline_mode<synchronous>, transform_indices = @transform_5, window_bounds = array<i64: 8, 128>}]} {
    %c0_i32 = arith.constant 0 : i32
    %0 = arith.cmpi eq, %arg0, %c0_i32 : i32
    %1 = arith.extui %0 : i1 to i32
    %c0_i32_0 = arith.constant 0 : i32
    %2 = arith.cmpi ne, %1, %c0_i32_0 : i32
    scf.if %2 {
      %c0_290 = arith.constant 0 : index
      %c0_291 = arith.constant 0 : index
      %646 = vector.load %arg3[%c0_290, %c0_291] : memref<8x128xf32, #tpu.memory_space<vmem>>, vector<8x128xf32>
      %c0_292 = arith.constant 0 : index
      %c0_293 = arith.constant 0 : index
      %647 = vector.load %arg7[%c0_292, %c0_293] : memref<8x128xf32, #tpu.memory_space<vmem>>, vector<8x128xf32>
      tpu.vector_store %arg7[%c0_292, %c0_293], %646 {strides = array<i32>} : memref<8x128xf32, #tpu.memory_space<vmem>>, vector<8x128xf32>,
      %c0_294 = arith.constant 0 : index
      %c0_295 = arith.constant 0 : index
      %648 = vector.load %arg4[%c0_294, %c0_295] : memref<8x128xf32, #tpu.memory_space<vmem>>, vector<8x128xf32>
      %c0_296 = arith.constant 0 : index
      %c0_297 = arith.constant 0 : index
      %649 = vector.load %arg8[%c0_296, %c0_297] : memref<8x128xf32, #tpu.memory_space<vmem>>, vector<8x128xf32>
      tpu.vector_store %arg8[%c0_296, %c0_297], %648 {strides = array<i32>} : memref<8x128xf32, #tpu.memory_space<vmem>>, vector<8x128xf32>,
    } else {
    }
    %c0_i32_1 = arith.constant 0 : i32
    %c0 = arith.constant 0 : index
    %c0_2 = arith.constant 0 : index
    %3 = vector.load %arg7[%c0, %c0_2] : memref<8x128xf32, #tpu.memory_space<vmem>>, vector<8x128xf32>
    %4 = arith.truncf %3 : vector<8x128xf32> to vector<8x128xbf16>
    %c0_3 = arith.constant 0 : index
    %c0_4 = arith.constant 0 : index
    %5 = vector.load %arg2[%c0_3, %c0_4] : memref<128x512xbf16, #tpu.memory_space<vmem>>, vector<128x512xbf16>
    %cst = arith.constant dense<0.000000e+00> : vector<8x512xf32>
    %6 = tpu.matmul %4, %5, %cst {dimension_numbers = #tpu.dot_dimension_numbers<[1], [0], [0], [1], [0, 0, 1, 1], [], []>} : vector<8x128xbf16>, vector<128x512xbf16>, vector<8x512xf32> -> vector<8x512xf32>
    %7 = arith.index_cast %c0_i32_1 : i32 to index
    %c0_5 = arith.constant 0 : index
    %c0_6 = arith.constant 0 : index
    %8 = vector.load %arg1[%7, %c0_5, %c0_6] : memref<16x8x512xf32, #tpu.memory_space<vmem>>, vector<1x8x512xf32>
    %9 = vector.shape_cast %8 : vector<1x8x512xf32> to vector<8x512xf32>
    %10 = arith.addf %6, %9 : vector<8x512xf32>
    %11 = vector.extract_strided_slice %10 {offsets = [0, 0], sizes = [8, 128], strides = [1, 1]} : vector<8x512xf32> to vector<8x128xf32>
    %12 = arith.negf %11 : vector<8x128xf32>
    %13 = math.exp %12 : vector<8x128xf32>
    %cst_7 = arith.constant 1.000000e+00 : f32
    %14 = vector.broadcast %cst_7 : f32 to vector<8x128xf32>
    %15 = arith.addf %14, %13 : vector<8x128xf32>
    %16 = arith.divf %14, %15 : vector<8x128xf32>
    %17 = vector.extract_strided_slice %10 {offsets = [0, 128], sizes = [8, 128], strides = [1, 1]} : vector<8x512xf32> to vector<8x128xf32>
    %18 = arith.negf %17 : vector<8x128xf32>
    %19 = math.exp %18 : vector<8x128xf32>
    %cst_8 = arith.constant 1.000000e+00 : f32
    %20 = vector.broadcast %cst_8 : f32 to vector<8x128xf32>
    %21 = arith.addf %20, %19 : vector<8x128xf32>
    %22 = arith.divf %20, %21 : vector<8x128xf32>
    %23 = vector.extract_strided_slice %10 {offsets = [0, 256], sizes = [8, 128], strides = [1, 1]} : vector<8x512xf32> to vector<8x128xf32>
    %24 = math.tanh %23 : vector<8x128xf32>
    %25 = vector.extract_strided_slice %10 {offsets = [0, 384], sizes = [8, 128], strides = [1, 1]} : vector<8x512xf32> to vector<8x128xf32>
    %26 = arith.negf %25 : vector<8x128xf32>
    %27 = math.exp %26 : vector<8x128xf32>
    %cst_9 = arith.constant 1.000000e+00 : f32
    %28 = vector.broadcast %cst_9 : f32 to vector<8x128xf32>
    %29 = arith.addf %28, %27 : vector<8x128xf32>
    %30 = arith.divf %28, %29 : vector<8x128xf32>
    %c0_10 = arith.constant 0 : index
    %c0_11 = arith.constant 0 : index
    %31 = vector.load %arg8[%c0_10, %c0_11] : memref<8x128xf32, #tpu.memory_space<vmem>>, vector<8x128xf32>
    %32 = arith.mulf %22, %31 : vector<8x128xf32>
    %33 = arith.mulf %16, %24 : vector<8x128xf32>
    %34 = arith.addf %32, %33 : vector<8x128xf32>
    %35 = math.tanh %34 : vector<8x128xf32>
    %36 = arith.mulf %30, %35 : vector<8x128xf32>
    %c0_12 = arith.constant 0 : index
    %c0_13 = arith.constant 0 : index
    %37 = vector.load %arg8[%c0_12, %c0_13] : memref<8x128xf32, #tpu.memory_space<vmem>>, vector<8x128xf32>
    tpu.vector_store %arg8[%c0_12, %c0_13], %34 {strides = array<i32>} : memref<8x128xf32, #tpu.memory_space<vmem>>, vector<8x128xf32>,
    %c0_14 = arith.constant 0 : index
    %c0_15 = arith.constant 0 : index
    %38 = vector.load %arg7[%c0_14, %c0_15] : memref<8x128xf32, #tpu.memory_space<vmem>>, vector<8x128xf32>
    tpu.vector_store %arg7[%c0_14, %c0_15], %36 {strides = array<i32>} : memref<8x128xf32, #tpu.memory_space<vmem>>, vector<8x128xf32>,
    %39 = arith.index_cast %c0_i32_1 : i32 to index
    %c0_16 = arith.constant 0 : index
    %c0_17 = arith.constant 0 : index
    %40 = vector.load %arg5[%39, %c0_16, %c0_17] : memref<16x8x128xf32, #tpu.memory_space<vmem>>, vector<1x8x128xf32>
    %41 = vector.shape_cast %40 : vector<1x8x128xf32> to vector<8x128xf32>
    %42 = vector.shape_cast %36 : vector<8x128xf32> to vector<1x8x128xf32>
    tpu.vector_store %arg5[%39, %c0_16, %c0_17], %42 {strides = array<i32>} : memref<16x8x128xf32, #tpu.memory_space<vmem>>, vector<1x8x128xf32>,
    %c1_i32 = arith.constant 1 : i32
    %c0_18 = arith.constant 0 : index
    %c0_19 = arith.constant 0 : index
    %43 = vector.load %arg7[%c0_18, %c0_19] : memref<8x128xf32, #tpu.memory_space<vmem>>, vector<8x128xf32>
    %44 = arith.truncf %43 : vector<8x128xf32> to vector<8x128xbf16>
    %c0_20 = arith.constant 0 : index
    %c0_21 = arith.constant 0 : index
    %45 = vector.load %arg2[%c0_20, %c0_21] : memref<128x512xbf16, #tpu.memory_space<vmem>>, vector<128x512xbf16>
    %cst_22 = arith.constant dense<0.000000e+00> : vector<8x512xf32>
    %46 = tpu.matmul %44, %45, %cst_22 {dimension_numbers = #tpu.dot_dimension_numbers<[1], [0], [0], [1], [0, 0, 1, 1], [], []>} : vector<8x128xbf16>, vector<128x512xbf16>, vector<8x512xf32> -> vector<8x512xf32>
    %47 = arith.index_cast %c1_i32 : i32 to index
    %c0_23 = arith.constant 0 : index
    %c0_24 = arith.constant 0 : index
    %48 = vector.load %arg1[%47, %c0_23, %c0_24] : memref<16x8x512xf32, #tpu.memory_space<vmem>>, vector<1x8x512xf32>
    %49 = vector.shape_cast %48 : vector<1x8x512xf32> to vector<8x512xf32>
    %50 = arith.addf %46, %49 : vector<8x512xf32>
    %51 = vector.extract_strided_slice %50 {offsets = [0, 0], sizes = [8, 128], strides = [1, 1]} : vector<8x512xf32> to vector<8x128xf32>
    %52 = arith.negf %51 : vector<8x128xf32>
    %53 = math.exp %52 : vector<8x128xf32>
    %cst_25 = arith.constant 1.000000e+00 : f32
    %54 = vector.broadcast %cst_25 : f32 to vector<8x128xf32>
    %55 = arith.addf %54, %53 : vector<8x128xf32>
    %56 = arith.divf %54, %55 : vector<8x128xf32>
    %57 = vector.extract_strided_slice %50 {offsets = [0, 128], sizes = [8, 128], strides = [1, 1]} : vector<8x512xf32> to vector<8x128xf32>
    %58 = arith.negf %57 : vector<8x128xf32>
    %59 = math.exp %58 : vector<8x128xf32>
    %cst_26 = arith.constant 1.000000e+00 : f32
    %60 = vector.broadcast %cst_26 : f32 to vector<8x128xf32>
    %61 = arith.addf %60, %59 : vector<8x128xf32>
    %62 = arith.divf %60, %61 : vector<8x128xf32>
    %63 = vector.extract_strided_slice %50 {offsets = [0, 256], sizes = [8, 128], strides = [1, 1]} : vector<8x512xf32> to vector<8x128xf32>
    %64 = math.tanh %63 : vector<8x128xf32>
    %65 = vector.extract_strided_slice %50 {offsets = [0, 384], sizes = [8, 128], strides = [1, 1]} : vector<8x512xf32> to vector<8x128xf32>
    %66 = arith.negf %65 : vector<8x128xf32>
    %67 = math.exp %66 : vector<8x128xf32>
    %cst_27 = arith.constant 1.000000e+00 : f32
    %68 = vector.broadcast %cst_27 : f32 to vector<8x128xf32>
    %69 = arith.addf %68, %67 : vector<8x128xf32>
    %70 = arith.divf %68, %69 : vector<8x128xf32>
    %c0_28 = arith.constant 0 : index
    %c0_29 = arith.constant 0 : index
    %71 = vector.load %arg8[%c0_28, %c0_29] : memref<8x128xf32, #tpu.memory_space<vmem>>, vector<8x128xf32>
    %72 = arith.mulf %62, %71 : vector<8x128xf32>
    %73 = arith.mulf %56, %64 : vector<8x128xf32>
    %74 = arith.addf %72, %73 : vector<8x128xf32>
    %75 = math.tanh %74 : vector<8x128xf32>
    %76 = arith.mulf %70, %75 : vector<8x128xf32>
    %c0_30 = arith.constant 0 : index
    %c0_31 = arith.constant 0 : index
    %77 = vector.load %arg8[%c0_30, %c0_31] : memref<8x128xf32, #tpu.memory_space<vmem>>, vector<8x128xf32>
    tpu.vector_store %arg8[%c0_30, %c0_31], %74 {strides = array<i32>} : memref<8x128xf32, #tpu.memory_space<vmem>>, vector<8x128xf32>,
    %c0_32 = arith.constant 0 : index
    %c0_33 = arith.constant 0 : index
    %78 = vector.load %arg7[%c0_32, %c0_33] : memref<8x128xf32, #tpu.memory_space<vmem>>, vector<8x128xf32>
    tpu.vector_store %arg7[%c0_32, %c0_33], %76 {strides = array<i32>} : memref<8x128xf32, #tpu.memory_space<vmem>>, vector<8x128xf32>,
    %79 = arith.index_cast %c1_i32 : i32 to index
    %c0_34 = arith.constant 0 : index
    %c0_35 = arith.constant 0 : index
    %80 = vector.load %arg5[%79, %c0_34, %c0_35] : memref<16x8x128xf32, #tpu.memory_space<vmem>>, vector<1x8x128xf32>
    %81 = vector.shape_cast %80 : vector<1x8x128xf32> to vector<8x128xf32>
    %82 = vector.shape_cast %76 : vector<8x128xf32> to vector<1x8x128xf32>
    tpu.vector_store %arg5[%79, %c0_34, %c0_35], %82 {strides = array<i32>} : memref<16x8x128xf32, #tpu.memory_space<vmem>>, vector<1x8x128xf32>,
    %c2_i32 = arith.constant 2 : i32
    %c0_36 = arith.constant 0 : index
    %c0_37 = arith.constant 0 : index
    %83 = vector.load %arg7[%c0_36, %c0_37] : memref<8x128xf32, #tpu.memory_space<vmem>>, vector<8x128xf32>
    %84 = arith.truncf %83 : vector<8x128xf32> to vector<8x128xbf16>
    %c0_38 = arith.constant 0 : index
    %c0_39 = arith.constant 0 : index
    %85 = vector.load %arg2[%c0_38, %c0_39] : memref<128x512xbf16, #tpu.memory_space<vmem>>, vector<128x512xbf16>
    %cst_40 = arith.constant dense<0.000000e+00> : vector<8x512xf32>
    %86 = tpu.matmul %84, %85, %cst_40 {dimension_numbers = #tpu.dot_dimension_numbers<[1], [0], [0], [1], [0, 0, 1, 1], [], []>} : vector<8x128xbf16>, vector<128x512xbf16>, vector<8x512xf32> -> vector<8x512xf32>
    %87 = arith.index_cast %c2_i32 : i32 to index
    %c0_41 = arith.constant 0 : index
    %c0_42 = arith.constant 0 : index
    %88 = vector.load %arg1[%87, %c0_41, %c0_42] : memref<16x8x512xf32, #tpu.memory_space<vmem>>, vector<1x8x512xf32>
    %89 = vector.shape_cast %88 : vector<1x8x512xf32> to vector<8x512xf32>
    %90 = arith.addf %86, %89 : vector<8x512xf32>
    %91 = vector.extract_strided_slice %90 {offsets = [0, 0], sizes = [8, 128], strides = [1, 1]} : vector<8x512xf32> to vector<8x128xf32>
    %92 = arith.negf %91 : vector<8x128xf32>
    %93 = math.exp %92 : vector<8x128xf32>
    %cst_43 = arith.constant 1.000000e+00 : f32
    %94 = vector.broadcast %cst_43 : f32 to vector<8x128xf32>
    %95 = arith.addf %94, %93 : vector<8x128xf32>
    %96 = arith.divf %94, %95 : vector<8x128xf32>
    %97 = vector.extract_strided_slice %90 {offsets = [0, 128], sizes = [8, 128], strides = [1, 1]} : vector<8x512xf32> to vector<8x128xf32>
    %98 = arith.negf %97 : vector<8x128xf32>
    %99 = math.exp %98 : vector<8x128xf32>
    %cst_44 = arith.constant 1.000000e+00 : f32
    %100 = vector.broadcast %cst_44 : f32 to vector<8x128xf32>
    %101 = arith.addf %100, %99 : vector<8x128xf32>
    %102 = arith.divf %100, %101 : vector<8x128xf32>
    %103 = vector.extract_strided_slice %90 {offsets = [0, 256], sizes = [8, 128], strides = [1, 1]} : vector<8x512xf32> to vector<8x128xf32>
    %104 = math.tanh %103 : vector<8x128xf32>
    %105 = vector.extract_strided_slice %90 {offsets = [0, 384], sizes = [8, 128], strides = [1, 1]} : vector<8x512xf32> to vector<8x128xf32>
    %106 = arith.negf %105 : vector<8x128xf32>
    %107 = math.exp %106 : vector<8x128xf32>
    %cst_45 = arith.constant 1.000000e+00 : f32
    %108 = vector.broadcast %cst_45 : f32 to vector<8x128xf32>
    %109 = arith.addf %108, %107 : vector<8x128xf32>
    %110 = arith.divf %108, %109 : vector<8x128xf32>
    %c0_46 = arith.constant 0 : index
    %c0_47 = arith.constant 0 : index
    %111 = vector.load %arg8[%c0_46, %c0_47] : memref<8x128xf32, #tpu.memory_space<vmem>>, vector<8x128xf32>
    %112 = arith.mulf %102, %111 : vector<8x128xf32>
    %113 = arith.mulf %96, %104 : vector<8x128xf32>
    %114 = arith.addf %112, %113 : vector<8x128xf32>
    %115 = math.tanh %114 : vector<8x128xf32>
    %116 = arith.mulf %110, %115 : vector<8x128xf32>
    %c0_48 = arith.constant 0 : index
    %c0_49 = arith.constant 0 : index
    %117 = vector.load %arg8[%c0_48, %c0_49] : memref<8x128xf32, #tpu.memory_space<vmem>>, vector<8x128xf32>
    tpu.vector_store %arg8[%c0_48, %c0_49], %114 {strides = array<i32>} : memref<8x128xf32, #tpu.memory_space<vmem>>, vector<8x128xf32>,
    %c0_50 = arith.constant 0 : index
    %c0_51 = arith.constant 0 : index
    %118 = vector.load %arg7[%c0_50, %c0_51] : memref<8x128xf32, #tpu.memory_space<vmem>>, vector<8x128xf32>
    tpu.vector_store %arg7[%c0_50, %c0_51], %116 {strides = array<i32>} : memref<8x128xf32, #tpu.memory_space<vmem>>, vector<8x128xf32>,
    %119 = arith.index_cast %c2_i32 : i32 to index
    %c0_52 = arith.constant 0 : index
    %c0_53 = arith.constant 0 : index
    %120 = vector.load %arg5[%119, %c0_52, %c0_53] : memref<16x8x128xf32, #tpu.memory_space<vmem>>, vector<1x8x128xf32>
    %121 = vector.shape_cast %120 : vector<1x8x128xf32> to vector<8x128xf32>
    %122 = vector.shape_cast %116 : vector<8x128xf32> to vector<1x8x128xf32>
    tpu.vector_store %arg5[%119, %c0_52, %c0_53], %122 {strides = array<i32>} : memref<16x8x128xf32, #tpu.memory_space<vmem>>, vector<1x8x128xf32>,
    %c3_i32 = arith.constant 3 : i32
    %c0_54 = arith.constant 0 : index
    %c0_55 = arith.constant 0 : index
    %123 = vector.load %arg7[%c0_54, %c0_55] : memref<8x128xf32, #tpu.memory_space<vmem>>, vector<8x128xf32>
    %124 = arith.truncf %123 : vector<8x128xf32> to vector<8x128xbf16>
    %c0_56 = arith.constant 0 : index
    %c0_57 = arith.constant 0 : index
    %125 = vector.load %arg2[%c0_56, %c0_57] : memref<128x512xbf16, #tpu.memory_space<vmem>>, vector<128x512xbf16>
    %cst_58 = arith.constant dense<0.000000e+00> : vector<8x512xf32>
    %126 = tpu.matmul %124, %125, %cst_58 {dimension_numbers = #tpu.dot_dimension_numbers<[1], [0], [0], [1], [0, 0, 1, 1], [], []>} : vector<8x128xbf16>, vector<128x512xbf16>, vector<8x512xf32> -> vector<8x512xf32>
    %127 = arith.index_cast %c3_i32 : i32 to index
    %c0_59 = arith.constant 0 : index
    %c0_60 = arith.constant 0 : index
    %128 = vector.load %arg1[%127, %c0_59, %c0_60] : memref<16x8x512xf32, #tpu.memory_space<vmem>>, vector<1x8x512xf32>
    %129 = vector.shape_cast %128 : vector<1x8x512xf32> to vector<8x512xf32>
    %130 = arith.addf %126, %129 : vector<8x512xf32>
    %131 = vector.extract_strided_slice %130 {offsets = [0, 0], sizes = [8, 128], strides = [1, 1]} : vector<8x512xf32> to vector<8x128xf32>
    %132 = arith.negf %131 : vector<8x128xf32>
    %133 = math.exp %132 : vector<8x128xf32>
    %cst_61 = arith.constant 1.000000e+00 : f32
    %134 = vector.broadcast %cst_61 : f32 to vector<8x128xf32>
    %135 = arith.addf %134, %133 : vector<8x128xf32>
    %136 = arith.divf %134, %135 : vector<8x128xf32>
    %137 = vector.extract_strided_slice %130 {offsets = [0, 128], sizes = [8, 128], strides = [1, 1]} : vector<8x512xf32> to vector<8x128xf32>
    %138 = arith.negf %137 : vector<8x128xf32>
    %139 = math.exp %138 : vector<8x128xf32>
    %cst_62 = arith.constant 1.000000e+00 : f32
    %140 = vector.broadcast %cst_62 : f32 to vector<8x128xf32>
    %141 = arith.addf %140, %139 : vector<8x128xf32>
    %142 = arith.divf %140, %141 : vector<8x128xf32>
    %143 = vector.extract_strided_slice %130 {offsets = [0, 256], sizes = [8, 128], strides = [1, 1]} : vector<8x512xf32> to vector<8x128xf32>
    %144 = math.tanh %143 : vector<8x128xf32>
    %145 = vector.extract_strided_slice %130 {offsets = [0, 384], sizes = [8, 128], strides = [1, 1]} : vector<8x512xf32> to vector<8x128xf32>
    %146 = arith.negf %145 : vector<8x128xf32>
    %147 = math.exp %146 : vector<8x128xf32>
    %cst_63 = arith.constant 1.000000e+00 : f32
    %148 = vector.broadcast %cst_63 : f32 to vector<8x128xf32>
    %149 = arith.addf %148, %147 : vector<8x128xf32>
    %150 = arith.divf %148, %149 : vector<8x128xf32>
    %c0_64 = arith.constant 0 : index
    %c0_65 = arith.constant 0 : index
    %151 = vector.load %arg8[%c0_64, %c0_65] : memref<8x128xf32, #tpu.memory_space<vmem>>, vector<8x128xf32>
    %152 = arith.mulf %142, %151 : vector<8x128xf32>
    %153 = arith.mulf %136, %144 : vector<8x128xf32>
    %154 = arith.addf %152, %153 : vector<8x128xf32>
    %155 = math.tanh %154 : vector<8x128xf32>
    %156 = arith.mulf %150, %155 : vector<8x128xf32>
    %c0_66 = arith.constant 0 : index
    %c0_67 = arith.constant 0 : index
    %157 = vector.load %arg8[%c0_66, %c0_67] : memref<8x128xf32, #tpu.memory_space<vmem>>, vector<8x128xf32>
    tpu.vector_store %arg8[%c0_66, %c0_67], %154 {strides = array<i32>} : memref<8x128xf32, #tpu.memory_space<vmem>>, vector<8x128xf32>,
    %c0_68 = arith.constant 0 : index
    %c0_69 = arith.constant 0 : index
    %158 = vector.load %arg7[%c0_68, %c0_69] : memref<8x128xf32, #tpu.memory_space<vmem>>, vector<8x128xf32>
    tpu.vector_store %arg7[%c0_68, %c0_69], %156 {strides = array<i32>} : memref<8x128xf32, #tpu.memory_space<vmem>>, vector<8x128xf32>,
    %159 = arith.index_cast %c3_i32 : i32 to index
    %c0_70 = arith.constant 0 : index
    %c0_71 = arith.constant 0 : index
    %160 = vector.load %arg5[%159, %c0_70, %c0_71] : memref<16x8x128xf32, #tpu.memory_space<vmem>>, vector<1x8x128xf32>
    %161 = vector.shape_cast %160 : vector<1x8x128xf32> to vector<8x128xf32>
    %162 = vector.shape_cast %156 : vector<8x128xf32> to vector<1x8x128xf32>
    tpu.vector_store %arg5[%159, %c0_70, %c0_71], %162 {strides = array<i32>} : memref<16x8x128xf32, #tpu.memory_space<vmem>>, vector<1x8x128xf32>,
    %c4_i32 = arith.constant 4 : i32
    %c0_72 = arith.constant 0 : index
    %c0_73 = arith.constant 0 : index
    %163 = vector.load %arg7[%c0_72, %c0_73] : memref<8x128xf32, #tpu.memory_space<vmem>>, vector<8x128xf32>
    %164 = arith.truncf %163 : vector<8x128xf32> to vector<8x128xbf16>
    %c0_74 = arith.constant 0 : index
    %c0_75 = arith.constant 0 : index
    %165 = vector.load %arg2[%c0_74, %c0_75] : memref<128x512xbf16, #tpu.memory_space<vmem>>, vector<128x512xbf16>
    %cst_76 = arith.constant dense<0.000000e+00> : vector<8x512xf32>
    %166 = tpu.matmul %164, %165, %cst_76 {dimension_numbers = #tpu.dot_dimension_numbers<[1], [0], [0], [1], [0, 0, 1, 1], [], []>} : vector<8x128xbf16>, vector<128x512xbf16>, vector<8x512xf32> -> vector<8x512xf32>
    %167 = arith.index_cast %c4_i32 : i32 to index
    %c0_77 = arith.constant 0 : index
    %c0_78 = arith.constant 0 : index
    %168 = vector.load %arg1[%167, %c0_77, %c0_78] : memref<16x8x512xf32, #tpu.memory_space<vmem>>, vector<1x8x512xf32>
    %169 = vector.shape_cast %168 : vector<1x8x512xf32> to vector<8x512xf32>
    %170 = arith.addf %166, %169 : vector<8x512xf32>
    %171 = vector.extract_strided_slice %170 {offsets = [0, 0], sizes = [8, 128], strides = [1, 1]} : vector<8x512xf32> to vector<8x128xf32>
    %172 = arith.negf %171 : vector<8x128xf32>
    %173 = math.exp %172 : vector<8x128xf32>
    %cst_79 = arith.constant 1.000000e+00 : f32
    %174 = vector.broadcast %cst_79 : f32 to vector<8x128xf32>
    %175 = arith.addf %174, %173 : vector<8x128xf32>
    %176 = arith.divf %174, %175 : vector<8x128xf32>
    %177 = vector.extract_strided_slice %170 {offsets = [0, 128], sizes = [8, 128], strides = [1, 1]} : vector<8x512xf32> to vector<8x128xf32>
    %178 = arith.negf %177 : vector<8x128xf32>
    %179 = math.exp %178 : vector<8x128xf32>
    %cst_80 = arith.constant 1.000000e+00 : f32
    %180 = vector.broadcast %cst_80 : f32 to vector<8x128xf32>
    %181 = arith.addf %180, %179 : vector<8x128xf32>
    %182 = arith.divf %180, %181 : vector<8x128xf32>
    %183 = vector.extract_strided_slice %170 {offsets = [0, 256], sizes = [8, 128], strides = [1, 1]} : vector<8x512xf32> to vector<8x128xf32>
    %184 = math.tanh %183 : vector<8x128xf32>
    %185 = vector.extract_strided_slice %170 {offsets = [0, 384], sizes = [8, 128], strides = [1, 1]} : vector<8x512xf32> to vector<8x128xf32>
    %186 = arith.negf %185 : vector<8x128xf32>
    %187 = math.exp %186 : vector<8x128xf32>
    %cst_81 = arith.constant 1.000000e+00 : f32
    %188 = vector.broadcast %cst_81 : f32 to vector<8x128xf32>
    %189 = arith.addf %188, %187 : vector<8x128xf32>
    %190 = arith.divf %188, %189 : vector<8x128xf32>
    %c0_82 = arith.constant 0 : index
    %c0_83 = arith.constant 0 : index
    %191 = vector.load %arg8[%c0_82, %c0_83] : memref<8x128xf32, #tpu.memory_space<vmem>>, vector<8x128xf32>
    %192 = arith.mulf %182, %191 : vector<8x128xf32>
    %193 = arith.mulf %176, %184 : vector<8x128xf32>
    %194 = arith.addf %192, %193 : vector<8x128xf32>
    %195 = math.tanh %194 : vector<8x128xf32>
    %196 = arith.mulf %190, %195 : vector<8x128xf32>
    %c0_84 = arith.constant 0 : index
    %c0_85 = arith.constant 0 : index
    %197 = vector.load %arg8[%c0_84, %c0_85] : memref<8x128xf32, #tpu.memory_space<vmem>>, vector<8x128xf32>
    tpu.vector_store %arg8[%c0_84, %c0_85], %194 {strides = array<i32>} : memref<8x128xf32, #tpu.memory_space<vmem>>, vector<8x128xf32>,
    %c0_86 = arith.constant 0 : index
    %c0_87 = arith.constant 0 : index
    %198 = vector.load %arg7[%c0_86, %c0_87] : memref<8x128xf32, #tpu.memory_space<vmem>>, vector<8x128xf32>
    tpu.vector_store %arg7[%c0_86, %c0_87], %196 {strides = array<i32>} : memref<8x128xf32, #tpu.memory_space<vmem>>, vector<8x128xf32>,
    %199 = arith.index_cast %c4_i32 : i32 to index
    %c0_88 = arith.constant 0 : index
    %c0_89 = arith.constant 0 : index
    %200 = vector.load %arg5[%199, %c0_88, %c0_89] : memref<16x8x128xf32, #tpu.memory_space<vmem>>, vector<1x8x128xf32>
    %201 = vector.shape_cast %200 : vector<1x8x128xf32> to vector<8x128xf32>
    %202 = vector.shape_cast %196 : vector<8x128xf32> to vector<1x8x128xf32>
    tpu.vector_store %arg5[%199, %c0_88, %c0_89], %202 {strides = array<i32>} : memref<16x8x128xf32, #tpu.memory_space<vmem>>, vector<1x8x128xf32>,
    %c5_i32 = arith.constant 5 : i32
    %c0_90 = arith.constant 0 : index
    %c0_91 = arith.constant 0 : index
    %203 = vector.load %arg7[%c0_90, %c0_91] : memref<8x128xf32, #tpu.memory_space<vmem>>, vector<8x128xf32>
    %204 = arith.truncf %203 : vector<8x128xf32> to vector<8x128xbf16>
    %c0_92 = arith.constant 0 : index
    %c0_93 = arith.constant 0 : index
    %205 = vector.load %arg2[%c0_92, %c0_93] : memref<128x512xbf16, #tpu.memory_space<vmem>>, vector<128x512xbf16>
    %cst_94 = arith.constant dense<0.000000e+00> : vector<8x512xf32>
    %206 = tpu.matmul %204, %205, %cst_94 {dimension_numbers = #tpu.dot_dimension_numbers<[1], [0], [0], [1], [0, 0, 1, 1], [], []>} : vector<8x128xbf16>, vector<128x512xbf16>, vector<8x512xf32> -> vector<8x512xf32>
    %207 = arith.index_cast %c5_i32 : i32 to index
    %c0_95 = arith.constant 0 : index
    %c0_96 = arith.constant 0 : index
    %208 = vector.load %arg1[%207, %c0_95, %c0_96] : memref<16x8x512xf32, #tpu.memory_space<vmem>>, vector<1x8x512xf32>
    %209 = vector.shape_cast %208 : vector<1x8x512xf32> to vector<8x512xf32>
    %210 = arith.addf %206, %209 : vector<8x512xf32>
    %211 = vector.extract_strided_slice %210 {offsets = [0, 0], sizes = [8, 128], strides = [1, 1]} : vector<8x512xf32> to vector<8x128xf32>
    %212 = arith.negf %211 : vector<8x128xf32>
    %213 = math.exp %212 : vector<8x128xf32>
    %cst_97 = arith.constant 1.000000e+00 : f32
    %214 = vector.broadcast %cst_97 : f32 to vector<8x128xf32>
    %215 = arith.addf %214, %213 : vector<8x128xf32>
    %216 = arith.divf %214, %215 : vector<8x128xf32>
    %217 = vector.extract_strided_slice %210 {offsets = [0, 128], sizes = [8, 128], strides = [1, 1]} : vector<8x512xf32> to vector<8x128xf32>
    %218 = arith.negf %217 : vector<8x128xf32>
    %219 = math.exp %218 : vector<8x128xf32>
    %cst_98 = arith.constant 1.000000e+00 : f32
    %220 = vector.broadcast %cst_98 : f32 to vector<8x128xf32>
    %221 = arith.addf %220, %219 : vector<8x128xf32>
    %222 = arith.divf %220, %221 : vector<8x128xf32>
    %223 = vector.extract_strided_slice %210 {offsets = [0, 256], sizes = [8, 128], strides = [1, 1]} : vector<8x512xf32> to vector<8x128xf32>
    %224 = math.tanh %223 : vector<8x128xf32>
    %225 = vector.extract_strided_slice %210 {offsets = [0, 384], sizes = [8, 128], strides = [1, 1]} : vector<8x512xf32> to vector<8x128xf32>
    %226 = arith.negf %225 : vector<8x128xf32>
    %227 = math.exp %226 : vector<8x128xf32>
    %cst_99 = arith.constant 1.000000e+00 : f32
    %228 = vector.broadcast %cst_99 : f32 to vector<8x128xf32>
    %229 = arith.addf %228, %227 : vector<8x128xf32>
    %230 = arith.divf %228, %229 : vector<8x128xf32>
    %c0_100 = arith.constant 0 : index
    %c0_101 = arith.constant 0 : index
    %231 = vector.load %arg8[%c0_100, %c0_101] : memref<8x128xf32, #tpu.memory_space<vmem>>, vector<8x128xf32>
    %232 = arith.mulf %222, %231 : vector<8x128xf32>
    %233 = arith.mulf %216, %224 : vector<8x128xf32>
    %234 = arith.addf %232, %233 : vector<8x128xf32>
    %235 = math.tanh %234 : vector<8x128xf32>
    %236 = arith.mulf %230, %235 : vector<8x128xf32>
    %c0_102 = arith.constant 0 : index
    %c0_103 = arith.constant 0 : index
    %237 = vector.load %arg8[%c0_102, %c0_103] : memref<8x128xf32, #tpu.memory_space<vmem>>, vector<8x128xf32>
    tpu.vector_store %arg8[%c0_102, %c0_103], %234 {strides = array<i32>} : memref<8x128xf32, #tpu.memory_space<vmem>>, vector<8x128xf32>,
    %c0_104 = arith.constant 0 : index
    %c0_105 = arith.constant 0 : index
    %238 = vector.load %arg7[%c0_104, %c0_105] : memref<8x128xf32, #tpu.memory_space<vmem>>, vector<8x128xf32>
    tpu.vector_store %arg7[%c0_104, %c0_105], %236 {strides = array<i32>} : memref<8x128xf32, #tpu.memory_space<vmem>>, vector<8x128xf32>,
    %239 = arith.index_cast %c5_i32 : i32 to index
    %c0_106 = arith.constant 0 : index
    %c0_107 = arith.constant 0 : index
    %240 = vector.load %arg5[%239, %c0_106, %c0_107] : memref<16x8x128xf32, #tpu.memory_space<vmem>>, vector<1x8x128xf32>
    %241 = vector.shape_cast %240 : vector<1x8x128xf32> to vector<8x128xf32>
    %242 = vector.shape_cast %236 : vector<8x128xf32> to vector<1x8x128xf32>
    tpu.vector_store %arg5[%239, %c0_106, %c0_107], %242 {strides = array<i32>} : memref<16x8x128xf32, #tpu.memory_space<vmem>>, vector<1x8x128xf32>,
    %c6_i32 = arith.constant 6 : i32
    %c0_108 = arith.constant 0 : index
    %c0_109 = arith.constant 0 : index
    %243 = vector.load %arg7[%c0_108, %c0_109] : memref<8x128xf32, #tpu.memory_space<vmem>>, vector<8x128xf32>
    %244 = arith.truncf %243 : vector<8x128xf32> to vector<8x128xbf16>
    %c0_110 = arith.constant 0 : index
    %c0_111 = arith.constant 0 : index
    %245 = vector.load %arg2[%c0_110, %c0_111] : memref<128x512xbf16, #tpu.memory_space<vmem>>, vector<128x512xbf16>
    %cst_112 = arith.constant dense<0.000000e+00> : vector<8x512xf32>
    %246 = tpu.matmul %244, %245, %cst_112 {dimension_numbers = #tpu.dot_dimension_numbers<[1], [0], [0], [1], [0, 0, 1, 1], [], []>} : vector<8x128xbf16>, vector<128x512xbf16>, vector<8x512xf32> -> vector<8x512xf32>
    %247 = arith.index_cast %c6_i32 : i32 to index
    %c0_113 = arith.constant 0 : index
    %c0_114 = arith.constant 0 : index
    %248 = vector.load %arg1[%247, %c0_113, %c0_114] : memref<16x8x512xf32, #tpu.memory_space<vmem>>, vector<1x8x512xf32>
    %249 = vector.shape_cast %248 : vector<1x8x512xf32> to vector<8x512xf32>
    %250 = arith.addf %246, %249 : vector<8x512xf32>
    %251 = vector.extract_strided_slice %250 {offsets = [0, 0], sizes = [8, 128], strides = [1, 1]} : vector<8x512xf32> to vector<8x128xf32>
    %252 = arith.negf %251 : vector<8x128xf32>
    %253 = math.exp %252 : vector<8x128xf32>
    %cst_115 = arith.constant 1.000000e+00 : f32
    %254 = vector.broadcast %cst_115 : f32 to vector<8x128xf32>
    %255 = arith.addf %254, %253 : vector<8x128xf32>
    %256 = arith.divf %254, %255 : vector<8x128xf32>
    %257 = vector.extract_strided_slice %250 {offsets = [0, 128], sizes = [8, 128], strides = [1, 1]} : vector<8x512xf32> to vector<8x128xf32>
    %258 = arith.negf %257 : vector<8x128xf32>
    %259 = math.exp %258 : vector<8x128xf32>
    %cst_116 = arith.constant 1.000000e+00 : f32
    %260 = vector.broadcast %cst_116 : f32 to vector<8x128xf32>
    %261 = arith.addf %260, %259 : vector<8x128xf32>
    %262 = arith.divf %260, %261 : vector<8x128xf32>
    %263 = vector.extract_strided_slice %250 {offsets = [0, 256], sizes = [8, 128], strides = [1, 1]} : vector<8x512xf32> to vector<8x128xf32>
    %264 = math.tanh %263 : vector<8x128xf32>
    %265 = vector.extract_strided_slice %250 {offsets = [0, 384], sizes = [8, 128], strides = [1, 1]} : vector<8x512xf32> to vector<8x128xf32>
    %266 = arith.negf %265 : vector<8x128xf32>
    %267 = math.exp %266 : vector<8x128xf32>
    %cst_117 = arith.constant 1.000000e+00 : f32
    %268 = vector.broadcast %cst_117 : f32 to vector<8x128xf32>
    %269 = arith.addf %268, %267 : vector<8x128xf32>
    %270 = arith.divf %268, %269 : vector<8x128xf32>
    %c0_118 = arith.constant 0 : index
    %c0_119 = arith.constant 0 : index
    %271 = vector.load %arg8[%c0_118, %c0_119] : memref<8x128xf32, #tpu.memory_space<vmem>>, vector<8x128xf32>
    %272 = arith.mulf %262, %271 : vector<8x128xf32>
    %273 = arith.mulf %256, %264 : vector<8x128xf32>
    %274 = arith.addf %272, %273 : vector<8x128xf32>
    %275 = math.tanh %274 : vector<8x128xf32>
    %276 = arith.mulf %270, %275 : vector<8x128xf32>
    %c0_120 = arith.constant 0 : index
    %c0_121 = arith.constant 0 : index
    %277 = vector.load %arg8[%c0_120, %c0_121] : memref<8x128xf32, #tpu.memory_space<vmem>>, vector<8x128xf32>
    tpu.vector_store %arg8[%c0_120, %c0_121], %274 {strides = array<i32>} : memref<8x128xf32, #tpu.memory_space<vmem>>, vector<8x128xf32>,
    %c0_122 = arith.constant 0 : index
    %c0_123 = arith.constant 0 : index
    %278 = vector.load %arg7[%c0_122, %c0_123] : memref<8x128xf32, #tpu.memory_space<vmem>>, vector<8x128xf32>
    tpu.vector_store %arg7[%c0_122, %c0_123], %276 {strides = array<i32>} : memref<8x128xf32, #tpu.memory_space<vmem>>, vector<8x128xf32>,
    %279 = arith.index_cast %c6_i32 : i32 to index
    %c0_124 = arith.constant 0 : index
    %c0_125 = arith.constant 0 : index
    %280 = vector.load %arg5[%279, %c0_124, %c0_125] : memref<16x8x128xf32, #tpu.memory_space<vmem>>, vector<1x8x128xf32>
    %281 = vector.shape_cast %280 : vector<1x8x128xf32> to vector<8x128xf32>
    %282 = vector.shape_cast %276 : vector<8x128xf32> to vector<1x8x128xf32>
    tpu.vector_store %arg5[%279, %c0_124, %c0_125], %282 {strides = array<i32>} : memref<16x8x128xf32, #tpu.memory_space<vmem>>, vector<1x8x128xf32>,
    %c7_i32 = arith.constant 7 : i32
    %c0_126 = arith.constant 0 : index
    %c0_127 = arith.constant 0 : index
    %283 = vector.load %arg7[%c0_126, %c0_127] : memref<8x128xf32, #tpu.memory_space<vmem>>, vector<8x128xf32>
    %284 = arith.truncf %283 : vector<8x128xf32> to vector<8x128xbf16>
    %c0_128 = arith.constant 0 : index
    %c0_129 = arith.constant 0 : index
    %285 = vector.load %arg2[%c0_128, %c0_129] : memref<128x512xbf16, #tpu.memory_space<vmem>>, vector<128x512xbf16>
    %cst_130 = arith.constant dense<0.000000e+00> : vector<8x512xf32>
    %286 = tpu.matmul %284, %285, %cst_130 {dimension_numbers = #tpu.dot_dimension_numbers<[1], [0], [0], [1], [0, 0, 1, 1], [], []>} : vector<8x128xbf16>, vector<128x512xbf16>, vector<8x512xf32> -> vector<8x512xf32>
    %287 = arith.index_cast %c7_i32 : i32 to index
    %c0_131 = arith.constant 0 : index
    %c0_132 = arith.constant 0 : index
    %288 = vector.load %arg1[%287, %c0_131, %c0_132] : memref<16x8x512xf32, #tpu.memory_space<vmem>>, vector<1x8x512xf32>
    %289 = vector.shape_cast %288 : vector<1x8x512xf32> to vector<8x512xf32>
    %290 = arith.addf %286, %289 : vector<8x512xf32>
    %291 = vector.extract_strided_slice %290 {offsets = [0, 0], sizes = [8, 128], strides = [1, 1]} : vector<8x512xf32> to vector<8x128xf32>
    %292 = arith.negf %291 : vector<8x128xf32>
    %293 = math.exp %292 : vector<8x128xf32>
    %cst_133 = arith.constant 1.000000e+00 : f32
    %294 = vector.broadcast %cst_133 : f32 to vector<8x128xf32>
    %295 = arith.addf %294, %293 : vector<8x128xf32>
    %296 = arith.divf %294, %295 : vector<8x128xf32>
    %297 = vector.extract_strided_slice %290 {offsets = [0, 128], sizes = [8, 128], strides = [1, 1]} : vector<8x512xf32> to vector<8x128xf32>
    %298 = arith.negf %297 : vector<8x128xf32>
    %299 = math.exp %298 : vector<8x128xf32>
    %cst_134 = arith.constant 1.000000e+00 : f32
    %300 = vector.broadcast %cst_134 : f32 to vector<8x128xf32>
    %301 = arith.addf %300, %299 : vector<8x128xf32>
    %302 = arith.divf %300, %301 : vector<8x128xf32>
    %303 = vector.extract_strided_slice %290 {offsets = [0, 256], sizes = [8, 128], strides = [1, 1]} : vector<8x512xf32> to vector<8x128xf32>
    %304 = math.tanh %303 : vector<8x128xf32>
    %305 = vector.extract_strided_slice %290 {offsets = [0, 384], sizes = [8, 128], strides = [1, 1]} : vector<8x512xf32> to vector<8x128xf32>
    %306 = arith.negf %305 : vector<8x128xf32>
    %307 = math.exp %306 : vector<8x128xf32>
    %cst_135 = arith.constant 1.000000e+00 : f32
    %308 = vector.broadcast %cst_135 : f32 to vector<8x128xf32>
    %309 = arith.addf %308, %307 : vector<8x128xf32>
    %310 = arith.divf %308, %309 : vector<8x128xf32>
    %c0_136 = arith.constant 0 : index
    %c0_137 = arith.constant 0 : index
    %311 = vector.load %arg8[%c0_136, %c0_137] : memref<8x128xf32, #tpu.memory_space<vmem>>, vector<8x128xf32>
    %312 = arith.mulf %302, %311 : vector<8x128xf32>
    %313 = arith.mulf %296, %304 : vector<8x128xf32>
    %314 = arith.addf %312, %313 : vector<8x128xf32>
    %315 = math.tanh %314 : vector<8x128xf32>
    %316 = arith.mulf %310, %315 : vector<8x128xf32>
    %c0_138 = arith.constant 0 : index
    %c0_139 = arith.constant 0 : index
    %317 = vector.load %arg8[%c0_138, %c0_139] : memref<8x128xf32, #tpu.memory_space<vmem>>, vector<8x128xf32>
    tpu.vector_store %arg8[%c0_138, %c0_139], %314 {strides = array<i32>} : memref<8x128xf32, #tpu.memory_space<vmem>>, vector<8x128xf32>,
    %c0_140 = arith.constant 0 : index
    %c0_141 = arith.constant 0 : index
    %318 = vector.load %arg7[%c0_140, %c0_141] : memref<8x128xf32, #tpu.memory_space<vmem>>, vector<8x128xf32>
    tpu.vector_store %arg7[%c0_140, %c0_141], %316 {strides = array<i32>} : memref<8x128xf32, #tpu.memory_space<vmem>>, vector<8x128xf32>,
    %319 = arith.index_cast %c7_i32 : i32 to index
    %c0_142 = arith.constant 0 : index
    %c0_143 = arith.constant 0 : index
    %320 = vector.load %arg5[%319, %c0_142, %c0_143] : memref<16x8x128xf32, #tpu.memory_space<vmem>>, vector<1x8x128xf32>
    %321 = vector.shape_cast %320 : vector<1x8x128xf32> to vector<8x128xf32>
    %322 = vector.shape_cast %316 : vector<8x128xf32> to vector<1x8x128xf32>
    tpu.vector_store %arg5[%319, %c0_142, %c0_143], %322 {strides = array<i32>} : memref<16x8x128xf32, #tpu.memory_space<vmem>>, vector<1x8x128xf32>,
    %c8_i32 = arith.constant 8 : i32
    %c0_144 = arith.constant 0 : index
    %c0_145 = arith.constant 0 : index
    %323 = vector.load %arg7[%c0_144, %c0_145] : memref<8x128xf32, #tpu.memory_space<vmem>>, vector<8x128xf32>
    %324 = arith.truncf %323 : vector<8x128xf32> to vector<8x128xbf16>
    %c0_146 = arith.constant 0 : index
    %c0_147 = arith.constant 0 : index
    %325 = vector.load %arg2[%c0_146, %c0_147] : memref<128x512xbf16, #tpu.memory_space<vmem>>, vector<128x512xbf16>
    %cst_148 = arith.constant dense<0.000000e+00> : vector<8x512xf32>
    %326 = tpu.matmul %324, %325, %cst_148 {dimension_numbers = #tpu.dot_dimension_numbers<[1], [0], [0], [1], [0, 0, 1, 1], [], []>} : vector<8x128xbf16>, vector<128x512xbf16>, vector<8x512xf32> -> vector<8x512xf32>
    %327 = arith.index_cast %c8_i32 : i32 to index
    %c0_149 = arith.constant 0 : index
    %c0_150 = arith.constant 0 : index
    %328 = vector.load %arg1[%327, %c0_149, %c0_150] : memref<16x8x512xf32, #tpu.memory_space<vmem>>, vector<1x8x512xf32>
    %329 = vector.shape_cast %328 : vector<1x8x512xf32> to vector<8x512xf32>
    %330 = arith.addf %326, %329 : vector<8x512xf32>
    %331 = vector.extract_strided_slice %330 {offsets = [0, 0], sizes = [8, 128], strides = [1, 1]} : vector<8x512xf32> to vector<8x128xf32>
    %332 = arith.negf %331 : vector<8x128xf32>
    %333 = math.exp %332 : vector<8x128xf32>
    %cst_151 = arith.constant 1.000000e+00 : f32
    %334 = vector.broadcast %cst_151 : f32 to vector<8x128xf32>
    %335 = arith.addf %334, %333 : vector<8x128xf32>
    %336 = arith.divf %334, %335 : vector<8x128xf32>
    %337 = vector.extract_strided_slice %330 {offsets = [0, 128], sizes = [8, 128], strides = [1, 1]} : vector<8x512xf32> to vector<8x128xf32>
    %338 = arith.negf %337 : vector<8x128xf32>
    %339 = math.exp %338 : vector<8x128xf32>
    %cst_152 = arith.constant 1.000000e+00 : f32
    %340 = vector.broadcast %cst_152 : f32 to vector<8x128xf32>
    %341 = arith.addf %340, %339 : vector<8x128xf32>
    %342 = arith.divf %340, %341 : vector<8x128xf32>
    %343 = vector.extract_strided_slice %330 {offsets = [0, 256], sizes = [8, 128], strides = [1, 1]} : vector<8x512xf32> to vector<8x128xf32>
    %344 = math.tanh %343 : vector<8x128xf32>
    %345 = vector.extract_strided_slice %330 {offsets = [0, 384], sizes = [8, 128], strides = [1, 1]} : vector<8x512xf32> to vector<8x128xf32>
    %346 = arith.negf %345 : vector<8x128xf32>
    %347 = math.exp %346 : vector<8x128xf32>
    %cst_153 = arith.constant 1.000000e+00 : f32
    %348 = vector.broadcast %cst_153 : f32 to vector<8x128xf32>
    %349 = arith.addf %348, %347 : vector<8x128xf32>
    %350 = arith.divf %348, %349 : vector<8x128xf32>
    %c0_154 = arith.constant 0 : index
    %c0_155 = arith.constant 0 : index
    %351 = vector.load %arg8[%c0_154, %c0_155] : memref<8x128xf32, #tpu.memory_space<vmem>>, vector<8x128xf32>
    %352 = arith.mulf %342, %351 : vector<8x128xf32>
    %353 = arith.mulf %336, %344 : vector<8x128xf32>
    %354 = arith.addf %352, %353 : vector<8x128xf32>
    %355 = math.tanh %354 : vector<8x128xf32>
    %356 = arith.mulf %350, %355 : vector<8x128xf32>
    %c0_156 = arith.constant 0 : index
    %c0_157 = arith.constant 0 : index
    %357 = vector.load %arg8[%c0_156, %c0_157] : memref<8x128xf32, #tpu.memory_space<vmem>>, vector<8x128xf32>
    tpu.vector_store %arg8[%c0_156, %c0_157], %354 {strides = array<i32>} : memref<8x128xf32, #tpu.memory_space<vmem>>, vector<8x128xf32>,
    %c0_158 = arith.constant 0 : index
    %c0_159 = arith.constant 0 : index
    %358 = vector.load %arg7[%c0_158, %c0_159] : memref<8x128xf32, #tpu.memory_space<vmem>>, vector<8x128xf32>
    tpu.vector_store %arg7[%c0_158, %c0_159], %356 {strides = array<i32>} : memref<8x128xf32, #tpu.memory_space<vmem>>, vector<8x128xf32>,
    %359 = arith.index_cast %c8_i32 : i32 to index
    %c0_160 = arith.constant 0 : index
    %c0_161 = arith.constant 0 : index
    %360 = vector.load %arg5[%359, %c0_160, %c0_161] : memref<16x8x128xf32, #tpu.memory_space<vmem>>, vector<1x8x128xf32>
    %361 = vector.shape_cast %360 : vector<1x8x128xf32> to vector<8x128xf32>
    %362 = vector.shape_cast %356 : vector<8x128xf32> to vector<1x8x128xf32>
    tpu.vector_store %arg5[%359, %c0_160, %c0_161], %362 {strides = array<i32>} : memref<16x8x128xf32, #tpu.memory_space<vmem>>, vector<1x8x128xf32>,
    %c9_i32 = arith.constant 9 : i32
    %c0_162 = arith.constant 0 : index
    %c0_163 = arith.constant 0 : index
    %363 = vector.load %arg7[%c0_162, %c0_163] : memref<8x128xf32, #tpu.memory_space<vmem>>, vector<8x128xf32>
    %364 = arith.truncf %363 : vector<8x128xf32> to vector<8x128xbf16>
    %c0_164 = arith.constant 0 : index
    %c0_165 = arith.constant 0 : index
    %365 = vector.load %arg2[%c0_164, %c0_165] : memref<128x512xbf16, #tpu.memory_space<vmem>>, vector<128x512xbf16>
    %cst_166 = arith.constant dense<0.000000e+00> : vector<8x512xf32>
    %366 = tpu.matmul %364, %365, %cst_166 {dimension_numbers = #tpu.dot_dimension_numbers<[1], [0], [0], [1], [0, 0, 1, 1], [], []>} : vector<8x128xbf16>, vector<128x512xbf16>, vector<8x512xf32> -> vector<8x512xf32>
    %367 = arith.index_cast %c9_i32 : i32 to index
    %c0_167 = arith.constant 0 : index
    %c0_168 = arith.constant 0 : index
    %368 = vector.load %arg1[%367, %c0_167, %c0_168] : memref<16x8x512xf32, #tpu.memory_space<vmem>>, vector<1x8x512xf32>
    %369 = vector.shape_cast %368 : vector<1x8x512xf32> to vector<8x512xf32>
    %370 = arith.addf %366, %369 : vector<8x512xf32>
    %371 = vector.extract_strided_slice %370 {offsets = [0, 0], sizes = [8, 128], strides = [1, 1]} : vector<8x512xf32> to vector<8x128xf32>
    %372 = arith.negf %371 : vector<8x128xf32>
    %373 = math.exp %372 : vector<8x128xf32>
    %cst_169 = arith.constant 1.000000e+00 : f32
    %374 = vector.broadcast %cst_169 : f32 to vector<8x128xf32>
    %375 = arith.addf %374, %373 : vector<8x128xf32>
    %376 = arith.divf %374, %375 : vector<8x128xf32>
    %377 = vector.extract_strided_slice %370 {offsets = [0, 128], sizes = [8, 128], strides = [1, 1]} : vector<8x512xf32> to vector<8x128xf32>
    %378 = arith.negf %377 : vector<8x128xf32>
    %379 = math.exp %378 : vector<8x128xf32>
    %cst_170 = arith.constant 1.000000e+00 : f32
    %380 = vector.broadcast %cst_170 : f32 to vector<8x128xf32>
    %381 = arith.addf %380, %379 : vector<8x128xf32>
    %382 = arith.divf %380, %381 : vector<8x128xf32>
    %383 = vector.extract_strided_slice %370 {offsets = [0, 256], sizes = [8, 128], strides = [1, 1]} : vector<8x512xf32> to vector<8x128xf32>
    %384 = math.tanh %383 : vector<8x128xf32>
    %385 = vector.extract_strided_slice %370 {offsets = [0, 384], sizes = [8, 128], strides = [1, 1]} : vector<8x512xf32> to vector<8x128xf32>
    %386 = arith.negf %385 : vector<8x128xf32>
    %387 = math.exp %386 : vector<8x128xf32>
    %cst_171 = arith.constant 1.000000e+00 : f32
    %388 = vector.broadcast %cst_171 : f32 to vector<8x128xf32>
    %389 = arith.addf %388, %387 : vector<8x128xf32>
    %390 = arith.divf %388, %389 : vector<8x128xf32>
    %c0_172 = arith.constant 0 : index
    %c0_173 = arith.constant 0 : index
    %391 = vector.load %arg8[%c0_172, %c0_173] : memref<8x128xf32, #tpu.memory_space<vmem>>, vector<8x128xf32>
    %392 = arith.mulf %382, %391 : vector<8x128xf32>
    %393 = arith.mulf %376, %384 : vector<8x128xf32>
    %394 = arith.addf %392, %393 : vector<8x128xf32>
    %395 = math.tanh %394 : vector<8x128xf32>
    %396 = arith.mulf %390, %395 : vector<8x128xf32>
    %c0_174 = arith.constant 0 : index
    %c0_175 = arith.constant 0 : index
    %397 = vector.load %arg8[%c0_174, %c0_175] : memref<8x128xf32, #tpu.memory_space<vmem>>, vector<8x128xf32>
    tpu.vector_store %arg8[%c0_174, %c0_175], %394 {strides = array<i32>} : memref<8x128xf32, #tpu.memory_space<vmem>>, vector<8x128xf32>,
    %c0_176 = arith.constant 0 : index
    %c0_177 = arith.constant 0 : index
    %398 = vector.load %arg7[%c0_176, %c0_177] : memref<8x128xf32, #tpu.memory_space<vmem>>, vector<8x128xf32>
    tpu.vector_store %arg7[%c0_176, %c0_177], %396 {strides = array<i32>} : memref<8x128xf32, #tpu.memory_space<vmem>>, vector<8x128xf32>,
    %399 = arith.index_cast %c9_i32 : i32 to index
    %c0_178 = arith.constant 0 : index
    %c0_179 = arith.constant 0 : index
    %400 = vector.load %arg5[%399, %c0_178, %c0_179] : memref<16x8x128xf32, #tpu.memory_space<vmem>>, vector<1x8x128xf32>
    %401 = vector.shape_cast %400 : vector<1x8x128xf32> to vector<8x128xf32>
    %402 = vector.shape_cast %396 : vector<8x128xf32> to vector<1x8x128xf32>
    tpu.vector_store %arg5[%399, %c0_178, %c0_179], %402 {strides = array<i32>} : memref<16x8x128xf32, #tpu.memory_space<vmem>>, vector<1x8x128xf32>,
    %c10_i32 = arith.constant 10 : i32
    %c0_180 = arith.constant 0 : index
    %c0_181 = arith.constant 0 : index
    %403 = vector.load %arg7[%c0_180, %c0_181] : memref<8x128xf32, #tpu.memory_space<vmem>>, vector<8x128xf32>
    %404 = arith.truncf %403 : vector<8x128xf32> to vector<8x128xbf16>
    %c0_182 = arith.constant 0 : index
    %c0_183 = arith.constant 0 : index
    %405 = vector.load %arg2[%c0_182, %c0_183] : memref<128x512xbf16, #tpu.memory_space<vmem>>, vector<128x512xbf16>
    %cst_184 = arith.constant dense<0.000000e+00> : vector<8x512xf32>
    %406 = tpu.matmul %404, %405, %cst_184 {dimension_numbers = #tpu.dot_dimension_numbers<[1], [0], [0], [1], [0, 0, 1, 1], [], []>} : vector<8x128xbf16>, vector<128x512xbf16>, vector<8x512xf32> -> vector<8x512xf32>
    %407 = arith.index_cast %c10_i32 : i32 to index
    %c0_185 = arith.constant 0 : index
    %c0_186 = arith.constant 0 : index
    %408 = vector.load %arg1[%407, %c0_185, %c0_186] : memref<16x8x512xf32, #tpu.memory_space<vmem>>, vector<1x8x512xf32>
    %409 = vector.shape_cast %408 : vector<1x8x512xf32> to vector<8x512xf32>
    %410 = arith.addf %406, %409 : vector<8x512xf32>
    %411 = vector.extract_strided_slice %410 {offsets = [0, 0], sizes = [8, 128], strides = [1, 1]} : vector<8x512xf32> to vector<8x128xf32>
    %412 = arith.negf %411 : vector<8x128xf32>
    %413 = math.exp %412 : vector<8x128xf32>
    %cst_187 = arith.constant 1.000000e+00 : f32
    %414 = vector.broadcast %cst_187 : f32 to vector<8x128xf32>
    %415 = arith.addf %414, %413 : vector<8x128xf32>
    %416 = arith.divf %414, %415 : vector<8x128xf32>
    %417 = vector.extract_strided_slice %410 {offsets = [0, 128], sizes = [8, 128], strides = [1, 1]} : vector<8x512xf32> to vector<8x128xf32>
    %418 = arith.negf %417 : vector<8x128xf32>
    %419 = math.exp %418 : vector<8x128xf32>
    %cst_188 = arith.constant 1.000000e+00 : f32
    %420 = vector.broadcast %cst_188 : f32 to vector<8x128xf32>
    %421 = arith.addf %420, %419 : vector<8x128xf32>
    %422 = arith.divf %420, %421 : vector<8x128xf32>
    %423 = vector.extract_strided_slice %410 {offsets = [0, 256], sizes = [8, 128], strides = [1, 1]} : vector<8x512xf32> to vector<8x128xf32>
    %424 = math.tanh %423 : vector<8x128xf32>
    %425 = vector.extract_strided_slice %410 {offsets = [0, 384], sizes = [8, 128], strides = [1, 1]} : vector<8x512xf32> to vector<8x128xf32>
    %426 = arith.negf %425 : vector<8x128xf32>
    %427 = math.exp %426 : vector<8x128xf32>
    %cst_189 = arith.constant 1.000000e+00 : f32
    %428 = vector.broadcast %cst_189 : f32 to vector<8x128xf32>
    %429 = arith.addf %428, %427 : vector<8x128xf32>
    %430 = arith.divf %428, %429 : vector<8x128xf32>
    %c0_190 = arith.constant 0 : index
    %c0_191 = arith.constant 0 : index
    %431 = vector.load %arg8[%c0_190, %c0_191] : memref<8x128xf32, #tpu.memory_space<vmem>>, vector<8x128xf32>
    %432 = arith.mulf %422, %431 : vector<8x128xf32>
    %433 = arith.mulf %416, %424 : vector<8x128xf32>
    %434 = arith.addf %432, %433 : vector<8x128xf32>
    %435 = math.tanh %434 : vector<8x128xf32>
    %436 = arith.mulf %430, %435 : vector<8x128xf32>
    %c0_192 = arith.constant 0 : index
    %c0_193 = arith.constant 0 : index
    %437 = vector.load %arg8[%c0_192, %c0_193] : memref<8x128xf32, #tpu.memory_space<vmem>>, vector<8x128xf32>
    tpu.vector_store %arg8[%c0_192, %c0_193], %434 {strides = array<i32>} : memref<8x128xf32, #tpu.memory_space<vmem>>, vector<8x128xf32>,
    %c0_194 = arith.constant 0 : index
    %c0_195 = arith.constant 0 : index
    %438 = vector.load %arg7[%c0_194, %c0_195] : memref<8x128xf32, #tpu.memory_space<vmem>>, vector<8x128xf32>
    tpu.vector_store %arg7[%c0_194, %c0_195], %436 {strides = array<i32>} : memref<8x128xf32, #tpu.memory_space<vmem>>, vector<8x128xf32>,
    %439 = arith.index_cast %c10_i32 : i32 to index
    %c0_196 = arith.constant 0 : index
    %c0_197 = arith.constant 0 : index
    %440 = vector.load %arg5[%439, %c0_196, %c0_197] : memref<16x8x128xf32, #tpu.memory_space<vmem>>, vector<1x8x128xf32>
    %441 = vector.shape_cast %440 : vector<1x8x128xf32> to vector<8x128xf32>
    %442 = vector.shape_cast %436 : vector<8x128xf32> to vector<1x8x128xf32>
    tpu.vector_store %arg5[%439, %c0_196, %c0_197], %442 {strides = array<i32>} : memref<16x8x128xf32, #tpu.memory_space<vmem>>, vector<1x8x128xf32>,
    %c11_i32 = arith.constant 11 : i32
    %c0_198 = arith.constant 0 : index
    %c0_199 = arith.constant 0 : index
    %443 = vector.load %arg7[%c0_198, %c0_199] : memref<8x128xf32, #tpu.memory_space<vmem>>, vector<8x128xf32>
    %444 = arith.truncf %443 : vector<8x128xf32> to vector<8x128xbf16>
    %c0_200 = arith.constant 0 : index
    %c0_201 = arith.constant 0 : index
    %445 = vector.load %arg2[%c0_200, %c0_201] : memref<128x512xbf16, #tpu.memory_space<vmem>>, vector<128x512xbf16>
    %cst_202 = arith.constant dense<0.000000e+00> : vector<8x512xf32>
    %446 = tpu.matmul %444, %445, %cst_202 {dimension_numbers = #tpu.dot_dimension_numbers<[1], [0], [0], [1], [0, 0, 1, 1], [], []>} : vector<8x128xbf16>, vector<128x512xbf16>, vector<8x512xf32> -> vector<8x512xf32>
    %447 = arith.index_cast %c11_i32 : i32 to index
    %c0_203 = arith.constant 0 : index
    %c0_204 = arith.constant 0 : index
    %448 = vector.load %arg1[%447, %c0_203, %c0_204] : memref<16x8x512xf32, #tpu.memory_space<vmem>>, vector<1x8x512xf32>
    %449 = vector.shape_cast %448 : vector<1x8x512xf32> to vector<8x512xf32>
    %450 = arith.addf %446, %449 : vector<8x512xf32>
    %451 = vector.extract_strided_slice %450 {offsets = [0, 0], sizes = [8, 128], strides = [1, 1]} : vector<8x512xf32> to vector<8x128xf32>
    %452 = arith.negf %451 : vector<8x128xf32>
    %453 = math.exp %452 : vector<8x128xf32>
    %cst_205 = arith.constant 1.000000e+00 : f32
    %454 = vector.broadcast %cst_205 : f32 to vector<8x128xf32>
    %455 = arith.addf %454, %453 : vector<8x128xf32>
    %456 = arith.divf %454, %455 : vector<8x128xf32>
    %457 = vector.extract_strided_slice %450 {offsets = [0, 128], sizes = [8, 128], strides = [1, 1]} : vector<8x512xf32> to vector<8x128xf32>
    %458 = arith.negf %457 : vector<8x128xf32>
    %459 = math.exp %458 : vector<8x128xf32>
    %cst_206 = arith.constant 1.000000e+00 : f32
    %460 = vector.broadcast %cst_206 : f32 to vector<8x128xf32>
    %461 = arith.addf %460, %459 : vector<8x128xf32>
    %462 = arith.divf %460, %461 : vector<8x128xf32>
    %463 = vector.extract_strided_slice %450 {offsets = [0, 256], sizes = [8, 128], strides = [1, 1]} : vector<8x512xf32> to vector<8x128xf32>
    %464 = math.tanh %463 : vector<8x128xf32>
    %465 = vector.extract_strided_slice %450 {offsets = [0, 384], sizes = [8, 128], strides = [1, 1]} : vector<8x512xf32> to vector<8x128xf32>
    %466 = arith.negf %465 : vector<8x128xf32>
    %467 = math.exp %466 : vector<8x128xf32>
    %cst_207 = arith.constant 1.000000e+00 : f32
    %468 = vector.broadcast %cst_207 : f32 to vector<8x128xf32>
    %469 = arith.addf %468, %467 : vector<8x128xf32>
    %470 = arith.divf %468, %469 : vector<8x128xf32>
    %c0_208 = arith.constant 0 : index
    %c0_209 = arith.constant 0 : index
    %471 = vector.load %arg8[%c0_208, %c0_209] : memref<8x128xf32, #tpu.memory_space<vmem>>, vector<8x128xf32>
    %472 = arith.mulf %462, %471 : vector<8x128xf32>
    %473 = arith.mulf %456, %464 : vector<8x128xf32>
    %474 = arith.addf %472, %473 : vector<8x128xf32>
    %475 = math.tanh %474 : vector<8x128xf32>
    %476 = arith.mulf %470, %475 : vector<8x128xf32>
    %c0_210 = arith.constant 0 : index
    %c0_211 = arith.constant 0 : index
    %477 = vector.load %arg8[%c0_210, %c0_211] : memref<8x128xf32, #tpu.memory_space<vmem>>, vector<8x128xf32>
    tpu.vector_store %arg8[%c0_210, %c0_211], %474 {strides = array<i32>} : memref<8x128xf32, #tpu.memory_space<vmem>>, vector<8x128xf32>,
    %c0_212 = arith.constant 0 : index
    %c0_213 = arith.constant 0 : index
    %478 = vector.load %arg7[%c0_212, %c0_213] : memref<8x128xf32, #tpu.memory_space<vmem>>, vector<8x128xf32>
    tpu.vector_store %arg7[%c0_212, %c0_213], %476 {strides = array<i32>} : memref<8x128xf32, #tpu.memory_space<vmem>>, vector<8x128xf32>,
    %479 = arith.index_cast %c11_i32 : i32 to index
    %c0_214 = arith.constant 0 : index
    %c0_215 = arith.constant 0 : index
    %480 = vector.load %arg5[%479, %c0_214, %c0_215] : memref<16x8x128xf32, #tpu.memory_space<vmem>>, vector<1x8x128xf32>
    %481 = vector.shape_cast %480 : vector<1x8x128xf32> to vector<8x128xf32>
    %482 = vector.shape_cast %476 : vector<8x128xf32> to vector<1x8x128xf32>
    tpu.vector_store %arg5[%479, %c0_214, %c0_215], %482 {strides = array<i32>} : memref<16x8x128xf32, #tpu.memory_space<vmem>>, vector<1x8x128xf32>,
    %c12_i32 = arith.constant 12 : i32
    %c0_216 = arith.constant 0 : index
    %c0_217 = arith.constant 0 : index
    %483 = vector.load %arg7[%c0_216, %c0_217] : memref<8x128xf32, #tpu.memory_space<vmem>>, vector<8x128xf32>
    %484 = arith.truncf %483 : vector<8x128xf32> to vector<8x128xbf16>
    %c0_218 = arith.constant 0 : index
    %c0_219 = arith.constant 0 : index
    %485 = vector.load %arg2[%c0_218, %c0_219] : memref<128x512xbf16, #tpu.memory_space<vmem>>, vector<128x512xbf16>
    %cst_220 = arith.constant dense<0.000000e+00> : vector<8x512xf32>
    %486 = tpu.matmul %484, %485, %cst_220 {dimension_numbers = #tpu.dot_dimension_numbers<[1], [0], [0], [1], [0, 0, 1, 1], [], []>} : vector<8x128xbf16>, vector<128x512xbf16>, vector<8x512xf32> -> vector<8x512xf32>
    %487 = arith.index_cast %c12_i32 : i32 to index
    %c0_221 = arith.constant 0 : index
    %c0_222 = arith.constant 0 : index
    %488 = vector.load %arg1[%487, %c0_221, %c0_222] : memref<16x8x512xf32, #tpu.memory_space<vmem>>, vector<1x8x512xf32>
    %489 = vector.shape_cast %488 : vector<1x8x512xf32> to vector<8x512xf32>
    %490 = arith.addf %486, %489 : vector<8x512xf32>
    %491 = vector.extract_strided_slice %490 {offsets = [0, 0], sizes = [8, 128], strides = [1, 1]} : vector<8x512xf32> to vector<8x128xf32>
    %492 = arith.negf %491 : vector<8x128xf32>
    %493 = math.exp %492 : vector<8x128xf32>
    %cst_223 = arith.constant 1.000000e+00 : f32
    %494 = vector.broadcast %cst_223 : f32 to vector<8x128xf32>
    %495 = arith.addf %494, %493 : vector<8x128xf32>
    %496 = arith.divf %494, %495 : vector<8x128xf32>
    %497 = vector.extract_strided_slice %490 {offsets = [0, 128], sizes = [8, 128], strides = [1, 1]} : vector<8x512xf32> to vector<8x128xf32>
    %498 = arith.negf %497 : vector<8x128xf32>
    %499 = math.exp %498 : vector<8x128xf32>
    %cst_224 = arith.constant 1.000000e+00 : f32
    %500 = vector.broadcast %cst_224 : f32 to vector<8x128xf32>
    %501 = arith.addf %500, %499 : vector<8x128xf32>
    %502 = arith.divf %500, %501 : vector<8x128xf32>
    %503 = vector.extract_strided_slice %490 {offsets = [0, 256], sizes = [8, 128], strides = [1, 1]} : vector<8x512xf32> to vector<8x128xf32>
    %504 = math.tanh %503 : vector<8x128xf32>
    %505 = vector.extract_strided_slice %490 {offsets = [0, 384], sizes = [8, 128], strides = [1, 1]} : vector<8x512xf32> to vector<8x128xf32>
    %506 = arith.negf %505 : vector<8x128xf32>
    %507 = math.exp %506 : vector<8x128xf32>
    %cst_225 = arith.constant 1.000000e+00 : f32
    %508 = vector.broadcast %cst_225 : f32 to vector<8x128xf32>
    %509 = arith.addf %508, %507 : vector<8x128xf32>
    %510 = arith.divf %508, %509 : vector<8x128xf32>
    %c0_226 = arith.constant 0 : index
    %c0_227 = arith.constant 0 : index
    %511 = vector.load %arg8[%c0_226, %c0_227] : memref<8x128xf32, #tpu.memory_space<vmem>>, vector<8x128xf32>
    %512 = arith.mulf %502, %511 : vector<8x128xf32>
    %513 = arith.mulf %496, %504 : vector<8x128xf32>
    %514 = arith.addf %512, %513 : vector<8x128xf32>
    %515 = math.tanh %514 : vector<8x128xf32>
    %516 = arith.mulf %510, %515 : vector<8x128xf32>
    %c0_228 = arith.constant 0 : index
    %c0_229 = arith.constant 0 : index
    %517 = vector.load %arg8[%c0_228, %c0_229] : memref<8x128xf32, #tpu.memory_space<vmem>>, vector<8x128xf32>
    tpu.vector_store %arg8[%c0_228, %c0_229], %514 {strides = array<i32>} : memref<8x128xf32, #tpu.memory_space<vmem>>, vector<8x128xf32>,
    %c0_230 = arith.constant 0 : index
    %c0_231 = arith.constant 0 : index
    %518 = vector.load %arg7[%c0_230, %c0_231] : memref<8x128xf32, #tpu.memory_space<vmem>>, vector<8x128xf32>
    tpu.vector_store %arg7[%c0_230, %c0_231], %516 {strides = array<i32>} : memref<8x128xf32, #tpu.memory_space<vmem>>, vector<8x128xf32>,
    %519 = arith.index_cast %c12_i32 : i32 to index
    %c0_232 = arith.constant 0 : index
    %c0_233 = arith.constant 0 : index
    %520 = vector.load %arg5[%519, %c0_232, %c0_233] : memref<16x8x128xf32, #tpu.memory_space<vmem>>, vector<1x8x128xf32>
    %521 = vector.shape_cast %520 : vector<1x8x128xf32> to vector<8x128xf32>
    %522 = vector.shape_cast %516 : vector<8x128xf32> to vector<1x8x128xf32>
    tpu.vector_store %arg5[%519, %c0_232, %c0_233], %522 {strides = array<i32>} : memref<16x8x128xf32, #tpu.memory_space<vmem>>, vector<1x8x128xf32>,
    %c13_i32 = arith.constant 13 : i32
    %c0_234 = arith.constant 0 : index
    %c0_235 = arith.constant 0 : index
    %523 = vector.load %arg7[%c0_234, %c0_235] : memref<8x128xf32, #tpu.memory_space<vmem>>, vector<8x128xf32>
    %524 = arith.truncf %523 : vector<8x128xf32> to vector<8x128xbf16>
    %c0_236 = arith.constant 0 : index
    %c0_237 = arith.constant 0 : index
    %525 = vector.load %arg2[%c0_236, %c0_237] : memref<128x512xbf16, #tpu.memory_space<vmem>>, vector<128x512xbf16>
    %cst_238 = arith.constant dense<0.000000e+00> : vector<8x512xf32>
    %526 = tpu.matmul %524, %525, %cst_238 {dimension_numbers = #tpu.dot_dimension_numbers<[1], [0], [0], [1], [0, 0, 1, 1], [], []>} : vector<8x128xbf16>, vector<128x512xbf16>, vector<8x512xf32> -> vector<8x512xf32>
    %527 = arith.index_cast %c13_i32 : i32 to index
    %c0_239 = arith.constant 0 : index
    %c0_240 = arith.constant 0 : index
    %528 = vector.load %arg1[%527, %c0_239, %c0_240] : memref<16x8x512xf32, #tpu.memory_space<vmem>>, vector<1x8x512xf32>
    %529 = vector.shape_cast %528 : vector<1x8x512xf32> to vector<8x512xf32>
    %530 = arith.addf %526, %529 : vector<8x512xf32>
    %531 = vector.extract_strided_slice %530 {offsets = [0, 0], sizes = [8, 128], strides = [1, 1]} : vector<8x512xf32> to vector<8x128xf32>
    %532 = arith.negf %531 : vector<8x128xf32>
    %533 = math.exp %532 : vector<8x128xf32>
    %cst_241 = arith.constant 1.000000e+00 : f32
    %534 = vector.broadcast %cst_241 : f32 to vector<8x128xf32>
    %535 = arith.addf %534, %533 : vector<8x128xf32>
    %536 = arith.divf %534, %535 : vector<8x128xf32>
    %537 = vector.extract_strided_slice %530 {offsets = [0, 128], sizes = [8, 128], strides = [1, 1]} : vector<8x512xf32> to vector<8x128xf32>
    %538 = arith.negf %537 : vector<8x128xf32>
    %539 = math.exp %538 : vector<8x128xf32>
    %cst_242 = arith.constant 1.000000e+00 : f32
    %540 = vector.broadcast %cst_242 : f32 to vector<8x128xf32>
    %541 = arith.addf %540, %539 : vector<8x128xf32>
    %542 = arith.divf %540, %541 : vector<8x128xf32>
    %543 = vector.extract_strided_slice %530 {offsets = [0, 256], sizes = [8, 128], strides = [1, 1]} : vector<8x512xf32> to vector<8x128xf32>
    %544 = math.tanh %543 : vector<8x128xf32>
    %545 = vector.extract_strided_slice %530 {offsets = [0, 384], sizes = [8, 128], strides = [1, 1]} : vector<8x512xf32> to vector<8x128xf32>
    %546 = arith.negf %545 : vector<8x128xf32>
    %547 = math.exp %546 : vector<8x128xf32>
    %cst_243 = arith.constant 1.000000e+00 : f32
    %548 = vector.broadcast %cst_243 : f32 to vector<8x128xf32>
    %549 = arith.addf %548, %547 : vector<8x128xf32>
    %550 = arith.divf %548, %549 : vector<8x128xf32>
    %c0_244 = arith.constant 0 : index
    %c0_245 = arith.constant 0 : index
    %551 = vector.load %arg8[%c0_244, %c0_245] : memref<8x128xf32, #tpu.memory_space<vmem>>, vector<8x128xf32>
    %552 = arith.mulf %542, %551 : vector<8x128xf32>
    %553 = arith.mulf %536, %544 : vector<8x128xf32>
    %554 = arith.addf %552, %553 : vector<8x128xf32>
    %555 = math.tanh %554 : vector<8x128xf32>
    %556 = arith.mulf %550, %555 : vector<8x128xf32>
    %c0_246 = arith.constant 0 : index
    %c0_247 = arith.constant 0 : index
    %557 = vector.load %arg8[%c0_246, %c0_247] : memref<8x128xf32, #tpu.memory_space<vmem>>, vector<8x128xf32>
    tpu.vector_store %arg8[%c0_246, %c0_247], %554 {strides = array<i32>} : memref<8x128xf32, #tpu.memory_space<vmem>>, vector<8x128xf32>,
    %c0_248 = arith.constant 0 : index
    %c0_249 = arith.constant 0 : index
    %558 = vector.load %arg7[%c0_248, %c0_249] : memref<8x128xf32, #tpu.memory_space<vmem>>, vector<8x128xf32>
    tpu.vector_store %arg7[%c0_248, %c0_249], %556 {strides = array<i32>} : memref<8x128xf32, #tpu.memory_space<vmem>>, vector<8x128xf32>,
    %559 = arith.index_cast %c13_i32 : i32 to index
    %c0_250 = arith.constant 0 : index
    %c0_251 = arith.constant 0 : index
    %560 = vector.load %arg5[%559, %c0_250, %c0_251] : memref<16x8x128xf32, #tpu.memory_space<vmem>>, vector<1x8x128xf32>
    %561 = vector.shape_cast %560 : vector<1x8x128xf32> to vector<8x128xf32>
    %562 = vector.shape_cast %556 : vector<8x128xf32> to vector<1x8x128xf32>
    tpu.vector_store %arg5[%559, %c0_250, %c0_251], %562 {strides = array<i32>} : memref<16x8x128xf32, #tpu.memory_space<vmem>>, vector<1x8x128xf32>,
    %c14_i32 = arith.constant 14 : i32
    %c0_252 = arith.constant 0 : index
    %c0_253 = arith.constant 0 : index
    %563 = vector.load %arg7[%c0_252, %c0_253] : memref<8x128xf32, #tpu.memory_space<vmem>>, vector<8x128xf32>
    %564 = arith.truncf %563 : vector<8x128xf32> to vector<8x128xbf16>
    %c0_254 = arith.constant 0 : index
    %c0_255 = arith.constant 0 : index
    %565 = vector.load %arg2[%c0_254, %c0_255] : memref<128x512xbf16, #tpu.memory_space<vmem>>, vector<128x512xbf16>
    %cst_256 = arith.constant dense<0.000000e+00> : vector<8x512xf32>
    %566 = tpu.matmul %564, %565, %cst_256 {dimension_numbers = #tpu.dot_dimension_numbers<[1], [0], [0], [1], [0, 0, 1, 1], [], []>} : vector<8x128xbf16>, vector<128x512xbf16>, vector<8x512xf32> -> vector<8x512xf32>
    %567 = arith.index_cast %c14_i32 : i32 to index
    %c0_257 = arith.constant 0 : index
    %c0_258 = arith.constant 0 : index
    %568 = vector.load %arg1[%567, %c0_257, %c0_258] : memref<16x8x512xf32, #tpu.memory_space<vmem>>, vector<1x8x512xf32>
    %569 = vector.shape_cast %568 : vector<1x8x512xf32> to vector<8x512xf32>
    %570 = arith.addf %566, %569 : vector<8x512xf32>
    %571 = vector.extract_strided_slice %570 {offsets = [0, 0], sizes = [8, 128], strides = [1, 1]} : vector<8x512xf32> to vector<8x128xf32>
    %572 = arith.negf %571 : vector<8x128xf32>
    %573 = math.exp %572 : vector<8x128xf32>
    %cst_259 = arith.constant 1.000000e+00 : f32
    %574 = vector.broadcast %cst_259 : f32 to vector<8x128xf32>
    %575 = arith.addf %574, %573 : vector<8x128xf32>
    %576 = arith.divf %574, %575 : vector<8x128xf32>
    %577 = vector.extract_strided_slice %570 {offsets = [0, 128], sizes = [8, 128], strides = [1, 1]} : vector<8x512xf32> to vector<8x128xf32>
    %578 = arith.negf %577 : vector<8x128xf32>
    %579 = math.exp %578 : vector<8x128xf32>
    %cst_260 = arith.constant 1.000000e+00 : f32
    %580 = vector.broadcast %cst_260 : f32 to vector<8x128xf32>
    %581 = arith.addf %580, %579 : vector<8x128xf32>
    %582 = arith.divf %580, %581 : vector<8x128xf32>
    %583 = vector.extract_strided_slice %570 {offsets = [0, 256], sizes = [8, 128], strides = [1, 1]} : vector<8x512xf32> to vector<8x128xf32>
    %584 = math.tanh %583 : vector<8x128xf32>
    %585 = vector.extract_strided_slice %570 {offsets = [0, 384], sizes = [8, 128], strides = [1, 1]} : vector<8x512xf32> to vector<8x128xf32>
    %586 = arith.negf %585 : vector<8x128xf32>
    %587 = math.exp %586 : vector<8x128xf32>
    %cst_261 = arith.constant 1.000000e+00 : f32
    %588 = vector.broadcast %cst_261 : f32 to vector<8x128xf32>
    %589 = arith.addf %588, %587 : vector<8x128xf32>
    %590 = arith.divf %588, %589 : vector<8x128xf32>
    %c0_262 = arith.constant 0 : index
    %c0_263 = arith.constant 0 : index
    %591 = vector.load %arg8[%c0_262, %c0_263] : memref<8x128xf32, #tpu.memory_space<vmem>>, vector<8x128xf32>
    %592 = arith.mulf %582, %591 : vector<8x128xf32>
    %593 = arith.mulf %576, %584 : vector<8x128xf32>
    %594 = arith.addf %592, %593 : vector<8x128xf32>
    %595 = math.tanh %594 : vector<8x128xf32>
    %596 = arith.mulf %590, %595 : vector<8x128xf32>
    %c0_264 = arith.constant 0 : index
    %c0_265 = arith.constant 0 : index
    %597 = vector.load %arg8[%c0_264, %c0_265] : memref<8x128xf32, #tpu.memory_space<vmem>>, vector<8x128xf32>
    tpu.vector_store %arg8[%c0_264, %c0_265], %594 {strides = array<i32>} : memref<8x128xf32, #tpu.memory_space<vmem>>, vector<8x128xf32>,
    %c0_266 = arith.constant 0 : index
    %c0_267 = arith.constant 0 : index
    %598 = vector.load %arg7[%c0_266, %c0_267] : memref<8x128xf32, #tpu.memory_space<vmem>>, vector<8x128xf32>
    tpu.vector_store %arg7[%c0_266, %c0_267], %596 {strides = array<i32>} : memref<8x128xf32, #tpu.memory_space<vmem>>, vector<8x128xf32>,
    %599 = arith.index_cast %c14_i32 : i32 to index
    %c0_268 = arith.constant 0 : index
    %c0_269 = arith.constant 0 : index
    %600 = vector.load %arg5[%599, %c0_268, %c0_269] : memref<16x8x128xf32, #tpu.memory_space<vmem>>, vector<1x8x128xf32>
    %601 = vector.shape_cast %600 : vector<1x8x128xf32> to vector<8x128xf32>
    %602 = vector.shape_cast %596 : vector<8x128xf32> to vector<1x8x128xf32>
    tpu.vector_store %arg5[%599, %c0_268, %c0_269], %602 {strides = array<i32>} : memref<16x8x128xf32, #tpu.memory_space<vmem>>, vector<1x8x128xf32>,
    %c15_i32 = arith.constant 15 : i32
    %c0_270 = arith.constant 0 : index
    %c0_271 = arith.constant 0 : index
    %603 = vector.load %arg7[%c0_270, %c0_271] : memref<8x128xf32, #tpu.memory_space<vmem>>, vector<8x128xf32>
    %604 = arith.truncf %603 : vector<8x128xf32> to vector<8x128xbf16>
    %c0_272 = arith.constant 0 : index
    %c0_273 = arith.constant 0 : index
    %605 = vector.load %arg2[%c0_272, %c0_273] : memref<128x512xbf16, #tpu.memory_space<vmem>>, vector<128x512xbf16>
    %cst_274 = arith.constant dense<0.000000e+00> : vector<8x512xf32>
    %606 = tpu.matmul %604, %605, %cst_274 {dimension_numbers = #tpu.dot_dimension_numbers<[1], [0], [0], [1], [0, 0, 1, 1], [], []>} : vector<8x128xbf16>, vector<128x512xbf16>, vector<8x512xf32> -> vector<8x512xf32>
    %607 = arith.index_cast %c15_i32 : i32 to index
    %c0_275 = arith.constant 0 : index
    %c0_276 = arith.constant 0 : index
    %608 = vector.load %arg1[%607, %c0_275, %c0_276] : memref<16x8x512xf32, #tpu.memory_space<vmem>>, vector<1x8x512xf32>
    %609 = vector.shape_cast %608 : vector<1x8x512xf32> to vector<8x512xf32>
    %610 = arith.addf %606, %609 : vector<8x512xf32>
    %611 = vector.extract_strided_slice %610 {offsets = [0, 0], sizes = [8, 128], strides = [1, 1]} : vector<8x512xf32> to vector<8x128xf32>
    %612 = arith.negf %611 : vector<8x128xf32>
    %613 = math.exp %612 : vector<8x128xf32>
    %cst_277 = arith.constant 1.000000e+00 : f32
    %614 = vector.broadcast %cst_277 : f32 to vector<8x128xf32>
    %615 = arith.addf %614, %613 : vector<8x128xf32>
    %616 = arith.divf %614, %615 : vector<8x128xf32>
    %617 = vector.extract_strided_slice %610 {offsets = [0, 128], sizes = [8, 128], strides = [1, 1]} : vector<8x512xf32> to vector<8x128xf32>
    %618 = arith.negf %617 : vector<8x128xf32>
    %619 = math.exp %618 : vector<8x128xf32>
    %cst_278 = arith.constant 1.000000e+00 : f32
    %620 = vector.broadcast %cst_278 : f32 to vector<8x128xf32>
    %621 = arith.addf %620, %619 : vector<8x128xf32>
    %622 = arith.divf %620, %621 : vector<8x128xf32>
    %623 = vector.extract_strided_slice %610 {offsets = [0, 256], sizes = [8, 128], strides = [1, 1]} : vector<8x512xf32> to vector<8x128xf32>
    %624 = math.tanh %623 : vector<8x128xf32>
    %625 = vector.extract_strided_slice %610 {offsets = [0, 384], sizes = [8, 128], strides = [1, 1]} : vector<8x512xf32> to vector<8x128xf32>
    %626 = arith.negf %625 : vector<8x128xf32>
    %627 = math.exp %626 : vector<8x128xf32>
    %cst_279 = arith.constant 1.000000e+00 : f32
    %628 = vector.broadcast %cst_279 : f32 to vector<8x128xf32>
    %629 = arith.addf %628, %627 : vector<8x128xf32>
    %630 = arith.divf %628, %629 : vector<8x128xf32>
    %c0_280 = arith.constant 0 : index
    %c0_281 = arith.constant 0 : index
    %631 = vector.load %arg8[%c0_280, %c0_281] : memref<8x128xf32, #tpu.memory_space<vmem>>, vector<8x128xf32>
    %632 = arith.mulf %622, %631 : vector<8x128xf32>
    %633 = arith.mulf %616, %624 : vector<8x128xf32>
    %634 = arith.addf %632, %633 : vector<8x128xf32>
    %635 = math.tanh %634 : vector<8x128xf32>
    %636 = arith.mulf %630, %635 : vector<8x128xf32>
    %c0_282 = arith.constant 0 : index
    %c0_283 = arith.constant 0 : index
    %637 = vector.load %arg8[%c0_282, %c0_283] : memref<8x128xf32, #tpu.memory_space<vmem>>, vector<8x128xf32>
    tpu.vector_store %arg8[%c0_282, %c0_283], %634 {strides = array<i32>} : memref<8x128xf32, #tpu.memory_space<vmem>>, vector<8x128xf32>,
    %c0_284 = arith.constant 0 : index
    %c0_285 = arith.constant 0 : index
    %638 = vector.load %arg7[%c0_284, %c0_285] : memref<8x128xf32, #tpu.memory_space<vmem>>, vector<8x128xf32>
    tpu.vector_store %arg7[%c0_284, %c0_285], %636 {strides = array<i32>} : memref<8x128xf32, #tpu.memory_space<vmem>>, vector<8x128xf32>,
    %639 = arith.index_cast %c15_i32 : i32 to index
    %c0_286 = arith.constant 0 : index
    %c0_287 = arith.constant 0 : index
    %640 = vector.load %arg5[%639, %c0_286, %c0_287] : memref<16x8x128xf32, #tpu.memory_space<vmem>>, vector<1x8x128xf32>
    %641 = vector.shape_cast %640 : vector<1x8x128xf32> to vector<8x128xf32>
    %642 = vector.shape_cast %636 : vector<8x128xf32> to vector<1x8x128xf32>
    tpu.vector_store %arg5[%639, %c0_286, %c0_287], %642 {strides = array<i32>} : memref<16x8x128xf32, #tpu.memory_space<vmem>>, vector<1x8x128xf32>,
    %c16_i32 = arith.constant 16 : i32
    %c0_i32_288 = arith.constant 0 : i32
    %643 = arith.cmpi eq, %arg0, %c0_i32_288 : i32
    %644 = arith.extui %643 : i1 to i32
    %c0_i32_289 = arith.constant 0 : i32
    %645 = arith.cmpi ne, %644, %c0_i32_289 : i32
    scf.if %645 {
      %c0_290 = arith.constant 0 : index
      %c0_291 = arith.constant 0 : index
      %646 = vector.load %arg8[%c0_290, %c0_291] : memref<8x128xf32, #tpu.memory_space<vmem>>, vector<8x128xf32>
      %c0_292 = arith.constant 0 : index
      %c0_293 = arith.constant 0 : index
      %647 = vector.load %arg6[%c0_292, %c0_293] : memref<8x128xf32, #tpu.memory_space<vmem>>, vector<8x128xf32>
      tpu.vector_store %arg6[%c0_292, %c0_293], %646 {strides = array<i32>} : memref<8x128xf32, #tpu.memory_space<vmem>>, vector<8x128xf32>,
    } else {
    }
    return
  }
  func.func @transform_0(%arg0: i32) -> (i32, i32, i32) {
    %c0_i32 = arith.constant 0 : i32
    %c0_i32_0 = arith.constant 0 : i32
    %c0_i32_1 = arith.constant 0 : i32
    return %arg0, %c0_i32, %c0_i32_0 : i32, i32, i32
  }
  func.func @transform_1(%arg0: i32) -> (i32, i32) {
    %c0_i32 = arith.constant 0 : i32
    %c0_i32_0 = arith.constant 0 : i32
    %c0_i32_1 = arith.constant 0 : i32
    return %c0_i32, %c0_i32_0 : i32, i32
  }
  func.func @transform_2(%arg0: i32) -> (i32, i32) {
    %c0_i32 = arith.constant 0 : i32
    %c0_i32_0 = arith.constant 0 : i32
    %c0_i32_1 = arith.constant 0 : i32
    return %c0_i32, %c0_i32_0 : i32, i32
  }
  func.func @transform_3(%arg0: i32) -> (i32, i32) {
    %c0_i32 = arith.constant 0 : i32
    %c0_i32_0 = arith.constant 0 : i32
    %c0_i32_1 = arith.constant 0 : i32
    return %c0_i32, %c0_i32_0 : i32, i32
  }
  func.func @transform_4(%arg0: i32) -> (i32, i32, i32) {
    %c0_i32 = arith.constant 0 : i32
    %c0_i32_0 = arith.constant 0 : i32
    %c0_i32_1 = arith.constant 0 : i32
    return %arg0, %c0_i32, %c0_i32_0 : i32, i32, i32
  }
  func.func @transform_5(%arg0: i32) -> (i32, i32) {
    %c0_i32 = arith.constant 0 : i32
    %c0_i32_0 = arith.constant 0 : i32
    %c0_i32_1 = arith.constant 0 : i32
    return %c0_i32, %c0_i32_0 : i32, i32
  }
}

module attributes {stable_mosaic.version = 11 : i64} {
  func.func @_matmul_bias_kernel(%arg0: i32, %arg1: i32, %arg2: memref<128x128xf32, #tpu.memory_space<vmem>>, %arg3: memref<128x512xbf16, #tpu.memory_space<vmem>>, %arg4: memref<1x512xf32, #tpu.memory_space<vmem>>, %arg5: memref<128x512xf32, #tpu.memory_space<vmem>>) attributes {dimension_semantics = [#tpu.dimension_semantics<parallel>, #tpu.dimension_semantics<parallel>], iteration_bounds = array<i64: 1, 1>, scalar_prefetch = 0 : i64, scratch_operands = 0 : i64, tpu.core_type = #tpu.core_type<tc>, window_params = [{transform_indices = @transform_0, window_bounds = array<i64: 128, 128>}, {transform_indices = @transform_1, window_bounds = array<i64: 128, 512>}, {transform_indices = @transform_2, window_bounds = array<i64: 1, 512>}, {transform_indices = @transform_3, window_bounds = array<i64: 128, 512>}]} {
    %c0 = arith.constant 0 : index
    %c0_0 = arith.constant 0 : index
    %0 = vector.load %arg2[%c0, %c0_0] : memref<128x128xf32, #tpu.memory_space<vmem>>, vector<128x128xf32>
    %1 = arith.truncf %0 : vector<128x128xf32> to vector<128x128xbf16>
    %c0_1 = arith.constant 0 : index
    %c0_2 = arith.constant 0 : index
    %2 = vector.load %arg3[%c0_1, %c0_2] : memref<128x512xbf16, #tpu.memory_space<vmem>>, vector<128x512xbf16>
    %cst = arith.constant dense<0.000000e+00> : vector<128x512xf32>
    %3 = tpu.matmul %1, %2, %cst {dimension_numbers = #tpu.dot_dimension_numbers<[1], [0], [0], [1], [0, 0, 1, 1], [], []>} : vector<128x128xbf16>, vector<128x512xbf16>, vector<128x512xf32> -> vector<128x512xf32>
    %c0_3 = arith.constant 0 : index
    %c0_4 = arith.constant 0 : index
    %4 = vector.load %arg4[%c0_3, %c0_4] : memref<1x512xf32, #tpu.memory_space<vmem>>, vector<1x512xf32>
    %5 = vector.broadcast %4 : vector<1x512xf32> to vector<128x512xf32>
    %6 = arith.addf %3, %5 : vector<128x512xf32>
    %c0_5 = arith.constant 0 : index
    %c0_6 = arith.constant 0 : index
    %7 = vector.load %arg5[%c0_5, %c0_6] : memref<128x512xf32, #tpu.memory_space<vmem>>, vector<128x512xf32>
    tpu.vector_store %arg5[%c0_5, %c0_6], %6 {strides = array<i32>} : memref<128x512xf32, #tpu.memory_space<vmem>>, vector<128x512xf32>,
    return
  }
  func.func @transform_0(%arg0: i32, %arg1: i32) -> (i32, i32) {
    %c0_i32 = arith.constant 0 : i32
    %c0_i32_0 = arith.constant 0 : i32
    return %arg0, %c0_i32 : i32, i32
  }
  func.func @transform_1(%arg0: i32, %arg1: i32) -> (i32, i32) {
    %c0_i32 = arith.constant 0 : i32
    %c0_i32_0 = arith.constant 0 : i32
    return %c0_i32, %arg1 : i32, i32
  }
  func.func @transform_2(%arg0: i32, %arg1: i32) -> (i32, i32) {
    %c0_i32 = arith.constant 0 : i32
    %c0_i32_0 = arith.constant 0 : i32
    return %c0_i32, %arg1 : i32, i32
  }
  func.func @transform_3(%arg0: i32, %arg1: i32) -> (i32, i32) {
    %c0_i32 = arith.constant 0 : i32
    return %arg0, %arg1 : i32, i32
  }
}

</mosaic_0001>

<llo_original>
// kernel: hflstmlm_forward.5
$region0: #{hflstmlm_forward.5}
  #allocation0 [shape = 'u32[]', space=smem, size = 0x4, offset = 0x4, fixed_abs, tag = 'smem constant byte address 0x4 - core index']
  #allocation1 [shape = 'u32[144,128]{1,0:T(1,128)}', space=vmem, size = 0x12000, scoped, tag = 'internal scratch']
  %s0 = inlined_call_operand.vmem [shape: f32[128,128], index: 0, kind: input, shape index: {}]
  %s1 = inlined_call_operand.vmem [shape: bf16[128,512], index: 1, kind: input, shape index: {}]
  %s2 = inlined_call_operand.vmem [shape: f32[1,512], index: 2, kind: input, shape index: {}]
  %s3 = inlined_call_operand.vmem [shape: f32[128,512], index: 3, kind: output, shape index: {}]
  %s4 = sld [smem:[#allocation0]]
  $region22: #{hflstmlm_forward.5} parent=0
    _
  %s6 = ssub.s32 1, %s4
  %s7 = scalar_select 0, %s6, %s4
  // Predicated region
  $region2: #{hflstmlm_forward.5} parent=0 // pred_check
    _
  $region3: #{hflstmlm_forward.5} parent=0 // pred_check_branch
    %9 = sbr.rel (0) target = $region5
  $region4: #{hflstmlm_forward.5} parent=0 // pred_region
    _
  $region5: #{hflstmlm_forward.5} parent=0 // pred_fallthru
    _
  // Predicated region
  $region6: #{hflstmlm_forward.5} parent=0 // pred_check
    _
  $region7: #{hflstmlm_forward.5} parent=0 // pred_check_branch
    %11 = sbr.rel (0) target = $region9
  $region8: #{hflstmlm_forward.5} parent=0 // pred_region
    _
  $region9: #{hflstmlm_forward.5} parent=0 // pred_fallthru
    _
  // Predicated region
  $region10: #{hflstmlm_forward.5} parent=0 // pred_check
    _
  $region11: #{hflstmlm_forward.5} parent=0 // pred_check_branch
    %13 = sbr.rel (0) target = $region13
  $region12: #{hflstmlm_forward.5} parent=0 // pred_region
    _
  $region13: #{hflstmlm_forward.5} parent=0 // pred_fallthru
    _
  %v15 = vld [vmem:[%s0] sm:$0xff]
  %v16 = vld [vmem:[%s0 + $0x8] sm:$0xff]
  %v17 = vld [vmem:[%s0 + $0x10] sm:$0xff]
  %v18 = vld [vmem:[%s0 + $0x18] sm:$0xff]
  %v19 = vld [vmem:[%s0 + $0x20] sm:$0xff]
  %v20 = vld [vmem:[%s0 + $0x28] sm:$0xff]
  %v21 = vld [vmem:[%s0 + $0x30] sm:$0xff]
  %v22 = vld [vmem:[%s0 + $0x38] sm:$0xff]
  %v23 = vld [vmem:[%s0 + $0x40] sm:$0xff]
  %v24 = vld [vmem:[%s0 + $0x48] sm:$0xff]
  %v25 = vld [vmem:[%s0 + $0x50] sm:$0xff]
  %v26 = vld [vmem:[%s0 + $0x58] sm:$0xff]
  %v27 = vld [vmem:[%s0 + $0x60] sm:$0xff]
  %v28 = vld [vmem:[%s0 + $0x68] sm:$0xff]
  %v29 = vld [vmem:[%s0 + $0x70] sm:$0xff]
  %v30 = vld [vmem:[%s0 + $0x78] sm:$0xff]
  %v31 = vpack.c.bf16 %v16, %v15
  %v32 = vpack.c.bf16 %v18, %v17
  %v33 = vpack.c.bf16 %v20, %v19
  %v34 = vpack.c.bf16 %v22, %v21
  %v35 = vpack.c.bf16 %v24, %v23
  %v36 = vpack.c.bf16 %v26, %v25
  %v37 = vpack.c.bf16 %v28, %v27
  %v38 = vpack.c.bf16 %v30, %v29
  %v39 = vld [vmem:[%s1] sm:$0xff]
  %v40 = vld [vmem:[%s1 + $0x8] sm:$0xff]
  %v41 = vld [vmem:[%s1 + $0x10] sm:$0xff]
  %v42 = vld [vmem:[%s1 + $0x18] sm:$0xff]
  %v43 = vld [vmem:[%s1 + $0x20] sm:$0xff]
  %v44 = vld [vmem:[%s1 + $0x28] sm:$0xff]
  %v45 = vld [vmem:[%s1 + $0x30] sm:$0xff]
  %v46 = vld [vmem:[%s1 + $0x38] sm:$0xff]
  %v47 = vld [vmem:[%s1 + $0x40] sm:$0xff]
  %v48 = vld [vmem:[%s1 + $0x48] sm:$0xff]
  %v49 = vld [vmem:[%s1 + $0x50] sm:$0xff]
  %v50 = vld [vmem:[%s1 + $0x58] sm:$0xff]
  %v51 = vld [vmem:[%s1 + $0x60] sm:$0xff]
  %v52 = vld [vmem:[%s1 + $0x68] sm:$0xff]
  %v53 = vld [vmem:[%s1 + $0x70] sm:$0xff]
  %v54 = vld [vmem:[%s1 + $0x78] sm:$0xff]
  %v55 = vld [vmem:[%s1 + $0x80] sm:$0xff]
  %v56 = vld [vmem:[%s1 + $0x88] sm:$0xff]
  %v57 = vld [vmem:[%s1 + $0x90] sm:$0xff]
  %v58 = vld [vmem:[%s1 + $0x98] sm:$0xff]
  %v59 = vld [vmem:[%s1 + $0xa0] sm:$0xff]
  %v60 = vld [vmem:[%s1 + $0xa8] sm:$0xff]
  %v61 = vld [vmem:[%s1 + $0xb0] sm:$0xff]
  %v62 = vld [vmem:[%s1 + $0xb8] sm:$0xff]
  %v63 = vld [vmem:[%s1 + $0xc0] sm:$0xff]
  %v64 = vld [vmem:[%s1 + $0xc8] sm:$0xff]
  %v65 = vld [vmem:[%s1 + $0xd0] sm:$0xff]
  %v66 = vld [vmem:[%s1 + $0xd8] sm:$0xff]
  %v67 = vld [vmem:[%s1 + $0xe0] sm:$0xff]
  %v68 = vld [vmem:[%s1 + $0xe8] sm:$0xff]
  %v69 = vld [vmem:[%s1 + $0xf0] sm:$0xff]
  %v70 = vld [vmem:[%s1 + $0xf8] sm:$0xff]
  %v71 = vld [vmem:[%s2] sm:$0xf]
  %v73 = vlaneseq
  %v74 = vshrl.u32 %v73, 7
  %v75 = vsub.s32 0, %v74
  %v76 = vrot.slane %v71, %v75
  %v77 = vlaneseq
  %v78 = vshrl.u32 %v77, 7
  %v79 = vsub.s32 1, %v78
  %v80 = vrot.slane %v71, %v79
  %v81 = vlaneseq
  %v82 = vshrl.u32 %v81, 7
  %v83 = vsub.s32 2, %v82
  %v84 = vrot.slane %v71, %v83
  %v85 = vlaneseq
  %v86 = vshrl.u32 %v85, 7
  %v87 = vsub.s32 3, %v86
  %v88 = vrot.slane %v71, %v87
  %v125 = vunpack.c.l.b16 %v39
  %v126 = vunpack.c.h.b16 %v39
  %v127 = vunpack.c.l.b16 %v40
  %v128 = vunpack.c.h.b16 %v40
  %v129 = vunpack.c.l.b16 %v41
  %v130 = vunpack.c.h.b16 %v41
  %v131 = vunpack.c.l.b16 %v42
  %v132 = vunpack.c.h.b16 %v42
  %v133 = vunpack.c.l.b16 %v43
  %v134 = vunpack.c.h.b16 %v43
  %v135 = vunpack.c.l.b16 %v44
  %v136 = vunpack.c.h.b16 %v44
  %v137 = vunpack.c.l.b16 %v45
  %v138 = vunpack.c.h.b16 %v45
  %v139 = vunpack.c.l.b16 %v46
  %v140 = vunpack.c.h.b16 %v46
  %v141 = vunpack.c.l.b16 %v47
  %v142 = vunpack.c.h.b16 %v47
  %v143 = vunpack.c.l.b16 %v48
  %v144 = vunpack.c.h.b16 %v48
  %v145 = vunpack.c.l.b16 %v49
  %v146 = vunpack.c.h.b16 %v49
  %v147 = vunpack.c.l.b16 %v50
  %v148 = vunpack.c.h.b16 %v50
  %v149 = vunpack.c.l.b16 %v51
  %v150 = vunpack.c.h.b16 %v51
  %v151 = vunpack.c.l.b16 %v52
  %v152 = vunpack.c.h.b16 %v52
  %v153 = vunpack.c.l.b16 %v53
  %v154 = vunpack.c.h.b16 %v53
  %v155 = vunpack.c.l.b16 %v54
  %v156 = vunpack.c.h.b16 %v54
  %v157 = vunpack.c.l.b16 %v55
  %v158 = vunpack.c.h.b16 %v55
  %v159 = vunpack.c.l.b16 %v56
  %v160 = vunpack.c.h.b16 %v56
  %v161 = vunpack.c.l.b16 %v57
  %v162 = vunpack.c.h.b16 %v57
  %v163 = vunpack.c.l.b16 %v58
  %v164 = vunpack.c.h.b16 %v58
  %v165 = vunpack.c.l.b16 %v59
  %v166 = vunpack.c.h.b16 %v59
  %v167 = vunpack.c.l.b16 %v60
  %v168 = vunpack.c.h.b16 %v60
  %v169 = vunpack.c.l.b16 %v61
  %v170 = vunpack.c.h.b16 %v61
  %v171 = vunpack.c.l.b16 %v62
  %v172 = vunpack.c.h.b16 %v62
  %v173 = vunpack.c.l.b16 %v63
  %v174 = vunpack.c.h.b16 %v63
  %v175 = vunpack.c.l.b16 %v64
  %v176 = vunpack.c.h.b16 %v64
  %v177 = vunpack.c.l.b16 %v65
  %v178 = vunpack.c.h.b16 %v65
  %v179 = vunpack.c.l.b16 %v66
  %v180 = vunpack.c.h.b16 %v66
  %v181 = vunpack.c.l.b16 %v67
  %v182 = vunpack.c.h.b16 %v67
  %v183 = vunpack.c.l.b16 %v68
  %v184 = vunpack.c.h.b16 %v68
  %v185 = vunpack.c.l.b16 %v69
  %v186 = vunpack.c.h.b16 %v69
  %v187 = vunpack.c.l.b16 %v70
  %v188 = vunpack.c.h.b16 %v70
  %v189 = vpack.c.b16 %v129, %v125
  %v190 = vpack.c.b16 %v130, %v126
  %v191 = vpack.c.b16 %v131, %v127
  %v192 = vpack.c.b16 %v132, %v128
  %v193 = vpack.c.b16 %v137, %v133
  %v194 = vpack.c.b16 %v138, %v134
  %v195 = vpack.c.b16 %v139, %v135
  %v196 = vpack.c.b16 %v140, %v136
  %v197 = vpack.c.b16 %v145, %v141
  %v198 = vpack.c.b16 %v146, %v142
  %v199 = vpack.c.b16 %v147, %v143
  %v200 = vpack.c.b16 %v148, %v144
  %v201 = vpack.c.b16 %v153, %v149
  %v202 = vpack.c.b16 %v154, %v150
  %v203 = vpack.c.b16 %v155, %v151
  %v204 = vpack.c.b16 %v156, %v152
  %v205 = vpack.c.b16 %v161, %v157
  %v206 = vpack.c.b16 %v162, %v158
  %v207 = vpack.c.b16 %v163, %v159
  %v208 = vpack.c.b16 %v164, %v160
  %v209 = vpack.c.b16 %v169, %v165
  %v210 = vpack.c.b16 %v170, %v166
  %v211 = vpack.c.b16 %v171, %v167
  %v212 = vpack.c.b16 %v172, %v168
  %v213 = vpack.c.b16 %v177, %v173
  %v214 = vpack.c.b16 %v178, %v174
  %v215 = vpack.c.b16 %v179, %v175
  %v216 = vpack.c.b16 %v180, %v176
  %v217 = vpack.c.b16 %v185, %v181
  %v218 = vpack.c.b16 %v186, %v182
  %v219 = vpack.c.b16 %v187, %v183
  %v220 = vpack.c.b16 %v188, %v184
  %253 = vmatprep.subr.bf16.mxu0 %v190
  %254 = vmatpush1.bf16.msra.mxu0 %v189
  %255 = vmatprep.subr.bf16.mxu0 %v194
  %256 = vmatpush1.bf16.msra.mxu0 %v193
  %257 = vmatprep.subr.bf16.mxu0 %v198
  %258 = vmatpush1.bf16.msra.mxu0 %v197
  %259 = vmatprep.subr.bf16.mxu0 %v202
  %260 = vmatpush1.bf16.msra.mxu0 %v201
  %261 = vmatprep.subr.bf16.mxu0 %v206
  %262 = vmatpush1.bf16.msra.mxu0 %v205
  %263 = vmatprep.subr.bf16.mxu0 %v210
  %264 = vmatpush1.bf16.msra.mxu0 %v209
  %265 = vmatprep.subr.bf16.mxu0 %v214
  %266 = vmatpush1.bf16.msra.mxu0 %v213
  %267 = vmatprep.subr.bf16.mxu0 %v218
  %268 = vmatpush1.bf16.msra.mxu0 %v217
  %269 = vmatprep.subr.bf16.mxu0 0
  %270 = vmatpush1.bf16.msra.mxu0 0
  %271 = vmatprep.subr.bf16.mxu0 0
  %272 = vmatpush1.bf16.msra.mxu0 0
  %273 = vmatprep.subr.bf16.mxu0 0
  %274 = vmatpush1.bf16.msra.mxu0 0
  %275 = vmatprep.subr.bf16.mxu0 0
  %276 = vmatpush1.bf16.msra.mxu0 0
  %277 = vmatprep.subr.bf16.mxu0 0
  %278 = vmatpush1.bf16.msra.mxu0 0
  %279 = vmatprep.subr.bf16.mxu0 0
  %280 = vmatpush1.bf16.msra.mxu0 0
  %281 = vmatprep.subr.bf16.mxu0 0
  %282 = vmatpush1.bf16.msra.mxu0 0
  %283 = vmatprep.subr.bf16.mxu0 0
  %284 = vmatpush1.bf16.msra.mxu0 0
  %285 = vmatprep.mubr.bf16.mxu0 0
  %286 = vmatmul.mubr.bf16.gmra.mrb[0].mxu0 %v31
  %v287 = vpop.f32.mrb[0].mxu0
  %v288 = vadd.f32 %v76, %v287
  %v289 = vpop.f32.mrb[0].mxu0
  %v290 = vadd.f32 %v80, %v289
  %v291 = vpop.f32.mrb[0].mxu0
  %v292 = vadd.f32 %v76, %v291
  %v293 = vpop.f32.mrb[0].mxu0
  %v294 = vadd.f32 %v80, %v293
  %295 = vmatprep.mubr.bf16.mxu0 0
  %296 = vmatmul.mubr.bf16.gmra.mrb[0].mxu0 %v32
  %v297 = vpop.f32.mrb[0].mxu0
  %v298 = vadd.f32 %v76, %v297
  %v299 = vpop.f32.mrb[0].mxu0
  %v300 = vadd.f32 %v80, %v299
  %v301 = vpop.f32.mrb[0].mxu0
  %v302 = vadd.f32 %v76, %v301
  %v303 = vpop.f32.mrb[0].mxu0
  %v304 = vadd.f32 %v80, %v303
  %305 = vmatprep.mubr.bf16.mxu0 0
  %306 = vmatmul.mubr.bf16.gmra.mrb[0].mxu0 %v33
  %v307 = vpop.f32.mrb[0].mxu0
  %v308 = vadd.f32 %v76, %v307
  %v309 = vpop.f32.mrb[0].mxu0
  %v310 = vadd.f32 %v80, %v309
  %v311 = vpop.f32.mrb[0].mxu0
  %v312 = vadd.f32 %v76, %v311
  %v313 = vpop.f32.mrb[0].mxu0
  %v314 = vadd.f32 %v80, %v313
  %315 = vmatprep.mubr.bf16.mxu0 0
  %316 = vmatmul.mubr.bf16.gmra.mrb[0].mxu0 %v34
  %v317 = vpop.f32.mrb[0].mxu0
  %v318 = vadd.f32 %v76, %v317
  %v319 = vpop.f32.mrb[0].mxu0
  %v320 = vadd.f32 %v80, %v319
  %v321 = vpop.f32.mrb[0].mxu0
  %v322 = vadd.f32 %v76, %v321
  %v323 = vpop.f32.mrb[0].mxu0
  %v324 = vadd.f32 %v80, %v323
  %325 = vmatprep.mubr.bf16.mxu0 0
  %326 = vmatmul.mubr.bf16.gmra.mrb[0].mxu0 %v35
  %v327 = vpop.f32.mrb[0].mxu0
  %v328 = vadd.f32 %v76, %v327
  %v329 = vpop.f32.mrb[0].mxu0
  %v330 = vadd.f32 %v80, %v329
  %v331 = vpop.f32.mrb[0].mxu0
  %v332 = vadd.f32 %v76, %v331
  %v333 = vpop.f32.mrb[0].mxu0
  %v334 = vadd.f32 %v80, %v333
  %335 = vmatprep.mubr.bf16.mxu0 0
  %336 = vmatmul.mubr.bf16.gmra.mrb[0].mxu0 %v36
  %v337 = vpop.f32.mrb[0].mxu0
  %v338 = vadd.f32 %v76, %v337
  %v339 = vpop.f32.mrb[0].mxu0
  %v340 = vadd.f32 %v80, %v339
  %v341 = vpop.f32.mrb[0].mxu0
  %v342 = vadd.f32 %v76, %v341
  %v343 = vpop.f32.mrb[0].mxu0
  %v344 = vadd.f32 %v80, %v343
  %345 = vmatprep.mubr.bf16.mxu0 0
  %346 = vmatmul.mubr.bf16.gmra.mrb[0].mxu0 %v37
  %v347 = vpop.f32.mrb[0].mxu0
  %v348 = vadd.f32 %v76, %v347
  %v349 = vpop.f32.mrb[0].mxu0
  %v350 = vadd.f32 %v80, %v349
  %v351 = vpop.f32.mrb[0].mxu0
  %v352 = vadd.f32 %v76, %v351
  %v353 = vpop.f32.mrb[0].mxu0
  %v354 = vadd.f32 %v80, %v353
  %355 = vmatprep.mubr.bf16.mxu0 0
  %356 = vmatmul.mubr.bf16.gmra.mrb[0].mxu0 %v38
  %v357 = vpop.f32.mrb[0].mxu0
  %v358 = vadd.f32 %v76, %v357
  %v359 = vpop.f32.mrb[0].mxu0
  %v360 = vadd.f32 %v80, %v359
  %v361 = vpop.f32.mrb[0].mxu0
  %v362 = vadd.f32 %v76, %v361
  %v363 = vpop.f32.mrb[0].mxu0
  %v364 = vadd.f32 %v80, %v363
  %365 = vdwg.mxu0
  %366 = vmatprep.subr.bf16.mxu0 %v192
  %367 = vmatpush1.bf16.msra.mxu0 %v191
  %368 = vmatprep.subr.bf16.mxu0 %v196
  %369 = vmatpush1.bf16.msra.mxu0 %v195
  %370 = vmatprep.subr.bf16.mxu0 %v200
  %371 = vmatpush1.bf16.msra.mxu0 %v199
  %372 = vmatprep.subr.bf16.mxu0 %v204
  %373 = vmatpush1.bf16.msra.mxu0 %v203
  %374 = vmatprep.subr.bf16.mxu0 %v208
  %375 = vmatpush1.bf16.msra.mxu0 %v207
  %376 = vmatprep.subr.bf16.mxu0 %v212
  %377 = vmatpush1.bf16.msra.mxu0 %v211
  %378 = vmatprep.subr.bf16.mxu0 %v216
  %379 = vmatpush1.bf16.msra.mxu0 %v215
  %380 = vmatprep.subr.bf16.mxu0 %v220
  %381 = vmatpush1.bf16.msra.mxu0 %v219
  %382 = vmatprep.subr.bf16.mxu0 0
  %383 = vmatpush1.bf16.msra.mxu0 0
  %384 = vmatprep.subr.bf16.mxu0 0
  %385 = vmatpush1.bf16.msra.mxu0 0
  %386 = vmatprep.subr.bf16.mxu0 0
  %387 = vmatpush1.bf16.msra.mxu0 0
  %388 = vmatprep.subr.bf16.mxu0 0
  %389 = vmatpush1.bf16.msra.mxu0 0
  %390 = vmatprep.subr.bf16.mxu0 0
  %391 = vmatpush1.bf16.msra.mxu0 0
  %392 = vmatprep.subr.bf16.mxu0 0
  %393 = vmatpush1.bf16.msra.mxu0 0
  %394 = vmatprep.subr.bf16.mxu0 0
  %395 = vmatpush1.bf16.msra.mxu0 0
  %396 = vmatprep.subr.bf16.mxu0 0
  %397 = vmatpush1.bf16.msra.mxu0 0
  %398 = vmatprep.mubr.bf16.mxu0 0
  %399 = vmatmul.mubr.bf16.gmra.mrb[0].mxu0 %v31
  %v400 = vpop.f32.mrb[0].mxu0
  %v401 = vadd.f32 %v84, %v400
  %v402 = vpop.f32.mrb[0].mxu0
  %v403 = vadd.f32 %v88, %v402
  %v404 = vpop.f32.mrb[0].mxu0
  %v405 = vadd.f32 %v84, %v404
  %v406 = vpop.f32.mrb[0].mxu0
  %v407 = vadd.f32 %v88, %v406
  %408 = vmatprep.mubr.bf16.mxu0 0
  %409 = vmatmul.mubr.bf16.gmra.mrb[0].mxu0 %v32
  %v410 = vpop.f32.mrb[0].mxu0
  %v411 = vadd.f32 %v84, %v410
  %v412 = vpop.f32.mrb[0].mxu0
  %v413 = vadd.f32 %v88, %v412
  %v414 = vpop.f32.mrb[0].mxu0
  %v415 = vadd.f32 %v84, %v414
  %v416 = vpop.f32.mrb[0].mxu0
  %v417 = vadd.f32 %v88, %v416
  %418 = vmatprep.mubr.bf16.mxu0 0
  %419 = vmatmul.mubr.bf16.gmra.mrb[0].mxu0 %v33
  %v420 = vpop.f32.mrb[0].mxu0
  %v421 = vadd.f32 %v84, %v420
  %v422 = vpop.f32.mrb[0].mxu0
  %v423 = vadd.f32 %v88, %v422
  %v424 = vpop.f32.mrb[0].mxu0
  %v425 = vadd.f32 %v84, %v424
  %v426 = vpop.f32.mrb[0].mxu0
  %v427 = vadd.f32 %v88, %v426
  %428 = vmatprep.mubr.bf16.mxu0 0
  %429 = vmatmul.mubr.bf16.gmra.mrb[0].mxu0 %v34
  %v430 = vpop.f32.mrb[0].mxu0
  %v431 = vadd.f32 %v84, %v430
  %v432 = vpop.f32.mrb[0].mxu0
  %v433 = vadd.f32 %v88, %v432
  %v434 = vpop.f32.mrb[0].mxu0
  %v435 = vadd.f32 %v84, %v434
  %v436 = vpop.f32.mrb[0].mxu0
  %v437 = vadd.f32 %v88, %v436
  %438 = vmatprep.mubr.bf16.mxu0 0
  %439 = vmatmul.mubr.bf16.gmra.mrb[0].mxu0 %v35
  %v440 = vpop.f32.mrb[0].mxu0
  %v441 = vadd.f32 %v84, %v440
  %v442 = vpop.f32.mrb[0].mxu0
  %v443 = vadd.f32 %v88, %v442
  %v444 = vpop.f32.mrb[0].mxu0
  %v445 = vadd.f32 %v84, %v444
  %v446 = vpop.f32.mrb[0].mxu0
  %v447 = vadd.f32 %v88, %v446
  %448 = vmatprep.mubr.bf16.mxu0 0
  %449 = vmatmul.mubr.bf16.gmra.mrb[0].mxu0 %v36
  %v450 = vpop.f32.mrb[0].mxu0
  %v451 = vadd.f32 %v84, %v450
  %v452 = vpop.f32.mrb[0].mxu0
  %v453 = vadd.f32 %v88, %v452
  %v454 = vpop.f32.mrb[0].mxu0
  %v455 = vadd.f32 %v84, %v454
  %v456 = vpop.f32.mrb[0].mxu0
  %v457 = vadd.f32 %v88, %v456
  %458 = vmatprep.mubr.bf16.mxu0 0
  %459 = vmatmul.mubr.bf16.gmra.mrb[0].mxu0 %v37
  %v460 = vpop.f32.mrb[0].mxu0
  %v461 = vadd.f32 %v84, %v460
  %v462 = vpop.f32.mrb[0].mxu0
  %v463 = vadd.f32 %v88, %v462
  %v464 = vpop.f32.mrb[0].mxu0
  %v465 = vadd.f32 %v84, %v464
  %v466 = vpop.f32.mrb[0].mxu0
  %v467 = vadd.f32 %v88, %v466
  %468 = vmatprep.mubr.bf16.mxu0 0
  %469 = vmatmul.mubr.bf16.gmra.mrb[0].mxu0 %v38
  %v470 = vpop.f32.mrb[0].mxu0
  %v471 = vadd.f32 %v84, %v470
  %v472 = vpop.f32.mrb[0].mxu0
  %v473 = vadd.f32 %v88, %v472
  %v474 = vpop.f32.mrb[0].mxu0
  %v475 = vadd.f32 %v84, %v474
  %v476 = vpop.f32.mrb[0].mxu0
  %v477 = vadd.f32 %v88, %v476
  %478 = vdwg.mxu0
  %479 = vst [vmem:[%s3] sm:$0xff] %v288
  %480 = vst [vmem:[%s3 + $0x8] sm:$0xff] %v290
  %481 = vst [vmem:[%s3 + $0x10] sm:$0xff] %v401
  %482 = vst [vmem:[%s3 + $0x18] sm:$0xff] %v403
  %483 = vst [vmem:[%s3 + $0x20] sm:$0xff] %v292
  %484 = vst [vmem:[%s3 + $0x28] sm:$0xff] %v294
  %485 = vst [vmem:[%s3 + $0x30] sm:$0xff] %v405
  %486 = vst [vmem:[%s3 + $0x38] sm:$0xff] %v407
  %487 = vst [vmem:[%s3 + $0x40] sm:$0xff] %v298
  %488 = vst [vmem:[%s3 + $0x48] sm:$0xff] %v300
  %489 = vst [vmem:[%s3 + $0x50] sm:$0xff] %v411
  %490 = vst [vmem:[%s3 + $0x58] sm:$0xff] %v413
  %491 = vst [vmem:[%s3 + $0x60] sm:$0xff] %v302
  %492 = vst [vmem:[%s3 + $0x68] sm:$0xff] %v304
  %493 = vst [vmem:[%s3 + $0x70] sm:$0xff] %v415
  %494 = vst [vmem:[%s3 + $0x78] sm:$0xff] %v417
  %495 = vst [vmem:[%s3 + $0x80] sm:$0xff] %v308
  %496 = vst [vmem:[%s3 + $0x88] sm:$0xff] %v310
  %497 = vst [vmem:[%s3 + $0x90] sm:$0xff] %v421
  %498 = vst [vmem:[%s3 + $0x98] sm:$0xff] %v423
  %499 = vst [vmem:[%s3 + $0xa0] sm:$0xff] %v312
  %500 = vst [vmem:[%s3 + $0xa8] sm:$0xff] %v314
  %501 = vst [vmem:[%s3 + $0xb0] sm:$0xff] %v425
  %502 = vst [vmem:[%s3 + $0xb8] sm:$0xff] %v427
  %503 = vst [vmem:[%s3 + $0xc0] sm:$0xff] %v318
  %504 = vst [vmem:[%s3 + $0xc8] sm:$0xff] %v320
  %505 = vst [vmem:[%s3 + $0xd0] sm:$0xff] %v431
  %506 = vst [vmem:[%s3 + $0xd8] sm:$0xff] %v433
  %507 = vst [vmem:[%s3 + $0xe0] sm:$0xff] %v322
  %508 = vst [vmem:[%s3 + $0xe8] sm:$0xff] %v324
  %509 = vst [vmem:[%s3 + $0xf0] sm:$0xff] %v435
  %510 = vst [vmem:[%s3 + $0xf8] sm:$0xff] %v437
  %511 = vst [vmem:[%s3 + $0x100] sm:$0xff] %v328
  %512 = vst [vmem:[%s3 + $0x108] sm:$0xff] %v330
  %513 = vst [vmem:[%s3 + $0x110] sm:$0xff] %v441
  %514 = vst [vmem:[%s3 + $0x118] sm:$0xff] %v443
  %515 = vst [vmem:[%s3 + $0x120] sm:$0xff] %v332
  %516 = vst [vmem:[%s3 + $0x128] sm:$0xff] %v334
  %517 = vst [vmem:[%s3 + $0x130] sm:$0xff] %v445
  %518 = vst [vmem:[%s3 + $0x138] sm:$0xff] %v447
  %519 = vst [vmem:[%s3 + $0x140] sm:$0xff] %v338
  %520 = vst [vmem:[%s3 + $0x148] sm:$0xff] %v340
  %521 = vst [vmem:[%s3 + $0x150] sm:$0xff] %v451
  %522 = vst [vmem:[%s3 + $0x158] sm:$0xff] %v453
  %523 = vst [vmem:[%s3 + $0x160] sm:$0xff] %v342
  %524 = vst [vmem:[%s3 + $0x168] sm:$0xff] %v344
  %525 = vst [vmem:[%s3 + $0x170] sm:$0xff] %v455
  %526 = vst [vmem:[%s3 + $0x178] sm:$0xff] %v457
  %527 = vst [vmem:[%s3 + $0x180] sm:$0xff] %v348
  %528 = vst [vmem:[%s3 + $0x188] sm:$0xff] %v350
  %529 = vst [vmem:[%s3 + $0x190] sm:$0xff] %v461
  %530 = vst [vmem:[%s3 + $0x198] sm:$0xff] %v463
  %531 = vst [vmem:[%s3 + $0x1a0] sm:$0xff] %v352
  %532 = vst [vmem:[%s3 + $0x1a8] sm:$0xff] %v354
  %533 = vst [vmem:[%s3 + $0x1b0] sm:$0xff] %v465
  %534 = vst [vmem:[%s3 + $0x1b8] sm:$0xff] %v467
  %535 = vst [vmem:[%s3 + $0x1c0] sm:$0xff] %v358
  %536 = vst [vmem:[%s3 + $0x1c8] sm:$0xff] %v360
  %537 = vst [vmem:[%s3 + $0x1d0] sm:$0xff] %v471
  %538 = vst [vmem:[%s3 + $0x1d8] sm:$0xff] %v473
  %539 = vst [vmem:[%s3 + $0x1e0] sm:$0xff] %v362
  %540 = vst [vmem:[%s3 + $0x1e8] sm:$0xff] %v364
  %541 = vst [vmem:[%s3 + $0x1f0] sm:$0xff] %v475
  %542 = vst [vmem:[%s3 + $0x1f8] sm:$0xff] %v477
  // Predicated region
  $region14: #{hflstmlm_forward.5} parent=0 // pred_check
    _
  $region15: #{hflstmlm_forward.5} parent=0 // pred_check_branch
    %544 = sbr.rel (0) target = $region17
  $region16: #{hflstmlm_forward.5} parent=0 // pred_region
    _
  $region17: #{hflstmlm_forward.5} parent=0 // pred_fallthru
    _
  // Predicated region
  $region18: #{hflstmlm_forward.5} parent=0 // pred_check
    _
  $region19: #{hflstmlm_forward.5} parent=0 // pred_check_branch
    %546 = sbr.rel (0) target = $region21
  $region20: #{hflstmlm_forward.5} parent=0 // pred_region
    _
  $region21: #{hflstmlm_forward.5} parent=0 // pred_fallthru
    _

// kernel: hflstmlm_forward.9
$region0: #{hflstmlm_forward.9}
  #allocation0 [shape = 'u32[]', space=smem, size = 0x4, offset = 0x4, fixed_abs, tag = 'smem constant byte address 0x4 - core index']
  #allocation1 [shape = 'u32[144,128]{1,0:T(1,128)}', space=vmem, size = 0x12000, scoped, tag = 'internal scratch']
  %s0 = inlined_call_operand.vmem [shape: f32[128,128], index: 0, kind: input, shape index: {}]
  %s1 = inlined_call_operand.vmem [shape: bf16[128,512], index: 1, kind: input, shape index: {}]
  %s2 = inlined_call_operand.vmem [shape: f32[1,512], index: 2, kind: input, shape index: {}]
  %s3 = inlined_call_operand.hbm [shape: f32[128,512], index: 3, kind: output, shape index: {}]
  %s4 = sld [smem:[#allocation0]]
  $region22: #{hflstmlm_forward.9} parent=0
    _
  %s6 = ssub.s32 1, %s4
  %s7 = scalar_select 0, %s6, %s4
  $region1: #{hflstmlm_forward.9} parent=0
    #allocation2 [shape = 'u8[262144]{0}', space=vmem, size = 0x40000, scoped, tag = 'output window, operand 0, single buffered']
    #allocation3 [shape = 's32[1]{0}', space=sflag, size = 0x4, scoped, tag = 'scoped memory for hflstmlm_forward.9']
    %8 = vsyncpa [#allocation3], 0
    // Predicated region
    $region2: #{hflstmlm_forward.9} parent=1 // pred_check
      _
    $region3: #{hflstmlm_forward.9} parent=1 // pred_check_branch
      %10 = sbr.rel (0) target = $region5
    $region4: #{hflstmlm_forward.9} parent=1 // pred_region
      _
    $region5: #{hflstmlm_forward.9} parent=1 // pred_fallthru
      _
    // Predicated region
    $region6: #{hflstmlm_forward.9} parent=1 // pred_check
      _
    $region7: #{hflstmlm_forward.9} parent=1 // pred_check_branch
      %12 = sbr.rel (0) target = $region9
    $region8: #{hflstmlm_forward.9} parent=1 // pred_region
      _
    $region9: #{hflstmlm_forward.9} parent=1 // pred_fallthru
      _
    // Predicated region
    $region10: #{hflstmlm_forward.9} parent=1 // pred_check
      _
    $region11: #{hflstmlm_forward.9} parent=1 // pred_check_branch
      %14 = sbr.rel (0) target = $region13
    $region12: #{hflstmlm_forward.9} parent=1 // pred_region
      _
    $region13: #{hflstmlm_forward.9} parent=1 // pred_fallthru
      _
    %v16 = vld [vmem:[%s0] sm:$0xff]
    %v17 = vld [vmem:[%s0 + $0x8] sm:$0xff]
    %v18 = vld [vmem:[%s0 + $0x10] sm:$0xff]
    %v19 = vld [vmem:[%s0 + $0x18] sm:$0xff]
    %v20 = vld [vmem:[%s0 + $0x20] sm:$0xff]
    %v21 = vld [vmem:[%s0 + $0x28] sm:$0xff]
    %v22 = vld [vmem:[%s0 + $0x30] sm:$0xff]
    %v23 = vld [vmem:[%s0 + $0x38] sm:$0xff]
    %v24 = vld [vmem:[%s0 + $0x40] sm:$0xff]
    %v25 = vld [vmem:[%s0 + $0x48] sm:$0xff]
    %v26 = vld [vmem:[%s0 + $0x50] sm:$0xff]
    %v27 = vld [vmem:[%s0 + $0x58] sm:$0xff]
    %v28 = vld [vmem:[%s0 + $0x60] sm:$0xff]
    %v29 = vld [vmem:[%s0 + $0x68] sm:$0xff]
    %v30 = vld [vmem:[%s0 + $0x70] sm:$0xff]
    %v31 = vld [vmem:[%s0 + $0x78] sm:$0xff]
    %v32 = vpack.c.bf16 %v17, %v16
    %v33 = vpack.c.bf16 %v19, %v18
    %v34 = vpack.c.bf16 %v21, %v20
    %v35 = vpack.c.bf16 %v23, %v22
    %v36 = vpack.c.bf16 %v25, %v24
    %v37 = vpack.c.bf16 %v27, %v26
    %v38 = vpack.c.bf16 %v29, %v28
    %v39 = vpack.c.bf16 %v31, %v30
    %v40 = vld [vmem:[%s1] sm:$0xff]
    %v41 = vld [vmem:[%s1 + $0x8] sm:$0xff]
    %v42 = vld [vmem:[%s1 + $0x10] sm:$0xff]
    %v43 = vld [vmem:[%s1 + $0x18] sm:$0xff]
    %v44 = vld [vmem:[%s1 + $0x20] sm:$0xff]
    %v45 = vld [vmem:[%s1 + $0x28] sm:$0xff]
    %v46 = vld [vmem:[%s1 + $0x30] sm:$0xff]
    %v47 = vld [vmem:[%s1 + $0x38] sm:$0xff]
    %v48 = vld [vmem:[%s1 + $0x40] sm:$0xff]
    %v49 = vld [vmem:[%s1 + $0x48] sm:$0xff]
    %v50 = vld [vmem:[%s1 + $0x50] sm:$0xff]
    %v51 = vld [vmem:[%s1 + $0x58] sm:$0xff]
    %v52 = vld [vmem:[%s1 + $0x60] sm:$0xff]
    %v53 = vld [vmem:[%s1 + $0x68] sm:$0xff]
    %v54 = vld [vmem:[%s1 + $0x70] sm:$0xff]
    %v55 = vld [vmem:[%s1 + $0x78] sm:$0xff]
    %v56 = vld [vmem:[%s1 + $0x80] sm:$0xff]
    %v57 = vld [vmem:[%s1 + $0x88] sm:$0xff]
    %v58 = vld [vmem:[%s1 + $0x90] sm:$0xff]
    %v59 = vld [vmem:[%s1 + $0x98] sm:$0xff]
    %v60 = vld [vmem:[%s1 + $0xa0] sm:$0xff]
    %v61 = vld [vmem:[%s1 + $0xa8] sm:$0xff]
    %v62 = vld [vmem:[%s1 + $0xb0] sm:$0xff]
    %v63 = vld [vmem:[%s1 + $0xb8] sm:$0xff]
    %v64 = vld [vmem:[%s1 + $0xc0] sm:$0xff]
    %v65 = vld [vmem:[%s1 + $0xc8] sm:$0xff]
    %v66 = vld [vmem:[%s1 + $0xd0] sm:$0xff]
    %v67 = vld [vmem:[%s1 + $0xd8] sm:$0xff]
    %v68 = vld [vmem:[%s1 + $0xe0] sm:$0xff]
    %v69 = vld [vmem:[%s1 + $0xe8] sm:$0xff]
    %v70 = vld [vmem:[%s1 + $0xf0] sm:$0xff]
    %v71 = vld [vmem:[%s1 + $0xf8] sm:$0xff]
    %v72 = vld [vmem:[%s2] sm:$0xf]
    %v74 = vlaneseq
    %v75 = vshrl.u32 %v74, 7
    %v76 = vsub.s32 0, %v75
    %v77 = vrot.slane %v72, %v76
    %v78 = vlaneseq
    %v79 = vshrl.u32 %v78, 7
    %v80 = vsub.s32 1, %v79
    %v81 = vrot.slane %v72, %v80
    %v82 = vlaneseq
    %v83 = vshrl.u32 %v82, 7
    %v84 = vsub.s32 2, %v83
    %v85 = vrot.slane %v72, %v84
    %v86 = vlaneseq
    %v87 = vshrl.u32 %v86, 7
    %v88 = vsub.s32 3, %v87
    %v89 = vrot.slane %v72, %v88
    %v126 = vunpack.c.l.b16 %v40
    %v127 = vunpack.c.h.b16 %v40
    %v128 = vunpack.c.l.b16 %v41
    %v129 = vunpack.c.h.b16 %v41
    %v130 = vunpack.c.l.b16 %v42
    %v131 = vunpack.c.h.b16 %v42
    %v132 = vunpack.c.l.b16 %v43
    %v133 = vunpack.c.h.b16 %v43
    %v134 = vunpack.c.l.b16 %v44
    %v135 = vunpack.c.h.b16 %v44
    %v136 = vunpack.c.l.b16 %v45
    %v137 = vunpack.c.h.b16 %v45
    %v138 = vunpack.c.l.b16 %v46
    %v139 = vunpack.c.h.b16 %v46
    %v140 = vunpack.c.l.b16 %v47
    %v141 = vunpack.c.h.b16 %v47
    %v142 = vunpack.c.l.b16 %v48
    %v143 = vunpack.c.h.b16 %v48
    %v144 = vunpack.c.l.b16 %v49
    %v145 = vunpack.c.h.b16 %v49
    %v146 = vunpack.c.l.b16 %v50
    %v147 = vunpack.c.h.b16 %v50
    %v148 = vunpack.c.l.b16 %v51
    %v149 = vunpack.c.h.b16 %v51
    %v150 = vunpack.c.l.b16 %v52
    %v151 = vunpack.c.h.b16 %v52
    %v152 = vunpack.c.l.b16 %v53
    %v153 = vunpack.c.h.b16 %v53
    %v154 = vunpack.c.l.b16 %v54
    %v155 = vunpack.c.h.b16 %v54
    %v156 = vunpack.c.l.b16 %v55
    %v157 = vunpack.c.h.b16 %v55
    %v158 = vunpack.c.l.b16 %v56
    %v159 = vunpack.c.h.b16 %v56
    %v160 = vunpack.c.l.b16 %v57
    %v161 = vunpack.c.h.b16 %v57
    %v162 = vunpack.c.l.b16 %v58
    %v163 = vunpack.c.h.b16 %v58
    %v164 = vunpack.c.l.b16 %v59
    %v165 = vunpack.c.h.b16 %v59
    %v166 = vunpack.c.l.b16 %v60
    %v167 = vunpack.c.h.b16 %v60
    %v168 = vunpack.c.l.b16 %v61
    %v169 = vunpack.c.h.b16 %v61
    %v170 = vunpack.c.l.b16 %v62
    %v171 = vunpack.c.h.b16 %v62
    %v172 = vunpack.c.l.b16 %v63
    %v173 = vunpack.c.h.b16 %v63
    %v174 = vunpack.c.l.b16 %v64
    %v175 = vunpack.c.h.b16 %v64
    %v176 = vunpack.c.l.b16 %v65
    %v177 = vunpack.c.h.b16 %v65
    %v178 = vunpack.c.l.b16 %v66
    %v179 = vunpack.c.h.b16 %v66
    %v180 = vunpack.c.l.b16 %v67
    %v181 = vunpack.c.h.b16 %v67
    %v182 = vunpack.c.l.b16 %v68
    %v183 = vunpack.c.h.b16 %v68
    %v184 = vunpack.c.l.b16 %v69
    %v185 = vunpack.c.h.b16 %v69
    %v186 = vunpack.c.l.b16 %v70
    %v187 = vunpack.c.h.b16 %v70
    %v188 = vunpack.c.l.b16 %v71
    %v189 = vunpack.c.h.b16 %v71
    %v190 = vpack.c.b16 %v130, %v126
    %v191 = vpack.c.b16 %v131, %v127
    %v192 = vpack.c.b16 %v132, %v128
    %v193 = vpack.c.b16 %v133, %v129
    %v194 = vpack.c.b16 %v138, %v134
    %v195 = vpack.c.b16 %v139, %v135
    %v196 = vpack.c.b16 %v140, %v136
    %v197 = vpack.c.b16 %v141, %v137
    %v198 = vpack.c.b16 %v146, %v142
    %v199 = vpack.c.b16 %v147, %v143
    %v200 = vpack.c.b16 %v148, %v144
    %v201 = vpack.c.b16 %v149, %v145
    %v202 = vpack.c.b16 %v154, %v150
    %v203 = vpack.c.b16 %v155, %v151
    %v204 = vpack.c.b16 %v156, %v152
    %v205 = vpack.c.b16 %v157, %v153
    %v206 = vpack.c.b16 %v162, %v158
    %v207 = vpack.c.b16 %v163, %v159
    %v208 = vpack.c.b16 %v164, %v160
    %v209 = vpack.c.b16 %v165, %v161
    %v210 = vpack.c.b16 %v170, %v166
    %v211 = vpack.c.b16 %v171, %v167
    %v212 = vpack.c.b16 %v172, %v168
    %v213 = vpack.c.b16 %v173, %v169
    %v214 = vpack.c.b16 %v178, %v174
    %v215 = vpack.c.b16 %v179, %v175
    %v216 = vpack.c.b16 %v180, %v176
    %v217 = vpack.c.b16 %v181, %v177
    %v218 = vpack.c.b16 %v186, %v182
    %v219 = vpack.c.b16 %v187, %v183
    %v220 = vpack.c.b16 %v188, %v184
    %v221 = vpack.c.b16 %v189, %v185
    %254 = vmatprep.subr.bf16.mxu0 %v191
    %255 = vmatpush1.bf16.msra.mxu0 %v190
    %256 = vmatprep.subr.bf16.mxu0 %v195
    %257 = vmatpush1.bf16.msra.mxu0 %v194
    %258 = vmatprep.subr.bf16.mxu0 %v199
    %259 = vmatpush1.bf16.msra.mxu0 %v198
    %260 = vmatprep.subr.bf16.mxu0 %v203
    %261 = vmatpush1.bf16.msra.mxu0 %v202
    %262 = vmatprep.subr.bf16.mxu0 %v207
    %263 = vmatpush1.bf16.msra.mxu0 %v206
    %264 = vmatprep.subr.bf16.mxu0 %v211
    %265 = vmatpush1.bf16.msra.mxu0 %v210
    %266 = vmatprep.subr.bf16.mxu0 %v215
    %267 = vmatpush1.bf16.msra.mxu0 %v214
    %268 = vmatprep.subr.bf16.mxu0 %v219
    %269 = vmatpush1.bf16.msra.mxu0 %v218
    %270 = vmatprep.subr.bf16.mxu0 0
    %271 = vmatpush1.bf16.msra.mxu0 0
    %272 = vmatprep.subr.bf16.mxu0 0
    %273 = vmatpush1.bf16.msra.mxu0 0
    %274 = vmatprep.subr.bf16.mxu0 0
    %275 = vmatpush1.bf16.msra.mxu0 0
    %276 = vmatprep.subr.bf16.mxu0 0
    %277 = vmatpush1.bf16.msra.mxu0 0
    %278 = vmatprep.subr.bf16.mxu0 0
    %279 = vmatpush1.bf16.msra.mxu0 0
    %280 = vmatprep.subr.bf16.mxu0 0
    %281 = vmatpush1.bf16.msra.mxu0 0
    %282 = vmatprep.subr.bf16.mxu0 0
    %283 = vmatpush1.bf16.msra.mxu0 0
    %284 = vmatprep.subr.bf16.mxu0 0
    %285 = vmatpush1.bf16.msra.mxu0 0
    %286 = vmatprep.mubr.bf16.mxu0 0
    %287 = vmatmul.mubr.bf16.gmra.mrb[0].mxu0 %v32
    %v288 = vpop.f32.mrb[0].mxu0
    %v289 = vadd.f32 %v77, %v288
    %v290 = vpop.f32.mrb[0].mxu0
    %v291 = vadd.f32 %v81, %v290
    %v292 = vpop.f32.mrb[0].mxu0
    %v293 = vadd.f32 %v77, %v292
    %v294 = vpop.f32.mrb[0].mxu0
    %v295 = vadd.f32 %v81, %v294
    %296 = vmatprep.mubr.bf16.mxu0 0
    %297 = vmatmul.mubr.bf16.gmra.mrb[0].mxu0 %v33
    %v298 = vpop.f32.mrb[0].mxu0
    %v299 = vadd.f32 %v77, %v298
    %v300 = vpop.f32.mrb[0].mxu0
    %v301 = vadd.f32 %v81, %v300
    %v302 = vpop.f32.mrb[0].mxu0
    %v303 = vadd.f32 %v77, %v302
    %v304 = vpop.f32.mrb[0].mxu0
    %v305 = vadd.f32 %v81, %v304
    %306 = vmatprep.mubr.bf16.mxu0 0
    %307 = vmatmul.mubr.bf16.gmra.mrb[0].mxu0 %v34
    %v308 = vpop.f32.mrb[0].mxu0
    %v309 = vadd.f32 %v77, %v308
    %v310 = vpop.f32.mrb[0].mxu0
    %v311 = vadd.f32 %v81, %v310
    %v312 = vpop.f32.mrb[0].mxu0
    %v313 = vadd.f32 %v77, %v312
    %v314 = vpop.f32.mrb[0].mxu0
    %v315 = vadd.f32 %v81, %v314
    %316 = vmatprep.mubr.bf16.mxu0 0
    %317 = vmatmul.mubr.bf16.gmra.mrb[0].mxu0 %v35
    %v318 = vpop.f32.mrb[0].mxu0
    %v319 = vadd.f32 %v77, %v318
    %v320 = vpop.f32.mrb[0].mxu0
    %v321 = vadd.f32 %v81, %v320
    %v322 = vpop.f32.mrb[0].mxu0
    %v323 = vadd.f32 %v77, %v322
    %v324 = vpop.f32.mrb[0].mxu0
    %v325 = vadd.f32 %v81, %v324
    %326 = vmatprep.mubr.bf16.mxu0 0
    %327 = vmatmul.mubr.bf16.gmra.mrb[0].mxu0 %v36
    %v328 = vpop.f32.mrb[0].mxu0
    %v329 = vadd.f32 %v77, %v328
    %v330 = vpop.f32.mrb[0].mxu0
    %v331 = vadd.f32 %v81, %v330
    %v332 = vpop.f32.mrb[0].mxu0
    %v333 = vadd.f32 %v77, %v332
    %v334 = vpop.f32.mrb[0].mxu0
    %v335 = vadd.f32 %v81, %v334
    %336 = vmatprep.mubr.bf16.mxu0 0
    %337 = vmatmul.mubr.bf16.gmra.mrb[0].mxu0 %v37
    %v338 = vpop.f32.mrb[0].mxu0
    %v339 = vadd.f32 %v77, %v338
    %v340 = vpop.f32.mrb[0].mxu0
    %v341 = vadd.f32 %v81, %v340
    %v342 = vpop.f32.mrb[0].mxu0
    %v343 = vadd.f32 %v77, %v342
    %v344 = vpop.f32.mrb[0].mxu0
    %v345 = vadd.f32 %v81, %v344
    %346 = vmatprep.mubr.bf16.mxu0 0
    %347 = vmatmul.mubr.bf16.gmra.mrb[0].mxu0 %v38
    %v348 = vpop.f32.mrb[0].mxu0
    %v349 = vadd.f32 %v77, %v348
    %v350 = vpop.f32.mrb[0].mxu0
    %v351 = vadd.f32 %v81, %v350
    %v352 = vpop.f32.mrb[0].mxu0
    %v353 = vadd.f32 %v77, %v352
    %v354 = vpop.f32.mrb[0].mxu0
    %v355 = vadd.f32 %v81, %v354
    %356 = vmatprep.mubr.bf16.mxu0 0
    %357 = vmatmul.mubr.bf16.gmra.mrb[0].mxu0 %v39
    %v358 = vpop.f32.mrb[0].mxu0
    %v359 = vadd.f32 %v77, %v358
    %v360 = vpop.f32.mrb[0].mxu0
    %v361 = vadd.f32 %v81, %v360
    %v362 = vpop.f32.mrb[0].mxu0
    %v363 = vadd.f32 %v77, %v362
    %v364 = vpop.f32.mrb[0].mxu0
    %v365 = vadd.f32 %v81, %v364
    %366 = vdwg.mxu0
    %367 = vmatprep.subr.bf16.mxu0 %v193
    %368 = vmatpush1.bf16.msra.mxu0 %v192
    %369 = vmatprep.subr.bf16.mxu0 %v197
    %370 = vmatpush1.bf16.msra.mxu0 %v196
    %371 = vmatprep.subr.bf16.mxu0 %v201
    %372 = vmatpush1.bf16.msra.mxu0 %v200
    %373 = vmatprep.subr.bf16.mxu0 %v205
    %374 = vmatpush1.bf16.msra.mxu0 %v204
    %375 = vmatprep.subr.bf16.mxu0 %v209
    %376 = vmatpush1.bf16.msra.mxu0 %v208
    %377 = vmatprep.subr.bf16.mxu0 %v213
    %378 = vmatpush1.bf16.msra.mxu0 %v212
    %379 = vmatprep.subr.bf16.mxu0 %v217
    %380 = vmatpush1.bf16.msra.mxu0 %v216
    %381 = vmatprep.subr.bf16.mxu0 %v221
    %382 = vmatpush1.bf16.msra.mxu0 %v220
    %383 = vmatprep.subr.bf16.mxu0 0
    %384 = vmatpush1.bf16.msra.mxu0 0
    %385 = vmatprep.subr.bf16.mxu0 0
    %386 = vmatpush1.bf16.msra.mxu0 0
    %387 = vmatprep.subr.bf16.mxu0 0
    %388 = vmatpush1.bf16.msra.mxu0 0
    %389 = vmatprep.subr.bf16.mxu0 0
    %390 = vmatpush1.bf16.msra.mxu0 0
    %391 = vmatprep.subr.bf16.mxu0 0
    %392 = vmatpush1.bf16.msra.mxu0 0
    %393 = vmatprep.subr.bf16.mxu0 0
    %394 = vmatpush1.bf16.msra.mxu0 0
    %395 = vmatprep.subr.bf16.mxu0 0
    %396 = vmatpush1.bf16.msra.mxu0 0
    %397 = vmatprep.subr.bf16.mxu0 0
    %398 = vmatpush1.bf16.msra.mxu0 0
    %399 = vmatprep.mubr.bf16.mxu0 0
    %400 = vmatmul.mubr.bf16.gmra.mrb[0].mxu0 %v32
    %v401 = vpop.f32.mrb[0].mxu0
    %v402 = vadd.f32 %v85, %v401
    %v403 = vpop.f32.mrb[0].mxu0
    %v404 = vadd.f32 %v89, %v403
    %v405 = vpop.f32.mrb[0].mxu0
    %v406 = vadd.f32 %v85, %v405
    %v407 = vpop.f32.mrb[0].mxu0
    %v408 = vadd.f32 %v89, %v407
    %409 = vmatprep.mubr.bf16.mxu0 0
    %410 = vmatmul.mubr.bf16.gmra.mrb[0].mxu0 %v33
    %v411 = vpop.f32.mrb[0].mxu0
    %v412 = vadd.f32 %v85, %v411
    %v413 = vpop.f32.mrb[0].mxu0
    %v414 = vadd.f32 %v89, %v413
    %v415 = vpop.f32.mrb[0].mxu0
    %v416 = vadd.f32 %v85, %v415
    %v417 = vpop.f32.mrb[0].mxu0
    %v418 = vadd.f32 %v89, %v417
    %419 = vmatprep.mubr.bf16.mxu0 0
    %420 = vmatmul.mubr.bf16.gmra.mrb[0].mxu0 %v34
    %v421 = vpop.f32.mrb[0].mxu0
    %v422 = vadd.f32 %v85, %v421
    %v423 = vpop.f32.mrb[0].mxu0
    %v424 = vadd.f32 %v89, %v423
    %v425 = vpop.f32.mrb[0].mxu0
    %v426 = vadd.f32 %v85, %v425
    %v427 = vpop.f32.mrb[0].mxu0
    %v428 = vadd.f32 %v89, %v427
    %429 = vmatprep.mubr.bf16.mxu0 0
    %430 = vmatmul.mubr.bf16.gmra.mrb[0].mxu0 %v35
    %v431 = vpop.f32.mrb[0].mxu0
    %v432 = vadd.f32 %v85, %v431
    %v433 = vpop.f32.mrb[0].mxu0
    %v434 = vadd.f32 %v89, %v433
    %v435 = vpop.f32.mrb[0].mxu0
    %v436 = vadd.f32 %v85, %v435
    %v437 = vpop.f32.mrb[0].mxu0
    %v438 = vadd.f32 %v89, %v437
    %439 = vmatprep.mubr.bf16.mxu0 0
    %440 = vmatmul.mubr.bf16.gmra.mrb[0].mxu0 %v36
    %v441 = vpop.f32.mrb[0].mxu0
    %v442 = vadd.f32 %v85, %v441
    %v443 = vpop.f32.mrb[0].mxu0
    %v444 = vadd.f32 %v89, %v443
    %v445 = vpop.f32.mrb[0].mxu0
    %v446 = vadd.f32 %v85, %v445
    %v447 = vpop.f32.mrb[0].mxu0
    %v448 = vadd.f32 %v89, %v447
    %449 = vmatprep.mubr.bf16.mxu0 0
    %450 = vmatmul.mubr.bf16.gmra.mrb[0].mxu0 %v37
    %v451 = vpop.f32.mrb[0].mxu0
    %v452 = vadd.f32 %v85, %v451
    %v453 = vpop.f32.mrb[0].mxu0
    %v454 = vadd.f32 %v89, %v453
    %v455 = vpop.f32.mrb[0].mxu0
    %v456 = vadd.f32 %v85, %v455
    %v457 = vpop.f32.mrb[0].mxu0
    %v458 = vadd.f32 %v89, %v457
    %459 = vmatprep.mubr.bf16.mxu0 0
    %460 = vmatmul.mubr.bf16.gmra.mrb[0].mxu0 %v38
    %v461 = vpop.f32.mrb[0].mxu0
    %v462 = vadd.f32 %v85, %v461
    %v463 = vpop.f32.mrb[0].mxu0
    %v464 = vadd.f32 %v89, %v463
    %v465 = vpop.f32.mrb[0].mxu0
    %v466 = vadd.f32 %v85, %v465
    %v467 = vpop.f32.mrb[0].mxu0
    %v468 = vadd.f32 %v89, %v467
    %469 = vmatprep.mubr.bf16.mxu0 0
    %470 = vmatmul.mubr.bf16.gmra.mrb[0].mxu0 %v39
    %v471 = vpop.f32.mrb[0].mxu0
    %v472 = vadd.f32 %v85, %v471
    %v473 = vpop.f32.mrb[0].mxu0
    %v474 = vadd.f32 %v89, %v473
    %v475 = vpop.f32.mrb[0].mxu0
    %v476 = vadd.f32 %v85, %v475
    %v477 = vpop.f32.mrb[0].mxu0
    %v478 = vadd.f32 %v89, %v477
    %479 = vdwg.mxu0
    %480 = vst [vmem:[#allocation2] sm:$0xff] %v289
    %481 = vst [vmem:[#allocation2 + $0x8] sm:$0xff] %v291
    %482 = vst [vmem:[#allocation2 + $0x10] sm:$0xff] %v402
    %483 = vst [vmem:[#allocation2 + $0x18] sm:$0xff] %v404
    %484 = vst [vmem:[#allocation2 + $0x20] sm:$0xff] %v293
    %485 = vst [vmem:[#allocation2 + $0x28] sm:$0xff] %v295
    %486 = vst [vmem:[#allocation2 + $0x30] sm:$0xff] %v406
    %487 = vst [vmem:[#allocation2 + $0x38] sm:$0xff] %v408
    %488 = vst [vmem:[#allocation2 + $0x40] sm:$0xff] %v299
    %489 = vst [vmem:[#allocation2 + $0x48] sm:$0xff] %v301
    %490 = vst [vmem:[#allocation2 + $0x50] sm:$0xff] %v412
    %491 = vst [vmem:[#allocation2 + $0x58] sm:$0xff] %v414
    %492 = vst [vmem:[#allocation2 + $0x60] sm:$0xff] %v303
    %493 = vst [vmem:[#allocation2 + $0x68] sm:$0xff] %v305
    %494 = vst [vmem:[#allocation2 + $0x70] sm:$0xff] %v416
    %495 = vst [vmem:[#allocation2 + $0x78] sm:$0xff] %v418
    %496 = vst [vmem:[#allocation2 + $0x80] sm:$0xff] %v309
    %497 = vst [vmem:[#allocation2 + $0x88] sm:$0xff] %v311
    %498 = vst [vmem:[#allocation2 + $0x90] sm:$0xff] %v422
    %499 = vst [vmem:[#allocation2 + $0x98] sm:$0xff] %v424
    %500 = vst [vmem:[#allocation2 + $0xa0] sm:$0xff] %v313
    %501 = vst [vmem:[#allocation2 + $0xa8] sm:$0xff] %v315
    %502 = vst [vmem:[#allocation2 + $0xb0] sm:$0xff] %v426
    %503 = vst [vmem:[#allocation2 + $0xb8] sm:$0xff] %v428
    %504 = vst [vmem:[#allocation2 + $0xc0] sm:$0xff] %v319
    %505 = vst [vmem:[#allocation2 + $0xc8] sm:$0xff] %v321
    %506 = vst [vmem:[#allocation2 + $0xd0] sm:$0xff] %v432
    %507 = vst [vmem:[#allocation2 + $0xd8] sm:$0xff] %v434
    %508 = vst [vmem:[#allocation2 + $0xe0] sm:$0xff] %v323
    %509 = vst [vmem:[#allocation2 + $0xe8] sm:$0xff] %v325
    %510 = vst [vmem:[#allocation2 + $0xf0] sm:$0xff] %v436
    %511 = vst [vmem:[#allocation2 + $0xf8] sm:$0xff] %v438
    %512 = vst [vmem:[#allocation2 + $0x100] sm:$0xff] %v329
    %513 = vst [vmem:[#allocation2 + $0x108] sm:$0xff] %v331
    %514 = vst [vmem:[#allocation2 + $0x110] sm:$0xff] %v442
    %515 = vst [vmem:[#allocation2 + $0x118] sm:$0xff] %v444
    %516 = vst [vmem:[#allocation2 + $0x120] sm:$0xff] %v333
    %517 = vst [vmem:[#allocation2 + $0x128] sm:$0xff] %v335
    %518 = vst [vmem:[#allocation2 + $0x130] sm:$0xff] %v446
    %519 = vst [vmem:[#allocation2 + $0x138] sm:$0xff] %v448
    %520 = vst [vmem:[#allocation2 + $0x140] sm:$0xff] %v339
    %521 = vst [vmem:[#allocation2 + $0x148] sm:$0xff] %v341
    %522 = vst [vmem:[#allocation2 + $0x150] sm:$0xff] %v452
    %523 = vst [vmem:[#allocation2 + $0x158] sm:$0xff] %v454
    %524 = vst [vmem:[#allocation2 + $0x160] sm:$0xff] %v343
    %525 = vst [vmem:[#allocation2 + $0x168] sm:$0xff] %v345
    %526 = vst [vmem:[#allocation2 + $0x170] sm:$0xff] %v456
    %527 = vst [vmem:[#allocation2 + $0x178] sm:$0xff] %v458
    %528 = vst [vmem:[#allocation2 + $0x180] sm:$0xff] %v349
    %529 = vst [vmem:[#allocation2 + $0x188] sm:$0xff] %v351
    %530 = vst [vmem:[#allocation2 + $0x190] sm:$0xff] %v462
    %531 = vst [vmem:[#allocation2 + $0x198] sm:$0xff] %v464
    %532 = vst [vmem:[#allocation2 + $0x1a0] sm:$0xff] %v353
    %533 = vst [vmem:[#allocation2 + $0x1a8] sm:$0xff] %v355
    %534 = vst [vmem:[#allocation2 + $0x1b0] sm:$0xff] %v466
    %535 = vst [vmem:[#allocation2 + $0x1b8] sm:$0xff] %v468
    %536 = vst [vmem:[#allocation2 + $0x1c0] sm:$0xff] %v359
    %537 = vst [vmem:[#allocation2 + $0x1c8] sm:$0xff] %v361
    %538 = vst [vmem:[#allocation2 + $0x1d0] sm:$0xff] %v472
    %539 = vst [vmem:[#allocation2 + $0x1d8] sm:$0xff] %v474
    %540 = vst [vmem:[#allocation2 + $0x1e0] sm:$0xff] %v363
    %541 = vst [vmem:[#allocation2 + $0x1e8] sm:$0xff] %v365
    %542 = vst [vmem:[#allocation2 + $0x1f0] sm:$0xff] %v476
    %543 = vst [vmem:[#allocation2 + $0x1f8] sm:$0xff] %v478
    // Predicated region
    $region14: #{hflstmlm_forward.9} parent=1 // pred_check
      _
    $region15: #{hflstmlm_forward.9} parent=1 // pred_check_branch
      %545 = sbr.rel (0) target = $region17
    $region16: #{hflstmlm_forward.9} parent=1 // pred_region
      %s547 = ssub.s32 8192, 8192
      %548 = vsyncadd [#allocation3], %s547
      %s549 = sshll.u32 [#allocation2], 4
      %s550 = int_to_ptr.vmem [resolvable:$true] %s549
      %555 = dma.vmem_to_hbm [thread:$0]  %s550, 8192, %s3, [#allocation3], 512, 512, 32
    $region17: #{hflstmlm_forward.9} parent=1 // pred_fallthru
      _
    // Predicated region
    $region18: #{hflstmlm_forward.9} parent=1 // pred_check
      _
    $region19: #{hflstmlm_forward.9} parent=1 // pred_check_branch
      %557 = sbr.rel (0) target = $region21
    $region20: #{hflstmlm_forward.9} parent=1 // pred_region
      %558 = dma.done [#allocation3], 8192
    $region21: #{hflstmlm_forward.9} parent=1 // pred_fallthru
      _
    %559 = vsyncpa [#allocation3], 1

// kernel: hflstmlm_forward.6
$region0: #{hflstmlm_forward.6}
  #allocation0 [shape = 'u32[]', space=smem, size = 0x4, offset = 0x4, fixed_abs, tag = 'smem constant byte address 0x4 - core index']
  #allocation1 [shape = 'u32[144,128]{1,0:T(1,128)}', space=vmem, size = 0x12000, scoped, tag = 'internal scratch']
  #allocation2 [shape = 'f32[8,128]{1,0:T(8,128)}', space=vmem, size = 0x1000, scoped, tag = 'scratch operand']
  #allocation3 [shape = 'f32[8,128]{1,0:T(8,128)}', space=vmem, size = 0x1000, scoped, tag = 'scratch operand']
  %s0 = inlined_call_operand.vmem [shape: f32[16,8,512], index: 0, kind: input, shape index: {}]
  %s1 = inlined_call_operand.vmem [shape: bf16[128,512], index: 1, kind: input, shape index: {}]
  %s2 = inlined_call_operand.vmem [shape: f32[8,128], index: 2, kind: input, shape index: {}, may-alias: {2,3}]
  %s3 = inlined_call_operand.vmem [shape: f32[8,128], index: 3, kind: input, shape index: {}, may-alias: {2,3}]
  %s4 = inlined_call_operand.vmem [shape: f32[16,8,128], index: 4, kind: output, shape index: {0}]
  %s5 = inlined_call_operand.vmem [shape: f32[8,128], index: 5, kind: output, shape index: {1}]
  %6 = xla_tuple %s4, %s5
  %s7 = sld [smem:[#allocation0]]
  $region42: #{hflstmlm_forward.6} parent=0
    _
  %s9 = ssub.s32 1, %s7
  %s10 = scalar_select 0, %s9, %s7
  // Predicated region
  $region2: #{hflstmlm_forward.6} parent=0 // pred_check
    _
  $region3: #{hflstmlm_forward.6} parent=0 // pred_check_branch
    %12 = sbr.rel (0) target = $region5
  $region4: #{hflstmlm_forward.6} parent=0 // pred_region
    _
  $region5: #{hflstmlm_forward.6} parent=0 // pred_fallthru
    _
  // Predicated region
  $region6: #{hflstmlm_forward.6} parent=0 // pred_check
    _
  $region7: #{hflstmlm_forward.6} parent=0 // pred_check_branch
    %14 = sbr.rel (0) target = $region9
  $region8: #{hflstmlm_forward.6} parent=0 // pred_region
    _
  $region9: #{hflstmlm_forward.6} parent=0 // pred_fallthru
    _
  // Predicated region
  $region10: #{hflstmlm_forward.6} parent=0 // pred_check
    _
  $region11: #{hflstmlm_forward.6} parent=0 // pred_check_branch
    %16 = sbr.rel (0) target = $region13
  $region12: #{hflstmlm_forward.6} parent=0 // pred_region
    _
  $region13: #{hflstmlm_forward.6} parent=0 // pred_fallthru
    _
  // Predicated region
  $region14: #{hflstmlm_forward.6} parent=0 // pred_check
    _
  $region15: #{hflstmlm_forward.6} parent=0 // pred_check_branch
    %18 = sbr.rel (0) target = $region17
  $region16: #{hflstmlm_forward.6} parent=0 // pred_region
    _
  $region17: #{hflstmlm_forward.6} parent=0 // pred_fallthru
    _
  %p20 = scmp.eq.s32.totalorder 0, 0
  // Predicated region
  $region18: #{hflstmlm_forward.6} parent=0 // pred_check
    %p21 = pneg %p20
  $region19: #{hflstmlm_forward.6} parent=0 // pred_check_branch
    %23 = sbr.rel (%p21) target = $region21
  $region20: #{hflstmlm_forward.6} parent=0 // pred_region
    %v24 = vld [vmem:[%s2] sm:$0xff]
    %25 = vst [vmem:[#allocation2] sm:$0xff] %v24
    %v26 = vld [vmem:[%s3] sm:$0xff]
    %27 = vst [vmem:[#allocation3] sm:$0xff] %v26
  $region21: #{hflstmlm_forward.6} parent=0 // pred_fallthru
    _
  %v28 = vld [vmem:[#allocation2] sm:$0xff]
  %v29 = vpack.c.bf16 %v28, %v28
  %v30 = vld [vmem:[%s1] sm:$0xff]
  %v31 = vld [vmem:[%s1 + $0x8] sm:$0xff]
  %v32 = vld [vmem:[%s1 + $0x10] sm:$0xff]
  %v33 = vld [vmem:[%s1 + $0x18] sm:$0xff]
  %v34 = vld [vmem:[%s1 + $0x20] sm:$0xff]
  %v35 = vld [vmem:[%s1 + $0x28] sm:$0xff]
  %v36 = vld [vmem:[%s1 + $0x30] sm:$0xff]
  %v37 = vld [vmem:[%s1 + $0x38] sm:$0xff]
  %v38 = vld [vmem:[%s1 + $0x40] sm:$0xff]
  %v39 = vld [vmem:[%s1 + $0x48] sm:$0xff]
  %v40 = vld [vmem:[%s1 + $0x50] sm:$0xff]
  %v41 = vld [vmem:[%s1 + $0x58] sm:$0xff]
  %v42 = vld [vmem:[%s1 + $0x60] sm:$0xff]
  %v43 = vld [vmem:[%s1 + $0x68] sm:$0xff]
  %v44 = vld [vmem:[%s1 + $0x70] sm:$0xff]
  %v45 = vld [vmem:[%s1 + $0x78] sm:$0xff]
  %v46 = vld [vmem:[%s1 + $0x80] sm:$0xff]
  %v47 = vld [vmem:[%s1 + $0x88] sm:$0xff]
  %v48 = vld [vmem:[%s1 + $0x90] sm:$0xff]
  %v49 = vld [vmem:[%s1 + $0x98] sm:$0xff]
  %v50 = vld [vmem:[%s1 + $0xa0] sm:$0xff]
  %v51 = vld [vmem:[%s1 + $0xa8] sm:$0xff]
  %v52 = vld [vmem:[%s1 + $0xb0] sm:$0xff]
  %v53 = vld [vmem:[%s1 + $0xb8] sm:$0xff]
  %v54 = vld [vmem:[%s1 + $0xc0] sm:$0xff]
  %v55 = vld [vmem:[%s1 + $0xc8] sm:$0xff]
  %v56 = vld [vmem:[%s1 + $0xd0] sm:$0xff]
  %v57 = vld [vmem:[%s1 + $0xd8] sm:$0xff]
  %v58 = vld [vmem:[%s1 + $0xe0] sm:$0xff]
  %v59 = vld [vmem:[%s1 + $0xe8] sm:$0xff]
  %v60 = vld [vmem:[%s1 + $0xf0] sm:$0xff]
  %v61 = vld [vmem:[%s1 + $0xf8] sm:$0xff]
  %v62 = vld [vmem:[%s0] sm:$0xff]
  %v63 = vld [vmem:[%s0 + $0x8] sm:$0xff]
  %v64 = vld [vmem:[%s0 + $0x10] sm:$0xff]
  %v65 = vld [vmem:[%s0 + $0x18] sm:$0xff]
  %v98 = vunpack.c.l.b16 %v30
  %v99 = vunpack.c.h.b16 %v30
  %v100 = vunpack.c.l.b16 %v31
  %v101 = vunpack.c.h.b16 %v31
  %v102 = vunpack.c.l.b16 %v32
  %v103 = vunpack.c.h.b16 %v32
  %v104 = vunpack.c.l.b16 %v33
  %v105 = vunpack.c.h.b16 %v33
  %v106 = vunpack.c.l.b16 %v34
  %v107 = vunpack.c.h.b16 %v34
  %v108 = vunpack.c.l.b16 %v35
  %v109 = vunpack.c.h.b16 %v35
  %v110 = vunpack.c.l.b16 %v36
  %v111 = vunpack.c.h.b16 %v36
  %v112 = vunpack.c.l.b16 %v37
  %v113 = vunpack.c.h.b16 %v37
  %v114 = vunpack.c.l.b16 %v38
  %v115 = vunpack.c.h.b16 %v38
  %v116 = vunpack.c.l.b16 %v39
  %v117 = vunpack.c.h.b16 %v39
  %v118 = vunpack.c.l.b16 %v40
  %v119 = vunpack.c.h.b16 %v40
  %v120 = vunpack.c.l.b16 %v41
  %v121 = vunpack.c.h.b16 %v41
  %v122 = vunpack.c.l.b16 %v42
  %v123 = vunpack.c.h.b16 %v42
  %v124 = vunpack.c.l.b16 %v43
  %v125 = vunpack.c.h.b16 %v43
  %v126 = vunpack.c.l.b16 %v44
  %v127 = vunpack.c.h.b16 %v44
  %v128 = vunpack.c.l.b16 %v45
  %v129 = vunpack.c.h.b16 %v45
  %v130 = vunpack.c.l.b16 %v46
  %v131 = vunpack.c.h.b16 %v46
  %v132 = vunpack.c.l.b16 %v47
  %v133 = vunpack.c.h.b16 %v47
  %v134 = vunpack.c.l.b16 %v48
  %v135 = vunpack.c.h.b16 %v48
  %v136 = vunpack.c.l.b16 %v49
  %v137 = vunpack.c.h.b16 %v49
  %v138 = vunpack.c.l.b16 %v50
  %v139 = vunpack.c.h.b16 %v50
  %v140 = vunpack.c.l.b16 %v51
  %v141 = vunpack.c.h.b16 %v51
  %v142 = vunpack.c.l.b16 %v52
  %v143 = vunpack.c.h.b16 %v52
  %v144 = vunpack.c.l.b16 %v53
  %v145 = vunpack.c.h.b16 %v53
  %v146 = vunpack.c.l.b16 %v54
  %v147 = vunpack.c.h.b16 %v54
  %v148 = vunpack.c.l.b16 %v55
  %v149 = vunpack.c.h.b16 %v55
  %v150 = vunpack.c.l.b16 %v56
  %v151 = vunpack.c.h.b16 %v56
  %v152 = vunpack.c.l.b16 %v57
  %v153 = vunpack.c.h.b16 %v57
  %v154 = vunpack.c.l.b16 %v58
  %v155 = vunpack.c.h.b16 %v58
  %v156 = vunpack.c.l.b16 %v59
  %v157 = vunpack.c.h.b16 %v59
  %v158 = vunpack.c.l.b16 %v60
  %v159 = vunpack.c.h.b16 %v60
  %v160 = vunpack.c.l.b16 %v61
  %v161 = vunpack.c.h.b16 %v61
  %v162 = vpack.c.b16 %v102, %v98
  %v163 = vpack.c.b16 %v103, %v99
  %v164 = vpack.c.b16 %v104, %v100
  %v165 = vpack.c.b16 %v105, %v101
  %v166 = vpack.c.b16 %v110, %v106
  %v167 = vpack.c.b16 %v111, %v107
  %v168 = vpack.c.b16 %v112, %v108
  %v169 = vpack.c.b16 %v113, %v109
  %v170 = vpack.c.b16 %v118, %v114
  %v171 = vpack.c.b16 %v119, %v115
  %v172 = vpack.c.b16 %v120, %v116
  %v173 = vpack.c.b16 %v121, %v117
  %v174 = vpack.c.b16 %v126, %v122
  %v175 = vpack.c.b16 %v127, %v123
  %v176 = vpack.c.b16 %v128, %v124
  %v177 = vpack.c.b16 %v129, %v125
  %v178 = vpack.c.b16 %v134, %v130
  %v179 = vpack.c.b16 %v135, %v131
  %v180 = vpack.c.b16 %v136, %v132
  %v181 = vpack.c.b16 %v137, %v133
  %v182 = vpack.c.b16 %v142, %v138
  %v183 = vpack.c.b16 %v143, %v139
  %v184 = vpack.c.b16 %v144, %v140
  %v185 = vpack.c.b16 %v145, %v141
  %v186 = vpack.c.b16 %v150, %v146
  %v187 = vpack.c.b16 %v151, %v147
  %v188 = vpack.c.b16 %v152, %v148
  %v189 = vpack.c.b16 %v153, %v149
  %v190 = vpack.c.b16 %v158, %v154
  %v191 = vpack.c.b16 %v159, %v155
  %v192 = vpack.c.b16 %v160, %v156
  %v193 = vpack.c.b16 %v161, %v157
  %226 = vmatprep.subr.bf16.mxu0 %v163
  %227 = vmatpush1.bf16.msra.mxu0 %v162
  %228 = vmatprep.subr.bf16.mxu0 %v167
  %229 = vmatpush1.bf16.msra.mxu0 %v166
  %230 = vmatprep.subr.bf16.mxu0 %v171
  %231 = vmatpush1.bf16.msra.mxu0 %v170
  %232 = vmatprep.subr.bf16.mxu0 %v175
  %233 = vmatpush1.bf16.msra.mxu0 %v174
  %234 = vmatprep.subr.bf16.mxu0 %v179
  %235 = vmatpush1.bf16.msra.mxu0 %v178
  %236 = vmatprep.subr.bf16.mxu0 %v183
  %237 = vmatpush1.bf16.msra.mxu0 %v182
  %238 = vmatprep.subr.bf16.mxu0 %v187
  %239 = vmatpush1.bf16.msra.mxu0 %v186
  %240 = vmatprep.subr.bf16.mxu0 %v191
  %241 = vmatpush1.bf16.msra.mxu0 %v190
  %242 = vmatprep.subr.bf16.mxu0 0
  %243 = vmatpush1.bf16.msra.mxu0 0
  %244 = vmatprep.subr.bf16.mxu0 0
  %245 = vmatpush1.bf16.msra.mxu0 0
  %246 = vmatprep.subr.bf16.mxu0 0
  %247 = vmatpush1.bf16.msra.mxu0 0
  %248 = vmatprep.subr.bf16.mxu0 0
  %249 = vmatpush1.bf16.msra.mxu0 0
  %250 = vmatprep.subr.bf16.mxu0 0
  %251 = vmatpush1.bf16.msra.mxu0 0
  %252 = vmatprep.subr.bf16.mxu0 0
  %253 = vmatpush1.bf16.msra.mxu0 0
  %254 = vmatprep.subr.bf16.mxu0 0
  %255 = vmatpush1.bf16.msra.mxu0 0
  %256 = vmatprep.subr.bf16.mxu0 0
  %257 = vmatpush1.bf16.msra.mxu0 0
  %258 = vmatprep.mubr.bf16.mxu0 0
  %259 = vmatmul.mubr.bf16.gmra.mrb[0].mxu0 %v29
  %v260 = vpop.f32.mrb[0].mxu0
  %v261 = vadd.f32 %v62, %v260
  %v262 = vpop.f32.mrb[0].mxu0
  %v263 = vadd.f32 %v63, %v262
  %v264 = vpop.f32.mrb[0].mxu0
  %v265 = vpop.f32.mrb[0].mxu0
  %266 = vdwg.mxu0
  %267 = vmatprep.subr.bf16.mxu0 %v165
  %268 = vmatpush1.bf16.msra.mxu0 %v164
  %269 = vmatprep.subr.bf16.mxu0 %v169
  %270 = vmatpush1.bf16.msra.mxu0 %v168
  %271 = vmatprep.subr.bf16.mxu0 %v173
  %272 = vmatpush1.bf16.msra.mxu0 %v172
  %273 = vmatprep.subr.bf16.mxu0 %v177
  %274 = vmatpush1.bf16.msra.mxu0 %v176
  %275 = vmatprep.subr.bf16.mxu0 %v181
  %276 = vmatpush1.bf16.msra.mxu0 %v180
  %277 = vmatprep.subr.bf16.mxu0 %v185
  %278 = vmatpush1.bf16.msra.mxu0 %v184
  %279 = vmatprep.subr.bf16.mxu0 %v189
  %280 = vmatpush1.bf16.msra.mxu0 %v188
  %281 = vmatprep.subr.bf16.mxu0 %v193
  %282 = vmatpush1.bf16.msra.mxu0 %v192
  %283 = vmatprep.subr.bf16.mxu0 0
  %284 = vmatpush1.bf16.msra.mxu0 0
  %285 = vmatprep.subr.bf16.mxu0 0
  %286 = vmatpush1.bf16.msra.mxu0 0
  %287 = vmatprep.subr.bf16.mxu0 0
  %288 = vmatpush1.bf16.msra.mxu0 0
  %289 = vmatprep.subr.bf16.mxu0 0
  %290 = vmatpush1.bf16.msra.mxu0 0
  %291 = vmatprep.subr.bf16.mxu0 0
  %292 = vmatpush1.bf16.msra.mxu0 0
  %293 = vmatprep.subr.bf16.mxu0 0
  %294 = vmatpush1.bf16.msra.mxu0 0
  %295 = vmatprep.subr.bf16.mxu0 0
  %296 = vmatpush1.bf16.msra.mxu0 0
  %297 = vmatprep.subr.bf16.mxu0 0
  %298 = vmatpush1.bf16.msra.mxu0 0
  %299 = vmatprep.mubr.bf16.mxu0 0
  %300 = vmatmul.mubr.bf16.gmra.mrb[0].mxu0 %v29
  %v301 = vpop.f32.mrb[0].mxu0
  %v302 = vadd.f32 %v64, %v301
  %v303 = vpop.f32.mrb[0].mxu0
  %v304 = vadd.f32 %v65, %v303
  %v305 = vpop.f32.mrb[0].mxu0
  %v306 = vpop.f32.mrb[0].mxu0
  %307 = vdwg.mxu0
  %v308 = vxor.u32 %v261, 2147483648
  %v309 = vmul.f32 %v308, 1.442695
  %v310 = vpow.pop %v309
  %v311 = vadd.f32 %v310, 1.0
  %v312 = vrcp.pop %v311
  %v313 = vmul.f32 1.0, %v312
  %v314 = vxor.u32 %v263, 2147483648
  %v315 = vmul.f32 %v314, 1.442695
  %v316 = vpow.pop %v315
  %v317 = vadd.f32 %v316, 1.0
  %v318 = vrcp.pop %v317
  %v319 = vmul.f32 1.0, %v318
  %v320 = vtanh.pop %v302
  %v321 = vxor.u32 %v304, 2147483648
  %v322 = vmul.f32 %v321, 1.442695
  %v323 = vpow.pop %v322
  %v324 = vadd.f32 %v323, 1.0
  %v325 = vrcp.pop %v324
  %v326 = vmul.f32 1.0, %v325
  %v327 = vld [vmem:[#allocation3] sm:$0xff]
  %v328 = vmul.f32 %v319, %v327
  %v329 = vmul.f32 %v313, %v320
  %v330 = vadd.f32 %v328, %v329
  %v331 = vtanh.pop %v330
  %v332 = vmul.f32 %v326, %v331
  %333 = vst [vmem:[#allocation3] sm:$0xff] %v330
  %334 = vst [vmem:[#allocation2] sm:$0xff] %v332
  %335 = vst [vmem:[%s4] sm:$0xff] %v332
  %v336 = vld [vmem:[#allocation2] sm:$0xff]
  %v337 = vpack.c.bf16 %v336, %v336
  %v338 = vld [vmem:[%s1] sm:$0xff]
  %v339 = vld [vmem:[%s1 + $0x8] sm:$0xff]
  %v340 = vld [vmem:[%s1 + $0x10] sm:$0xff]
  %v341 = vld [vmem:[%s1 + $0x18] sm:$0xff]
  %v342 = vld [vmem:[%s1 + $0x20] sm:$0xff]
  %v343 = vld [vmem:[%s1 + $0x28] sm:$0xff]
  %v344 = vld [vmem:[%s1 + $0x30] sm:$0xff]
  %v345 = vld [vmem:[%s1 + $0x38] sm:$0xff]
  %v346 = vld [vmem:[%s1 + $0x40] sm:$0xff]
  %v347 = vld [vmem:[%s1 + $0x48] sm:$0xff]
  %v348 = vld [vmem:[%s1 + $0x50] sm:$0xff]
  %v349 = vld [vmem:[%s1 + $0x58] sm:$0xff]
  %v350 = vld [vmem:[%s1 + $0x60] sm:$0xff]
  %v351 = vld [vmem:[%s1 + $0x68] sm:$0xff]
  %v352 = vld [vmem:[%s1 + $0x70] sm:$0xff]
  %v353 = vld [vmem:[%s1 + $0x78] sm:$0xff]
  %v354 = vld [vmem:[%s1 + $0x80] sm:$0xff]
  %v355 = vld [vmem:[%s1 + $0x88] sm:$0xff]
  %v356 = vld [vmem:[%s1 + $0x90] sm:$0xff]
  %v357 = vld [vmem:[%s1 + $0x98] sm:$0xff]
  %v358 = vld [vmem:[%s1 + $0xa0] sm:$0xff]
  %v359 = vld [vmem:[%s1 + $0xa8] sm:$0xff]
  %v360 = vld [vmem:[%s1 + $0xb0] sm:$0xff]
  %v361 = vld [vmem:[%s1 + $0xb8] sm:$0xff]
  %v362 = vld [vmem:[%s1 + $0xc0] sm:$0xff]
  %v363 = vld [vmem:[%s1 + $0xc8] sm:$0xff]
  %v364 = vld [vmem:[%s1 + $0xd0] sm:$0xff]
  %v365 = vld [vmem:[%s1 + $0xd8] sm:$0xff]
  %v366 = vld [vmem:[%s1 + $0xe0] sm:$0xff]
  %v367 = vld [vmem:[%s1 + $0xe8] sm:$0xff]
  %v368 = vld [vmem:[%s1 + $0xf0] sm:$0xff]
  %v369 = vld [vmem:[%s1 + $0xf8] sm:$0xff]
  %s370 = scalar_lea.vmem %s0, 32
  %v371 = vld [vmem:[%s370] sm:$0xff]
  %v372 = vld [vmem:[%s370 + $0x8] sm:$0xff]
  %v373 = vld [vmem:[%s370 + $0x10] sm:$0xff]
  %v374 = vld [vmem:[%s370 + $0x18] sm:$0xff]
  %v407 = vunpack.c.l.b16 %v338
  %v408 = vunpack.c.h.b16 %v338
  %v409 = vunpack.c.l.b16 %v339
  %v410 = vunpack.c.h.b16 %v339
  %v411 = vunpack.c.l.b16 %v340
  %v412 = vunpack.c.h.b16 %v340
  %v413 = vunpack.c.l.b16 %v341
  %v414 = vunpack.c.h.b16 %v341
  %v415 = vunpack.c.l.b16 %v342
  %v416 = vunpack.c.h.b16 %v342
  %v417 = vunpack.c.l.b16 %v343
  %v418 = vunpack.c.h.b16 %v343
  %v419 = vunpack.c.l.b16 %v344
  %v420 = vunpack.c.h.b16 %v344
  %v421 = vunpack.c.l.b16 %v345
  %v422 = vunpack.c.h.b16 %v345
  %v423 = vunpack.c.l.b16 %v346
  %v424 = vunpack.c.h.b16 %v346
  %v425 = vunpack.c.l.b16 %v347
  %v426 = vunpack.c.h.b16 %v347
  %v427 = vunpack.c.l.b16 %v348
  %v428 = vunpack.c.h.b16 %v348
  %v429 = vunpack.c.l.b16 %v349
  %v430 = vunpack.c.h.b16 %v349
  %v431 = vunpack.c.l.b16 %v350
  %v432 = vunpack.c.h.b16 %v350
  %v433 = vunpack.c.l.b16 %v351
  %v434 = vunpack.c.h.b16 %v351
  %v435 = vunpack.c.l.b16 %v352
  %v436 = vunpack.c.h.b16 %v352
  %v437 = vunpack.c.l.b16 %v353
  %v438 = vunpack.c.h.b16 %v353
  %v439 = vunpack.c.l.b16 %v354
  %v440 = vunpack.c.h.b16 %v354
  %v441 = vunpack.c.l.b16 %v355
  %v442 = vunpack.c.h.b16 %v355
  %v443 = vunpack.c.l.b16 %v356
  %v444 = vunpack.c.h.b16 %v356
  %v445 = vunpack.c.l.b16 %v357
  %v446 = vunpack.c.h.b16 %v357
  %v447 = vunpack.c.l.b16 %v358
  %v448 = vunpack.c.h.b16 %v358
  %v449 = vunpack.c.l.b16 %v359
  %v450 = vunpack.c.h.b16 %v359
  %v451 = vunpack.c.l.b16 %v360
  %v452 = vunpack.c.h.b16 %v360
  %v453 = vunpack.c.l.b16 %v361
  %v454 = vunpack.c.h.b16 %v361
  %v455 = vunpack.c.l.b16 %v362
  %v456 = vunpack.c.h.b16 %v362
  %v457 = vunpack.c.l.b16 %v363
  %v458 = vunpack.c.h.b16 %v363
  %v459 = vunpack.c.l.b16 %v364
  %v460 = vunpack.c.h.b16 %v364
  %v461 = vunpack.c.l.b16 %v365
  %v462 = vunpack.c.h.b16 %v365
  %v463 = vunpack.c.l.b16 %v366
  %v464 = vunpack.c.h.b16 %v366
  %v465 = vunpack.c.l.b16 %v367
  %v466 = vunpack.c.h.b16 %v367
  %v467 = vunpack.c.l.b16 %v368
  %v468 = vunpack.c.h.b16 %v368
  %v469 = vunpack.c.l.b16 %v369
  %v470 = vunpack.c.h.b16 %v369
  %v471 = vpack.c.b16 %v411, %v407
  %v472 = vpack.c.b16 %v412, %v408
  %v473 = vpack.c.b16 %v413, %v409
  %v474 = vpack.c.b16 %v414, %v410
  %v475 = vpack.c.b16 %v419, %v415
  %v476 = vpack.c.b16 %v420, %v416
  %v477 = vpack.c.b16 %v421, %v417
  %v478 = vpack.c.b16 %v422, %v418
  %v479 = vpack.c.b16 %v427, %v423
  %v480 = vpack.c.b16 %v428, %v424
  %v481 = vpack.c.b16 %v429, %v425
  %v482 = vpack.c.b16 %v430, %v426
  %v483 = vpack.c.b16 %v435, %v431
  %v484 = vpack.c.b16 %v436, %v432
  %v485 = vpack.c.b16 %v437, %v433
  %v486 = vpack.c.b16 %v438, %v434
  %v487 = vpack.c.b16 %v443, %v439
  %v488 = vpack.c.b16 %v444, %v440
  %v489 = vpack.c.b16 %v445, %v441
  %v490 = vpack.c.b16 %v446, %v442
  %v491 = vpack.c.b16 %v451, %v447
  %v492 = vpack.c.b16 %v452, %v448
  %v493 = vpack.c.b16 %v453, %v449
  %v494 = vpack.c.b16 %v454, %v450
  %v495 = vpack.c.b16 %v459, %v455
  %v496 = vpack.c.b16 %v460, %v456
  %v497 = vpack.c.b16 %v461, %v457
  %v498 = vpack.c.b16 %v462, %v458
  %v499 = vpack.c.b16 %v467, %v463
  %v500 = vpack.c.b16 %v468, %v464
  %v501 = vpack.c.b16 %v469, %v465
  %v502 = vpack.c.b16 %v470, %v466
  %535 = vmatprep.subr.bf16.mxu0 %v472
  %536 = vmatpush1.bf16.msra.mxu0 %v471
  %537 = vmatprep.subr.bf16.mxu0 %v476
  %538 = vmatpush1.bf16.msra.mxu0 %v475
  %539 = vmatprep.subr.bf16.mxu0 %v480
  %540 = vmatpush1.bf16.msra.mxu0 %v479
  %541 = vmatprep.subr.bf16.mxu0 %v484
  %542 = vmatpush1.bf16.msra.mxu0 %v483
  %543 = vmatprep.subr.bf16.mxu0 %v488
  %544 = vmatpush1.bf16.msra.mxu0 %v487
  %545 = vmatprep.subr.bf16.mxu0 %v492
  %546 = vmatpush1.bf16.msra.mxu0 %v491
  %547 = vmatprep.subr.bf16.mxu0 %v496
  %548 = vmatpush1.bf16.msra.mxu0 %v495
  %549 = vmatprep.subr.bf16.mxu0 %v500
  %550 = vmatpush1.bf16.msra.mxu0 %v499
  %551 = vmatprep.subr.bf16.mxu0 0
  %552 = vmatpush1.bf16.msra.mxu0 0
  %553 = vmatprep.subr.bf16.mxu0 0
  %554 = vmatpush1.bf16.msra.mxu0 0
  %555 = vmatprep.subr.bf16.mxu0 0
  %556 = vmatpush1.bf16.msra.mxu0 0
  %557 = vmatprep.subr.bf16.mxu0 0
  %558 = vmatpush1.bf16.msra.mxu0 0
  %559 = vmatprep.subr.bf16.mxu0 0
  %560 = vmatpush1.bf16.msra.mxu0 0
  %561 = vmatprep.subr.bf16.mxu0 0
  %562 = vmatpush1.bf16.msra.mxu0 0
  %563 = vmatprep.subr.bf16.mxu0 0
  %564 = vmatpush1.bf16.msra.mxu0 0
  %565 = vmatprep.subr.bf16.mxu0 0
  %566 = vmatpush1.bf16.msra.mxu0 0
  %567 = vmatprep.mubr.bf16.mxu0 0
  %568 = vmatmul.mubr.bf16.gmra.mrb[0].mxu0 %v337
  %v569 = vpop.f32.mrb[0].mxu0
  %v570 = vadd.f32 %v371, %v569
  %v571 = vpop.f32.mrb[0].mxu0
  %v572 = vadd.f32 %v372, %v571
  %v573 = vpop.f32.mrb[0].mxu0
  %v574 = vpop.f32.mrb[0].mxu0
  %575 = vdwg.mxu0
  %576 = vmatprep.subr.bf16.mxu0 %v474
  %577 = vmatpush1.bf16.msra.mxu0 %v473
  %578 = vmatprep.subr.bf16.mxu0 %v478
  %579 = vmatpush1.bf16.msra.mxu0 %v477
  %580 = vmatprep.subr.bf16.mxu0 %v482
  %581 = vmatpush1.bf16.msra.mxu0 %v481
  %582 = vmatprep.subr.bf16.mxu0 %v486
  %583 = vmatpush1.bf16.msra.mxu0 %v485
  %584 = vmatprep.subr.bf16.mxu0 %v490
  %585 = vmatpush1.bf16.msra.mxu0 %v489
  %586 = vmatprep.subr.bf16.mxu0 %v494
  %587 = vmatpush1.bf16.msra.mxu0 %v493
  %588 = vmatprep.subr.bf16.mxu0 %v498
  %589 = vmatpush1.bf16.msra.mxu0 %v497
  %590 = vmatprep.subr.bf16.mxu0 %v502
  %591 = vmatpush1.bf16.msra.mxu0 %v501
  %592 = vmatprep.subr.bf16.mxu0 0
  %593 = vmatpush1.bf16.msra.mxu0 0
  %594 = vmatprep.subr.bf16.mxu0 0
  %595 = vmatpush1.bf16.msra.mxu0 0
  %596 = vmatprep.subr.bf16.mxu0 0
  %597 = vmatpush1.bf16.msra.mxu0 0
  %598 = vmatprep.subr.bf16.mxu0 0
  %599 = vmatpush1.bf16.msra.mxu0 0
  %600 = vmatprep.subr.bf16.mxu0 0
  %601 = vmatpush1.bf16.msra.mxu0 0
  %602 = vmatprep.subr.bf16.mxu0 0
  %603 = vmatpush1.bf16.msra.mxu0 0
  %604 = vmatprep.subr.bf16.mxu0 0
  %605 = vmatpush1.bf16.msra.mxu0 0
  %606 = vmatprep.subr.bf16.mxu0 0
  %607 = vmatpush1.bf16.msra.mxu0 0
  %608 = vmatprep.mubr.bf16.mxu0 0
  %609 = vmatmul.mubr.bf16.gmra.mrb[0].mxu0 %v337
  %v610 = vpop.f32.mrb[0].mxu0
  %v611 = vadd.f32 %v373, %v610
  %v612 = vpop.f32.mrb[0].mxu0
  %v613 = vadd.f32 %v374, %v612
  %v614 = vpop.f32.mrb[0].mxu0
  %v615 = vpop.f32.mrb[0].mxu0
  %616 = vdwg.mxu0
  %v617 = vxor.u32 %v570, 2147483648
  %v618 = vmul.f32 %v617, 1.442695
  %v619 = vpow.pop %v618
  %v620 = vadd.f32 %v619, 1.0
  %v621 = vrcp.pop %v620
  %v622 = vmul.f32 1.0, %v621
  %v623 = vxor.u32 %v572, 2147483648
  %v624 = vmul.f32 %v623, 1.442695
  %v625 = vpow.pop %v624
  %v626 = vadd.f32 %v625, 1.0
  %v627 = vrcp.pop %v626
  %v628 = vmul.f32 1.0, %v627
  %v629 = vtanh.pop %v611
  %v630 = vxor.u32 %v613, 2147483648
  %v631 = vmul.f32 %v630, 1.442695
  %v632 = vpow.pop %v631
  %v633 = vadd.f32 %v632, 1.0
  %v634 = vrcp.pop %v633
  %v635 = vmul.f32 1.0, %v634
  %v636 = vld [vmem:[#allocation3] sm:$0xff]
  %v637 = vmul.f32 %v628, %v636
  %v638 = vmul.f32 %v622, %v629
  %v639 = vadd.f32 %v637, %v638
  %v640 = vtanh.pop %v639
  %v641 = vmul.f32 %v635, %v640
  %642 = vst [vmem:[#allocation3] sm:$0xff] %v639
  %643 = vst [vmem:[#allocation2] sm:$0xff] %v641
  %s644 = scalar_lea.vmem %s4, 8
  %645 = vst [vmem:[%s644] sm:$0xff] %v641
  %v646 = vld [vmem:[#allocation2] sm:$0xff]
  %v647 = vpack.c.bf16 %v646, %v646
  %v648 = vld [vmem:[%s1] sm:$0xff]
  %v649 = vld [vmem:[%s1 + $0x8] sm:$0xff]
  %v650 = vld [vmem:[%s1 + $0x10] sm:$0xff]
  %v651 = vld [vmem:[%s1 + $0x18] sm:$0xff]
  %v652 = vld [vmem:[%s1 + $0x20] sm:$0xff]
  %v653 = vld [vmem:[%s1 + $0x28] sm:$0xff]
  %v654 = vld [vmem:[%s1 + $0x30] sm:$0xff]
  %v655 = vld [vmem:[%s1 + $0x38] sm:$0xff]
  %v656 = vld [vmem:[%s1 + $0x40] sm:$0xff]
  %v657 = vld [vmem:[%s1 + $0x48] sm:$0xff]
  %v658 = vld [vmem:[%s1 + $0x50] sm:$0xff]
  %v659 = vld [vmem:[%s1 + $0x58] sm:$0xff]
  %v660 = vld [vmem:[%s1 + $0x60] sm:$0xff]
  %v661 = vld [vmem:[%s1 + $0x68] sm:$0xff]
  %v662 = vld [vmem:[%s1 + $0x70] sm:$0xff]
  %v663 = vld [vmem:[%s1 + $0x78] sm:$0xff]
  %v664 = vld [vmem:[%s1 + $0x80] sm:$0xff]
  %v665 = vld [vmem:[%s1 + $0x88] sm:$0xff]
  %v666 = vld [vmem:[%s1 + $0x90] sm:$0xff]
  %v667 = vld [vmem:[%s1 + $0x98] sm:$0xff]
  %v668 = vld [vmem:[%s1 + $0xa0] sm:$0xff]
  %v669 = vld [vmem:[%s1 + $0xa8] sm:$0xff]
  %v670 = vld [vmem:[%s1 + $0xb0] sm:$0xff]
  %v671 = vld [vmem:[%s1 + $0xb8] sm:$0xff]
  %v672 = vld [vmem:[%s1 + $0xc0] sm:$0xff]
  %v673 = vld [vmem:[%s1 + $0xc8] sm:$0xff]
  %v674 = vld [vmem:[%s1 + $0xd0] sm:$0xff]
  %v675 = vld [vmem:[%s1 + $0xd8] sm:$0xff]
  %v676 = vld [vmem:[%s1 + $0xe0] sm:$0xff]
  %v677 = vld [vmem:[%s1 + $0xe8] sm:$0xff]
  %v678 = vld [vmem:[%s1 + $0xf0] sm:$0xff]
  %v679 = vld [vmem:[%s1 + $0xf8] sm:$0xff]
  %s680 = scalar_lea.vmem %s0, 64
  %v681 = vld [vmem:[%s680] sm:$0xff]
  %v682 = vld [vmem:[%s680 + $0x8] sm:$0xff]
  %v683 = vld [vmem:[%s680 + $0x10] sm:$0xff]
  %v684 = vld [vmem:[%s680 + $0x18] sm:$0xff]
  %v717 = vunpack.c.l.b16 %v648
  %v718 = vunpack.c.h.b16 %v648
  %v719 = vunpack.c.l.b16 %v649
  %v720 = vunpack.c.h.b16 %v649
  %v721 = vunpack.c.l.b16 %v650
  %v722 = vunpack.c.h.b16 %v650
  %v723 = vunpack.c.l.b16 %v651
  %v724 = vunpack.c.h.b16 %v651
  %v725 = vunpack.c.l.b16 %v652
  %v726 = vunpack.c.h.b16 %v652
  %v727 = vunpack.c.l.b16 %v653
  %v728 = vunpack.c.h.b16 %v653
  %v729 = vunpack.c.l.b16 %v654
  %v730 = vunpack.c.h.b16 %v654
  %v731 = vunpack.c.l.b16 %v655
  %v732 = vunpack.c.h.b16 %v655
  %v733 = vunpack.c.l.b16 %v656
  %v734 = vunpack.c.h.b16 %v656
  %v735 = vunpack.c.l.b16 %v657
  %v736 = vunpack.c.h.b16 %v657
  %v737 = vunpack.c.l.b16 %v658
  %v738 = vunpack.c.h.b16 %v658
  %v739 = vunpack.c.l.b16 %v659
  %v740 = vunpack.c.h.b16 %v659
  %v741 = vunpack.c.l.b16 %v660
  %v742 = vunpack.c.h.b16 %v660
  %v743 = vunpack.c.l.b16 %v661
  %v744 = vunpack.c.h.b16 %v661
  %v745 = vunpack.c.l.b16 %v662
  %v746 = vunpack.c.h.b16 %v662
  %v747 = vunpack.c.l.b16 %v663
  %v748 = vunpack.c.h.b16 %v663
  %v749 = vunpack.c.l.b16 %v664
  %v750 = vunpack.c.h.b16 %v664
  %v751 = vunpack.c.l.b16 %v665
  %v752 = vunpack.c.h.b16 %v665
  %v753 = vunpack.c.l.b16 %v666
  %v754 = vunpack.c.h.b16 %v666
  %v755 = vunpack.c.l.b16 %v667
  %v756 = vunpack.c.h.b16 %v667
  %v757 = vunpack.c.l.b16 %v668
  %v758 = vunpack.c.h.b16 %v668
  %v759 = vunpack.c.l.b16 %v669
  %v760 = vunpack.c.h.b16 %v669
  %v761 = vunpack.c.l.b16 %v670
  %v762 = vunpack.c.h.b16 %v670
  %v763 = vunpack.c.l.b16 %v671
  %v764 = vunpack.c.h.b16 %v671
  %v765 = vunpack.c.l.b16 %v672
  %v766 = vunpack.c.h.b16 %v672
  %v767 = vunpack.c.l.b16 %v673
  %v768 = vunpack.c.h.b16 %v673
  %v769 = vunpack.c.l.b16 %v674
  %v770 = vunpack.c.h.b16 %v674
  %v771 = vunpack.c.l.b16 %v675
  %v772 = vunpack.c.h.b16 %v675
  %v773 = vunpack.c.l.b16 %v676
  %v774 = vunpack.c.h.b16 %v676
  %v775 = vunpack.c.l.b16 %v677
  %v776 = vunpack.c.h.b16 %v677
  %v777 = vunpack.c.l.b16 %v678
  %v778 = vunpack.c.h.b16 %v678
  %v779 = vunpack.c.l.b16 %v679
  %v780 = vunpack.c.h.b16 %v679
  %v781 = vpack.c.b16 %v721, %v717
  %v782 = vpack.c.b16 %v722, %v718
  %v783 = vpack.c.b16 %v723, %v719
  %v784 = vpack.c.b16 %v724, %v720
  %v785 = vpack.c.b16 %v729, %v725
  %v786 = vpack.c.b16 %v730, %v726
  %v787 = vpack.c.b16 %v731, %v727
  %v788 = vpack.c.b16 %v732, %v728
  %v789 = vpack.c.b16 %v737, %v733
  %v790 = vpack.c.b16 %v738, %v734
  %v791 = vpack.c.b16 %v739, %v735
  %v792 = vpack.c.b16 %v740, %v736
  %v793 = vpack.c.b16 %v745, %v741
  %v794 = vpack.c.b16 %v746, %v742
  %v795 = vpack.c.b16 %v747, %v743
  %v796 = vpack.c.b16 %v748, %v744
  %v797 = vpack.c.b16 %v753, %v749
  %v798 = vpack.c.b16 %v754, %v750
  %v799 = vpack.c.b16 %v755, %v751
  %v800 = vpack.c.b16 %v756, %v752
  %v801 = vpack.c.b16 %v761, %v757
  %v802 = vpack.c.b16 %v762, %v758
  %v803 = vpack.c.b16 %v763, %v759
  %v804 = vpack.c.b16 %v764, %v760
  %v805 = vpack.c.b16 %v769, %v765
  %v806 = vpack.c.b16 %v770, %v766
  %v807 = vpack.c.b16 %v771, %v767
  %v808 = vpack.c.b16 %v772, %v768
  %v809 = vpack.c.b16 %v777, %v773
  %v810 = vpack.c.b16 %v778, %v774
  %v811 = vpack.c.b16 %v779, %v775
  %v812 = vpack.c.b16 %v780, %v776
  %845 = vmatprep.subr.bf16.mxu0 %v782
  %846 = vmatpush1.bf16.msra.mxu0 %v781
  %847 = vmatprep.subr.bf16.mxu0 %v786
  %848 = vmatpush1.bf16.msra.mxu0 %v785
  %849 = vmatprep.subr.bf16.mxu0 %v790
  %850 = vmatpush1.bf16.msra.mxu0 %v789
  %851 = vmatprep.subr.bf16.mxu0 %v794
  %852 = vmatpush1.bf16.msra.mxu0 %v793
  %853 = vmatprep.subr.bf16.mxu0 %v798
  %854 = vmatpush1.bf16.msra.mxu0 %v797
  %855 = vmatprep.subr.bf16.mxu0 %v802
  %856 = vmatpush1.bf16.msra.mxu0 %v801
  %857 = vmatprep.subr.bf16.mxu0 %v806
  %858 = vmatpush1.bf16.msra.mxu0 %v805
  %859 = vmatprep.subr.bf16.mxu0 %v810
  %860 = vmatpush1.bf16.msra.mxu0 %v809
  %861 = vmatprep.subr.bf16.mxu0 0
  %862 = vmatpush1.bf16.msra.mxu0 0
  %863 = vmatprep.subr.bf16.mxu0 0
  %864 = vmatpush1.bf16.msra.mxu0 0
  %865 = vmatprep.subr.bf16.mxu0 0
  %866 = vmatpush1.bf16.msra.mxu0 0
  %867 = vmatprep.subr.bf16.mxu0 0
  %868 = vmatpush1.bf16.msra.mxu0 0
  %869 = vmatprep.subr.bf16.mxu0 0
  %870 = vmatpush1.bf16.msra.mxu0 0
  %871 = vmatprep.subr.bf16.mxu0 0
  %872 = vmatpush1.bf16.msra.mxu0 0
  %873 = vmatprep.subr.bf16.mxu0 0
  %874 = vmatpush1.bf16.msra.mxu0 0
  %875 = vmatprep.subr.bf16.mxu0 0
  %876 = vmatpush1.bf16.msra.mxu0 0
  %877 = vmatprep.mubr.bf16.mxu0 0
  %878 = vmatmul.mubr.bf16.gmra.mrb[0].mxu0 %v647
  %v879 = vpop.f32.mrb[0].mxu0
  %v880 = vadd.f32 %v681, %v879
  %v881 = vpop.f32.mrb[0].mxu0
  %v882 = vadd.f32 %v682, %v881
  %v883 = vpop.f32.mrb[0].mxu0
  %v884 = vpop.f32.mrb[0].mxu0
  %885 = vdwg.mxu0
  %886 = vmatprep.subr.bf16.mxu0 %v784
  %887 = vmatpush1.bf16.msra.mxu0 %v783
  %888 = vmatprep.subr.bf16.mxu0 %v788
  %889 = vmatpush1.bf16.msra.mxu0 %v787
  %890 = vmatprep.subr.bf16.mxu0 %v792
  %891 = vmatpush1.bf16.msra.mxu0 %v791
  %892 = vmatprep.subr.bf16.mxu0 %v796
  %893 = vmatpush1.bf16.msra.mxu0 %v795
  %894 = vmatprep.subr.bf16.mxu0 %v800
  %895 = vmatpush1.bf16.msra.mxu0 %v799
  %896 = vmatprep.subr.bf16.mxu0 %v804
  %897 = vmatpush1.bf16.msra.mxu0 %v803
  %898 = vmatprep.subr.bf16.mxu0 %v808
  %899 = vmatpush1.bf16.msra.mxu0 %v807
  %900 = vmatprep.subr.bf16.mxu0 %v812
  %901 = vmatpush1.bf16.msra.mxu0 %v811
  %902 = vmatprep.subr.bf16.mxu0 0
  %903 = vmatpush1.bf16.msra.mxu0 0
  %904 = vmatprep.subr.bf16.mxu0 0
  %905 = vmatpush1.bf16.msra.mxu0 0
  %906 = vmatprep.subr.bf16.mxu0 0
  %907 = vmatpush1.bf16.msra.mxu0 0
  %908 = vmatprep.subr.bf16.mxu0 0
  %909 = vmatpush1.bf16.msra.mxu0 0
  %910 = vmatprep.subr.bf16.mxu0 0
  %911 = vmatpush1.bf16.msra.mxu0 0
  %912 = vmatprep.subr.bf16.mxu0 0
  %913 = vmatpush1.bf16.msra.mxu0 0
  %914 = vmatprep.subr.bf16.mxu0 0
  %915 = vmatpush1.bf16.msra.mxu0 0
  %916 = vmatprep.subr.bf16.mxu0 0
  %917 = vmatpush1.bf16.msra.mxu0 0
  %918 = vmatprep.mubr.bf16.mxu0 0
  %919 = vmatmul.mubr.bf16.gmra.mrb[0].mxu0 %v647
  %v920 = vpop.f32.mrb[0].mxu0
  %v921 = vadd.f32 %v683, %v920
  %v922 = vpop.f32.mrb[0].mxu0
  %v923 = vadd.f32 %v684, %v922
  %v924 = vpop.f32.mrb[0].mxu0
  %v925 = vpop.f32.mrb[0].mxu0
  %926 = vdwg.mxu0
  %v927 = vxor.u32 %v880, 2147483648
  %v928 = vmul.f32 %v927, 1.442695
  %v929 = vpow.pop %v928
  %v930 = vadd.f32 %v929, 1.0
  %v931 = vrcp.pop %v930
  %v932 = vmul.f32 1.0, %v931
  %v933 = vxor.u32 %v882, 2147483648
  %v934 = vmul.f32 %v933, 1.442695
  %v935 = vpow.pop %v934
  %v936 = vadd.f32 %v935, 1.0
  %v937 = vrcp.pop %v936
  %v938 = vmul.f32 1.0, %v937
  %v939 = vtanh.pop %v921
  %v940 = vxor.u32 %v923, 2147483648
  %v941 = vmul.f32 %v940, 1.442695
  %v942 = vpow.pop %v941
  %v943 = vadd.f32 %v942, 1.0
  %v944 = vrcp.pop %v943
  %v945 = vmul.f32 1.0, %v944
  %v946 = vld [vmem:[#allocation3] sm:$0xff]
  %v947 = vmul.f32 %v938, %v946
  %v948 = vmul.f32 %v932, %v939
  %v949 = vadd.f32 %v947, %v948
  %v950 = vtanh.pop %v949
  %v951 = vmul.f32 %v945, %v950
  %952 = vst [vmem:[#allocation3] sm:$0xff] %v949
  %953 = vst [vmem:[#allocation2] sm:$0xff] %v951
  %s954 = scalar_lea.vmem %s4, 16
  %955 = vst [vmem:[%s954] sm:$0xff] %v951
  %v956 = vld [vmem:[#allocation2] sm:$0xff]
  %v957 = vpack.c.bf16 %v956, %v956
  %v958 = vld [vmem:[%s1] sm:$0xff]
  %v959 = vld [vmem:[%s1 + $0x8] sm:$0xff]
  %v960 = vld [vmem:[%s1 + $0x10] sm:$0xff]
  %v961 = vld [vmem:[%s1 + $0x18] sm:$0xff]
  %v962 = vld [vmem:[%s1 + $0x20] sm:$0xff]
  %v963 = vld [vmem:[%s1 + $0x28] sm:$0xff]
  %v964 = vld [vmem:[%s1 + $0x30] sm:$0xff]
  %v965 = vld [vmem:[%s1 + $0x38] sm:$0xff]
  %v966 = vld [vmem:[%s1 + $0x40] sm:$0xff]
  %v967 = vld [vmem:[%s1 + $0x48] sm:$0xff]
  %v968 = vld [vmem:[%s1 + $0x50] sm:$0xff]
  %v969 = vld [vmem:[%s1 + $0x58] sm:$0xff]
  %v970 = vld [vmem:[%s1 + $0x60] sm:$0xff]
  %v971 = vld [vmem:[%s1 + $0x68] sm:$0xff]
  %v972 = vld [vmem:[%s1 + $0x70] sm:$0xff]
  %v973 = vld [vmem:[%s1 + $0x78] sm:$0xff]
  %v974 = vld [vmem:[%s1 + $0x80] sm:$0xff]
  %v975 = vld [vmem:[%s1 + $0x88] sm:$0xff]
  %v976 = vld [vmem:[%s1 + $0x90] sm:$0xff]
  %v977 = vld [vmem:[%s1 + $0x98] sm:$0xff]
  %v978 = vld [vmem:[%s1 + $0xa0] sm:$0xff]
  %v979 = vld [vmem:[%s1 + $0xa8] sm:$0xff]
  %v980 = vld [vmem:[%s1 + $0xb0] sm:$0xff]
  %v981 = vld [vmem:[%s1 + $0xb8] sm:$0xff]
  %v982 = vld [vmem:[%s1 + $0xc0] sm:$0xff]
  %v983 = vld [vmem:[%s1 + $0xc8] sm:$0xff]
  %v984 = vld [vmem:[%s1 + $0xd0] sm:$0xff]
  %v985 = vld [vmem:[%s1 + $0xd8] sm:$0xff]
  %v986 = vld [vmem:[%s1 + $0xe0] sm:$0xff]
  %v987 = vld [vmem:[%s1 + $0xe8] sm:$0xff]
  %v988 = vld [vmem:[%s1 + $0xf0] sm:$0xff]
  %v989 = vld [vmem:[%s1 + $0xf8] sm:$0xff]
  %s990 = scalar_lea.vmem %s0, 96
  %v991 = vld [vmem:[%s990] sm:$0xff]
  %v992 = vld [vmem:[%s990 + $0x8] sm:$0xff]
  %v993 = vld [vmem:[%s990 + $0x10] sm:$0xff]
  %v994 = vld [vmem:[%s990 + $0x18] sm:$0xff]
  %v1027 = vunpack.c.l.b16 %v958
  %v1028 = vunpack.c.h.b16 %v958
  %v1029 = vunpack.c.l.b16 %v959
  %v1030 = vunpack.c.h.b16 %v959
  %v1031 = vunpack.c.l.b16 %v960
  %v1032 = vunpack.c.h.b16 %v960
  %v1033 = vunpack.c.l.b16 %v961
  %v1034 = vunpack.c.h.b16 %v961
  %v1035 = vunpack.c.l.b16 %v962
  %v1036 = vunpack.c.h.b16 %v962
  %v1037 = vunpack.c.l.b16 %v963
  %v1038 = vunpack.c.h.b16 %v963
  %v1039 = vunpack.c.l.b16 %v964
  %v1040 = vunpack.c.h.b16 %v964
  %v1041 = vunpack.c.l.b16 %v965
  %v1042 = vunpack.c.h.b16 %v965
  %v1043 = vunpack.c.l.b16 %v966
  %v1044 = vunpack.c.h.b16 %v966
  %v1045 = vunpack.c.l.b16 %v967
  %v1046 = vunpack.c.h.b16 %v967
  %v1047 = vunpack.c.l.b16 %v968
  %v1048 = vunpack.c.h.b16 %v968
  %v1049 = vunpack.c.l.b16 %v969
  %v1050 = vunpack.c.h.b16 %v969
  %v1051 = vunpack.c.l.b16 %v970
  %v1052 = vunpack.c.h.b16 %v970
  %v1053 = vunpack.c.l.b16 %v971
  %v1054 = vunpack.c.h.b16 %v971
  %v1055 = vunpack.c.l.b16 %v972
  %v1056 = vunpack.c.h.b16 %v972
  %v1057 = vunpack.c.l.b16 %v973
  %v1058 = vunpack.c.h.b16 %v973
  %v1059 = vunpack.c.l.b16 %v974
  %v1060 = vunpack.c.h.b16 %v974
  %v1061 = vunpack.c.l.b16 %v975
  %v1062 = vunpack.c.h.b16 %v975
  %v1063 = vunpack.c.l.b16 %v976
  %v1064 = vunpack.c.h.b16 %v976
  %v1065 = vunpack.c.l.b16 %v977
  %v1066 = vunpack.c.h.b16 %v977
  %v1067 = vunpack.c.l.b16 %v978
  %v1068 = vunpack.c.h.b16 %v978
  %v1069 = vunpack.c.l.b16 %v979
  %v1070 = vunpack.c.h.b16 %v979
  %v1071 = vunpack.c.l.b16 %v980
  %v1072 = vunpack.c.h.b16 %v980
  %v1073 = vunpack.c.l.b16 %v981
  %v1074 = vunpack.c.h.b16 %v981
  %v1075 = vunpack.c.l.b16 %v982
  %v1076 = vunpack.c.h.b16 %v982
  %v1077 = vunpack.c.l.b16 %v983
  %v1078 = vunpack.c.h.b16 %v983
  %v1079 = vunpack.c.l.b16 %v984
  %v1080 = vunpack.c.h.b16 %v984
  %v1081 = vunpack.c.l.b16 %v985
  %v1082 = vunpack.c.h.b16 %v985
  %v1083 = vunpack.c.l.b16 %v986
  %v1084 = vunpack.c.h.b16 %v986
  %v1085 = vunpack.c.l.b16 %v987
  %v1086 = vunpack.c.h.b16 %v987
  %v1087 = vunpack.c.l.b16 %v988
  %v1088 = vunpack.c.h.b16 %v988
  %v1089 = vunpack.c.l.b16 %v989
  %v1090 = vunpack.c.h.b16 %v989
  %v1091 = vpack.c.b16 %v1031, %v1027
  %v1092 = vpack.c.b16 %v1032, %v1028
  %v1093 = vpack.c.b16 %v1033, %v1029
  %v1094 = vpack.c.b16 %v1034, %v1030
  %v1095 = vpack.c.b16 %v1039, %v1035
  %v1096 = vpack.c.b16 %v1040, %v1036
  %v1097 = vpack.c.b16 %v1041, %v1037
  %v1098 = vpack.c.b16 %v1042, %v1038
  %v1099 = vpack.c.b16 %v1047, %v1043
  %v1100 = vpack.c.b16 %v1048, %v1044
  %v1101 = vpack.c.b16 %v1049, %v1045
  %v1102 = vpack.c.b16 %v1050, %v1046
  %v1103 = vpack.c.b16 %v1055, %v1051
  %v1104 = vpack.c.b16 %v1056, %v1052
  %v1105 = vpack.c.b16 %v1057, %v1053
  %v1106 = vpack.c.b16 %v1058, %v1054
  %v1107 = vpack.c.b16 %v1063, %v1059
  %v1108 = vpack.c.b16 %v1064, %v1060
  %v1109 = vpack.c.b16 %v1065, %v1061
  %v1110 = vpack.c.b16 %v1066, %v1062
  %v1111 = vpack.c.b16 %v1071, %v1067
  %v1112 = vpack.c.b16 %v1072, %v1068
  %v1113 = vpack.c.b16 %v1073, %v1069
  %v1114 = vpack.c.b16 %v1074, %v1070
  %v1115 = vpack.c.b16 %v1079, %v1075
  %v1116 = vpack.c.b16 %v1080, %v1076
  %v1117 = vpack.c.b16 %v1081, %v1077
  %v1118 = vpack.c.b16 %v1082, %v1078
  %v1119 = vpack.c.b16 %v1087, %v1083
  %v1120 = vpack.c.b16 %v1088, %v1084
  %v1121 = vpack.c.b16 %v1089, %v1085
  %v1122 = vpack.c.b16 %v1090, %v1086
  %1155 = vmatprep.subr.bf16.mxu0 %v1092
  %1156 = vmatpush1.bf16.msra.mxu0 %v1091
  %1157 = vmatprep.subr.bf16.mxu0 %v1096
  %1158 = vmatpush1.bf16.msra.mxu0 %v1095
  %1159 = vmatprep.subr.bf16.mxu0 %v1100
  %1160 = vmatpush1.bf16.msra.mxu0 %v1099
  %1161 = vmatprep.subr.bf16.mxu0 %v1104
  %1162 = vmatpush1.bf16.msra.mxu0 %v1103
  %1163 = vmatprep.subr.bf16.mxu0 %v1108
  %1164 = vmatpush1.bf16.msra.mxu0 %v1107
  %1165 = vmatprep.subr.bf16.mxu0 %v1112
  %1166 = vmatpush1.bf16.msra.mxu0 %v1111
  %1167 = vmatprep.subr.bf16.mxu0 %v1116
  %1168 = vmatpush1.bf16.msra.mxu0 %v1115
  %1169 = vmatprep.subr.bf16.mxu0 %v1120
  %1170 = vmatpush1.bf16.msra.mxu0 %v1119
  %1171 = vmatprep.subr.bf16.mxu0 0
  %1172 = vmatpush1.bf16.msra.mxu0 0
  %1173 = vmatprep.subr.bf16.mxu0 0
  %1174 = vmatpush1.bf16.msra.mxu0 0
  %1175 = vmatprep.subr.bf16.mxu0 0
  %1176 = vmatpush1.bf16.msra.mxu0 0
  %1177 = vmatprep.subr.bf16.mxu0 0
  %1178 = vmatpush1.bf16.msra.mxu0 0
  %1179 = vmatprep.subr.bf16.mxu0 0
  %1180 = vmatpush1.bf16.msra.mxu0 0
  %1181 = vmatprep.subr.bf16.mxu0 0
  %1182 = vmatpush1.bf16.msra.mxu0 0
  %1183 = vmatprep.subr.bf16.mxu0 0
  %1184 = vmatpush1.bf16.msra.mxu0 0
  %1185 = vmatprep.subr.bf16.mxu0 0
  %1186 = vmatpush1.bf16.msra.mxu0 0
  %1187 = vmatprep.mubr.bf16.mxu0 0
  %1188 = vmatmul.mubr.bf16.gmra.mrb[0].mxu0 %v957
  %v1189 = vpop.f32.mrb[0].mxu0
  %v1190 = vadd.f32 %v991, %v1189
  %v1191 = vpop.f32.mrb[0].mxu0
  %v1192 = vadd.f32 %v992, %v1191
  %v1193 = vpop.f32.mrb[0].mxu0
  %v1194 = vpop.f32.mrb[0].mxu0
  %1195 = vdwg.mxu0
  %1196 = vmatprep.subr.bf16.mxu0 %v1094
  %1197 = vmatpush1.bf16.msra.mxu0 %v1093
  %1198 = vmatprep.subr.bf16.mxu0 %v1098
  %1199 = vmatpush1.bf16.msra.mxu0 %v1097
  %1200 = vmatprep.subr.bf16.mxu0 %v1102
  %1201 = vmatpush1.bf16.msra.mxu0 %v1101
  %1202 = vmatprep.subr.bf16.mxu0 %v1106
  %1203 = vmatpush1.bf16.msra.mxu0 %v1105
  %1204 = vmatprep.subr.bf16.mxu0 %v1110
  %1205 = vmatpush1.bf16.msra.mxu0 %v1109
  %1206 = vmatprep.subr.bf16.mxu0 %v1114
  %1207 = vmatpush1.bf16.msra.mxu0 %v1113
  %1208 = vmatprep.subr.bf16.mxu0 %v1118
  %1209 = vmatpush1.bf16.msra.mxu0 %v1117
  %1210 = vmatprep.subr.bf16.mxu0 %v1122
  %1211 = vmatpush1.bf16.msra.mxu0 %v1121
  %1212 = vmatprep.subr.bf16.mxu0 0
  %1213 = vmatpush1.bf16.msra.mxu0 0
  %1214 = vmatprep.subr.bf16.mxu0 0
  %1215 = vmatpush1.bf16.msra.mxu0 0
  %1216 = vmatprep.subr.bf16.mxu0 0
  %1217 = vmatpush1.bf16.msra.mxu0 0
  %1218 = vmatprep.subr.bf16.mxu0 0
  %1219 = vmatpush1.bf16.msra.mxu0 0
  %1220 = vmatprep.subr.bf16.mxu0 0
  %1221 = vmatpush1.bf16.msra.mxu0 0
  %1222 = vmatprep.subr.bf16.mxu0 0
  %1223 = vmatpush1.bf16.msra.mxu0 0
  %1224 = vmatprep.subr.bf16.mxu0 0
  %1225 = vmatpush1.bf16.msra.mxu0 0
  %1226 = vmatprep.subr.bf16.mxu0 0
  %1227 = vmatpush1.bf16.msra.mxu0 0
  %1228 = vmatprep.mubr.bf16.mxu0 0
  %1229 = vmatmul.mubr.bf16.gmra.mrb[0].mxu0 %v957
  %v1230 = vpop.f32.mrb[0].mxu0
  %v1231 = vadd.f32 %v993, %v1230
  %v1232 = vpop.f32.mrb[0].mxu0
  %v1233 = vadd.f32 %v994, %v1232
  %v1234 = vpop.f32.mrb[0].mxu0
  %v1235 = vpop.f32.mrb[0].mxu0
  %1236 = vdwg.mxu0
  %v1237 = vxor.u32 %v1190, 2147483648
  %v1238 = vmul.f32 %v1237, 1.442695
  %v1239 = vpow.pop %v1238
  %v1240 = vadd.f32 %v1239, 1.0
  %v1241 = vrcp.pop %v1240
  %v1242 = vmul.f32 1.0, %v1241
  %v1243 = vxor.u32 %v1192, 2147483648
  %v1244 = vmul.f32 %v1243, 1.442695
  %v1245 = vpow.pop %v1244
  %v1246 = vadd.f32 %v1245, 1.0
  %v1247 = vrcp.pop %v1246
  %v1248 = vmul.f32 1.0, %v1247
  %v1249 = vtanh.pop %v1231
  %v1250 = vxor.u32 %v1233, 2147483648
  %v1251 = vmul.f32 %v1250, 1.442695
  %v1252 = vpow.pop %v1251
  %v1253 = vadd.f32 %v1252, 1.0
  %v1254 = vrcp.pop %v1253
  %v1255 = vmul.f32 1.0, %v1254
  %v1256 = vld [vmem:[#allocation3] sm:$0xff]
  %v1257 = vmul.f32 %v1248, %v1256
  %v1258 = vmul.f32 %v1242, %v1249
  %v1259 = vadd.f32 %v1257, %v1258
  %v1260 = vtanh.pop %v1259
  %v1261 = vmul.f32 %v1255, %v1260
  %1262 = vst [vmem:[#allocation3] sm:$0xff] %v1259
  %1263 = vst [vmem:[#allocation2] sm:$0xff] %v1261
  %s1264 = scalar_lea.vmem %s4, 24
  %1265 = vst [vmem:[%s1264] sm:$0xff] %v1261
  %v1266 = vld [vmem:[#allocation2] sm:$0xff]
  %v1267 = vpack.c.bf16 %v1266, %v1266
  %v1268 = vld [vmem:[%s1] sm:$0xff]
  %v1269 = vld [vmem:[%s1 + $0x8] sm:$0xff]
  %v1270 = vld [vmem:[%s1 + $0x10] sm:$0xff]
  %v1271 = vld [vmem:[%s1 + $0x18] sm:$0xff]
  %v1272 = vld [vmem:[%s1 + $0x20] sm:$0xff]
  %v1273 = vld [vmem:[%s1 + $0x28] sm:$0xff]
  %v1274 = vld [vmem:[%s1 + $0x30] sm:$0xff]
  %v1275 = vld [vmem:[%s1 + $0x38] sm:$0xff]
  %v1276 = vld [vmem:[%s1 + $0x40] sm:$0xff]
  %v1277 = vld [vmem:[%s1 + $0x48] sm:$0xff]
  %v1278 = vld [vmem:[%s1 + $0x50] sm:$0xff]
  %v1279 = vld [vmem:[%s1 + $0x58] sm:$0xff]
  %v1280 = vld [vmem:[%s1 + $0x60] sm:$0xff]
  %v1281 = vld [vmem:[%s1 + $0x68] sm:$0xff]
  %v1282 = vld [vmem:[%s1 + $0x70] sm:$0xff]
  %v1283 = vld [vmem:[%s1 + $0x78] sm:$0xff]
  %v1284 = vld [vmem:[%s1 + $0x80] sm:$0xff]
  %v1285 = vld [vmem:[%s1 + $0x88] sm:$0xff]
  %v1286 = vld [vmem:[%s1 + $0x90] sm:$0xff]
  %v1287 = vld [vmem:[%s1 + $0x98] sm:$0xff]
  %v1288 = vld [vmem:[%s1 + $0xa0] sm:$0xff]
  %v1289 = vld [vmem:[%s1 + $0xa8] sm:$0xff]
  %v1290 = vld [vmem:[%s1 + $0xb0] sm:$0xff]
  %v1291 = vld [vmem:[%s1 + $0xb8] sm:$0xff]
  %v1292 = vld [vmem:[%s1 + $0xc0] sm:$0xff]
  %v1293 = vld [vmem:[%s1 + $0xc8] sm:$0xff]
  %v1294 = vld [vmem:[%s1 + $0xd0] sm:$0xff]
  %v1295 = vld [vmem:[%s1 + $0xd8] sm:$0xff]
  %v1296 = vld [vmem:[%s1 + $0xe0] sm:$0xff]
  %v1297 = vld [vmem:[%s1 + $0xe8] sm:$0xff]
  %v1298 = vld [vmem:[%s1 + $0xf0] sm:$0xff]
  %v1299 = vld [vmem:[%s1 + $0xf8] sm:$0xff]
  %s1300 = scalar_lea.vmem %s0, 128
  %v1301 = vld [vmem:[%s1300] sm:$0xff]
  %v1302 = vld [vmem:[%s1300 + $0x8] sm:$0xff]
  %v1303 = vld [vmem:[%s1300 + $0x10] sm:$0xff]
  %v1304 = vld [vmem:[%s1300 + $0x18] sm:$0xff]
  %v1337 = vunpack.c.l.b16 %v1268
  %v1338 = vunpack.c.h.b16 %v1268
  %v1339 = vunpack.c.l.b16 %v1269
  %v1340 = vunpack.c.h.b16 %v1269
  %v1341 = vunpack.c.l.b16 %v1270
  %v1342 = vunpack.c.h.b16 %v1270
  %v1343 = vunpack.c.l.b16 %v1271
  %v1344 = vunpack.c.h.b16 %v1271
  %v1345 = vunpack.c.l.b16 %v1272
  %v1346 = vunpack.c.h.b16 %v1272
  %v1347 = vunpack.c.l.b16 %v1273
  %v1348 = vunpack.c.h.b16 %v1273
  %v1349 = vunpack.c.l.b16 %v1274
  %v1350 = vunpack.c.h.b16 %v1274
  %v1351 = vunpack.c.l.b16 %v1275
  %v1352 = vunpack.c.h.b16 %v1275
  %v1353 = vunpack.c.l.b16 %v1276
  %v1354 = vunpack.c.h.b16 %v1276
  %v1355 = vunpack.c.l.b16 %v1277
  %v1356 = vunpack.c.h.b16 %v1277
  %v1357 = vunpack.c.l.b16 %v1278
  %v1358 = vunpack.c.h.b16 %v1278
  %v1359 = vunpack.c.l.b16 %v1279
  %v1360 = vunpack.c.h.b16 %v1279
  %v1361 = vunpack.c.l.b16 %v1280
  %v1362 = vunpack.c.h.b16 %v1280
  %v1363 = vunpack.c.l.b16 %v1281
  %v1364 = vunpack.c.h.b16 %v1281
  %v1365 = vunpack.c.l.b16 %v1282
  %v1366 = vunpack.c.h.b16 %v1282
  %v1367 = vunpack.c.l.b16 %v1283
  %v1368 = vunpack.c.h.b16 %v1283
  %v1369 = vunpack.c.l.b16 %v1284
  %v1370 = vunpack.c.h.b16 %v1284
  %v1371 = vunpack.c.l.b16 %v1285
  %v1372 = vunpack.c.h.b16 %v1285
  %v1373 = vunpack.c.l.b16 %v1286
  %v1374 = vunpack.c.h.b16 %v1286
  %v1375 = vunpack.c.l.b16 %v1287
  %v1376 = vunpack.c.h.b16 %v1287
  %v1377 = vunpack.c.l.b16 %v1288
  %v1378 = vunpack.c.h.b16 %v1288
  %v1379 = vunpack.c.l.b16 %v1289
  %v1380 = vunpack.c.h.b16 %v1289
  %v1381 = vunpack.c.l.b16 %v1290
  %v1382 = vunpack.c.h.b16 %v1290
  %v1383 = vunpack.c.l.b16 %v1291
  %v1384 = vunpack.c.h.b16 %v1291
  %v1385 = vunpack.c.l.b16 %v1292
  %v1386 = vunpack.c.h.b16 %v1292
  %v1387 = vunpack.c.l.b16 %v1293
  %v1388 = vunpack.c.h.b16 %v1293
  %v1389 = vunpack.c.l.b16 %v1294
  %v1390 = vunpack.c.h.b16 %v1294
  %v1391 = vunpack.c.l.b16 %v1295
  %v1392 = vunpack.c.h.b16 %v1295
  %v1393 = vunpack.c.l.b16 %v1296
  %v1394 = vunpack.c.h.b16 %v1296
  %v1395 = vunpack.c.l.b16 %v1297
  %v1396 = vunpack.c.h.b16 %v1297
  %v1397 = vunpack.c.l.b16 %v1298
  %v1398 = vunpack.c.h.b16 %v1298
  %v1399 = vunpack.c.l.b16 %v1299
  %v1400 = vunpack.c.h.b16 %v1299
  %v1401 = vpack.c.b16 %v1341, %v1337
  %v1402 = vpack.c.b16 %v1342, %v1338
  %v1403 = vpack.c.b16 %v1343, %v1339
  %v1404 = vpack.c.b16 %v1344, %v1340
  %v1405 = vpack.c.b16 %v1349, %v1345
  %v1406 = vpack.c.b16 %v1350, %v1346
  %v1407 = vpack.c.b16 %v1351, %v1347
  %v1408 = vpack.c.b16 %v1352, %v1348
  %v1409 = vpack.c.b16 %v1357, %v1353
  %v1410 = vpack.c.b16 %v1358, %v1354
  %v1411 = vpack.c.b16 %v1359, %v1355
  %v1412 = vpack.c.b16 %v1360, %v1356
  %v1413 = vpack.c.b16 %v1365, %v1361
  %v1414 = vpack.c.b16 %v1366, %v1362
  %v1415 = vpack.c.b16 %v1367, %v1363
  %v1416 = vpack.c.b16 %v1368, %v1364
  %v1417 = vpack.c.b16 %v1373, %v1369
  %v1418 = vpack.c.b16 %v1374, %v1370
  %v1419 = vpack.c.b16 %v1375, %v1371
  %v1420 = vpack.c.b16 %v1376, %v1372
  %v1421 = vpack.c.b16 %v1381, %v1377
  %v1422 = vpack.c.b16 %v1382, %v1378
  %v1423 = vpack.c.b16 %v1383, %v1379
  %v1424 = vpack.c.b16 %v1384, %v1380
  %v1425 = vpack.c.b16 %v1389, %v1385
  %v1426 = vpack.c.b16 %v1390, %v1386
  %v1427 = vpack.c.b16 %v1391, %v1387
  %v1428 = vpack.c.b16 %v1392, %v1388
  %v1429 = vpack.c.b16 %v1397, %v1393
  %v1430 = vpack.c.b16 %v1398, %v1394
  %v1431 = vpack.c.b16 %v1399, %v1395
  %v1432 = vpack.c.b16 %v1400, %v1396
  %1465 = vmatprep.subr.bf16.mxu0 %v1402
  %1466 = vmatpush1.bf16.msra.mxu0 %v1401
  %1467 = vmatprep.subr.bf16.mxu0 %v1406
  %1468 = vmatpush1.bf16.msra.mxu0 %v1405
  %1469 = vmatprep.subr.bf16.mxu0 %v1410
  %1470 = vmatpush1.bf16.msra.mxu0 %v1409
  %1471 = vmatprep.subr.bf16.mxu0 %v1414
  %1472 = vmatpush1.bf16.msra.mxu0 %v1413
  %1473 = vmatprep.subr.bf16.mxu0 %v1418
  %1474 = vmatpush1.bf16.msra.mxu0 %v1417
  %1475 = vmatprep.subr.bf16.mxu0 %v1422
  %1476 = vmatpush1.bf16.msra.mxu0 %v1421
  %1477 = vmatprep.subr.bf16.mxu0 %v1426
  %1478 = vmatpush1.bf16.msra.mxu0 %v1425
  %1479 = vmatprep.subr.bf16.mxu0 %v1430
  %1480 = vmatpush1.bf16.msra.mxu0 %v1429
  %1481 = vmatprep.subr.bf16.mxu0 0
  %1482 = vmatpush1.bf16.msra.mxu0 0
  %1483 = vmatprep.subr.bf16.mxu0 0
  %1484 = vmatpush1.bf16.msra.mxu0 0
  %1485 = vmatprep.subr.bf16.mxu0 0
  %1486 = vmatpush1.bf16.msra.mxu0 0
  %1487 = vmatprep.subr.bf16.mxu0 0
  %1488 = vmatpush1.bf16.msra.mxu0 0
  %1489 = vmatprep.subr.bf16.mxu0 0
  %1490 = vmatpush1.bf16.msra.mxu0 0
  %1491 = vmatprep.subr.bf16.mxu0 0
  %1492 = vmatpush1.bf16.msra.mxu0 0
  %1493 = vmatprep.subr.bf16.mxu0 0
  %1494 = vmatpush1.bf16.msra.mxu0 0
  %1495 = vmatprep.subr.bf16.mxu0 0
  %1496 = vmatpush1.bf16.msra.mxu0 0
  %1497 = vmatprep.mubr.bf16.mxu0 0
  %1498 = vmatmul.mubr.bf16.gmra.mrb[0].mxu0 %v1267
  %v1499 = vpop.f32.mrb[0].mxu0
  %v1500 = vadd.f32 %v1301, %v1499
  %v1501 = vpop.f32.mrb[0].mxu0
  %v1502 = vadd.f32 %v1302, %v1501
  %v1503 = vpop.f32.mrb[0].mxu0
  %v1504 = vpop.f32.mrb[0].mxu0
  %1505 = vdwg.mxu0
  %1506 = vmatprep.subr.bf16.mxu0 %v1404
  %1507 = vmatpush1.bf16.msra.mxu0 %v1403
  %1508 = vmatprep.subr.bf16.mxu0 %v1408
  %1509 = vmatpush1.bf16.msra.mxu0 %v1407
  %1510 = vmatprep.subr.bf16.mxu0 %v1412
  %1511 = vmatpush1.bf16.msra.mxu0 %v1411
  %1512 = vmatprep.subr.bf16.mxu0 %v1416
  %1513 = vmatpush1.bf16.msra.mxu0 %v1415
  %1514 = vmatprep.subr.bf16.mxu0 %v1420
  %1515 = vmatpush1.bf16.msra.mxu0 %v1419
  %1516 = vmatprep.subr.bf16.mxu0 %v1424
  %1517 = vmatpush1.bf16.msra.mxu0 %v1423
  %1518 = vmatprep.subr.bf16.mxu0 %v1428
  %1519 = vmatpush1.bf16.msra.mxu0 %v1427
  %1520 = vmatprep.subr.bf16.mxu0 %v1432
  %1521 = vmatpush1.bf16.msra.mxu0 %v1431
  %1522 = vmatprep.subr.bf16.mxu0 0
  %1523 = vmatpush1.bf16.msra.mxu0 0
  %1524 = vmatprep.subr.bf16.mxu0 0
  %1525 = vmatpush1.bf16.msra.mxu0 0
  %1526 = vmatprep.subr.bf16.mxu0 0
  %1527 = vmatpush1.bf16.msra.mxu0 0
  %1528 = vmatprep.subr.bf16.mxu0 0
  %1529 = vmatpush1.bf16.msra.mxu0 0
  %1530 = vmatprep.subr.bf16.mxu0 0
  %1531 = vmatpush1.bf16.msra.mxu0 0
  %1532 = vmatprep.subr.bf16.mxu0 0
  %1533 = vmatpush1.bf16.msra.mxu0 0
  %1534 = vmatprep.subr.bf16.mxu0 0
  %1535 = vmatpush1.bf16.msra.mxu0 0
  %1536 = vmatprep.subr.bf16.mxu0 0
  %1537 = vmatpush1.bf16.msra.mxu0 0
  %1538 = vmatprep.mubr.bf16.mxu0 0
  %1539 = vmatmul.mubr.bf16.gmra.mrb[0].mxu0 %v1267
  %v1540 = vpop.f32.mrb[0].mxu0
  %v1541 = vadd.f32 %v1303, %v1540
  %v1542 = vpop.f32.mrb[0].mxu0
  %v1543 = vadd.f32 %v1304, %v1542
  %v1544 = vpop.f32.mrb[0].mxu0
  %v1545 = vpop.f32.mrb[0].mxu0
  %1546 = vdwg.mxu0
  %v1547 = vxor.u32 %v1500, 2147483648
  %v1548 = vmul.f32 %v1547, 1.442695
  %v1549 = vpow.pop %v1548
  %v1550 = vadd.f32 %v1549, 1.0
  %v1551 = vrcp.pop %v1550
  %v1552 = vmul.f32 1.0, %v1551
  %v1553 = vxor.u32 %v1502, 2147483648
  %v1554 = vmul.f32 %v1553, 1.442695
  %v1555 = vpow.pop %v1554
  %v1556 = vadd.f32 %v1555, 1.0
  %v1557 = vrcp.pop %v1556
  %v1558 = vmul.f32 1.0, %v1557
  %v1559 = vtanh.pop %v1541
  %v1560 = vxor.u32 %v1543, 2147483648
  %v1561 = vmul.f32 %v1560, 1.442695
  %v1562 = vpow.pop %v1561
  %v1563 = vadd.f32 %v1562, 1.0
  %v1564 = vrcp.pop %v1563
  %v1565 = vmul.f32 1.0, %v1564
  %v1566 = vld [vmem:[#allocation3] sm:$0xff]
  %v1567 = vmul.f32 %v1558, %v1566
  %v1568 = vmul.f32 %v1552, %v1559
  %v1569 = vadd.f32 %v1567, %v1568
  %v1570 = vtanh.pop %v1569
  %v1571 = vmul.f32 %v1565, %v1570
  %1572 = vst [vmem:[#allocation3] sm:$0xff] %v1569
  %1573 = vst [vmem:[#allocation2] sm:$0xff] %v1571
  %s1574 = scalar_lea.vmem %s4, 32
  %1575 = vst [vmem:[%s1574] sm:$0xff] %v1571
  %v1576 = vld [vmem:[#allocation2] sm:$0xff]
  %v1577 = vpack.c.bf16 %v1576, %v1576
  %v1578 = vld [vmem:[%s1] sm:$0xff]
  %v1579 = vld [vmem:[%s1 + $0x8] sm:$0xff]
  %v1580 = vld [vmem:[%s1 + $0x10] sm:$0xff]
  %v1581 = vld [vmem:[%s1 + $0x18] sm:$0xff]
  %v1582 = vld [vmem:[%s1 + $0x20] sm:$0xff]
  %v1583 = vld [vmem:[%s1 + $0x28] sm:$0xff]
  %v1584 = vld [vmem:[%s1 + $0x30] sm:$0xff]
  %v1585 = vld [vmem:[%s1 + $0x38] sm:$0xff]
  %v1586 = vld [vmem:[%s1 + $0x40] sm:$0xff]
  %v1587 = vld [vmem:[%s1 + $0x48] sm:$0xff]
  %v1588 = vld [vmem:[%s1 + $0x50] sm:$0xff]
  %v1589 = vld [vmem:[%s1 + $0x58] sm:$0xff]
  %v1590 = vld [vmem:[%s1 + $0x60] sm:$0xff]
  %v1591 = vld [vmem:[%s1 + $0x68] sm:$0xff]
  %v1592 = vld [vmem:[%s1 + $0x70] sm:$0xff]
  %v1593 = vld [vmem:[%s1 + $0x78] sm:$0xff]
  %v1594 = vld [vmem:[%s1 + $0x80] sm:$0xff]
  %v1595 = vld [vmem:[%s1 + $0x88] sm:$0xff]
  %v1596 = vld [vmem:[%s1 + $0x90] sm:$0xff]
  %v1597 = vld [vmem:[%s1 + $0x98] sm:$0xff]
  %v1598 = vld [vmem:[%s1 + $0xa0] sm:$0xff]
  %v1599 = vld [vmem:[%s1 + $0xa8] sm:$0xff]
  %v1600 = vld [vmem:[%s1 + $0xb0] sm:$0xff]
  %v1601 = vld [vmem:[%s1 + $0xb8] sm:$0xff]
  %v1602 = vld [vmem:[%s1 + $0xc0] sm:$0xff]
  %v1603 = vld [vmem:[%s1 + $0xc8] sm:$0xff]
  %v1604 = vld [vmem:[%s1 + $0xd0] sm:$0xff]
  %v1605 = vld [vmem:[%s1 + $0xd8] sm:$0xff]
  %v1606 = vld [vmem:[%s1 + $0xe0] sm:$0xff]
  %v1607 = vld [vmem:[%s1 + $0xe8] sm:$0xff]
  %v1608 = vld [vmem:[%s1 + $0xf0] sm:$0xff]
  %v1609 = vld [vmem:[%s1 + $0xf8] sm:$0xff]
  %s1610 = scalar_lea.vmem %s0, 160
  %v1611 = vld [vmem:[%s1610] sm:$0xff]
  %v1612 = vld [vmem:[%s1610 + $0x8] sm:$0xff]
  %v1613 = vld [vmem:[%s1610 + $0x10] sm:$0xff]
  %v1614 = vld [vmem:[%s1610 + $0x18] sm:$0xff]
  %v1647 = vunpack.c.l.b16 %v1578
  %v1648 = vunpack.c.h.b16 %v1578
  %v1649 = vunpack.c.l.b16 %v1579
  %v1650 = vunpack.c.h.b16 %v1579
  %v1651 = vunpack.c.l.b16 %v1580
  %v1652 = vunpack.c.h.b16 %v1580
  %v1653 = vunpack.c.l.b16 %v1581
  %v1654 = vunpack.c.h.b16 %v1581
  %v1655 = vunpack.c.l.b16 %v1582
  %v1656 = vunpack.c.h.b16 %v1582
  %v1657 = vunpack.c.l.b16 %v1583
  %v1658 = vunpack.c.h.b16 %v1583
  %v1659 = vunpack.c.l.b16 %v1584
  %v1660 = vunpack.c.h.b16 %v1584
  %v1661 = vunpack.c.l.b16 %v1585
  %v1662 = vunpack.c.h.b16 %v1585
  %v1663 = vunpack.c.l.b16 %v1586
  %v1664 = vunpack.c.h.b16 %v1586
  %v1665 = vunpack.c.l.b16 %v1587
  %v1666 = vunpack.c.h.b16 %v1587
  %v1667 = vunpack.c.l.b16 %v1588
  %v1668 = vunpack.c.h.b16 %v1588
  %v1669 = vunpack.c.l.b16 %v1589
  %v1670 = vunpack.c.h.b16 %v1589
  %v1671 = vunpack.c.l.b16 %v1590
  %v1672 = vunpack.c.h.b16 %v1590
  %v1673 = vunpack.c.l.b16 %v1591
  %v1674 = vunpack.c.h.b16 %v1591
  %v1675 = vunpack.c.l.b16 %v1592
  %v1676 = vunpack.c.h.b16 %v1592
  %v1677 = vunpack.c.l.b16 %v1593
  %v1678 = vunpack.c.h.b16 %v1593
  %v1679 = vunpack.c.l.b16 %v1594
  %v1680 = vunpack.c.h.b16 %v1594
  %v1681 = vunpack.c.l.b16 %v1595
  %v1682 = vunpack.c.h.b16 %v1595
  %v1683 = vunpack.c.l.b16 %v1596
  %v1684 = vunpack.c.h.b16 %v1596
  %v1685 = vunpack.c.l.b16 %v1597
  %v1686 = vunpack.c.h.b16 %v1597
  %v1687 = vunpack.c.l.b16 %v1598
  %v1688 = vunpack.c.h.b16 %v1598
  %v1689 = vunpack.c.l.b16 %v1599
  %v1690 = vunpack.c.h.b16 %v1599
  %v1691 = vunpack.c.l.b16 %v1600
  %v1692 = vunpack.c.h.b16 %v1600
  %v1693 = vunpack.c.l.b16 %v1601
  %v1694 = vunpack.c.h.b16 %v1601
  %v1695 = vunpack.c.l.b16 %v1602
  %v1696 = vunpack.c.h.b16 %v1602
  %v1697 = vunpack.c.l.b16 %v1603
  %v1698 = vunpack.c.h.b16 %v1603
  %v1699 = vunpack.c.l.b16 %v1604
  %v1700 = vunpack.c.h.b16 %v1604
  %v1701 = vunpack.c.l.b16 %v1605
  %v1702 = vunpack.c.h.b16 %v1605
  %v1703 = vunpack.c.l.b16 %v1606
  %v1704 = vunpack.c.h.b16 %v1606
  %v1705 = vunpack.c.l.b16 %v1607
  %v1706 = vunpack.c.h.b16 %v1607
  %v1707 = vunpack.c.l.b16 %v1608
  %v1708 = vunpack.c.h.b16 %v1608
  %v1709 = vunpack.c.l.b16 %v1609
  %v1710 = vunpack.c.h.b16 %v1609
  %v1711 = vpack.c.b16 %v1651, %v1647
  %v1712 = vpack.c.b16 %v1652, %v1648
  %v1713 = vpack.c.b16 %v1653, %v1649
  %v1714 = vpack.c.b16 %v1654, %v1650
  %v1715 = vpack.c.b16 %v1659, %v1655
  %v1716 = vpack.c.b16 %v1660, %v1656
  %v1717 = vpack.c.b16 %v1661, %v1657
  %v1718 = vpack.c.b16 %v1662, %v1658
  %v1719 = vpack.c.b16 %v1667, %v1663
  %v1720 = vpack.c.b16 %v1668, %v1664
  %v1721 = vpack.c.b16 %v1669, %v1665
  %v1722 = vpack.c.b16 %v1670, %v1666
  %v1723 = vpack.c.b16 %v1675, %v1671
  %v1724 = vpack.c.b16 %v1676, %v1672
  %v1725 = vpack.c.b16 %v1677, %v1673
  %v1726 = vpack.c.b16 %v1678, %v1674
  %v1727 = vpack.c.b16 %v1683, %v1679
  %v1728 = vpack.c.b16 %v1684, %v1680
  %v1729 = vpack.c.b16 %v1685, %v1681
  %v1730 = vpack.c.b16 %v1686, %v1682
  %v1731 = vpack.c.b16 %v1691, %v1687
  %v1732 = vpack.c.b16 %v1692, %v1688
  %v1733 = vpack.c.b16 %v1693, %v1689
  %v1734 = vpack.c.b16 %v1694, %v1690
  %v1735 = vpack.c.b16 %v1699, %v1695
  %v1736 = vpack.c.b16 %v1700, %v1696
  %v1737 = vpack.c.b16 %v1701, %v1697
  %v1738 = vpack.c.b16 %v1702, %v1698
  %v1739 = vpack.c.b16 %v1707, %v1703
  %v1740 = vpack.c.b16 %v1708, %v1704
  %v1741 = vpack.c.b16 %v1709, %v1705
  %v1742 = vpack.c.b16 %v1710, %v1706
  %1775 = vmatprep.subr.bf16.mxu0 %v1712
  %1776 = vmatpush1.bf16.msra.mxu0 %v1711
  %1777 = vmatprep.subr.bf16.mxu0 %v1716
  %1778 = vmatpush1.bf16.msra.mxu0 %v1715
  %1779 = vmatprep.subr.bf16.mxu0 %v1720
  %1780 = vmatpush1.bf16.msra.mxu0 %v1719
  %1781 = vmatprep.subr.bf16.mxu0 %v1724
  %1782 = vmatpush1.bf16.msra.mxu0 %v1723
  %1783 = vmatprep.subr.bf16.mxu0 %v1728
  %1784 = vmatpush1.bf16.msra.mxu0 %v1727
  %1785 = vmatprep.subr.bf16.mxu0 %v1732
  %1786 = vmatpush1.bf16.msra.mxu0 %v1731
  %1787 = vmatprep.subr.bf16.mxu0 %v1736
  %1788 = vmatpush1.bf16.msra.mxu0 %v1735
  %1789 = vmatprep.subr.bf16.mxu0 %v1740
  %1790 = vmatpush1.bf16.msra.mxu0 %v1739
  %1791 = vmatprep.subr.bf16.mxu0 0
  %1792 = vmatpush1.bf16.msra.mxu0 0
  %1793 = vmatprep.subr.bf16.mxu0 0
  %1794 = vmatpush1.bf16.msra.mxu0 0
  %1795 = vmatprep.subr.bf16.mxu0 0
  %1796 = vmatpush1.bf16.msra.mxu0 0
  %1797 = vmatprep.subr.bf16.mxu0 0
  %1798 = vmatpush1.bf16.msra.mxu0 0
  %1799 = vmatprep.subr.bf16.mxu0 0
  %1800 = vmatpush1.bf16.msra.mxu0 0
  %1801 = vmatprep.subr.bf16.mxu0 0
  %1802 = vmatpush1.bf16.msra.mxu0 0
  %1803 = vmatprep.subr.bf16.mxu0 0
  %1804 = vmatpush1.bf16.msra.mxu0 0
  %1805 = vmatprep.subr.bf16.mxu0 0
  %1806 = vmatpush1.bf16.msra.mxu0 0
  %1807 = vmatprep.mubr.bf16.mxu0 0
  %1808 = vmatmul.mubr.bf16.gmra.mrb[0].mxu0 %v1577
  %v1809 = vpop.f32.mrb[0].mxu0
  %v1810 = vadd.f32 %v1611, %v1809
  %v1811 = vpop.f32.mrb[0].mxu0
  %v1812 = vadd.f32 %v1612, %v1811
  %v1813 = vpop.f32.mrb[0].mxu0
  %v1814 = vpop.f32.mrb[0].mxu0
  %1815 = vdwg.mxu0
  %1816 = vmatprep.subr.bf16.mxu0 %v1714
  %1817 = vmatpush1.bf16.msra.mxu0 %v1713
  %1818 = vmatprep.subr.bf16.mxu0 %v1718
  %1819 = vmatpush1.bf16.msra.mxu0 %v1717
  %1820 = vmatprep.subr.bf16.mxu0 %v1722
  %1821 = vmatpush1.bf16.msra.mxu0 %v1721
  %1822 = vmatprep.subr.bf16.mxu0 %v1726
  %1823 = vmatpush1.bf16.msra.mxu0 %v1725
  %1824 = vmatprep.subr.bf16.mxu0 %v1730
  %1825 = vmatpush1.bf16.msra.mxu0 %v1729
  %1826 = vmatprep.subr.bf16.mxu0 %v1734
  %1827 = vmatpush1.bf16.msra.mxu0 %v1733
  %1828 = vmatprep.subr.bf16.mxu0 %v1738
  %1829 = vmatpush1.bf16.msra.mxu0 %v1737
  %1830 = vmatprep.subr.bf16.mxu0 %v1742
  %1831 = vmatpush1.bf16.msra.mxu0 %v1741
  %1832 = vmatprep.subr.bf16.mxu0 0
  %1833 = vmatpush1.bf16.msra.mxu0 0
  %1834 = vmatprep.subr.bf16.mxu0 0
  %1835 = vmatpush1.bf16.msra.mxu0 0
  %1836 = vmatprep.subr.bf16.mxu0 0
  %1837 = vmatpush1.bf16.msra.mxu0 0
  %1838 = vmatprep.subr.bf16.mxu0 0
  %1839 = vmatpush1.bf16.msra.mxu0 0
  %1840 = vmatprep.subr.bf16.mxu0 0
  %1841 = vmatpush1.bf16.msra.mxu0 0
  %1842 = vmatprep.subr.bf16.mxu0 0
  %1843 = vmatpush1.bf16.msra.mxu0 0
  %1844 = vmatprep.subr.bf16.mxu0 0
  %1845 = vmatpush1.bf16.msra.mxu0 0
  %1846 = vmatprep.subr.bf16.mxu0 0
  %1847 = vmatpush1.bf16.msra.mxu0 0
  %1848 = vmatprep.mubr.bf16.mxu0 0
  %1849 = vmatmul.mubr.bf16.gmra.mrb[0].mxu0 %v1577
  %v1850 = vpop.f32.mrb[0].mxu0
  %v1851 = vadd.f32 %v1613, %v1850
  %v1852 = vpop.f32.mrb[0].mxu0
  %v1853 = vadd.f32 %v1614, %v1852
  %v1854 = vpop.f32.mrb[0].mxu0
  %v1855 = vpop.f32.mrb[0].mxu0
  %1856 = vdwg.mxu0
  %v1857 = vxor.u32 %v1810, 2147483648
  %v1858 = vmul.f32 %v1857, 1.442695
  %v1859 = vpow.pop %v1858
  %v1860 = vadd.f32 %v1859, 1.0
  %v1861 = vrcp.pop %v1860
  %v1862 = vmul.f32 1.0, %v1861
  %v1863 = vxor.u32 %v1812, 2147483648
  %v1864 = vmul.f32 %v1863, 1.442695
  %v1865 = vpow.pop %v1864
  %v1866 = vadd.f32 %v1865, 1.0
  %v1867 = vrcp.pop %v1866
  %v1868 = vmul.f32 1.0, %v1867
  %v1869 = vtanh.pop %v1851
  %v1870 = vxor.u32 %v1853, 2147483648
  %v1871 = vmul.f32 %v1870, 1.442695
  %v1872 = vpow.pop %v1871
  %v1873 = vadd.f32 %v1872, 1.0
  %v1874 = vrcp.pop %v1873
  %v1875 = vmul.f32 1.0, %v1874
  %v1876 = vld [vmem:[#allocation3] sm:$0xff]
  %v1877 = vmul.f32 %v1868, %v1876
  %v1878 = vmul.f32 %v1862, %v1869
  %v1879 = vadd.f32 %v1877, %v1878
  %v1880 = vtanh.pop %v1879
  %v1881 = vmul.f32 %v1875, %v1880
  %1882 = vst [vmem:[#allocation3] sm:$0xff] %v1879
  %1883 = vst [vmem:[#allocation2] sm:$0xff] %v1881
  %s1884 = scalar_lea.vmem %s4, 40
  %1885 = vst [vmem:[%s1884] sm:$0xff] %v1881
  %v1886 = vld [vmem:[#allocation2] sm:$0xff]
  %v1887 = vpack.c.bf16 %v1886, %v1886
  %v1888 = vld [vmem:[%s1] sm:$0xff]
  %v1889 = vld [vmem:[%s1 + $0x8] sm:$0xff]
  %v1890 = vld [vmem:[%s1 + $0x10] sm:$0xff]
  %v1891 = vld [vmem:[%s1 + $0x18] sm:$0xff]
  %v1892 = vld [vmem:[%s1 + $0x20] sm:$0xff]
  %v1893 = vld [vmem:[%s1 + $0x28] sm:$0xff]
  %v1894 = vld [vmem:[%s1 + $0x30] sm:$0xff]
  %v1895 = vld [vmem:[%s1 + $0x38] sm:$0xff]
  %v1896 = vld [vmem:[%s1 + $0x40] sm:$0xff]
  %v1897 = vld [vmem:[%s1 + $0x48] sm:$0xff]
  %v1898 = vld [vmem:[%s1 + $0x50] sm:$0xff]
  %v1899 = vld [vmem:[%s1 + $0x58] sm:$0xff]
  %v1900 = vld [vmem:[%s1 + $0x60] sm:$0xff]
  %v1901 = vld [vmem:[%s1 + $0x68] sm:$0xff]
  %v1902 = vld [vmem:[%s1 + $0x70] sm:$0xff]
  %v1903 = vld [vmem:[%s1 + $0x78] sm:$0xff]
  %v1904 = vld [vmem:[%s1 + $0x80] sm:$0xff]
  %v1905 = vld [vmem:[%s1 + $0x88] sm:$0xff]
  %v1906 = vld [vmem:[%s1 + $0x90] sm:$0xff]
  %v1907 = vld [vmem:[%s1 + $0x98] sm:$0xff]
  %v1908 = vld [vmem:[%s1 + $0xa0] sm:$0xff]
  %v1909 = vld [vmem:[%s1 + $0xa8] sm:$0xff]
  %v1910 = vld [vmem:[%s1 + $0xb0] sm:$0xff]
  %v1911 = vld [vmem:[%s1 + $0xb8] sm:$0xff]
  %v1912 = vld [vmem:[%s1 + $0xc0] sm:$0xff]
  %v1913 = vld [vmem:[%s1 + $0xc8] sm:$0xff]
  %v1914 = vld [vmem:[%s1 + $0xd0] sm:$0xff]
  %v1915 = vld [vmem:[%s1 + $0xd8] sm:$0xff]
  %v1916 = vld [vmem:[%s1 + $0xe0] sm:$0xff]
  %v1917 = vld [vmem:[%s1 + $0xe8] sm:$0xff]
  %v1918 = vld [vmem:[%s1 + $0xf0] sm:$0xff]
  %v1919 = vld [vmem:[%s1 + $0xf8] sm:$0xff]
  %s1920 = scalar_lea.vmem %s0, 192
  %v1921 = vld [vmem:[%s1920] sm:$0xff]
  %v1922 = vld [vmem:[%s1920 + $0x8] sm:$0xff]
  %v1923 = vld [vmem:[%s1920 + $0x10] sm:$0xff]
  %v1924 = vld [vmem:[%s1920 + $0x18] sm:$0xff]
  %v1957 = vunpack.c.l.b16 %v1888
  %v1958 = vunpack.c.h.b16 %v1888
  %v1959 = vunpack.c.l.b16 %v1889
  %v1960 = vunpack.c.h.b16 %v1889
  %v1961 = vunpack.c.l.b16 %v1890
  %v1962 = vunpack.c.h.b16 %v1890
  %v1963 = vunpack.c.l.b16 %v1891
  %v1964 = vunpack.c.h.b16 %v1891
  %v1965 = vunpack.c.l.b16 %v1892
  %v1966 = vunpack.c.h.b16 %v1892
  %v1967 = vunpack.c.l.b16 %v1893
  %v1968 = vunpack.c.h.b16 %v1893
  %v1969 = vunpack.c.l.b16 %v1894
  %v1970 = vunpack.c.h.b16 %v1894
  %v1971 = vunpack.c.l.b16 %v1895
  %v1972 = vunpack.c.h.b16 %v1895
  %v1973 = vunpack.c.l.b16 %v1896
  %v1974 = vunpack.c.h.b16 %v1896
  %v1975 = vunpack.c.l.b16 %v1897
  %v1976 = vunpack.c.h.b16 %v1897
  %v1977 = vunpack.c.l.b16 %v1898
  %v1978 = vunpack.c.h.b16 %v1898
  %v1979 = vunpack.c.l.b16 %v1899
  %v1980 = vunpack.c.h.b16 %v1899
  %v1981 = vunpack.c.l.b16 %v1900
  %v1982 = vunpack.c.h.b16 %v1900
  %v1983 = vunpack.c.l.b16 %v1901
  %v1984 = vunpack.c.h.b16 %v1901
  %v1985 = vunpack.c.l.b16 %v1902
  %v1986 = vunpack.c.h.b16 %v1902
  %v1987 = vunpack.c.l.b16 %v1903
  %v1988 = vunpack.c.h.b16 %v1903
  %v1989 = vunpack.c.l.b16 %v1904
  %v1990 = vunpack.c.h.b16 %v1904
  %v1991 = vunpack.c.l.b16 %v1905
  %v1992 = vunpack.c.h.b16 %v1905
  %v1993 = vunpack.c.l.b16 %v1906
  %v1994 = vunpack.c.h.b16 %v1906
  %v1995 = vunpack.c.l.b16 %v1907
  %v1996 = vunpack.c.h.b16 %v1907
  %v1997 = vunpack.c.l.b16 %v1908
  %v1998 = vunpack.c.h.b16 %v1908
  %v1999 = vunpack.c.l.b16 %v1909
  %v2000 = vunpack.c.h.b16 %v1909
  %v2001 = vunpack.c.l.b16 %v1910
  %v2002 = vunpack.c.h.b16 %v1910
  %v2003 = vunpack.c.l.b16 %v1911
  %v2004 = vunpack.c.h.b16 %v1911
  %v2005 = vunpack.c.l.b16 %v1912
  %v2006 = vunpack.c.h.b16 %v1912
  %v2007 = vunpack.c.l.b16 %v1913
  %v2008 = vunpack.c.h.b16 %v1913
  %v2009 = vunpack.c.l.b16 %v1914
  %v2010 = vunpack.c.h.b16 %v1914
  %v2011 = vunpack.c.l.b16 %v1915
  %v2012 = vunpack.c.h.b16 %v1915
  %v2013 = vunpack.c.l.b16 %v1916
  %v2014 = vunpack.c.h.b16 %v1916
  %v2015 = vunpack.c.l.b16 %v1917
  %v2016 = vunpack.c.h.b16 %v1917
  %v2017 = vunpack.c.l.b16 %v1918
  %v2018 = vunpack.c.h.b16 %v1918
  %v2019 = vunpack.c.l.b16 %v1919
  %v2020 = vunpack.c.h.b16 %v1919
  %v2021 = vpack.c.b16 %v1961, %v1957
  %v2022 = vpack.c.b16 %v1962, %v1958
  %v2023 = vpack.c.b16 %v1963, %v1959
  %v2024 = vpack.c.b16 %v1964, %v1960
  %v2025 = vpack.c.b16 %v1969, %v1965
  %v2026 = vpack.c.b16 %v1970, %v1966
  %v2027 = vpack.c.b16 %v1971, %v1967
  %v2028 = vpack.c.b16 %v1972, %v1968
  %v2029 = vpack.c.b16 %v1977, %v1973
  %v2030 = vpack.c.b16 %v1978, %v1974
  %v2031 = vpack.c.b16 %v1979, %v1975
  %v2032 = vpack.c.b16 %v1980, %v1976
  %v2033 = vpack.c.b16 %v1985, %v1981
  %v2034 = vpack.c.b16 %v1986, %v1982
  %v2035 = vpack.c.b16 %v1987, %v1983
  %v2036 = vpack.c.b16 %v1988, %v1984
  %v2037 = vpack.c.b16 %v1993, %v1989
  %v2038 = vpack.c.b16 %v1994, %v1990
  %v2039 = vpack.c.b16 %v1995, %v1991
  %v2040 = vpack.c.b16 %v1996, %v1992
  %v2041 = vpack.c.b16 %v2001, %v1997
  %v2042 = vpack.c.b16 %v2002, %v1998
  %v2043 = vpack.c.b16 %v2003, %v1999
  %v2044 = vpack.c.b16 %v2004, %v2000
  %v2045 = vpack.c.b16 %v2009, %v2005
  %v2046 = vpack.c.b16 %v2010, %v2006
  %v2047 = vpack.c.b16 %v2011, %v2007
  %v2048 = vpack.c.b16 %v2012, %v2008
  %v2049 = vpack.c.b16 %v2017, %v2013
  %v2050 = vpack.c.b16 %v2018, %v2014
  %v2051 = vpack.c.b16 %v2019, %v2015
  %v2052 = vpack.c.b16 %v2020, %v2016
  %2085 = vmatprep.subr.bf16.mxu0 %v2022
  %2086 = vmatpush1.bf16.msra.mxu0 %v2021
  %2087 = vmatprep.subr.bf16.mxu0 %v2026
  %2088 = vmatpush1.bf16.msra.mxu0 %v2025
  %2089 = vmatprep.subr.bf16.mxu0 %v2030
  %2090 = vmatpush1.bf16.msra.mxu0 %v2029
  %2091 = vmatprep.subr.bf16.mxu0 %v2034
  %2092 = vmatpush1.bf16.msra.mxu0 %v2033
  %2093 = vmatprep.subr.bf16.mxu0 %v2038
  %2094 = vmatpush1.bf16.msra.mxu0 %v2037
  %2095 = vmatprep.subr.bf16.mxu0 %v2042
  %2096 = vmatpush1.bf16.msra.mxu0 %v2041
  %2097 = vmatprep.subr.bf16.mxu0 %v2046
  %2098 = vmatpush1.bf16.msra.mxu0 %v2045
  %2099 = vmatprep.subr.bf16.mxu0 %v2050
  %2100 = vmatpush1.bf16.msra.mxu0 %v2049
  %2101 = vmatprep.subr.bf16.mxu0 0
  %2102 = vmatpush1.bf16.msra.mxu0 0
  %2103 = vmatprep.subr.bf16.mxu0 0
  %2104 = vmatpush1.bf16.msra.mxu0 0
  %2105 = vmatprep.subr.bf16.mxu0 0
  %2106 = vmatpush1.bf16.msra.mxu0 0
  %2107 = vmatprep.subr.bf16.mxu0 0
  %2108 = vmatpush1.bf16.msra.mxu0 0
  %2109 = vmatprep.subr.bf16.mxu0 0
  %2110 = vmatpush1.bf16.msra.mxu0 0
  %2111 = vmatprep.subr.bf16.mxu0 0
  %2112 = vmatpush1.bf16.msra.mxu0 0
  %2113 = vmatprep.subr.bf16.mxu0 0
  %2114 = vmatpush1.bf16.msra.mxu0 0
  %2115 = vmatprep.subr.bf16.mxu0 0
  %2116 = vmatpush1.bf16.msra.mxu0 0
  %2117 = vmatprep.mubr.bf16.mxu0 0
  %2118 = vmatmul.mubr.bf16.gmra.mrb[0].mxu0 %v1887
  %v2119 = vpop.f32.mrb[0].mxu0
  %v2120 = vadd.f32 %v1921, %v2119
  %v2121 = vpop.f32.mrb[0].mxu0
  %v2122 = vadd.f32 %v1922, %v2121
  %v2123 = vpop.f32.mrb[0].mxu0
  %v2124 = vpop.f32.mrb[0].mxu0
  %2125 = vdwg.mxu0
  %2126 = vmatprep.subr.bf16.mxu0 %v2024
  %2127 = vmatpush1.bf16.msra.mxu0 %v2023
  %2128 = vmatprep.subr.bf16.mxu0 %v2028
  %2129 = vmatpush1.bf16.msra.mxu0 %v2027
  %2130 = vmatprep.subr.bf16.mxu0 %v2032
  %2131 = vmatpush1.bf16.msra.mxu0 %v2031
  %2132 = vmatprep.subr.bf16.mxu0 %v2036
  %2133 = vmatpush1.bf16.msra.mxu0 %v2035
  %2134 = vmatprep.subr.bf16.mxu0 %v2040
  %2135 = vmatpush1.bf16.msra.mxu0 %v2039
  %2136 = vmatprep.subr.bf16.mxu0 %v2044
  %2137 = vmatpush1.bf16.msra.mxu0 %v2043
  %2138 = vmatprep.subr.bf16.mxu0 %v2048
  %2139 = vmatpush1.bf16.msra.mxu0 %v2047
  %2140 = vmatprep.subr.bf16.mxu0 %v2052
  %2141 = vmatpush1.bf16.msra.mxu0 %v2051
  %2142 = vmatprep.subr.bf16.mxu0 0
  %2143 = vmatpush1.bf16.msra.mxu0 0
  %2144 = vmatprep.subr.bf16.mxu0 0
  %2145 = vmatpush1.bf16.msra.mxu0 0
  %2146 = vmatprep.subr.bf16.mxu0 0
  %2147 = vmatpush1.bf16.msra.mxu0 0
  %2148 = vmatprep.subr.bf16.mxu0 0
  %2149 = vmatpush1.bf16.msra.mxu0 0
  %2150 = vmatprep.subr.bf16.mxu0 0
  %2151 = vmatpush1.bf16.msra.mxu0 0
  %2152 = vmatprep.subr.bf16.mxu0 0
  %2153 = vmatpush1.bf16.msra.mxu0 0
  %2154 = vmatprep.subr.bf16.mxu0 0
  %2155 = vmatpush1.bf16.msra.mxu0 0
  %2156 = vmatprep.subr.bf16.mxu0 0
  %2157 = vmatpush1.bf16.msra.mxu0 0
  %2158 = vmatprep.mubr.bf16.mxu0 0
  %2159 = vmatmul.mubr.bf16.gmra.mrb[0].mxu0 %v1887
  %v2160 = vpop.f32.mrb[0].mxu0
  %v2161 = vadd.f32 %v1923, %v2160
  %v2162 = vpop.f32.mrb[0].mxu0
  %v2163 = vadd.f32 %v1924, %v2162
  %v2164 = vpop.f32.mrb[0].mxu0
  %v2165 = vpop.f32.mrb[0].mxu0
  %2166 = vdwg.mxu0
  %v2167 = vxor.u32 %v2120, 2147483648
  %v2168 = vmul.f32 %v2167, 1.442695
  %v2169 = vpow.pop %v2168
  %v2170 = vadd.f32 %v2169, 1.0
  %v2171 = vrcp.pop %v2170
  %v2172 = vmul.f32 1.0, %v2171
  %v2173 = vxor.u32 %v2122, 2147483648
  %v2174 = vmul.f32 %v2173, 1.442695
  %v2175 = vpow.pop %v2174
  %v2176 = vadd.f32 %v2175, 1.0
  %v2177 = vrcp.pop %v2176
  %v2178 = vmul.f32 1.0, %v2177
  %v2179 = vtanh.pop %v2161
  %v2180 = vxor.u32 %v2163, 2147483648
  %v2181 = vmul.f32 %v2180, 1.442695
  %v2182 = vpow.pop %v2181
  %v2183 = vadd.f32 %v2182, 1.0
  %v2184 = vrcp.pop %v2183
  %v2185 = vmul.f32 1.0, %v2184
  %v2186 = vld [vmem:[#allocation3] sm:$0xff]
  %v2187 = vmul.f32 %v2178, %v2186
  %v2188 = vmul.f32 %v2172, %v2179
  %v2189 = vadd.f32 %v2187, %v2188
  %v2190 = vtanh.pop %v2189
  %v2191 = vmul.f32 %v2185, %v2190
  %2192 = vst [vmem:[#allocation3] sm:$0xff] %v2189
  %2193 = vst [vmem:[#allocation2] sm:$0xff] %v2191
  %s2194 = scalar_lea.vmem %s4, 48
  %2195 = vst [vmem:[%s2194] sm:$0xff] %v2191
  %v2196 = vld [vmem:[#allocation2] sm:$0xff]
  %v2197 = vpack.c.bf16 %v2196, %v2196
  %v2198 = vld [vmem:[%s1] sm:$0xff]
  %v2199 = vld [vmem:[%s1 + $0x8] sm:$0xff]
  %v2200 = vld [vmem:[%s1 + $0x10] sm:$0xff]
  %v2201 = vld [vmem:[%s1 + $0x18] sm:$0xff]
  %v2202 = vld [vmem:[%s1 + $0x20] sm:$0xff]
  %v2203 = vld [vmem:[%s1 + $0x28] sm:$0xff]
  %v2204 = vld [vmem:[%s1 + $0x30] sm:$0xff]
  %v2205 = vld [vmem:[%s1 + $0x38] sm:$0xff]
  %v2206 = vld [vmem:[%s1 + $0x40] sm:$0xff]
  %v2207 = vld [vmem:[%s1 + $0x48] sm:$0xff]
  %v2208 = vld [vmem:[%s1 + $0x50] sm:$0xff]
  %v2209 = vld [vmem:[%s1 + $0x58] sm:$0xff]
  %v2210 = vld [vmem:[%s1 + $0x60] sm:$0xff]
  %v2211 = vld [vmem:[%s1 + $0x68] sm:$0xff]
  %v2212 = vld [vmem:[%s1 + $0x70] sm:$0xff]
  %v2213 = vld [vmem:[%s1 + $0x78] sm:$0xff]
  %v2214 = vld [vmem:[%s1 + $0x80] sm:$0xff]
  %v2215 = vld [vmem:[%s1 + $0x88] sm:$0xff]
  %v2216 = vld [vmem:[%s1 + $0x90] sm:$0xff]
  %v2217 = vld [vmem:[%s1 + $0x98] sm:$0xff]
  %v2218 = vld [vmem:[%s1 + $0xa0] sm:$0xff]
  %v2219 = vld [vmem:[%s1 + $0xa8] sm:$0xff]
  %v2220 = vld [vmem:[%s1 + $0xb0] sm:$0xff]
  %v2221 = vld [vmem:[%s1 + $0xb8] sm:$0xff]
  %v2222 = vld [vmem:[%s1 + $0xc0] sm:$0xff]
  %v2223 = vld [vmem:[%s1 + $0xc8] sm:$0xff]
  %v2224 = vld [vmem:[%s1 + $0xd0] sm:$0xff]
  %v2225 = vld [vmem:[%s1 + $0xd8] sm:$0xff]
  %v2226 = vld [vmem:[%s1 + $0xe0] sm:$0xff]
  %v2227 = vld [vmem:[%s1 + $0xe8] sm:$0xff]
  %v2228 = vld [vmem:[%s1 + $0xf0] sm:$0xff]
  %v2229 = vld [vmem:[%s1 + $0xf8] sm:$0xff]
  %s2230 = scalar_lea.vmem %s0, 224
  %v2231 = vld [vmem:[%s2230] sm:$0xff]
  %v2232 = vld [vmem:[%s2230 + $0x8] sm:$0xff]
  %v2233 = vld [vmem:[%s2230 + $0x10] sm:$0xff]
  %v2234 = vld [vmem:[%s2230 + $0x18] sm:$0xff]
  %v2267 = vunpack.c.l.b16 %v2198
  %v2268 = vunpack.c.h.b16 %v2198
  %v2269 = vunpack.c.l.b16 %v2199
  %v2270 = vunpack.c.h.b16 %v2199
  %v2271 = vunpack.c.l.b16 %v2200
  %v2272 = vunpack.c.h.b16 %v2200
  %v2273 = vunpack.c.l.b16 %v2201
  %v2274 = vunpack.c.h.b16 %v2201
  %v2275 = vunpack.c.l.b16 %v2202
  %v2276 = vunpack.c.h.b16 %v2202
  %v2277 = vunpack.c.l.b16 %v2203
  %v2278 = vunpack.c.h.b16 %v2203
  %v2279 = vunpack.c.l.b16 %v2204
  %v2280 = vunpack.c.h.b16 %v2204
  %v2281 = vunpack.c.l.b16 %v2205
  %v2282 = vunpack.c.h.b16 %v2205
  %v2283 = vunpack.c.l.b16 %v2206
  %v2284 = vunpack.c.h.b16 %v2206
  %v2285 = vunpack.c.l.b16 %v2207
  %v2286 = vunpack.c.h.b16 %v2207
  %v2287 = vunpack.c.l.b16 %v2208
  %v2288 = vunpack.c.h.b16 %v2208
  %v2289 = vunpack.c.l.b16 %v2209
  %v2290 = vunpack.c.h.b16 %v2209
  %v2291 = vunpack.c.l.b16 %v2210
  %v2292 = vunpack.c.h.b16 %v2210
  %v2293 = vunpack.c.l.b16 %v2211
  %v2294 = vunpack.c.h.b16 %v2211
  %v2295 = vunpack.c.l.b16 %v2212
  %v2296 = vunpack.c.h.b16 %v2212
  %v2297 = vunpack.c.l.b16 %v2213
  %v2298 = vunpack.c.h.b16 %v2213
  %v2299 = vunpack.c.l.b16 %v2214
  %v2300 = vunpack.c.h.b16 %v2214
  %v2301 = vunpack.c.l.b16 %v2215
  %v2302 = vunpack.c.h.b16 %v2215
  %v2303 = vunpack.c.l.b16 %v2216
  %v2304 = vunpack.c.h.b16 %v2216
  %v2305 = vunpack.c.l.b16 %v2217
  %v2306 = vunpack.c.h.b16 %v2217
  %v2307 = vunpack.c.l.b16 %v2218
  %v2308 = vunpack.c.h.b16 %v2218
  %v2309 = vunpack.c.l.b16 %v2219
  %v2310 = vunpack.c.h.b16 %v2219
  %v2311 = vunpack.c.l.b16 %v2220
  %v2312 = vunpack.c.h.b16 %v2220
  %v2313 = vunpack.c.l.b16 %v2221
  %v2314 = vunpack.c.h.b16 %v2221
  %v2315 = vunpack.c.l.b16 %v2222
  %v2316 = vunpack.c.h.b16 %v2222
  %v2317 = vunpack.c.l.b16 %v2223
  %v2318 = vunpack.c.h.b16 %v2223
  %v2319 = vunpack.c.l.b16 %v2224
  %v2320 = vunpack.c.h.b16 %v2224
  %v2321 = vunpack.c.l.b16 %v2225
  %v2322 = vunpack.c.h.b16 %v2225
  %v2323 = vunpack.c.l.b16 %v2226
  %v2324 = vunpack.c.h.b16 %v2226
  %v2325 = vunpack.c.l.b16 %v2227
  %v2326 = vunpack.c.h.b16 %v2227
  %v2327 = vunpack.c.l.b16 %v2228
  %v2328 = vunpack.c.h.b16 %v2228
  %v2329 = vunpack.c.l.b16 %v2229
  %v2330 = vunpack.c.h.b16 %v2229
  %v2331 = vpack.c.b16 %v2271, %v2267
  %v2332 = vpack.c.b16 %v2272, %v2268
  %v2333 = vpack.c.b16 %v2273, %v2269
  %v2334 = vpack.c.b16 %v2274, %v2270
  %v2335 = vpack.c.b16 %v2279, %v2275
  %v2336 = vpack.c.b16 %v2280, %v2276
  %v2337 = vpack.c.b16 %v2281, %v2277
  %v2338 = vpack.c.b16 %v2282, %v2278
  %v2339 = vpack.c.b16 %v2287, %v2283
  %v2340 = vpack.c.b16 %v2288, %v2284
  %v2341 = vpack.c.b16 %v2289, %v2285
  %v2342 = vpack.c.b16 %v2290, %v2286
  %v2343 = vpack.c.b16 %v2295, %v2291
  %v2344 = vpack.c.b16 %v2296, %v2292
  %v2345 = vpack.c.b16 %v2297, %v2293
  %v2346 = vpack.c.b16 %v2298, %v2294
  %v2347 = vpack.c.b16 %v2303, %v2299
  %v2348 = vpack.c.b16 %v2304, %v2300
  %v2349 = vpack.c.b16 %v2305, %v2301
  %v2350 = vpack.c.b16 %v2306, %v2302
  %v2351 = vpack.c.b16 %v2311, %v2307
  %v2352 = vpack.c.b16 %v2312, %v2308
  %v2353 = vpack.c.b16 %v2313, %v2309
  %v2354 = vpack.c.b16 %v2314, %v2310
  %v2355 = vpack.c.b16 %v2319, %v2315
  %v2356 = vpack.c.b16 %v2320, %v2316
  %v2357 = vpack.c.b16 %v2321, %v2317
  %v2358 = vpack.c.b16 %v2322, %v2318
  %v2359 = vpack.c.b16 %v2327, %v2323
  %v2360 = vpack.c.b16 %v2328, %v2324
  %v2361 = vpack.c.b16 %v2329, %v2325
  %v2362 = vpack.c.b16 %v2330, %v2326
  %2395 = vmatprep.subr.bf16.mxu0 %v2332
  %2396 = vmatpush1.bf16.msra.mxu0 %v2331
  %2397 = vmatprep.subr.bf16.mxu0 %v2336
  %2398 = vmatpush1.bf16.msra.mxu0 %v2335
  %2399 = vmatprep.subr.bf16.mxu0 %v2340
  %2400 = vmatpush1.bf16.msra.mxu0 %v2339
  %2401 = vmatprep.subr.bf16.mxu0 %v2344
  %2402 = vmatpush1.bf16.msra.mxu0 %v2343
  %2403 = vmatprep.subr.bf16.mxu0 %v2348
  %2404 = vmatpush1.bf16.msra.mxu0 %v2347
  %2405 = vmatprep.subr.bf16.mxu0 %v2352
  %2406 = vmatpush1.bf16.msra.mxu0 %v2351
  %2407 = vmatprep.subr.bf16.mxu0 %v2356
  %2408 = vmatpush1.bf16.msra.mxu0 %v2355
  %2409 = vmatprep.subr.bf16.mxu0 %v2360
  %2410 = vmatpush1.bf16.msra.mxu0 %v2359
  %2411 = vmatprep.subr.bf16.mxu0 0
  %2412 = vmatpush1.bf16.msra.mxu0 0
  %2413 = vmatprep.subr.bf16.mxu0 0
  %2414 = vmatpush1.bf16.msra.mxu0 0
  %2415 = vmatprep.subr.bf16.mxu0 0
  %2416 = vmatpush1.bf16.msra.mxu0 0
  %2417 = vmatprep.subr.bf16.mxu0 0
  %2418 = vmatpush1.bf16.msra.mxu0 0
  %2419 = vmatprep.subr.bf16.mxu0 0
  %2420 = vmatpush1.bf16.msra.mxu0 0
  %2421 = vmatprep.subr.bf16.mxu0 0
  %2422 = vmatpush1.bf16.msra.mxu0 0
  %2423 = vmatprep.subr.bf16.mxu0 0
  %2424 = vmatpush1.bf16.msra.mxu0 0
  %2425 = vmatprep.subr.bf16.mxu0 0
  %2426 = vmatpush1.bf16.msra.mxu0 0
  %2427 = vmatprep.mubr.bf16.mxu0 0
  %2428 = vmatmul.mubr.bf16.gmra.mrb[0].mxu0 %v2197
  %v2429 = vpop.f32.mrb[0].mxu0
  %v2430 = vadd.f32 %v2231, %v2429
  %v2431 = vpop.f32.mrb[0].mxu0
  %v2432 = vadd.f32 %v2232, %v2431
  %v2433 = vpop.f32.mrb[0].mxu0
  %v2434 = vpop.f32.mrb[0].mxu0
  %2435 = vdwg.mxu0
  %2436 = vmatprep.subr.bf16.mxu0 %v2334
  %2437 = vmatpush1.bf16.msra.mxu0 %v2333
  %2438 = vmatprep.subr.bf16.mxu0 %v2338
  %2439 = vmatpush1.bf16.msra.mxu0 %v2337
  %2440 = vmatprep.subr.bf16.mxu0 %v2342
  %2441 = vmatpush1.bf16.msra.mxu0 %v2341
  %2442 = vmatprep.subr.bf16.mxu0 %v2346
  %2443 = vmatpush1.bf16.msra.mxu0 %v2345
  %2444 = vmatprep.subr.bf16.mxu0 %v2350
  %2445 = vmatpush1.bf16.msra.mxu0 %v2349
  %2446 = vmatprep.subr.bf16.mxu0 %v2354
  %2447 = vmatpush1.bf16.msra.mxu0 %v2353
  %2448 = vmatprep.subr.bf16.mxu0 %v2358
  %2449 = vmatpush1.bf16.msra.mxu0 %v2357
  %2450 = vmatprep.subr.bf16.mxu0 %v2362
  %2451 = vmatpush1.bf16.msra.mxu0 %v2361
  %2452 = vmatprep.subr.bf16.mxu0 0
  %2453 = vmatpush1.bf16.msra.mxu0 0
  %2454 = vmatprep.subr.bf16.mxu0 0
  %2455 = vmatpush1.bf16.msra.mxu0 0
  %2456 = vmatprep.subr.bf16.mxu0 0
  %2457 = vmatpush1.bf16.msra.mxu0 0
  %2458 = vmatprep.subr.bf16.mxu0 0
  %2459 = vmatpush1.bf16.msra.mxu0 0
  %2460 = vmatprep.subr.bf16.mxu0 0
  %2461 = vmatpush1.bf16.msra.mxu0 0
  %2462 = vmatprep.subr.bf16.mxu0 0
  %2463 = vmatpush1.bf16.msra.mxu0 0
  %2464 = vmatprep.subr.bf16.mxu0 0
  %2465 = vmatpush1.bf16.msra.mxu0 0
  %2466 = vmatprep.subr.bf16.mxu0 0
  %2467 = vmatpush1.bf16.msra.mxu0 0
  %2468 = vmatprep.mubr.bf16.mxu0 0
  %2469 = vmatmul.mubr.bf16.gmra.mrb[0].mxu0 %v2197
  %v2470 = vpop.f32.mrb[0].mxu0
  %v2471 = vadd.f32 %v2233, %v2470
  %v2472 = vpop.f32.mrb[0].mxu0
  %v2473 = vadd.f32 %v2234, %v2472
  %v2474 = vpop.f32.mrb[0].mxu0
  %v2475 = vpop.f32.mrb[0].mxu0
  %2476 = vdwg.mxu0
  %v2477 = vxor.u32 %v2430, 2147483648
  %v2478 = vmul.f32 %v2477, 1.442695
  %v2479 = vpow.pop %v2478
  %v2480 = vadd.f32 %v2479, 1.0
  %v2481 = vrcp.pop %v2480
  %v2482 = vmul.f32 1.0, %v2481
  %v2483 = vxor.u32 %v2432, 2147483648
  %v2484 = vmul.f32 %v2483, 1.442695
  %v2485 = vpow.pop %v2484
  %v2486 = vadd.f32 %v2485, 1.0
  %v2487 = vrcp.pop %v2486
  %v2488 = vmul.f32 1.0, %v2487
  %v2489 = vtanh.pop %v2471
  %v2490 = vxor.u32 %v2473, 2147483648
  %v2491 = vmul.f32 %v2490, 1.442695
  %v2492 = vpow.pop %v2491
  %v2493 = vadd.f32 %v2492, 1.0
  %v2494 = vrcp.pop %v2493
  %v2495 = vmul.f32 1.0, %v2494
  %v2496 = vld [vmem:[#allocation3] sm:$0xff]
  %v2497 = vmul.f32 %v2488, %v2496
  %v2498 = vmul.f32 %v2482, %v2489
  %v2499 = vadd.f32 %v2497, %v2498
  %v2500 = vtanh.pop %v2499
  %v2501 = vmul.f32 %v2495, %v2500
  %2502 = vst [vmem:[#allocation3] sm:$0xff] %v2499
  %2503 = vst [vmem:[#allocation2] sm:$0xff] %v2501
  %s2504 = scalar_lea.vmem %s4, 56
  %2505 = vst [vmem:[%s2504] sm:$0xff] %v2501
  %v2506 = vld [vmem:[#allocation2] sm:$0xff]
  %v2507 = vpack.c.bf16 %v2506, %v2506
  %v2508 = vld [vmem:[%s1] sm:$0xff]
  %v2509 = vld [vmem:[%s1 + $0x8] sm:$0xff]
  %v2510 = vld [vmem:[%s1 + $0x10] sm:$0xff]
  %v2511 = vld [vmem:[%s1 + $0x18] sm:$0xff]
  %v2512 = vld [vmem:[%s1 + $0x20] sm:$0xff]
  %v2513 = vld [vmem:[%s1 + $0x28] sm:$0xff]
  %v2514 = vld [vmem:[%s1 + $0x30] sm:$0xff]
  %v2515 = vld [vmem:[%s1 + $0x38] sm:$0xff]
  %v2516 = vld [vmem:[%s1 + $0x40] sm:$0xff]
  %v2517 = vld [vmem:[%s1 + $0x48] sm:$0xff]
  %v2518 = vld [vmem:[%s1 + $0x50] sm:$0xff]
  %v2519 = vld [vmem:[%s1 + $0x58] sm:$0xff]
  %v2520 = vld [vmem:[%s1 + $0x60] sm:$0xff]
  %v2521 = vld [vmem:[%s1 + $0x68] sm:$0xff]
  %v2522 = vld [vmem:[%s1 + $0x70] sm:$0xff]
  %v2523 = vld [vmem:[%s1 + $0x78] sm:$0xff]
  %v2524 = vld [vmem:[%s1 + $0x80] sm:$0xff]
  %v2525 = vld [vmem:[%s1 + $0x88] sm:$0xff]
  %v2526 = vld [vmem:[%s1 + $0x90] sm:$0xff]
  %v2527 = vld [vmem:[%s1 + $0x98] sm:$0xff]
  %v2528 = vld [vmem:[%s1 + $0xa0] sm:$0xff]
  %v2529 = vld [vmem:[%s1 + $0xa8] sm:$0xff]
  %v2530 = vld [vmem:[%s1 + $0xb0] sm:$0xff]
  %v2531 = vld [vmem:[%s1 + $0xb8] sm:$0xff]
  %v2532 = vld [vmem:[%s1 + $0xc0] sm:$0xff]
  %v2533 = vld [vmem:[%s1 + $0xc8] sm:$0xff]
  %v2534 = vld [vmem:[%s1 + $0xd0] sm:$0xff]
  %v2535 = vld [vmem:[%s1 + $0xd8] sm:$0xff]
  %v2536 = vld [vmem:[%s1 + $0xe0] sm:$0xff]
  %v2537 = vld [vmem:[%s1 + $0xe8] sm:$0xff]
  %v2538 = vld [vmem:[%s1 + $0xf0] sm:$0xff]
  %v2539 = vld [vmem:[%s1 + $0xf8] sm:$0xff]
  %s2540 = scalar_lea.vmem %s0, 256
  %v2541 = vld [vmem:[%s2540] sm:$0xff]
  %v2542 = vld [vmem:[%s2540 + $0x8] sm:$0xff]
  %v2543 = vld [vmem:[%s2540 + $0x10] sm:$0xff]
  %v2544 = vld [vmem:[%s2540 + $0x18] sm:$0xff]
  %v2577 = vunpack.c.l.b16 %v2508
  %v2578 = vunpack.c.h.b16 %v2508
  %v2579 = vunpack.c.l.b16 %v2509
  %v2580 = vunpack.c.h.b16 %v2509
  %v2581 = vunpack.c.l.b16 %v2510
  %v2582 = vunpack.c.h.b16 %v2510
  %v2583 = vunpack.c.l.b16 %v2511
  %v2584 = vunpack.c.h.b16 %v2511
  %v2585 = vunpack.c.l.b16 %v2512
  %v2586 = vunpack.c.h.b16 %v2512
  %v2587 = vunpack.c.l.b16 %v2513
  %v2588 = vunpack.c.h.b16 %v2513
  %v2589 = vunpack.c.l.b16 %v2514
  %v2590 = vunpack.c.h.b16 %v2514
  %v2591 = vunpack.c.l.b16 %v2515
  %v2592 = vunpack.c.h.b16 %v2515
  %v2593 = vunpack.c.l.b16 %v2516
  %v2594 = vunpack.c.h.b16 %v2516
  %v2595 = vunpack.c.l.b16 %v2517
  %v2596 = vunpack.c.h.b16 %v2517
  %v2597 = vunpack.c.l.b16 %v2518
  %v2598 = vunpack.c.h.b16 %v2518
  %v2599 = vunpack.c.l.b16 %v2519
  %v2600 = vunpack.c.h.b16 %v2519
  %v2601 = vunpack.c.l.b16 %v2520
  %v2602 = vunpack.c.h.b16 %v2520
  %v2603 = vunpack.c.l.b16 %v2521
  %v2604 = vunpack.c.h.b16 %v2521
  %v2605 = vunpack.c.l.b16 %v2522
  %v2606 = vunpack.c.h.b16 %v2522
  %v2607 = vunpack.c.l.b16 %v2523
  %v2608 = vunpack.c.h.b16 %v2523
  %v2609 = vunpack.c.l.b16 %v2524
  %v2610 = vunpack.c.h.b16 %v2524
  %v2611 = vunpack.c.l.b16 %v2525
  %v2612 = vunpack.c.h.b16 %v2525
  %v2613 = vunpack.c.l.b16 %v2526
  %v2614 = vunpack.c.h.b16 %v2526
  %v2615 = vunpack.c.l.b16 %v2527
  %v2616 = vunpack.c.h.b16 %v2527
  %v2617 = vunpack.c.l.b16 %v2528
  %v2618 = vunpack.c.h.b16 %v2528
  %v2619 = vunpack.c.l.b16 %v2529
  %v2620 = vunpack.c.h.b16 %v2529
  %v2621 = vunpack.c.l.b16 %v2530
  %v2622 = vunpack.c.h.b16 %v2530
  %v2623 = vunpack.c.l.b16 %v2531
  %v2624 = vunpack.c.h.b16 %v2531
  %v2625 = vunpack.c.l.b16 %v2532
  %v2626 = vunpack.c.h.b16 %v2532
  %v2627 = vunpack.c.l.b16 %v2533
  %v2628 = vunpack.c.h.b16 %v2533
  %v2629 = vunpack.c.l.b16 %v2534
  %v2630 = vunpack.c.h.b16 %v2534
  %v2631 = vunpack.c.l.b16 %v2535
  %v2632 = vunpack.c.h.b16 %v2535
  %v2633 = vunpack.c.l.b16 %v2536
  %v2634 = vunpack.c.h.b16 %v2536
  %v2635 = vunpack.c.l.b16 %v2537
  %v2636 = vunpack.c.h.b16 %v2537
  %v2637 = vunpack.c.l.b16 %v2538
  %v2638 = vunpack.c.h.b16 %v2538
  %v2639 = vunpack.c.l.b16 %v2539
  %v2640 = vunpack.c.h.b16 %v2539
  %v2641 = vpack.c.b16 %v2581, %v2577
  %v2642 = vpack.c.b16 %v2582, %v2578
  %v2643 = vpack.c.b16 %v2583, %v2579
  %v2644 = vpack.c.b16 %v2584, %v2580
  %v2645 = vpack.c.b16 %v2589, %v2585
  %v2646 = vpack.c.b16 %v2590, %v2586
  %v2647 = vpack.c.b16 %v2591, %v2587
  %v2648 = vpack.c.b16 %v2592, %v2588
  %v2649 = vpack.c.b16 %v2597, %v2593
  %v2650 = vpack.c.b16 %v2598, %v2594
  %v2651 = vpack.c.b16 %v2599, %v2595
  %v2652 = vpack.c.b16 %v2600, %v2596
  %v2653 = vpack.c.b16 %v2605, %v2601
  %v2654 = vpack.c.b16 %v2606, %v2602
  %v2655 = vpack.c.b16 %v2607, %v2603
  %v2656 = vpack.c.b16 %v2608, %v2604
  %v2657 = vpack.c.b16 %v2613, %v2609
  %v2658 = vpack.c.b16 %v2614, %v2610
  %v2659 = vpack.c.b16 %v2615, %v2611
  %v2660 = vpack.c.b16 %v2616, %v2612
  %v2661 = vpack.c.b16 %v2621, %v2617
  %v2662 = vpack.c.b16 %v2622, %v2618
  %v2663 = vpack.c.b16 %v2623, %v2619
  %v2664 = vpack.c.b16 %v2624, %v2620
  %v2665 = vpack.c.b16 %v2629, %v2625
  %v2666 = vpack.c.b16 %v2630, %v2626
  %v2667 = vpack.c.b16 %v2631, %v2627
  %v2668 = vpack.c.b16 %v2632, %v2628
  %v2669 = vpack.c.b16 %v2637, %v2633
  %v2670 = vpack.c.b16 %v2638, %v2634
  %v2671 = vpack.c.b16 %v2639, %v2635
  %v2672 = vpack.c.b16 %v2640, %v2636
  %2705 = vmatprep.subr.bf16.mxu0 %v2642
  %2706 = vmatpush1.bf16.msra.mxu0 %v2641
  %2707 = vmatprep.subr.bf16.mxu0 %v2646
  %2708 = vmatpush1.bf16.msra.mxu0 %v2645
  %2709 = vmatprep.subr.bf16.mxu0 %v2650
  %2710 = vmatpush1.bf16.msra.mxu0 %v2649
  %2711 = vmatprep.subr.bf16.mxu0 %v2654
  %2712 = vmatpush1.bf16.msra.mxu0 %v2653
  %2713 = vmatprep.subr.bf16.mxu0 %v2658
  %2714 = vmatpush1.bf16.msra.mxu0 %v2657
  %2715 = vmatprep.subr.bf16.mxu0 %v2662
  %2716 = vmatpush1.bf16.msra.mxu0 %v2661
  %2717 = vmatprep.subr.bf16.mxu0 %v2666
  %2718 = vmatpush1.bf16.msra.mxu0 %v2665
  %2719 = vmatprep.subr.bf16.mxu0 %v2670
  %2720 = vmatpush1.bf16.msra.mxu0 %v2669
  %2721 = vmatprep.subr.bf16.mxu0 0
  %2722 = vmatpush1.bf16.msra.mxu0 0
  %2723 = vmatprep.subr.bf16.mxu0 0
  %2724 = vmatpush1.bf16.msra.mxu0 0
  %2725 = vmatprep.subr.bf16.mxu0 0
  %2726 = vmatpush1.bf16.msra.mxu0 0
  %2727 = vmatprep.subr.bf16.mxu0 0
  %2728 = vmatpush1.bf16.msra.mxu0 0
  %2729 = vmatprep.subr.bf16.mxu0 0
  %2730 = vmatpush1.bf16.msra.mxu0 0
  %2731 = vmatprep.subr.bf16.mxu0 0
  %2732 = vmatpush1.bf16.msra.mxu0 0
  %2733 = vmatprep.subr.bf16.mxu0 0
  %2734 = vmatpush1.bf16.msra.mxu0 0
  %2735 = vmatprep.subr.bf16.mxu0 0
  %2736 = vmatpush1.bf16.msra.mxu0 0
  %2737 = vmatprep.mubr.bf16.mxu0 0
  %2738 = vmatmul.mubr.bf16.gmra.mrb[0].mxu0 %v2507
  %v2739 = vpop.f32.mrb[0].mxu0
  %v2740 = vadd.f32 %v2541, %v2739
  %v2741 = vpop.f32.mrb[0].mxu0
  %v2742 = vadd.f32 %v2542, %v2741
  %v2743 = vpop.f32.mrb[0].mxu0
  %v2744 = vpop.f32.mrb[0].mxu0
  %2745 = vdwg.mxu0
  %2746 = vmatprep.subr.bf16.mxu0 %v2644
  %2747 = vmatpush1.bf16.msra.mxu0 %v2643
  %2748 = vmatprep.subr.bf16.mxu0 %v2648
  %2749 = vmatpush1.bf16.msra.mxu0 %v2647
  %2750 = vmatprep.subr.bf16.mxu0 %v2652
  %2751 = vmatpush1.bf16.msra.mxu0 %v2651
  %2752 = vmatprep.subr.bf16.mxu0 %v2656
  %2753 = vmatpush1.bf16.msra.mxu0 %v2655
  %2754 = vmatprep.subr.bf16.mxu0 %v2660
  %2755 = vmatpush1.bf16.msra.mxu0 %v2659
  %2756 = vmatprep.subr.bf16.mxu0 %v2664
  %2757 = vmatpush1.bf16.msra.mxu0 %v2663
  %2758 = vmatprep.subr.bf16.mxu0 %v2668
  %2759 = vmatpush1.bf16.msra.mxu0 %v2667
  %2760 = vmatprep.subr.bf16.mxu0 %v2672
  %2761 = vmatpush1.bf16.msra.mxu0 %v2671
  %2762 = vmatprep.subr.bf16.mxu0 0
  %2763 = vmatpush1.bf16.msra.mxu0 0
  %2764 = vmatprep.subr.bf16.mxu0 0
  %2765 = vmatpush1.bf16.msra.mxu0 0
  %2766 = vmatprep.subr.bf16.mxu0 0
  %2767 = vmatpush1.bf16.msra.mxu0 0
  %2768 = vmatprep.subr.bf16.mxu0 0
  %2769 = vmatpush1.bf16.msra.mxu0 0
  %2770 = vmatprep.subr.bf16.mxu0 0
  %2771 = vmatpush1.bf16.msra.mxu0 0
  %2772 = vmatprep.subr.bf16.mxu0 0
  %2773 = vmatpush1.bf16.msra.mxu0 0
  %2774 = vmatprep.subr.bf16.mxu0 0
  %2775 = vmatpush1.bf16.msra.mxu0 0
  %2776 = vmatprep.subr.bf16.mxu0 0
  %2777 = vmatpush1.bf16.msra.mxu0 0
  %2778 = vmatprep.mubr.bf16.mxu0 0
  %2779 = vmatmul.mubr.bf16.gmra.mrb[0].mxu0 %v2507
  %v2780 = vpop.f32.mrb[0].mxu0
  %v2781 = vadd.f32 %v2543, %v2780
  %v2782 = vpop.f32.mrb[0].mxu0
  %v2783 = vadd.f32 %v2544, %v2782
  %v2784 = vpop.f32.mrb[0].mxu0
  %v2785 = vpop.f32.mrb[0].mxu0
  %2786 = vdwg.mxu0
  %v2787 = vxor.u32 %v2740, 2147483648
  %v2788 = vmul.f32 %v2787, 1.442695
  %v2789 = vpow.pop %v2788
  %v2790 = vadd.f32 %v2789, 1.0
  %v2791 = vrcp.pop %v2790
  %v2792 = vmul.f32 1.0, %v2791
  %v2793 = vxor.u32 %v2742, 2147483648
  %v2794 = vmul.f32 %v2793, 1.442695
  %v2795 = vpow.pop %v2794
  %v2796 = vadd.f32 %v2795, 1.0
  %v2797 = vrcp.pop %v2796
  %v2798 = vmul.f32 1.0, %v2797
  %v2799 = vtanh.pop %v2781
  %v2800 = vxor.u32 %v2783, 2147483648
  %v2801 = vmul.f32 %v2800, 1.442695
  %v2802 = vpow.pop %v2801
  %v2803 = vadd.f32 %v2802, 1.0
  %v2804 = vrcp.pop %v2803
  %v2805 = vmul.f32 1.0, %v2804
  %v2806 = vld [vmem:[#allocation3] sm:$0xff]
  %v2807 = vmul.f32 %v2798, %v2806
  %v2808 = vmul.f32 %v2792, %v2799
  %v2809 = vadd.f32 %v2807, %v2808
  %v2810 = vtanh.pop %v2809
  %v2811 = vmul.f32 %v2805, %v2810
  %2812 = vst [vmem:[#allocation3] sm:$0xff] %v2809
  %2813 = vst [vmem:[#allocation2] sm:$0xff] %v2811
  %s2814 = scalar_lea.vmem %s4, 64
  %2815 = vst [vmem:[%s2814] sm:$0xff] %v2811
  %v2816 = vld [vmem:[#allocation2] sm:$0xff]
  %v2817 = vpack.c.bf16 %v2816, %v2816
  %v2818 = vld [vmem:[%s1] sm:$0xff]
  %v2819 = vld [vmem:[%s1 + $0x8] sm:$0xff]
  %v2820 = vld [vmem:[%s1 + $0x10] sm:$0xff]
  %v2821 = vld [vmem:[%s1 + $0x18] sm:$0xff]
  %v2822 = vld [vmem:[%s1 + $0x20] sm:$0xff]
  %v2823 = vld [vmem:[%s1 + $0x28] sm:$0xff]
  %v2824 = vld [vmem:[%s1 + $0x30] sm:$0xff]
  %v2825 = vld [vmem:[%s1 + $0x38] sm:$0xff]
  %v2826 = vld [vmem:[%s1 + $0x40] sm:$0xff]
  %v2827 = vld [vmem:[%s1 + $0x48] sm:$0xff]
  %v2828 = vld [vmem:[%s1 + $0x50] sm:$0xff]
  %v2829 = vld [vmem:[%s1 + $0x58] sm:$0xff]
  %v2830 = vld [vmem:[%s1 + $0x60] sm:$0xff]
  %v2831 = vld [vmem:[%s1 + $0x68] sm:$0xff]
  %v2832 = vld [vmem:[%s1 + $0x70] sm:$0xff]
  %v2833 = vld [vmem:[%s1 + $0x78] sm:$0xff]
  %v2834 = vld [vmem:[%s1 + $0x80] sm:$0xff]
  %v2835 = vld [vmem:[%s1 + $0x88] sm:$0xff]
  %v2836 = vld [vmem:[%s1 + $0x90] sm:$0xff]
  %v2837 = vld [vmem:[%s1 + $0x98] sm:$0xff]
  %v2838 = vld [vmem:[%s1 + $0xa0] sm:$0xff]
  %v2839 = vld [vmem:[%s1 + $0xa8] sm:$0xff]
  %v2840 = vld [vmem:[%s1 + $0xb0] sm:$0xff]
  %v2841 = vld [vmem:[%s1 + $0xb8] sm:$0xff]
  %v2842 = vld [vmem:[%s1 + $0xc0] sm:$0xff]
  %v2843 = vld [vmem:[%s1 + $0xc8] sm:$0xff]
  %v2844 = vld [vmem:[%s1 + $0xd0] sm:$0xff]
  %v2845 = vld [vmem:[%s1 + $0xd8] sm:$0xff]
  %v2846 = vld [vmem:[%s1 + $0xe0] sm:$0xff]
  %v2847 = vld [vmem:[%s1 + $0xe8] sm:$0xff]
  %v2848 = vld [vmem:[%s1 + $0xf0] sm:$0xff]
  %v2849 = vld [vmem:[%s1 + $0xf8] sm:$0xff]
  %s2850 = scalar_lea.vmem %s0, 288
  %v2851 = vld [vmem:[%s2850] sm:$0xff]
  %v2852 = vld [vmem:[%s2850 + $0x8] sm:$0xff]
  %v2853 = vld [vmem:[%s2850 + $0x10] sm:$0xff]
  %v2854 = vld [vmem:[%s2850 + $0x18] sm:$0xff]
  %v2887 = vunpack.c.l.b16 %v2818
  %v2888 = vunpack.c.h.b16 %v2818
  %v2889 = vunpack.c.l.b16 %v2819
  %v2890 = vunpack.c.h.b16 %v2819
  %v2891 = vunpack.c.l.b16 %v2820
  %v2892 = vunpack.c.h.b16 %v2820
  %v2893 = vunpack.c.l.b16 %v2821
  %v2894 = vunpack.c.h.b16 %v2821
  %v2895 = vunpack.c.l.b16 %v2822
  %v2896 = vunpack.c.h.b16 %v2822
  %v2897 = vunpack.c.l.b16 %v2823
  %v2898 = vunpack.c.h.b16 %v2823
  %v2899 = vunpack.c.l.b16 %v2824
  %v2900 = vunpack.c.h.b16 %v2824
  %v2901 = vunpack.c.l.b16 %v2825
  %v2902 = vunpack.c.h.b16 %v2825
  %v2903 = vunpack.c.l.b16 %v2826
  %v2904 = vunpack.c.h.b16 %v2826
  %v2905 = vunpack.c.l.b16 %v2827
  %v2906 = vunpack.c.h.b16 %v2827
  %v2907 = vunpack.c.l.b16 %v2828
  %v2908 = vunpack.c.h.b16 %v2828
  %v2909 = vunpack.c.l.b16 %v2829
  %v2910 = vunpack.c.h.b16 %v2829
  %v2911 = vunpack.c.l.b16 %v2830
  %v2912 = vunpack.c.h.b16 %v2830
  %v2913 = vunpack.c.l.b16 %v2831
  %v2914 = vunpack.c.h.b16 %v2831
  %v2915 = vunpack.c.l.b16 %v2832
  %v2916 = vunpack.c.h.b16 %v2832
  %v2917 = vunpack.c.l.b16 %v2833
  %v2918 = vunpack.c.h.b16 %v2833
  %v2919 = vunpack.c.l.b16 %v2834
  %v2920 = vunpack.c.h.b16 %v2834
  %v2921 = vunpack.c.l.b16 %v2835
  %v2922 = vunpack.c.h.b16 %v2835
  %v2923 = vunpack.c.l.b16 %v2836
  %v2924 = vunpack.c.h.b16 %v2836
  %v2925 = vunpack.c.l.b16 %v2837
  %v2926 = vunpack.c.h.b16 %v2837
  %v2927 = vunpack.c.l.b16 %v2838
  %v2928 = vunpack.c.h.b16 %v2838
  %v2929 = vunpack.c.l.b16 %v2839
  %v2930 = vunpack.c.h.b16 %v2839
  %v2931 = vunpack.c.l.b16 %v2840
  %v2932 = vunpack.c.h.b16 %v2840
  %v2933 = vunpack.c.l.b16 %v2841
  %v2934 = vunpack.c.h.b16 %v2841
  %v2935 = vunpack.c.l.b16 %v2842
  %v2936 = vunpack.c.h.b16 %v2842
  %v2937 = vunpack.c.l.b16 %v2843
  %v2938 = vunpack.c.h.b16 %v2843
  %v2939 = vunpack.c.l.b16 %v2844
  %v2940 = vunpack.c.h.b16 %v2844
  %v2941 = vunpack.c.l.b16 %v2845
  %v2942 = vunpack.c.h.b16 %v2845
  %v2943 = vunpack.c.l.b16 %v2846
  %v2944 = vunpack.c.h.b16 %v2846
  %v2945 = vunpack.c.l.b16 %v2847
  %v2946 = vunpack.c.h.b16 %v2847
  %v2947 = vunpack.c.l.b16 %v2848
  %v2948 = vunpack.c.h.b16 %v2848
  %v2949 = vunpack.c.l.b16 %v2849
  %v2950 = vunpack.c.h.b16 %v2849
  %v2951 = vpack.c.b16 %v2891, %v2887
  %v2952 = vpack.c.b16 %v2892, %v2888
  %v2953 = vpack.c.b16 %v2893, %v2889
  %v2954 = vpack.c.b16 %v2894, %v2890
  %v2955 = vpack.c.b16 %v2899, %v2895
  %v2956 = vpack.c.b16 %v2900, %v2896
  %v2957 = vpack.c.b16 %v2901, %v2897
  %v2958 = vpack.c.b16 %v2902, %v2898
  %v2959 = vpack.c.b16 %v2907, %v2903
  %v2960 = vpack.c.b16 %v2908, %v2904
  %v2961 = vpack.c.b16 %v2909, %v2905
  %v2962 = vpack.c.b16 %v2910, %v2906
  %v2963 = vpack.c.b16 %v2915, %v2911
  %v2964 = vpack.c.b16 %v2916, %v2912
  %v2965 = vpack.c.b16 %v2917, %v2913
  %v2966 = vpack.c.b16 %v2918, %v2914
  %v2967 = vpack.c.b16 %v2923, %v2919
  %v2968 = vpack.c.b16 %v2924, %v2920
  %v2969 = vpack.c.b16 %v2925, %v2921
  %v2970 = vpack.c.b16 %v2926, %v2922
  %v2971 = vpack.c.b16 %v2931, %v2927
  %v2972 = vpack.c.b16 %v2932, %v2928
  %v2973 = vpack.c.b16 %v2933, %v2929
  %v2974 = vpack.c.b16 %v2934, %v2930
  %v2975 = vpack.c.b16 %v2939, %v2935
  %v2976 = vpack.c.b16 %v2940, %v2936
  %v2977 = vpack.c.b16 %v2941, %v2937
  %v2978 = vpack.c.b16 %v2942, %v2938
  %v2979 = vpack.c.b16 %v2947, %v2943
  %v2980 = vpack.c.b16 %v2948, %v2944
  %v2981 = vpack.c.b16 %v2949, %v2945
  %v2982 = vpack.c.b16 %v2950, %v2946
  %3015 = vmatprep.subr.bf16.mxu0 %v2952
  %3016 = vmatpush1.bf16.msra.mxu0 %v2951
  %3017 = vmatprep.subr.bf16.mxu0 %v2956
  %3018 = vmatpush1.bf16.msra.mxu0 %v2955
  %3019 = vmatprep.subr.bf16.mxu0 %v2960
  %3020 = vmatpush1.bf16.msra.mxu0 %v2959
  %3021 = vmatprep.subr.bf16.mxu0 %v2964
  %3022 = vmatpush1.bf16.msra.mxu0 %v2963
  %3023 = vmatprep.subr.bf16.mxu0 %v2968
  %3024 = vmatpush1.bf16.msra.mxu0 %v2967
  %3025 = vmatprep.subr.bf16.mxu0 %v2972
  %3026 = vmatpush1.bf16.msra.mxu0 %v2971
  %3027 = vmatprep.subr.bf16.mxu0 %v2976
  %3028 = vmatpush1.bf16.msra.mxu0 %v2975
  %3029 = vmatprep.subr.bf16.mxu0 %v2980
  %3030 = vmatpush1.bf16.msra.mxu0 %v2979
  %3031 = vmatprep.subr.bf16.mxu0 0
  %3032 = vmatpush1.bf16.msra.mxu0 0
  %3033 = vmatprep.subr.bf16.mxu0 0
  %3034 = vmatpush1.bf16.msra.mxu0 0
  %3035 = vmatprep.subr.bf16.mxu0 0
  %3036 = vmatpush1.bf16.msra.mxu0 0
  %3037 = vmatprep.subr.bf16.mxu0 0
  %3038 = vmatpush1.bf16.msra.mxu0 0
  %3039 = vmatprep.subr.bf16.mxu0 0
  %3040 = vmatpush1.bf16.msra.mxu0 0
  %3041 = vmatprep.subr.bf16.mxu0 0
  %3042 = vmatpush1.bf16.msra.mxu0 0
  %3043 = vmatprep.subr.bf16.mxu0 0
  %3044 = vmatpush1.bf16.msra.mxu0 0
  %3045 = vmatprep.subr.bf16.mxu0 0
  %3046 = vmatpush1.bf16.msra.mxu0 0
  %3047 = vmatprep.mubr.bf16.mxu0 0
  %3048 = vmatmul.mubr.bf16.gmra.mrb[0].mxu0 %v2817
  %v3049 = vpop.f32.mrb[0].mxu0
  %v3050 = vadd.f32 %v2851, %v3049
  %v3051 = vpop.f32.mrb[0].mxu0
  %v3052 = vadd.f32 %v2852, %v3051
  %v3053 = vpop.f32.mrb[0].mxu0
  %v3054 = vpop.f32.mrb[0].mxu0
  %3055 = vdwg.mxu0
  %3056 = vmatprep.subr.bf16.mxu0 %v2954
  %3057 = vmatpush1.bf16.msra.mxu0 %v2953
  %3058 = vmatprep.subr.bf16.mxu0 %v2958
  %3059 = vmatpush1.bf16.msra.mxu0 %v2957
  %3060 = vmatprep.subr.bf16.mxu0 %v2962
  %3061 = vmatpush1.bf16.msra.mxu0 %v2961
  %3062 = vmatprep.subr.bf16.mxu0 %v2966
  %3063 = vmatpush1.bf16.msra.mxu0 %v2965
  %3064 = vmatprep.subr.bf16.mxu0 %v2970
  %3065 = vmatpush1.bf16.msra.mxu0 %v2969
  %3066 = vmatprep.subr.bf16.mxu0 %v2974
  %3067 = vmatpush1.bf16.msra.mxu0 %v2973
  %3068 = vmatprep.subr.bf16.mxu0 %v2978
  %3069 = vmatpush1.bf16.msra.mxu0 %v2977
  %3070 = vmatprep.subr.bf16.mxu0 %v2982
  %3071 = vmatpush1.bf16.msra.mxu0 %v2981
  %3072 = vmatprep.subr.bf16.mxu0 0
  %3073 = vmatpush1.bf16.msra.mxu0 0
  %3074 = vmatprep.subr.bf16.mxu0 0
  %3075 = vmatpush1.bf16.msra.mxu0 0
  %3076 = vmatprep.subr.bf16.mxu0 0
  %3077 = vmatpush1.bf16.msra.mxu0 0
  %3078 = vmatprep.subr.bf16.mxu0 0
  %3079 = vmatpush1.bf16.msra.mxu0 0
  %3080 = vmatprep.subr.bf16.mxu0 0
  %3081 = vmatpush1.bf16.msra.mxu0 0
  %3082 = vmatprep.subr.bf16.mxu0 0
  %3083 = vmatpush1.bf16.msra.mxu0 0
  %3084 = vmatprep.subr.bf16.mxu0 0
  %3085 = vmatpush1.bf16.msra.mxu0 0
  %3086 = vmatprep.subr.bf16.mxu0 0
  %3087 = vmatpush1.bf16.msra.mxu0 0
  %3088 = vmatprep.mubr.bf16.mxu0 0
  %3089 = vmatmul.mubr.bf16.gmra.mrb[0].mxu0 %v2817
  %v3090 = vpop.f32.mrb[0].mxu0
  %v3091 = vadd.f32 %v2853, %v3090
  %v3092 = vpop.f32.mrb[0].mxu0
  %v3093 = vadd.f32 %v2854, %v3092
  %v3094 = vpop.f32.mrb[0].mxu0
  %v3095 = vpop.f32.mrb[0].mxu0
  %3096 = vdwg.mxu0
  %v3097 = vxor.u32 %v3050, 2147483648
  %v3098 = vmul.f32 %v3097, 1.442695
  %v3099 = vpow.pop %v3098
  %v3100 = vadd.f32 %v3099, 1.0
  %v3101 = vrcp.pop %v3100
  %v3102 = vmul.f32 1.0, %v3101
  %v3103 = vxor.u32 %v3052, 2147483648
  %v3104 = vmul.f32 %v3103, 1.442695
  %v3105 = vpow.pop %v3104
  %v3106 = vadd.f32 %v3105, 1.0
  %v3107 = vrcp.pop %v3106
  %v3108 = vmul.f32 1.0, %v3107
  %v3109 = vtanh.pop %v3091
  %v3110 = vxor.u32 %v3093, 2147483648
  %v3111 = vmul.f32 %v3110, 1.442695
  %v3112 = vpow.pop %v3111
  %v3113 = vadd.f32 %v3112, 1.0
  %v3114 = vrcp.pop %v3113
  %v3115 = vmul.f32 1.0, %v3114
  %v3116 = vld [vmem:[#allocation3] sm:$0xff]
  %v3117 = vmul.f32 %v3108, %v3116
  %v3118 = vmul.f32 %v3102, %v3109
  %v3119 = vadd.f32 %v3117, %v3118
  %v3120 = vtanh.pop %v3119
  %v3121 = vmul.f32 %v3115, %v3120
  %3122 = vst [vmem:[#allocation3] sm:$0xff] %v3119
  %3123 = vst [vmem:[#allocation2] sm:$0xff] %v3121
  %s3124 = scalar_lea.vmem %s4, 72
  %3125 = vst [vmem:[%s3124] sm:$0xff] %v3121
  %v3126 = vld [vmem:[#allocation2] sm:$0xff]
  %v3127 = vpack.c.bf16 %v3126, %v3126
  %v3128 = vld [vmem:[%s1] sm:$0xff]
  %v3129 = vld [vmem:[%s1 + $0x8] sm:$0xff]
  %v3130 = vld [vmem:[%s1 + $0x10] sm:$0xff]
  %v3131 = vld [vmem:[%s1 + $0x18] sm:$0xff]
  %v3132 = vld [vmem:[%s1 + $0x20] sm:$0xff]
  %v3133 = vld [vmem:[%s1 + $0x28] sm:$0xff]
  %v3134 = vld [vmem:[%s1 + $0x30] sm:$0xff]
  %v3135 = vld [vmem:[%s1 + $0x38] sm:$0xff]
  %v3136 = vld [vmem:[%s1 + $0x40] sm:$0xff]
  %v3137 = vld [vmem:[%s1 + $0x48] sm:$0xff]
  %v3138 = vld [vmem:[%s1 + $0x50] sm:$0xff]
  %v3139 = vld [vmem:[%s1 + $0x58] sm:$0xff]
  %v3140 = vld [vmem:[%s1 + $0x60] sm:$0xff]
  %v3141 = vld [vmem:[%s1 + $0x68] sm:$0xff]
  %v3142 = vld [vmem:[%s1 + $0x70] sm:$0xff]
  %v3143 = vld [vmem:[%s1 + $0x78] sm:$0xff]
  %v3144 = vld [vmem:[%s1 + $0x80] sm:$0xff]
  %v3145 = vld [vmem:[%s1 + $0x88] sm:$0xff]
  %v3146 = vld [vmem:[%s1 + $0x90] sm:$0xff]
  %v3147 = vld [vmem:[%s1 + $0x98] sm:$0xff]
  %v3148 = vld [vmem:[%s1 + $0xa0] sm:$0xff]
  %v3149 = vld [vmem:[%s1 + $0xa8] sm:$0xff]
  %v3150 = vld [vmem:[%s1 + $0xb0] sm:$0xff]
  %v3151 = vld [vmem:[%s1 + $0xb8] sm:$0xff]
  %v3152 = vld [vmem:[%s1 + $0xc0] sm:$0xff]
  %v3153 = vld [vmem:[%s1 + $0xc8] sm:$0xff]
  %v3154 = vld [vmem:[%s1 + $0xd0] sm:$0xff]
  %v3155 = vld [vmem:[%s1 + $0xd8] sm:$0xff]
  %v3156 = vld [vmem:[%s1 + $0xe0] sm:$0xff]
  %v3157 = vld [vmem:[%s1 + $0xe8] sm:$0xff]
  %v3158 = vld [vmem:[%s1 + $0xf0] sm:$0xff]
  %v3159 = vld [vmem:[%s1 + $0xf8] sm:$0xff]
  %s3160 = scalar_lea.vmem %s0, 320
  %v3161 = vld [vmem:[%s3160] sm:$0xff]
  %v3162 = vld [vmem:[%s3160 + $0x8] sm:$0xff]
  %v3163 = vld [vmem:[%s3160 + $0x10] sm:$0xff]
  %v3164 = vld [vmem:[%s3160 + $0x18] sm:$0xff]
  %v3197 = vunpack.c.l.b16 %v3128
  %v3198 = vunpack.c.h.b16 %v3128
  %v3199 = vunpack.c.l.b16 %v3129
  %v3200 = vunpack.c.h.b16 %v3129
  %v3201 = vunpack.c.l.b16 %v3130
  %v3202 = vunpack.c.h.b16 %v3130
  %v3203 = vunpack.c.l.b16 %v3131
  %v3204 = vunpack.c.h.b16 %v3131
  %v3205 = vunpack.c.l.b16 %v3132
  %v3206 = vunpack.c.h.b16 %v3132
  %v3207 = vunpack.c.l.b16 %v3133
  %v3208 = vunpack.c.h.b16 %v3133
  %v3209 = vunpack.c.l.b16 %v3134
  %v3210 = vunpack.c.h.b16 %v3134
  %v3211 = vunpack.c.l.b16 %v3135
  %v3212 = vunpack.c.h.b16 %v3135
  %v3213 = vunpack.c.l.b16 %v3136
  %v3214 = vunpack.c.h.b16 %v3136
  %v3215 = vunpack.c.l.b16 %v3137
  %v3216 = vunpack.c.h.b16 %v3137
  %v3217 = vunpack.c.l.b16 %v3138
  %v3218 = vunpack.c.h.b16 %v3138
  %v3219 = vunpack.c.l.b16 %v3139
  %v3220 = vunpack.c.h.b16 %v3139
  %v3221 = vunpack.c.l.b16 %v3140
  %v3222 = vunpack.c.h.b16 %v3140
  %v3223 = vunpack.c.l.b16 %v3141
  %v3224 = vunpack.c.h.b16 %v3141
  %v3225 = vunpack.c.l.b16 %v3142
  %v3226 = vunpack.c.h.b16 %v3142
  %v3227 = vunpack.c.l.b16 %v3143
  %v3228 = vunpack.c.h.b16 %v3143
  %v3229 = vunpack.c.l.b16 %v3144
  %v3230 = vunpack.c.h.b16 %v3144
  %v3231 = vunpack.c.l.b16 %v3145
  %v3232 = vunpack.c.h.b16 %v3145
  %v3233 = vunpack.c.l.b16 %v3146
  %v3234 = vunpack.c.h.b16 %v3146
  %v3235 = vunpack.c.l.b16 %v3147
  %v3236 = vunpack.c.h.b16 %v3147
  %v3237 = vunpack.c.l.b16 %v3148
  %v3238 = vunpack.c.h.b16 %v3148
  %v3239 = vunpack.c.l.b16 %v3149
  %v3240 = vunpack.c.h.b16 %v3149
  %v3241 = vunpack.c.l.b16 %v3150
  %v3242 = vunpack.c.h.b16 %v3150
  %v3243 = vunpack.c.l.b16 %v3151
  %v3244 = vunpack.c.h.b16 %v3151
  %v3245 = vunpack.c.l.b16 %v3152
  %v3246 = vunpack.c.h.b16 %v3152
  %v3247 = vunpack.c.l.b16 %v3153
  %v3248 = vunpack.c.h.b16 %v3153
  %v3249 = vunpack.c.l.b16 %v3154
  %v3250 = vunpack.c.h.b16 %v3154
  %v3251 = vunpack.c.l.b16 %v3155
  %v3252 = vunpack.c.h.b16 %v3155
  %v3253 = vunpack.c.l.b16 %v3156
  %v3254 = vunpack.c.h.b16 %v3156
  %v3255 = vunpack.c.l.b16 %v3157
  %v3256 = vunpack.c.h.b16 %v3157
  %v3257 = vunpack.c.l.b16 %v3158
  %v3258 = vunpack.c.h.b16 %v3158
  %v3259 = vunpack.c.l.b16 %v3159
  %v3260 = vunpack.c.h.b16 %v3159
  %v3261 = vpack.c.b16 %v3201, %v3197
  %v3262 = vpack.c.b16 %v3202, %v3198
  %v3263 = vpack.c.b16 %v3203, %v3199
  %v3264 = vpack.c.b16 %v3204, %v3200
  %v3265 = vpack.c.b16 %v3209, %v3205
  %v3266 = vpack.c.b16 %v3210, %v3206
  %v3267 = vpack.c.b16 %v3211, %v3207
  %v3268 = vpack.c.b16 %v3212, %v3208
  %v3269 = vpack.c.b16 %v3217, %v3213
  %v3270 = vpack.c.b16 %v3218, %v3214
  %v3271 = vpack.c.b16 %v3219, %v3215
  %v3272 = vpack.c.b16 %v3220, %v3216
  %v3273 = vpack.c.b16 %v3225, %v3221
  %v3274 = vpack.c.b16 %v3226, %v3222
  %v3275 = vpack.c.b16 %v3227, %v3223
  %v3276 = vpack.c.b16 %v3228, %v3224
  %v3277 = vpack.c.b16 %v3233, %v3229
  %v3278 = vpack.c.b16 %v3234, %v3230
  %v3279 = vpack.c.b16 %v3235, %v3231
  %v3280 = vpack.c.b16 %v3236, %v3232
  %v3281 = vpack.c.b16 %v3241, %v3237
  %v3282 = vpack.c.b16 %v3242, %v3238
  %v3283 = vpack.c.b16 %v3243, %v3239
  %v3284 = vpack.c.b16 %v3244, %v3240
  %v3285 = vpack.c.b16 %v3249, %v3245
  %v3286 = vpack.c.b16 %v3250, %v3246
  %v3287 = vpack.c.b16 %v3251, %v3247
  %v3288 = vpack.c.b16 %v3252, %v3248
  %v3289 = vpack.c.b16 %v3257, %v3253
  %v3290 = vpack.c.b16 %v3258, %v3254
  %v3291 = vpack.c.b16 %v3259, %v3255
  %v3292 = vpack.c.b16 %v3260, %v3256
  %3325 = vmatprep.subr.bf16.mxu0 %v3262
  %3326 = vmatpush1.bf16.msra.mxu0 %v3261
  %3327 = vmatprep.subr.bf16.mxu0 %v3266
  %3328 = vmatpush1.bf16.msra.mxu0 %v3265
  %3329 = vmatprep.subr.bf16.mxu0 %v3270
  %3330 = vmatpush1.bf16.msra.mxu0 %v3269
  %3331 = vmatprep.subr.bf16.mxu0 %v3274
  %3332 = vmatpush1.bf16.msra.mxu0 %v3273
  %3333 = vmatprep.subr.bf16.mxu0 %v3278
  %3334 = vmatpush1.bf16.msra.mxu0 %v3277
  %3335 = vmatprep.subr.bf16.mxu0 %v3282
  %3336 = vmatpush1.bf16.msra.mxu0 %v3281
  %3337 = vmatprep.subr.bf16.mxu0 %v3286
  %3338 = vmatpush1.bf16.msra.mxu0 %v3285
  %3339 = vmatprep.subr.bf16.mxu0 %v3290
  %3340 = vmatpush1.bf16.msra.mxu0 %v3289
  %3341 = vmatprep.subr.bf16.mxu0 0
  %3342 = vmatpush1.bf16.msra.mxu0 0
  %3343 = vmatprep.subr.bf16.mxu0 0
  %3344 = vmatpush1.bf16.msra.mxu0 0
  %3345 = vmatprep.subr.bf16.mxu0 0
  %3346 = vmatpush1.bf16.msra.mxu0 0
  %3347 = vmatprep.subr.bf16.mxu0 0
  %3348 = vmatpush1.bf16.msra.mxu0 0
  %3349 = vmatprep.subr.bf16.mxu0 0
  %3350 = vmatpush1.bf16.msra.mxu0 0
  %3351 = vmatprep.subr.bf16.mxu0 0
  %3352 = vmatpush1.bf16.msra.mxu0 0
  %3353 = vmatprep.subr.bf16.mxu0 0
  %3354 = vmatpush1.bf16.msra.mxu0 0
  %3355 = vmatprep.subr.bf16.mxu0 0
  %3356 = vmatpush1.bf16.msra.mxu0 0
  %3357 = vmatprep.mubr.bf16.mxu0 0
  %3358 = vmatmul.mubr.bf16.gmra.mrb[0].mxu0 %v3127
  %v3359 = vpop.f32.mrb[0].mxu0
  %v3360 = vadd.f32 %v3161, %v3359
  %v3361 = vpop.f32.mrb[0].mxu0
  %v3362 = vadd.f32 %v3162, %v3361
  %v3363 = vpop.f32.mrb[0].mxu0
  %v3364 = vpop.f32.mrb[0].mxu0
  %3365 = vdwg.mxu0
  %3366 = vmatprep.subr.bf16.mxu0 %v3264
  %3367 = vmatpush1.bf16.msra.mxu0 %v3263
  %3368 = vmatprep.subr.bf16.mxu0 %v3268
  %3369 = vmatpush1.bf16.msra.mxu0 %v3267
  %3370 = vmatprep.subr.bf16.mxu0 %v3272
  %3371 = vmatpush1.bf16.msra.mxu0 %v3271
  %3372 = vmatprep.subr.bf16.mxu0 %v3276
  %3373 = vmatpush1.bf16.msra.mxu0 %v3275
  %3374 = vmatprep.subr.bf16.mxu0 %v3280
  %3375 = vmatpush1.bf16.msra.mxu0 %v3279
  %3376 = vmatprep.subr.bf16.mxu0 %v3284
  %3377 = vmatpush1.bf16.msra.mxu0 %v3283
  %3378 = vmatprep.subr.bf16.mxu0 %v3288
  %3379 = vmatpush1.bf16.msra.mxu0 %v3287
  %3380 = vmatprep.subr.bf16.mxu0 %v3292
  %3381 = vmatpush1.bf16.msra.mxu0 %v3291
  %3382 = vmatprep.subr.bf16.mxu0 0
  %3383 = vmatpush1.bf16.msra.mxu0 0
  %3384 = vmatprep.subr.bf16.mxu0 0
  %3385 = vmatpush1.bf16.msra.mxu0 0
  %3386 = vmatprep.subr.bf16.mxu0 0
  %3387 = vmatpush1.bf16.msra.mxu0 0
  %3388 = vmatprep.subr.bf16.mxu0 0
  %3389 = vmatpush1.bf16.msra.mxu0 0
  %3390 = vmatprep.subr.bf16.mxu0 0
  %3391 = vmatpush1.bf16.msra.mxu0 0
  %3392 = vmatprep.subr.bf16.mxu0 0
  %3393 = vmatpush1.bf16.msra.mxu0 0
  %3394 = vmatprep.subr.bf16.mxu0 0
  %3395 = vmatpush1.bf16.msra.mxu0 0
  %3396 = vmatprep.subr.bf16.mxu0 0
  %3397 = vmatpush1.bf16.msra.mxu0 0
  %3398 = vmatprep.mubr.bf16.mxu0 0
  %3399 = vmatmul.mubr.bf16.gmra.mrb[0].mxu0 %v3127
  %v3400 = vpop.f32.mrb[0].mxu0
  %v3401 = vadd.f32 %v3163, %v3400
  %v3402 = vpop.f32.mrb[0].mxu0
  %v3403 = vadd.f32 %v3164, %v3402
  %v3404 = vpop.f32.mrb[0].mxu0
  %v3405 = vpop.f32.mrb[0].mxu0
  %3406 = vdwg.mxu0
  %v3407 = vxor.u32 %v3360, 2147483648
  %v3408 = vmul.f32 %v3407, 1.442695
  %v3409 = vpow.pop %v3408
  %v3410 = vadd.f32 %v3409, 1.0
  %v3411 = vrcp.pop %v3410
  %v3412 = vmul.f32 1.0, %v3411
  %v3413 = vxor.u32 %v3362, 2147483648
  %v3414 = vmul.f32 %v3413, 1.442695
  %v3415 = vpow.pop %v3414
  %v3416 = vadd.f32 %v3415, 1.0
  %v3417 = vrcp.pop %v3416
  %v3418 = vmul.f32 1.0, %v3417
  %v3419 = vtanh.pop %v3401
  %v3420 = vxor.u32 %v3403, 2147483648
  %v3421 = vmul.f32 %v3420, 1.442695
  %v3422 = vpow.pop %v3421
  %v3423 = vadd.f32 %v3422, 1.0
  %v3424 = vrcp.pop %v3423
  %v3425 = vmul.f32 1.0, %v3424
  %v3426 = vld [vmem:[#allocation3] sm:$0xff]
  %v3427 = vmul.f32 %v3418, %v3426
  %v3428 = vmul.f32 %v3412, %v3419
  %v3429 = vadd.f32 %v3427, %v3428
  %v3430 = vtanh.pop %v3429
  %v3431 = vmul.f32 %v3425, %v3430
  %3432 = vst [vmem:[#allocation3] sm:$0xff] %v3429
  %3433 = vst [vmem:[#allocation2] sm:$0xff] %v3431
  %s3434 = scalar_lea.vmem %s4, 80
  %3435 = vst [vmem:[%s3434] sm:$0xff] %v3431
  %v3436 = vld [vmem:[#allocation2] sm:$0xff]
  %v3437 = vpack.c.bf16 %v3436, %v3436
  %v3438 = vld [vmem:[%s1] sm:$0xff]
  %v3439 = vld [vmem:[%s1 + $0x8] sm:$0xff]
  %v3440 = vld [vmem:[%s1 + $0x10] sm:$0xff]
  %v3441 = vld [vmem:[%s1 + $0x18] sm:$0xff]
  %v3442 = vld [vmem:[%s1 + $0x20] sm:$0xff]
  %v3443 = vld [vmem:[%s1 + $0x28] sm:$0xff]
  %v3444 = vld [vmem:[%s1 + $0x30] sm:$0xff]
  %v3445 = vld [vmem:[%s1 + $0x38] sm:$0xff]
  %v3446 = vld [vmem:[%s1 + $0x40] sm:$0xff]
  %v3447 = vld [vmem:[%s1 + $0x48] sm:$0xff]
  %v3448 = vld [vmem:[%s1 + $0x50] sm:$0xff]
  %v3449 = vld [vmem:[%s1 + $0x58] sm:$0xff]
  %v3450 = vld [vmem:[%s1 + $0x60] sm:$0xff]
  %v3451 = vld [vmem:[%s1 + $0x68] sm:$0xff]
  %v3452 = vld [vmem:[%s1 + $0x70] sm:$0xff]
  %v3453 = vld [vmem:[%s1 + $0x78] sm:$0xff]
  %v3454 = vld [vmem:[%s1 + $0x80] sm:$0xff]
  %v3455 = vld [vmem:[%s1 + $0x88] sm:$0xff]
  %v3456 = vld [vmem:[%s1 + $0x90] sm:$0xff]
  %v3457 = vld [vmem:[%s1 + $0x98] sm:$0xff]
  %v3458 = vld [vmem:[%s1 + $0xa0] sm:$0xff]
  %v3459 = vld [vmem:[%s1 + $0xa8] sm:$0xff]
  %v3460 = vld [vmem:[%s1 + $0xb0] sm:$0xff]
  %v3461 = vld [vmem:[%s1 + $0xb8] sm:$0xff]
  %v3462 = vld [vmem:[%s1 + $0xc0] sm:$0xff]
  %v3463 = vld [vmem:[%s1 + $0xc8] sm:$0xff]
  %v3464 = vld [vmem:[%s1 + $0xd0] sm:$0xff]
  %v3465 = vld [vmem:[%s1 + $0xd8] sm:$0xff]
  %v3466 = vld [vmem:[%s1 + $0xe0] sm:$0xff]
  %v3467 = vld [vmem:[%s1 + $0xe8] sm:$0xff]
  %v3468 = vld [vmem:[%s1 + $0xf0] sm:$0xff]
  %v3469 = vld [vmem:[%s1 + $0xf8] sm:$0xff]
  %s3470 = scalar_lea.vmem %s0, 352
  %v3471 = vld [vmem:[%s3470] sm:$0xff]
  %v3472 = vld [vmem:[%s3470 + $0x8] sm:$0xff]
  %v3473 = vld [vmem:[%s3470 + $0x10] sm:$0xff]
  %v3474 = vld [vmem:[%s3470 + $0x18] sm:$0xff]
  %v3507 = vunpack.c.l.b16 %v3438
  %v3508 = vunpack.c.h.b16 %v3438
  %v3509 = vunpack.c.l.b16 %v3439
  %v3510 = vunpack.c.h.b16 %v3439
  %v3511 = vunpack.c.l.b16 %v3440
  %v3512 = vunpack.c.h.b16 %v3440
  %v3513 = vunpack.c.l.b16 %v3441
  %v3514 = vunpack.c.h.b16 %v3441
  %v3515 = vunpack.c.l.b16 %v3442
  %v3516 = vunpack.c.h.b16 %v3442
  %v3517 = vunpack.c.l.b16 %v3443
  %v3518 = vunpack.c.h.b16 %v3443
  %v3519 = vunpack.c.l.b16 %v3444
  %v3520 = vunpack.c.h.b16 %v3444
  %v3521 = vunpack.c.l.b16 %v3445
  %v3522 = vunpack.c.h.b16 %v3445
  %v3523 = vunpack.c.l.b16 %v3446
  %v3524 = vunpack.c.h.b16 %v3446
  %v3525 = vunpack.c.l.b16 %v3447
  %v3526 = vunpack.c.h.b16 %v3447
  %v3527 = vunpack.c.l.b16 %v3448
  %v3528 = vunpack.c.h.b16 %v3448
  %v3529 = vunpack.c.l.b16 %v3449
  %v3530 = vunpack.c.h.b16 %v3449
  %v3531 = vunpack.c.l.b16 %v3450
  %v3532 = vunpack.c.h.b16 %v3450
  %v3533 = vunpack.c.l.b16 %v3451
  %v3534 = vunpack.c.h.b16 %v3451
  %v3535 = vunpack.c.l.b16 %v3452
  %v3536 = vunpack.c.h.b16 %v3452
  %v3537 = vunpack.c.l.b16 %v3453
  %v3538 = vunpack.c.h.b16 %v3453
  %v3539 = vunpack.c.l.b16 %v3454
  %v3540 = vunpack.c.h.b16 %v3454
  %v3541 = vunpack.c.l.b16 %v3455
  %v3542 = vunpack.c.h.b16 %v3455
  %v3543 = vunpack.c.l.b16 %v3456
  %v3544 = vunpack.c.h.b16 %v3456
  %v3545 = vunpack.c.l.b16 %v3457
  %v3546 = vunpack.c.h.b16 %v3457
  %v3547 = vunpack.c.l.b16 %v3458
  %v3548 = vunpack.c.h.b16 %v3458
  %v3549 = vunpack.c.l.b16 %v3459
  %v3550 = vunpack.c.h.b16 %v3459
  %v3551 = vunpack.c.l.b16 %v3460
  %v3552 = vunpack.c.h.b16 %v3460
  %v3553 = vunpack.c.l.b16 %v3461
  %v3554 = vunpack.c.h.b16 %v3461
  %v3555 = vunpack.c.l.b16 %v3462
  %v3556 = vunpack.c.h.b16 %v3462
  %v3557 = vunpack.c.l.b16 %v3463
  %v3558 = vunpack.c.h.b16 %v3463
  %v3559 = vunpack.c.l.b16 %v3464
  %v3560 = vunpack.c.h.b16 %v3464
  %v3561 = vunpack.c.l.b16 %v3465
  %v3562 = vunpack.c.h.b16 %v3465
  %v3563 = vunpack.c.l.b16 %v3466
  %v3564 = vunpack.c.h.b16 %v3466
  %v3565 = vunpack.c.l.b16 %v3467
  %v3566 = vunpack.c.h.b16 %v3467
  %v3567 = vunpack.c.l.b16 %v3468
  %v3568 = vunpack.c.h.b16 %v3468
  %v3569 = vunpack.c.l.b16 %v3469
  %v3570 = vunpack.c.h.b16 %v3469
  %v3571 = vpack.c.b16 %v3511, %v3507
  %v3572 = vpack.c.b16 %v3512, %v3508
  %v3573 = vpack.c.b16 %v3513, %v3509
  %v3574 = vpack.c.b16 %v3514, %v3510
  %v3575 = vpack.c.b16 %v3519, %v3515
  %v3576 = vpack.c.b16 %v3520, %v3516
  %v3577 = vpack.c.b16 %v3521, %v3517
  %v3578 = vpack.c.b16 %v3522, %v3518
  %v3579 = vpack.c.b16 %v3527, %v3523
  %v3580 = vpack.c.b16 %v3528, %v3524
  %v3581 = vpack.c.b16 %v3529, %v3525
  %v3582 = vpack.c.b16 %v3530, %v3526
  %v3583 = vpack.c.b16 %v3535, %v3531
  %v3584 = vpack.c.b16 %v3536, %v3532
  %v3585 = vpack.c.b16 %v3537, %v3533
  %v3586 = vpack.c.b16 %v3538, %v3534
  %v3587 = vpack.c.b16 %v3543, %v3539
  %v3588 = vpack.c.b16 %v3544, %v3540
  %v3589 = vpack.c.b16 %v3545, %v3541
  %v3590 = vpack.c.b16 %v3546, %v3542
  %v3591 = vpack.c.b16 %v3551, %v3547
  %v3592 = vpack.c.b16 %v3552, %v3548
  %v3593 = vpack.c.b16 %v3553, %v3549
  %v3594 = vpack.c.b16 %v3554, %v3550
  %v3595 = vpack.c.b16 %v3559, %v3555
  %v3596 = vpack.c.b16 %v3560, %v3556
  %v3597 = vpack.c.b16 %v3561, %v3557
  %v3598 = vpack.c.b16 %v3562, %v3558
  %v3599 = vpack.c.b16 %v3567, %v3563
  %v3600 = vpack.c.b16 %v3568, %v3564
  %v3601 = vpack.c.b16 %v3569, %v3565
  %v3602 = vpack.c.b16 %v3570, %v3566
  %3635 = vmatprep.subr.bf16.mxu0 %v3572
  %3636 = vmatpush1.bf16.msra.mxu0 %v3571
  %3637 = vmatprep.subr.bf16.mxu0 %v3576
  %3638 = vmatpush1.bf16.msra.mxu0 %v3575
  %3639 = vmatprep.subr.bf16.mxu0 %v3580
  %3640 = vmatpush1.bf16.msra.mxu0 %v3579
  %3641 = vmatprep.subr.bf16.mxu0 %v3584
  %3642 = vmatpush1.bf16.msra.mxu0 %v3583
  %3643 = vmatprep.subr.bf16.mxu0 %v3588
  %3644 = vmatpush1.bf16.msra.mxu0 %v3587
  %3645 = vmatprep.subr.bf16.mxu0 %v3592
  %3646 = vmatpush1.bf16.msra.mxu0 %v3591
  %3647 = vmatprep.subr.bf16.mxu0 %v3596
  %3648 = vmatpush1.bf16.msra.mxu0 %v3595
  %3649 = vmatprep.subr.bf16.mxu0 %v3600
  %3650 = vmatpush1.bf16.msra.mxu0 %v3599
  %3651 = vmatprep.subr.bf16.mxu0 0
  %3652 = vmatpush1.bf16.msra.mxu0 0
  %3653 = vmatprep.subr.bf16.mxu0 0
  %3654 = vmatpush1.bf16.msra.mxu0 0
  %3655 = vmatprep.subr.bf16.mxu0 0
  %3656 = vmatpush1.bf16.msra.mxu0 0
  %3657 = vmatprep.subr.bf16.mxu0 0
  %3658 = vmatpush1.bf16.msra.mxu0 0
  %3659 = vmatprep.subr.bf16.mxu0 0
  %3660 = vmatpush1.bf16.msra.mxu0 0
  %3661 = vmatprep.subr.bf16.mxu0 0
  %3662 = vmatpush1.bf16.msra.mxu0 0
  %3663 = vmatprep.subr.bf16.mxu0 0
  %3664 = vmatpush1.bf16.msra.mxu0 0
  %3665 = vmatprep.subr.bf16.mxu0 0
  %3666 = vmatpush1.bf16.msra.mxu0 0
  %3667 = vmatprep.mubr.bf16.mxu0 0
  %3668 = vmatmul.mubr.bf16.gmra.mrb[0].mxu0 %v3437
  %v3669 = vpop.f32.mrb[0].mxu0
  %v3670 = vadd.f32 %v3471, %v3669
  %v3671 = vpop.f32.mrb[0].mxu0
  %v3672 = vadd.f32 %v3472, %v3671
  %v3673 = vpop.f32.mrb[0].mxu0
  %v3674 = vpop.f32.mrb[0].mxu0
  %3675 = vdwg.mxu0
  %3676 = vmatprep.subr.bf16.mxu0 %v3574
  %3677 = vmatpush1.bf16.msra.mxu0 %v3573
  %3678 = vmatprep.subr.bf16.mxu0 %v3578
  %3679 = vmatpush1.bf16.msra.mxu0 %v3577
  %3680 = vmatprep.subr.bf16.mxu0 %v3582
  %3681 = vmatpush1.bf16.msra.mxu0 %v3581
  %3682 = vmatprep.subr.bf16.mxu0 %v3586
  %3683 = vmatpush1.bf16.msra.mxu0 %v3585
  %3684 = vmatprep.subr.bf16.mxu0 %v3590
  %3685 = vmatpush1.bf16.msra.mxu0 %v3589
  %3686 = vmatprep.subr.bf16.mxu0 %v3594
  %3687 = vmatpush1.bf16.msra.mxu0 %v3593
  %3688 = vmatprep.subr.bf16.mxu0 %v3598
  %3689 = vmatpush1.bf16.msra.mxu0 %v3597
  %3690 = vmatprep.subr.bf16.mxu0 %v3602
  %3691 = vmatpush1.bf16.msra.mxu0 %v3601
  %3692 = vmatprep.subr.bf16.mxu0 0
  %3693 = vmatpush1.bf16.msra.mxu0 0
  %3694 = vmatprep.subr.bf16.mxu0 0
  %3695 = vmatpush1.bf16.msra.mxu0 0
  %3696 = vmatprep.subr.bf16.mxu0 0
  %3697 = vmatpush1.bf16.msra.mxu0 0
  %3698 = vmatprep.subr.bf16.mxu0 0
  %3699 = vmatpush1.bf16.msra.mxu0 0
  %3700 = vmatprep.subr.bf16.mxu0 0
  %3701 = vmatpush1.bf16.msra.mxu0 0
  %3702 = vmatprep.subr.bf16.mxu0 0
  %3703 = vmatpush1.bf16.msra.mxu0 0
  %3704 = vmatprep.subr.bf16.mxu0 0
  %3705 = vmatpush1.bf16.msra.mxu0 0
  %3706 = vmatprep.subr.bf16.mxu0 0
  %3707 = vmatpush1.bf16.msra.mxu0 0
  %3708 = vmatprep.mubr.bf16.mxu0 0
  %3709 = vmatmul.mubr.bf16.gmra.mrb[0].mxu0 %v3437
  %v3710 = vpop.f32.mrb[0].mxu0
  %v3711 = vadd.f32 %v3473, %v3710
  %v3712 = vpop.f32.mrb[0].mxu0
  %v3713 = vadd.f32 %v3474, %v3712
  %v3714 = vpop.f32.mrb[0].mxu0
  %v3715 = vpop.f32.mrb[0].mxu0
  %3716 = vdwg.mxu0
  %v3717 = vxor.u32 %v3670, 2147483648
  %v3718 = vmul.f32 %v3717, 1.442695
  %v3719 = vpow.pop %v3718
  %v3720 = vadd.f32 %v3719, 1.0
  %v3721 = vrcp.pop %v3720
  %v3722 = vmul.f32 1.0, %v3721
  %v3723 = vxor.u32 %v3672, 2147483648
  %v3724 = vmul.f32 %v3723, 1.442695
  %v3725 = vpow.pop %v3724
  %v3726 = vadd.f32 %v3725, 1.0
  %v3727 = vrcp.pop %v3726
  %v3728 = vmul.f32 1.0, %v3727
  %v3729 = vtanh.pop %v3711
  %v3730 = vxor.u32 %v3713, 2147483648
  %v3731 = vmul.f32 %v3730, 1.442695
  %v3732 = vpow.pop %v3731
  %v3733 = vadd.f32 %v3732, 1.0
  %v3734 = vrcp.pop %v3733
  %v3735 = vmul.f32 1.0, %v3734
  %v3736 = vld [vmem:[#allocation3] sm:$0xff]
  %v3737 = vmul.f32 %v3728, %v3736
  %v3738 = vmul.f32 %v3722, %v3729
  %v3739 = vadd.f32 %v3737, %v3738
  %v3740 = vtanh.pop %v3739
  %v3741 = vmul.f32 %v3735, %v3740
  %3742 = vst [vmem:[#allocation3] sm:$0xff] %v3739
  %3743 = vst [vmem:[#allocation2] sm:$0xff] %v3741
  %s3744 = scalar_lea.vmem %s4, 88
  %3745 = vst [vmem:[%s3744] sm:$0xff] %v3741
  %v3746 = vld [vmem:[#allocation2] sm:$0xff]
  %v3747 = vpack.c.bf16 %v3746, %v3746
  %v3748 = vld [vmem:[%s1] sm:$0xff]
  %v3749 = vld [vmem:[%s1 + $0x8] sm:$0xff]
  %v3750 = vld [vmem:[%s1 + $0x10] sm:$0xff]
  %v3751 = vld [vmem:[%s1 + $0x18] sm:$0xff]
  %v3752 = vld [vmem:[%s1 + $0x20] sm:$0xff]
  %v3753 = vld [vmem:[%s1 + $0x28] sm:$0xff]
  %v3754 = vld [vmem:[%s1 + $0x30] sm:$0xff]
  %v3755 = vld [vmem:[%s1 + $0x38] sm:$0xff]
  %v3756 = vld [vmem:[%s1 + $0x40] sm:$0xff]
  %v3757 = vld [vmem:[%s1 + $0x48] sm:$0xff]
  %v3758 = vld [vmem:[%s1 + $0x50] sm:$0xff]
  %v3759 = vld [vmem:[%s1 + $0x58] sm:$0xff]
  %v3760 = vld [vmem:[%s1 + $0x60] sm:$0xff]
  %v3761 = vld [vmem:[%s1 + $0x68] sm:$0xff]
  %v3762 = vld [vmem:[%s1 + $0x70] sm:$0xff]
  %v3763 = vld [vmem:[%s1 + $0x78] sm:$0xff]
  %v3764 = vld [vmem:[%s1 + $0x80] sm:$0xff]
  %v3765 = vld [vmem:[%s1 + $0x88] sm:$0xff]
  %v3766 = vld [vmem:[%s1 + $0x90] sm:$0xff]
  %v3767 = vld [vmem:[%s1 + $0x98] sm:$0xff]
  %v3768 = vld [vmem:[%s1 + $0xa0] sm:$0xff]
  %v3769 = vld [vmem:[%s1 + $0xa8] sm:$0xff]
  %v3770 = vld [vmem:[%s1 + $0xb0] sm:$0xff]
  %v3771 = vld [vmem:[%s1 + $0xb8] sm:$0xff]
  %v3772 = vld [vmem:[%s1 + $0xc0] sm:$0xff]
  %v3773 = vld [vmem:[%s1 + $0xc8] sm:$0xff]
  %v3774 = vld [vmem:[%s1 + $0xd0] sm:$0xff]
  %v3775 = vld [vmem:[%s1 + $0xd8] sm:$0xff]
  %v3776 = vld [vmem:[%s1 + $0xe0] sm:$0xff]
  %v3777 = vld [vmem:[%s1 + $0xe8] sm:$0xff]
  %v3778 = vld [vmem:[%s1 + $0xf0] sm:$0xff]
  %v3779 = vld [vmem:[%s1 + $0xf8] sm:$0xff]
  %s3780 = scalar_lea.vmem %s0, 384
  %v3781 = vld [vmem:[%s3780] sm:$0xff]
  %v3782 = vld [vmem:[%s3780 + $0x8] sm:$0xff]
  %v3783 = vld [vmem:[%s3780 + $0x10] sm:$0xff]
  %v3784 = vld [vmem:[%s3780 + $0x18] sm:$0xff]
  %v3817 = vunpack.c.l.b16 %v3748
  %v3818 = vunpack.c.h.b16 %v3748
  %v3819 = vunpack.c.l.b16 %v3749
  %v3820 = vunpack.c.h.b16 %v3749
  %v3821 = vunpack.c.l.b16 %v3750
  %v3822 = vunpack.c.h.b16 %v3750
  %v3823 = vunpack.c.l.b16 %v3751
  %v3824 = vunpack.c.h.b16 %v3751
  %v3825 = vunpack.c.l.b16 %v3752
  %v3826 = vunpack.c.h.b16 %v3752
  %v3827 = vunpack.c.l.b16 %v3753
  %v3828 = vunpack.c.h.b16 %v3753
  %v3829 = vunpack.c.l.b16 %v3754
  %v3830 = vunpack.c.h.b16 %v3754
  %v3831 = vunpack.c.l.b16 %v3755
  %v3832 = vunpack.c.h.b16 %v3755
  %v3833 = vunpack.c.l.b16 %v3756
  %v3834 = vunpack.c.h.b16 %v3756
  %v3835 = vunpack.c.l.b16 %v3757
  %v3836 = vunpack.c.h.b16 %v3757
  %v3837 = vunpack.c.l.b16 %v3758
  %v3838 = vunpack.c.h.b16 %v3758
  %v3839 = vunpack.c.l.b16 %v3759
  %v3840 = vunpack.c.h.b16 %v3759
  %v3841 = vunpack.c.l.b16 %v3760
  %v3842 = vunpack.c.h.b16 %v3760
  %v3843 = vunpack.c.l.b16 %v3761
  %v3844 = vunpack.c.h.b16 %v3761
  %v3845 = vunpack.c.l.b16 %v3762
  %v3846 = vunpack.c.h.b16 %v3762
  %v3847 = vunpack.c.l.b16 %v3763
  %v3848 = vunpack.c.h.b16 %v3763
  %v3849 = vunpack.c.l.b16 %v3764
  %v3850 = vunpack.c.h.b16 %v3764
  %v3851 = vunpack.c.l.b16 %v3765
  %v3852 = vunpack.c.h.b16 %v3765
  %v3853 = vunpack.c.l.b16 %v3766
  %v3854 = vunpack.c.h.b16 %v3766
  %v3855 = vunpack.c.l.b16 %v3767
  %v3856 = vunpack.c.h.b16 %v3767
  %v3857 = vunpack.c.l.b16 %v3768
  %v3858 = vunpack.c.h.b16 %v3768
  %v3859 = vunpack.c.l.b16 %v3769
  %v3860 = vunpack.c.h.b16 %v3769
  %v3861 = vunpack.c.l.b16 %v3770
  %v3862 = vunpack.c.h.b16 %v3770
  %v3863 = vunpack.c.l.b16 %v3771
  %v3864 = vunpack.c.h.b16 %v3771
  %v3865 = vunpack.c.l.b16 %v3772
  %v3866 = vunpack.c.h.b16 %v3772
  %v3867 = vunpack.c.l.b16 %v3773
  %v3868 = vunpack.c.h.b16 %v3773
  %v3869 = vunpack.c.l.b16 %v3774
  %v3870 = vunpack.c.h.b16 %v3774
  %v3871 = vunpack.c.l.b16 %v3775
  %v3872 = vunpack.c.h.b16 %v3775
  %v3873 = vunpack.c.l.b16 %v3776
  %v3874 = vunpack.c.h.b16 %v3776
  %v3875 = vunpack.c.l.b16 %v3777
  %v3876 = vunpack.c.h.b16 %v3777
  %v3877 = vunpack.c.l.b16 %v3778
  %v3878 = vunpack.c.h.b16 %v3778
  %v3879 = vunpack.c.l.b16 %v3779
  %v3880 = vunpack.c.h.b16 %v3779
  %v3881 = vpack.c.b16 %v3821, %v3817
  %v3882 = vpack.c.b16 %v3822, %v3818
  %v3883 = vpack.c.b16 %v3823, %v3819
  %v3884 = vpack.c.b16 %v3824, %v3820
  %v3885 = vpack.c.b16 %v3829, %v3825
  %v3886 = vpack.c.b16 %v3830, %v3826
  %v3887 = vpack.c.b16 %v3831, %v3827
  %v3888 = vpack.c.b16 %v3832, %v3828
  %v3889 = vpack.c.b16 %v3837, %v3833
  %v3890 = vpack.c.b16 %v3838, %v3834
  %v3891 = vpack.c.b16 %v3839, %v3835
  %v3892 = vpack.c.b16 %v3840, %v3836
  %v3893 = vpack.c.b16 %v3845, %v3841
  %v3894 = vpack.c.b16 %v3846, %v3842
  %v3895 = vpack.c.b16 %v3847, %v3843
  %v3896 = vpack.c.b16 %v3848, %v3844
  %v3897 = vpack.c.b16 %v3853, %v3849
  %v3898 = vpack.c.b16 %v3854, %v3850
  %v3899 = vpack.c.b16 %v3855, %v3851
  %v3900 = vpack.c.b16 %v3856, %v3852
  %v3901 = vpack.c.b16 %v3861, %v3857
  %v3902 = vpack.c.b16 %v3862, %v3858
  %v3903 = vpack.c.b16 %v3863, %v3859
  %v3904 = vpack.c.b16 %v3864, %v3860
  %v3905 = vpack.c.b16 %v3869, %v3865
  %v3906 = vpack.c.b16 %v3870, %v3866
  %v3907 = vpack.c.b16 %v3871, %v3867
  %v3908 = vpack.c.b16 %v3872, %v3868
  %v3909 = vpack.c.b16 %v3877, %v3873
  %v3910 = vpack.c.b16 %v3878, %v3874
  %v3911 = vpack.c.b16 %v3879, %v3875
  %v3912 = vpack.c.b16 %v3880, %v3876
  %3945 = vmatprep.subr.bf16.mxu0 %v3882
  %3946 = vmatpush1.bf16.msra.mxu0 %v3881
  %3947 = vmatprep.subr.bf16.mxu0 %v3886
  %3948 = vmatpush1.bf16.msra.mxu0 %v3885
  %3949 = vmatprep.subr.bf16.mxu0 %v3890
  %3950 = vmatpush1.bf16.msra.mxu0 %v3889
  %3951 = vmatprep.subr.bf16.mxu0 %v3894
  %3952 = vmatpush1.bf16.msra.mxu0 %v3893
  %3953 = vmatprep.subr.bf16.mxu0 %v3898
  %3954 = vmatpush1.bf16.msra.mxu0 %v3897
  %3955 = vmatprep.subr.bf16.mxu0 %v3902
  %3956 = vmatpush1.bf16.msra.mxu0 %v3901
  %3957 = vmatprep.subr.bf16.mxu0 %v3906
  %3958 = vmatpush1.bf16.msra.mxu0 %v3905
  %3959 = vmatprep.subr.bf16.mxu0 %v3910
  %3960 = vmatpush1.bf16.msra.mxu0 %v3909
  %3961 = vmatprep.subr.bf16.mxu0 0
  %3962 = vmatpush1.bf16.msra.mxu0 0
  %3963 = vmatprep.subr.bf16.mxu0 0
  %3964 = vmatpush1.bf16.msra.mxu0 0
  %3965 = vmatprep.subr.bf16.mxu0 0
  %3966 = vmatpush1.bf16.msra.mxu0 0
  %3967 = vmatprep.subr.bf16.mxu0 0
  %3968 = vmatpush1.bf16.msra.mxu0 0
  %3969 = vmatprep.subr.bf16.mxu0 0
  %3970 = vmatpush1.bf16.msra.mxu0 0
  %3971 = vmatprep.subr.bf16.mxu0 0
  %3972 = vmatpush1.bf16.msra.mxu0 0
  %3973 = vmatprep.subr.bf16.mxu0 0
  %3974 = vmatpush1.bf16.msra.mxu0 0
  %3975 = vmatprep.subr.bf16.mxu0 0
  %3976 = vmatpush1.bf16.msra.mxu0 0
  %3977 = vmatprep.mubr.bf16.mxu0 0
  %3978 = vmatmul.mubr.bf16.gmra.mrb[0].mxu0 %v3747
  %v3979 = vpop.f32.mrb[0].mxu0
  %v3980 = vadd.f32 %v3781, %v3979
  %v3981 = vpop.f32.mrb[0].mxu0
  %v3982 = vadd.f32 %v3782, %v3981
  %v3983 = vpop.f32.mrb[0].mxu0
  %v3984 = vpop.f32.mrb[0].mxu0
  %3985 = vdwg.mxu0
  %3986 = vmatprep.subr.bf16.mxu0 %v3884
  %3987 = vmatpush1.bf16.msra.mxu0 %v3883
  %3988 = vmatprep.subr.bf16.mxu0 %v3888
  %3989 = vmatpush1.bf16.msra.mxu0 %v3887
  %3990 = vmatprep.subr.bf16.mxu0 %v3892
  %3991 = vmatpush1.bf16.msra.mxu0 %v3891
  %3992 = vmatprep.subr.bf16.mxu0 %v3896
  %3993 = vmatpush1.bf16.msra.mxu0 %v3895
  %3994 = vmatprep.subr.bf16.mxu0 %v3900
  %3995 = vmatpush1.bf16.msra.mxu0 %v3899
  %3996 = vmatprep.subr.bf16.mxu0 %v3904
  %3997 = vmatpush1.bf16.msra.mxu0 %v3903
  %3998 = vmatprep.subr.bf16.mxu0 %v3908
  %3999 = vmatpush1.bf16.msra.mxu0 %v3907
  %4000 = vmatprep.subr.bf16.mxu0 %v3912
  %4001 = vmatpush1.bf16.msra.mxu0 %v3911
  %4002 = vmatprep.subr.bf16.mxu0 0
  %4003 = vmatpush1.bf16.msra.mxu0 0
  %4004 = vmatprep.subr.bf16.mxu0 0
  %4005 = vmatpush1.bf16.msra.mxu0 0
  %4006 = vmatprep.subr.bf16.mxu0 0
  %4007 = vmatpush1.bf16.msra.mxu0 0
  %4008 = vmatprep.subr.bf16.mxu0 0
  %4009 = vmatpush1.bf16.msra.mxu0 0
  %4010 = vmatprep.subr.bf16.mxu0 0
  %4011 = vmatpush1.bf16.msra.mxu0 0
  %4012 = vmatprep.subr.bf16.mxu0 0
  %4013 = vmatpush1.bf16.msra.mxu0 0
  %4014 = vmatprep.subr.bf16.mxu0 0
  %4015 = vmatpush1.bf16.msra.mxu0 0
  %4016 = vmatprep.subr.bf16.mxu0 0
  %4017 = vmatpush1.bf16.msra.mxu0 0
  %4018 = vmatprep.mubr.bf16.mxu0 0
  %4019 = vmatmul.mubr.bf16.gmra.mrb[0].mxu0 %v3747
  %v4020 = vpop.f32.mrb[0].mxu0
  %v4021 = vadd.f32 %v3783, %v4020
  %v4022 = vpop.f32.mrb[0].mxu0
  %v4023 = vadd.f32 %v3784, %v4022
  %v4024 = vpop.f32.mrb[0].mxu0
  %v4025 = vpop.f32.mrb[0].mxu0
  %4026 = vdwg.mxu0
  %v4027 = vxor.u32 %v3980, 2147483648
  %v4028 = vmul.f32 %v4027, 1.442695
  %v4029 = vpow.pop %v4028
  %v4030 = vadd.f32 %v4029, 1.0
  %v4031 = vrcp.pop %v4030
  %v4032 = vmul.f32 1.0, %v4031
  %v4033 = vxor.u32 %v3982, 2147483648
  %v4034 = vmul.f32 %v4033, 1.442695
  %v4035 = vpow.pop %v4034
  %v4036 = vadd.f32 %v4035, 1.0
  %v4037 = vrcp.pop %v4036
  %v4038 = vmul.f32 1.0, %v4037
  %v4039 = vtanh.pop %v4021
  %v4040 = vxor.u32 %v4023, 2147483648
  %v4041 = vmul.f32 %v4040, 1.442695
  %v4042 = vpow.pop %v4041
  %v4043 = vadd.f32 %v4042, 1.0
  %v4044 = vrcp.pop %v4043
  %v4045 = vmul.f32 1.0, %v4044
  %v4046 = vld [vmem:[#allocation3] sm:$0xff]
  %v4047 = vmul.f32 %v4038, %v4046
  %v4048 = vmul.f32 %v4032, %v4039
  %v4049 = vadd.f32 %v4047, %v4048
  %v4050 = vtanh.pop %v4049
  %v4051 = vmul.f32 %v4045, %v4050
  %4052 = vst [vmem:[#allocation3] sm:$0xff] %v4049
  %4053 = vst [vmem:[#allocation2] sm:$0xff] %v4051
  %s4054 = scalar_lea.vmem %s4, 96
  %4055 = vst [vmem:[%s4054] sm:$0xff] %v4051
  %v4056 = vld [vmem:[#allocation2] sm:$0xff]
  %v4057 = vpack.c.bf16 %v4056, %v4056
  %v4058 = vld [vmem:[%s1] sm:$0xff]
  %v4059 = vld [vmem:[%s1 + $0x8] sm:$0xff]
  %v4060 = vld [vmem:[%s1 + $0x10] sm:$0xff]
  %v4061 = vld [vmem:[%s1 + $0x18] sm:$0xff]
  %v4062 = vld [vmem:[%s1 + $0x20] sm:$0xff]
  %v4063 = vld [vmem:[%s1 + $0x28] sm:$0xff]
  %v4064 = vld [vmem:[%s1 + $0x30] sm:$0xff]
  %v4065 = vld [vmem:[%s1 + $0x38] sm:$0xff]
  %v4066 = vld [vmem:[%s1 + $0x40] sm:$0xff]
  %v4067 = vld [vmem:[%s1 + $0x48] sm:$0xff]
  %v4068 = vld [vmem:[%s1 + $0x50] sm:$0xff]
  %v4069 = vld [vmem:[%s1 + $0x58] sm:$0xff]
  %v4070 = vld [vmem:[%s1 + $0x60] sm:$0xff]
  %v4071 = vld [vmem:[%s1 + $0x68] sm:$0xff]
  %v4072 = vld [vmem:[%s1 + $0x70] sm:$0xff]
  %v4073 = vld [vmem:[%s1 + $0x78] sm:$0xff]
  %v4074 = vld [vmem:[%s1 + $0x80] sm:$0xff]
  %v4075 = vld [vmem:[%s1 + $0x88] sm:$0xff]
  %v4076 = vld [vmem:[%s1 + $0x90] sm:$0xff]
  %v4077 = vld [vmem:[%s1 + $0x98] sm:$0xff]
  %v4078 = vld [vmem:[%s1 + $0xa0] sm:$0xff]
  %v4079 = vld [vmem:[%s1 + $0xa8] sm:$0xff]
  %v4080 = vld [vmem:[%s1 + $0xb0] sm:$0xff]
  %v4081 = vld [vmem:[%s1 + $0xb8] sm:$0xff]
  %v4082 = vld [vmem:[%s1 + $0xc0] sm:$0xff]
  %v4083 = vld [vmem:[%s1 + $0xc8] sm:$0xff]
  %v4084 = vld [vmem:[%s1 + $0xd0] sm:$0xff]
  %v4085 = vld [vmem:[%s1 + $0xd8] sm:$0xff]
  %v4086 = vld [vmem:[%s1 + $0xe0] sm:$0xff]
  %v4087 = vld [vmem:[%s1 + $0xe8] sm:$0xff]
  %v4088 = vld [vmem:[%s1 + $0xf0] sm:$0xff]
  %v4089 = vld [vmem:[%s1 + $0xf8] sm:$0xff]
  %s4090 = scalar_lea.vmem %s0, 416
  %v4091 = vld [vmem:[%s4090] sm:$0xff]
  %v4092 = vld [vmem:[%s4090 + $0x8] sm:$0xff]
  %v4093 = vld [vmem:[%s4090 + $0x10] sm:$0xff]
  %v4094 = vld [vmem:[%s4090 + $0x18] sm:$0xff]
  %v4127 = vunpack.c.l.b16 %v4058
  %v4128 = vunpack.c.h.b16 %v4058
  %v4129 = vunpack.c.l.b16 %v4059
  %v4130 = vunpack.c.h.b16 %v4059
  %v4131 = vunpack.c.l.b16 %v4060
  %v4132 = vunpack.c.h.b16 %v4060
  %v4133 = vunpack.c.l.b16 %v4061
  %v4134 = vunpack.c.h.b16 %v4061
  %v4135 = vunpack.c.l.b16 %v4062
  %v4136 = vunpack.c.h.b16 %v4062
  %v4137 = vunpack.c.l.b16 %v4063
  %v4138 = vunpack.c.h.b16 %v4063
  %v4139 = vunpack.c.l.b16 %v4064
  %v4140 = vunpack.c.h.b16 %v4064
  %v4141 = vunpack.c.l.b16 %v4065
  %v4142 = vunpack.c.h.b16 %v4065
  %v4143 = vunpack.c.l.b16 %v4066
  %v4144 = vunpack.c.h.b16 %v4066
  %v4145 = vunpack.c.l.b16 %v4067
  %v4146 = vunpack.c.h.b16 %v4067
  %v4147 = vunpack.c.l.b16 %v4068
  %v4148 = vunpack.c.h.b16 %v4068
  %v4149 = vunpack.c.l.b16 %v4069
  %v4150 = vunpack.c.h.b16 %v4069
  %v4151 = vunpack.c.l.b16 %v4070
  %v4152 = vunpack.c.h.b16 %v4070
  %v4153 = vunpack.c.l.b16 %v4071
  %v4154 = vunpack.c.h.b16 %v4071
  %v4155 = vunpack.c.l.b16 %v4072
  %v4156 = vunpack.c.h.b16 %v4072
  %v4157 = vunpack.c.l.b16 %v4073
  %v4158 = vunpack.c.h.b16 %v4073
  %v4159 = vunpack.c.l.b16 %v4074
  %v4160 = vunpack.c.h.b16 %v4074
  %v4161 = vunpack.c.l.b16 %v4075
  %v4162 = vunpack.c.h.b16 %v4075
  %v4163 = vunpack.c.l.b16 %v4076
  %v4164 = vunpack.c.h.b16 %v4076
  %v4165 = vunpack.c.l.b16 %v4077
  %v4166 = vunpack.c.h.b16 %v4077
  %v4167 = vunpack.c.l.b16 %v4078
  %v4168 = vunpack.c.h.b16 %v4078
  %v4169 = vunpack.c.l.b16 %v4079
  %v4170 = vunpack.c.h.b16 %v4079
  %v4171 = vunpack.c.l.b16 %v4080
  %v4172 = vunpack.c.h.b16 %v4080
  %v4173 = vunpack.c.l.b16 %v4081
  %v4174 = vunpack.c.h.b16 %v4081
  %v4175 = vunpack.c.l.b16 %v4082
  %v4176 = vunpack.c.h.b16 %v4082
  %v4177 = vunpack.c.l.b16 %v4083
  %v4178 = vunpack.c.h.b16 %v4083
  %v4179 = vunpack.c.l.b16 %v4084
  %v4180 = vunpack.c.h.b16 %v4084
  %v4181 = vunpack.c.l.b16 %v4085
  %v4182 = vunpack.c.h.b16 %v4085
  %v4183 = vunpack.c.l.b16 %v4086
  %v4184 = vunpack.c.h.b16 %v4086
  %v4185 = vunpack.c.l.b16 %v4087
  %v4186 = vunpack.c.h.b16 %v4087
  %v4187 = vunpack.c.l.b16 %v4088
  %v4188 = vunpack.c.h.b16 %v4088
  %v4189 = vunpack.c.l.b16 %v4089
  %v4190 = vunpack.c.h.b16 %v4089
  %v4191 = vpack.c.b16 %v4131, %v4127
  %v4192 = vpack.c.b16 %v4132, %v4128
  %v4193 = vpack.c.b16 %v4133, %v4129
  %v4194 = vpack.c.b16 %v4134, %v4130
  %v4195 = vpack.c.b16 %v4139, %v4135
  %v4196 = vpack.c.b16 %v4140, %v4136
  %v4197 = vpack.c.b16 %v4141, %v4137
  %v4198 = vpack.c.b16 %v4142, %v4138
  %v4199 = vpack.c.b16 %v4147, %v4143
  %v4200 = vpack.c.b16 %v4148, %v4144
  %v4201 = vpack.c.b16 %v4149, %v4145
  %v4202 = vpack.c.b16 %v4150, %v4146
  %v4203 = vpack.c.b16 %v4155, %v4151
  %v4204 = vpack.c.b16 %v4156, %v4152
  %v4205 = vpack.c.b16 %v4157, %v4153
  %v4206 = vpack.c.b16 %v4158, %v4154
  %v4207 = vpack.c.b16 %v4163, %v4159
  %v4208 = vpack.c.b16 %v4164, %v4160
  %v4209 = vpack.c.b16 %v4165, %v4161
  %v4210 = vpack.c.b16 %v4166, %v4162
  %v4211 = vpack.c.b16 %v4171, %v4167
  %v4212 = vpack.c.b16 %v4172, %v4168
  %v4213 = vpack.c.b16 %v4173, %v4169
  %v4214 = vpack.c.b16 %v4174, %v4170
  %v4215 = vpack.c.b16 %v4179, %v4175
  %v4216 = vpack.c.b16 %v4180, %v4176
  %v4217 = vpack.c.b16 %v4181, %v4177
  %v4218 = vpack.c.b16 %v4182, %v4178
  %v4219 = vpack.c.b16 %v4187, %v4183
  %v4220 = vpack.c.b16 %v4188, %v4184
  %v4221 = vpack.c.b16 %v4189, %v4185
  %v4222 = vpack.c.b16 %v4190, %v4186
  %4255 = vmatprep.subr.bf16.mxu0 %v4192
  %4256 = vmatpush1.bf16.msra.mxu0 %v4191
  %4257 = vmatprep.subr.bf16.mxu0 %v4196
  %4258 = vmatpush1.bf16.msra.mxu0 %v4195
  %4259 = vmatprep.subr.bf16.mxu0 %v4200
  %4260 = vmatpush1.bf16.msra.mxu0 %v4199
  %4261 = vmatprep.subr.bf16.mxu0 %v4204
  %4262 = vmatpush1.bf16.msra.mxu0 %v4203
  %4263 = vmatprep.subr.bf16.mxu0 %v4208
  %4264 = vmatpush1.bf16.msra.mxu0 %v4207
  %4265 = vmatprep.subr.bf16.mxu0 %v4212
  %4266 = vmatpush1.bf16.msra.mxu0 %v4211
  %4267 = vmatprep.subr.bf16.mxu0 %v4216
  %4268 = vmatpush1.bf16.msra.mxu0 %v4215
  %4269 = vmatprep.subr.bf16.mxu0 %v4220
  %4270 = vmatpush1.bf16.msra.mxu0 %v4219
  %4271 = vmatprep.subr.bf16.mxu0 0
  %4272 = vmatpush1.bf16.msra.mxu0 0
  %4273 = vmatprep.subr.bf16.mxu0 0
  %4274 = vmatpush1.bf16.msra.mxu0 0
  %4275 = vmatprep.subr.bf16.mxu0 0
  %4276 = vmatpush1.bf16.msra.mxu0 0
  %4277 = vmatprep.subr.bf16.mxu0 0
  %4278 = vmatpush1.bf16.msra.mxu0 0
  %4279 = vmatprep.subr.bf16.mxu0 0
  %4280 = vmatpush1.bf16.msra.mxu0 0
  %4281 = vmatprep.subr.bf16.mxu0 0
  %4282 = vmatpush1.bf16.msra.mxu0 0
  %4283 = vmatprep.subr.bf16.mxu0 0
  %4284 = vmatpush1.bf16.msra.mxu0 0
  %4285 = vmatprep.subr.bf16.mxu0 0
  %4286 = vmatpush1.bf16.msra.mxu0 0
  %4287 = vmatprep.mubr.bf16.mxu0 0
  %4288 = vmatmul.mubr.bf16.gmra.mrb[0].mxu0 %v4057
  %v4289 = vpop.f32.mrb[0].mxu0
  %v4290 = vadd.f32 %v4091, %v4289
  %v4291 = vpop.f32.mrb[0].mxu0
  %v4292 = vadd.f32 %v4092, %v4291
  %v4293 = vpop.f32.mrb[0].mxu0
  %v4294 = vpop.f32.mrb[0].mxu0
  %4295 = vdwg.mxu0
  %4296 = vmatprep.subr.bf16.mxu0 %v4194
  %4297 = vmatpush1.bf16.msra.mxu0 %v4193
  %4298 = vmatprep.subr.bf16.mxu0 %v4198
  %4299 = vmatpush1.bf16.msra.mxu0 %v4197
  %4300 = vmatprep.subr.bf16.mxu0 %v4202
  %4301 = vmatpush1.bf16.msra.mxu0 %v4201
  %4302 = vmatprep.subr.bf16.mxu0 %v4206
  %4303 = vmatpush1.bf16.msra.mxu0 %v4205
  %4304 = vmatprep.subr.bf16.mxu0 %v4210
  %4305 = vmatpush1.bf16.msra.mxu0 %v4209
  %4306 = vmatprep.subr.bf16.mxu0 %v4214
  %4307 = vmatpush1.bf16.msra.mxu0 %v4213
  %4308 = vmatprep.subr.bf16.mxu0 %v4218
  %4309 = vmatpush1.bf16.msra.mxu0 %v4217
  %4310 = vmatprep.subr.bf16.mxu0 %v4222
  %4311 = vmatpush1.bf16.msra.mxu0 %v4221
  %4312 = vmatprep.subr.bf16.mxu0 0
  %4313 = vmatpush1.bf16.msra.mxu0 0
  %4314 = vmatprep.subr.bf16.mxu0 0
  %4315 = vmatpush1.bf16.msra.mxu0 0
  %4316 = vmatprep.subr.bf16.mxu0 0
  %4317 = vmatpush1.bf16.msra.mxu0 0
  %4318 = vmatprep.subr.bf16.mxu0 0
  %4319 = vmatpush1.bf16.msra.mxu0 0
  %4320 = vmatprep.subr.bf16.mxu0 0
  %4321 = vmatpush1.bf16.msra.mxu0 0
  %4322 = vmatprep.subr.bf16.mxu0 0
  %4323 = vmatpush1.bf16.msra.mxu0 0
  %4324 = vmatprep.subr.bf16.mxu0 0
  %4325 = vmatpush1.bf16.msra.mxu0 0
  %4326 = vmatprep.subr.bf16.mxu0 0
  %4327 = vmatpush1.bf16.msra.mxu0 0
  %4328 = vmatprep.mubr.bf16.mxu0 0
  %4329 = vmatmul.mubr.bf16.gmra.mrb[0].mxu0 %v4057
  %v4330 = vpop.f32.mrb[0].mxu0
  %v4331 = vadd.f32 %v4093, %v4330
  %v4332 = vpop.f32.mrb[0].mxu0
  %v4333 = vadd.f32 %v4094, %v4332
  %v4334 = vpop.f32.mrb[0].mxu0
  %v4335 = vpop.f32.mrb[0].mxu0
  %4336 = vdwg.mxu0
  %v4337 = vxor.u32 %v4290, 2147483648
  %v4338 = vmul.f32 %v4337, 1.442695
  %v4339 = vpow.pop %v4338
  %v4340 = vadd.f32 %v4339, 1.0
  %v4341 = vrcp.pop %v4340
  %v4342 = vmul.f32 1.0, %v4341
  %v4343 = vxor.u32 %v4292, 2147483648
  %v4344 = vmul.f32 %v4343, 1.442695
  %v4345 = vpow.pop %v4344
  %v4346 = vadd.f32 %v4345, 1.0
  %v4347 = vrcp.pop %v4346
  %v4348 = vmul.f32 1.0, %v4347
  %v4349 = vtanh.pop %v4331
  %v4350 = vxor.u32 %v4333, 2147483648
  %v4351 = vmul.f32 %v4350, 1.442695
  %v4352 = vpow.pop %v4351
  %v4353 = vadd.f32 %v4352, 1.0
  %v4354 = vrcp.pop %v4353
  %v4355 = vmul.f32 1.0, %v4354
  %v4356 = vld [vmem:[#allocation3] sm:$0xff]
  %v4357 = vmul.f32 %v4348, %v4356
  %v4358 = vmul.f32 %v4342, %v4349
  %v4359 = vadd.f32 %v4357, %v4358
  %v4360 = vtanh.pop %v4359
  %v4361 = vmul.f32 %v4355, %v4360
  %4362 = vst [vmem:[#allocation3] sm:$0xff] %v4359
  %4363 = vst [vmem:[#allocation2] sm:$0xff] %v4361
  %s4364 = scalar_lea.vmem %s4, 104
  %4365 = vst [vmem:[%s4364] sm:$0xff] %v4361
  %v4366 = vld [vmem:[#allocation2] sm:$0xff]
  %v4367 = vpack.c.bf16 %v4366, %v4366
  %v4368 = vld [vmem:[%s1] sm:$0xff]
  %v4369 = vld [vmem:[%s1 + $0x8] sm:$0xff]
  %v4370 = vld [vmem:[%s1 + $0x10] sm:$0xff]
  %v4371 = vld [vmem:[%s1 + $0x18] sm:$0xff]
  %v4372 = vld [vmem:[%s1 + $0x20] sm:$0xff]
  %v4373 = vld [vmem:[%s1 + $0x28] sm:$0xff]
  %v4374 = vld [vmem:[%s1 + $0x30] sm:$0xff]
  %v4375 = vld [vmem:[%s1 + $0x38] sm:$0xff]
  %v4376 = vld [vmem:[%s1 + $0x40] sm:$0xff]
  %v4377 = vld [vmem:[%s1 + $0x48] sm:$0xff]
  %v4378 = vld [vmem:[%s1 + $0x50] sm:$0xff]
  %v4379 = vld [vmem:[%s1 + $0x58] sm:$0xff]
  %v4380 = vld [vmem:[%s1 + $0x60] sm:$0xff]
  %v4381 = vld [vmem:[%s1 + $0x68] sm:$0xff]
  %v4382 = vld [vmem:[%s1 + $0x70] sm:$0xff]
  %v4383 = vld [vmem:[%s1 + $0x78] sm:$0xff]
  %v4384 = vld [vmem:[%s1 + $0x80] sm:$0xff]
  %v4385 = vld [vmem:[%s1 + $0x88] sm:$0xff]
  %v4386 = vld [vmem:[%s1 + $0x90] sm:$0xff]
  %v4387 = vld [vmem:[%s1 + $0x98] sm:$0xff]
  %v4388 = vld [vmem:[%s1 + $0xa0] sm:$0xff]
  %v4389 = vld [vmem:[%s1 + $0xa8] sm:$0xff]
  %v4390 = vld [vmem:[%s1 + $0xb0] sm:$0xff]
  %v4391 = vld [vmem:[%s1 + $0xb8] sm:$0xff]
  %v4392 = vld [vmem:[%s1 + $0xc0] sm:$0xff]
  %v4393 = vld [vmem:[%s1 + $0xc8] sm:$0xff]
  %v4394 = vld [vmem:[%s1 + $0xd0] sm:$0xff]
  %v4395 = vld [vmem:[%s1 + $0xd8] sm:$0xff]
  %v4396 = vld [vmem:[%s1 + $0xe0] sm:$0xff]
  %v4397 = vld [vmem:[%s1 + $0xe8] sm:$0xff]
  %v4398 = vld [vmem:[%s1 + $0xf0] sm:$0xff]
  %v4399 = vld [vmem:[%s1 + $0xf8] sm:$0xff]
  %s4400 = scalar_lea.vmem %s0, 448
  %v4401 = vld [vmem:[%s4400] sm:$0xff]
  %v4402 = vld [vmem:[%s4400 + $0x8] sm:$0xff]
  %v4403 = vld [vmem:[%s4400 + $0x10] sm:$0xff]
  %v4404 = vld [vmem:[%s4400 + $0x18] sm:$0xff]
  %v4437 = vunpack.c.l.b16 %v4368
  %v4438 = vunpack.c.h.b16 %v4368
  %v4439 = vunpack.c.l.b16 %v4369
  %v4440 = vunpack.c.h.b16 %v4369
  %v4441 = vunpack.c.l.b16 %v4370
  %v4442 = vunpack.c.h.b16 %v4370
  %v4443 = vunpack.c.l.b16 %v4371
  %v4444 = vunpack.c.h.b16 %v4371
  %v4445 = vunpack.c.l.b16 %v4372
  %v4446 = vunpack.c.h.b16 %v4372
  %v4447 = vunpack.c.l.b16 %v4373
  %v4448 = vunpack.c.h.b16 %v4373
  %v4449 = vunpack.c.l.b16 %v4374
  %v4450 = vunpack.c.h.b16 %v4374
  %v4451 = vunpack.c.l.b16 %v4375
  %v4452 = vunpack.c.h.b16 %v4375
  %v4453 = vunpack.c.l.b16 %v4376
  %v4454 = vunpack.c.h.b16 %v4376
  %v4455 = vunpack.c.l.b16 %v4377
  %v4456 = vunpack.c.h.b16 %v4377
  %v4457 = vunpack.c.l.b16 %v4378
  %v4458 = vunpack.c.h.b16 %v4378
  %v4459 = vunpack.c.l.b16 %v4379
  %v4460 = vunpack.c.h.b16 %v4379
  %v4461 = vunpack.c.l.b16 %v4380
  %v4462 = vunpack.c.h.b16 %v4380
  %v4463 = vunpack.c.l.b16 %v4381
  %v4464 = vunpack.c.h.b16 %v4381
  %v4465 = vunpack.c.l.b16 %v4382
  %v4466 = vunpack.c.h.b16 %v4382
  %v4467 = vunpack.c.l.b16 %v4383
  %v4468 = vunpack.c.h.b16 %v4383
  %v4469 = vunpack.c.l.b16 %v4384
  %v4470 = vunpack.c.h.b16 %v4384
  %v4471 = vunpack.c.l.b16 %v4385
  %v4472 = vunpack.c.h.b16 %v4385
  %v4473 = vunpack.c.l.b16 %v4386
  %v4474 = vunpack.c.h.b16 %v4386
  %v4475 = vunpack.c.l.b16 %v4387
  %v4476 = vunpack.c.h.b16 %v4387
  %v4477 = vunpack.c.l.b16 %v4388
  %v4478 = vunpack.c.h.b16 %v4388
  %v4479 = vunpack.c.l.b16 %v4389
  %v4480 = vunpack.c.h.b16 %v4389
  %v4481 = vunpack.c.l.b16 %v4390
  %v4482 = vunpack.c.h.b16 %v4390
  %v4483 = vunpack.c.l.b16 %v4391
  %v4484 = vunpack.c.h.b16 %v4391
  %v4485 = vunpack.c.l.b16 %v4392
  %v4486 = vunpack.c.h.b16 %v4392
  %v4487 = vunpack.c.l.b16 %v4393
  %v4488 = vunpack.c.h.b16 %v4393
  %v4489 = vunpack.c.l.b16 %v4394
  %v4490 = vunpack.c.h.b16 %v4394
  %v4491 = vunpack.c.l.b16 %v4395
  %v4492 = vunpack.c.h.b16 %v4395
  %v4493 = vunpack.c.l.b16 %v4396
  %v4494 = vunpack.c.h.b16 %v4396
  %v4495 = vunpack.c.l.b16 %v4397
  %v4496 = vunpack.c.h.b16 %v4397
  %v4497 = vunpack.c.l.b16 %v4398
  %v4498 = vunpack.c.h.b16 %v4398
  %v4499 = vunpack.c.l.b16 %v4399
  %v4500 = vunpack.c.h.b16 %v4399
  %v4501 = vpack.c.b16 %v4441, %v4437
  %v4502 = vpack.c.b16 %v4442, %v4438
  %v4503 = vpack.c.b16 %v4443, %v4439
  %v4504 = vpack.c.b16 %v4444, %v4440
  %v4505 = vpack.c.b16 %v4449, %v4445
  %v4506 = vpack.c.b16 %v4450, %v4446
  %v4507 = vpack.c.b16 %v4451, %v4447
  %v4508 = vpack.c.b16 %v4452, %v4448
  %v4509 = vpack.c.b16 %v4457, %v4453
  %v4510 = vpack.c.b16 %v4458, %v4454
  %v4511 = vpack.c.b16 %v4459, %v4455
  %v4512 = vpack.c.b16 %v4460, %v4456
  %v4513 = vpack.c.b16 %v4465, %v4461
  %v4514 = vpack.c.b16 %v4466, %v4462
  %v4515 = vpack.c.b16 %v4467, %v4463
  %v4516 = vpack.c.b16 %v4468, %v4464
  %v4517 = vpack.c.b16 %v4473, %v4469
  %v4518 = vpack.c.b16 %v4474, %v4470
  %v4519 = vpack.c.b16 %v4475, %v4471
  %v4520 = vpack.c.b16 %v4476, %v4472
  %v4521 = vpack.c.b16 %v4481, %v4477
  %v4522 = vpack.c.b16 %v4482, %v4478
  %v4523 = vpack.c.b16 %v4483, %v4479
  %v4524 = vpack.c.b16 %v4484, %v4480
  %v4525 = vpack.c.b16 %v4489, %v4485
  %v4526 = vpack.c.b16 %v4490, %v4486
  %v4527 = vpack.c.b16 %v4491, %v4487
  %v4528 = vpack.c.b16 %v4492, %v4488
  %v4529 = vpack.c.b16 %v4497, %v4493
  %v4530 = vpack.c.b16 %v4498, %v4494
  %v4531 = vpack.c.b16 %v4499, %v4495
  %v4532 = vpack.c.b16 %v4500, %v4496
  %4565 = vmatprep.subr.bf16.mxu0 %v4502
  %4566 = vmatpush1.bf16.msra.mxu0 %v4501
  %4567 = vmatprep.subr.bf16.mxu0 %v4506
  %4568 = vmatpush1.bf16.msra.mxu0 %v4505
  %4569 = vmatprep.subr.bf16.mxu0 %v4510
  %4570 = vmatpush1.bf16.msra.mxu0 %v4509
  %4571 = vmatprep.subr.bf16.mxu0 %v4514
  %4572 = vmatpush1.bf16.msra.mxu0 %v4513
  %4573 = vmatprep.subr.bf16.mxu0 %v4518
  %4574 = vmatpush1.bf16.msra.mxu0 %v4517
  %4575 = vmatprep.subr.bf16.mxu0 %v4522
  %4576 = vmatpush1.bf16.msra.mxu0 %v4521
  %4577 = vmatprep.subr.bf16.mxu0 %v4526
  %4578 = vmatpush1.bf16.msra.mxu0 %v4525
  %4579 = vmatprep.subr.bf16.mxu0 %v4530
  %4580 = vmatpush1.bf16.msra.mxu0 %v4529
  %4581 = vmatprep.subr.bf16.mxu0 0
  %4582 = vmatpush1.bf16.msra.mxu0 0
  %4583 = vmatprep.subr.bf16.mxu0 0
  %4584 = vmatpush1.bf16.msra.mxu0 0
  %4585 = vmatprep.subr.bf16.mxu0 0
  %4586 = vmatpush1.bf16.msra.mxu0 0
  %4587 = vmatprep.subr.bf16.mxu0 0
  %4588 = vmatpush1.bf16.msra.mxu0 0
  %4589 = vmatprep.subr.bf16.mxu0 0
  %4590 = vmatpush1.bf16.msra.mxu0 0
  %4591 = vmatprep.subr.bf16.mxu0 0
  %4592 = vmatpush1.bf16.msra.mxu0 0
  %4593 = vmatprep.subr.bf16.mxu0 0
  %4594 = vmatpush1.bf16.msra.mxu0 0
  %4595 = vmatprep.subr.bf16.mxu0 0
  %4596 = vmatpush1.bf16.msra.mxu0 0
  %4597 = vmatprep.mubr.bf16.mxu0 0
  %4598 = vmatmul.mubr.bf16.gmra.mrb[0].mxu0 %v4367
  %v4599 = vpop.f32.mrb[0].mxu0
  %v4600 = vadd.f32 %v4401, %v4599
  %v4601 = vpop.f32.mrb[0].mxu0
  %v4602 = vadd.f32 %v4402, %v4601
  %v4603 = vpop.f32.mrb[0].mxu0
  %v4604 = vpop.f32.mrb[0].mxu0
  %4605 = vdwg.mxu0
  %4606 = vmatprep.subr.bf16.mxu0 %v4504
  %4607 = vmatpush1.bf16.msra.mxu0 %v4503
  %4608 = vmatprep.subr.bf16.mxu0 %v4508
  %4609 = vmatpush1.bf16.msra.mxu0 %v4507
  %4610 = vmatprep.subr.bf16.mxu0 %v4512
  %4611 = vmatpush1.bf16.msra.mxu0 %v4511
  %4612 = vmatprep.subr.bf16.mxu0 %v4516
  %4613 = vmatpush1.bf16.msra.mxu0 %v4515
  %4614 = vmatprep.subr.bf16.mxu0 %v4520
  %4615 = vmatpush1.bf16.msra.mxu0 %v4519
  %4616 = vmatprep.subr.bf16.mxu0 %v4524
  %4617 = vmatpush1.bf16.msra.mxu0 %v4523
  %4618 = vmatprep.subr.bf16.mxu0 %v4528
  %4619 = vmatpush1.bf16.msra.mxu0 %v4527
  %4620 = vmatprep.subr.bf16.mxu0 %v4532
  %4621 = vmatpush1.bf16.msra.mxu0 %v4531
  %4622 = vmatprep.subr.bf16.mxu0 0
  %4623 = vmatpush1.bf16.msra.mxu0 0
  %4624 = vmatprep.subr.bf16.mxu0 0
  %4625 = vmatpush1.bf16.msra.mxu0 0
  %4626 = vmatprep.subr.bf16.mxu0 0
  %4627 = vmatpush1.bf16.msra.mxu0 0
  %4628 = vmatprep.subr.bf16.mxu0 0
  %4629 = vmatpush1.bf16.msra.mxu0 0
  %4630 = vmatprep.subr.bf16.mxu0 0
  %4631 = vmatpush1.bf16.msra.mxu0 0
  %4632 = vmatprep.subr.bf16.mxu0 0
  %4633 = vmatpush1.bf16.msra.mxu0 0
  %4634 = vmatprep.subr.bf16.mxu0 0
  %4635 = vmatpush1.bf16.msra.mxu0 0
  %4636 = vmatprep.subr.bf16.mxu0 0
  %4637 = vmatpush1.bf16.msra.mxu0 0
  %4638 = vmatprep.mubr.bf16.mxu0 0
  %4639 = vmatmul.mubr.bf16.gmra.mrb[0].mxu0 %v4367
  %v4640 = vpop.f32.mrb[0].mxu0
  %v4641 = vadd.f32 %v4403, %v4640
  %v4642 = vpop.f32.mrb[0].mxu0
  %v4643 = vadd.f32 %v4404, %v4642
  %v4644 = vpop.f32.mrb[0].mxu0
  %v4645 = vpop.f32.mrb[0].mxu0
  %4646 = vdwg.mxu0
  %v4647 = vxor.u32 %v4600, 2147483648
  %v4648 = vmul.f32 %v4647, 1.442695
  %v4649 = vpow.pop %v4648
  %v4650 = vadd.f32 %v4649, 1.0
  %v4651 = vrcp.pop %v4650
  %v4652 = vmul.f32 1.0, %v4651
  %v4653 = vxor.u32 %v4602, 2147483648
  %v4654 = vmul.f32 %v4653, 1.442695
  %v4655 = vpow.pop %v4654
  %v4656 = vadd.f32 %v4655, 1.0
  %v4657 = vrcp.pop %v4656
  %v4658 = vmul.f32 1.0, %v4657
  %v4659 = vtanh.pop %v4641
  %v4660 = vxor.u32 %v4643, 2147483648
  %v4661 = vmul.f32 %v4660, 1.442695
  %v4662 = vpow.pop %v4661
  %v4663 = vadd.f32 %v4662, 1.0
  %v4664 = vrcp.pop %v4663
  %v4665 = vmul.f32 1.0, %v4664
  %v4666 = vld [vmem:[#allocation3] sm:$0xff]
  %v4667 = vmul.f32 %v4658, %v4666
  %v4668 = vmul.f32 %v4652, %v4659
  %v4669 = vadd.f32 %v4667, %v4668
  %v4670 = vtanh.pop %v4669
  %v4671 = vmul.f32 %v4665, %v4670
  %4672 = vst [vmem:[#allocation3] sm:$0xff] %v4669
  %4673 = vst [vmem:[#allocation2] sm:$0xff] %v4671
  %s4674 = scalar_lea.vmem %s4, 112
  %4675 = vst [vmem:[%s4674] sm:$0xff] %v4671
  %v4676 = vld [vmem:[#allocation2] sm:$0xff]
  %v4677 = vpack.c.bf16 %v4676, %v4676
  %v4678 = vld [vmem:[%s1] sm:$0xff]
  %v4679 = vld [vmem:[%s1 + $0x8] sm:$0xff]
  %v4680 = vld [vmem:[%s1 + $0x10] sm:$0xff]
  %v4681 = vld [vmem:[%s1 + $0x18] sm:$0xff]
  %v4682 = vld [vmem:[%s1 + $0x20] sm:$0xff]
  %v4683 = vld [vmem:[%s1 + $0x28] sm:$0xff]
  %v4684 = vld [vmem:[%s1 + $0x30] sm:$0xff]
  %v4685 = vld [vmem:[%s1 + $0x38] sm:$0xff]
  %v4686 = vld [vmem:[%s1 + $0x40] sm:$0xff]
  %v4687 = vld [vmem:[%s1 + $0x48] sm:$0xff]
  %v4688 = vld [vmem:[%s1 + $0x50] sm:$0xff]
  %v4689 = vld [vmem:[%s1 + $0x58] sm:$0xff]
  %v4690 = vld [vmem:[%s1 + $0x60] sm:$0xff]
  %v4691 = vld [vmem:[%s1 + $0x68] sm:$0xff]
  %v4692 = vld [vmem:[%s1 + $0x70] sm:$0xff]
  %v4693 = vld [vmem:[%s1 + $0x78] sm:$0xff]
  %v4694 = vld [vmem:[%s1 + $0x80] sm:$0xff]
  %v4695 = vld [vmem:[%s1 + $0x88] sm:$0xff]
  %v4696 = vld [vmem:[%s1 + $0x90] sm:$0xff]
  %v4697 = vld [vmem:[%s1 + $0x98] sm:$0xff]
  %v4698 = vld [vmem:[%s1 + $0xa0] sm:$0xff]
  %v4699 = vld [vmem:[%s1 + $0xa8] sm:$0xff]
  %v4700 = vld [vmem:[%s1 + $0xb0] sm:$0xff]
  %v4701 = vld [vmem:[%s1 + $0xb8] sm:$0xff]
  %v4702 = vld [vmem:[%s1 + $0xc0] sm:$0xff]
  %v4703 = vld [vmem:[%s1 + $0xc8] sm:$0xff]
  %v4704 = vld [vmem:[%s1 + $0xd0] sm:$0xff]
  %v4705 = vld [vmem:[%s1 + $0xd8] sm:$0xff]
  %v4706 = vld [vmem:[%s1 + $0xe0] sm:$0xff]
  %v4707 = vld [vmem:[%s1 + $0xe8] sm:$0xff]
  %v4708 = vld [vmem:[%s1 + $0xf0] sm:$0xff]
  %v4709 = vld [vmem:[%s1 + $0xf8] sm:$0xff]
  %s4710 = scalar_lea.vmem %s0, 480
  %v4711 = vld [vmem:[%s4710] sm:$0xff]
  %v4712 = vld [vmem:[%s4710 + $0x8] sm:$0xff]
  %v4713 = vld [vmem:[%s4710 + $0x10] sm:$0xff]
  %v4714 = vld [vmem:[%s4710 + $0x18] sm:$0xff]
  %v4747 = vunpack.c.l.b16 %v4678
  %v4748 = vunpack.c.h.b16 %v4678
  %v4749 = vunpack.c.l.b16 %v4679
  %v4750 = vunpack.c.h.b16 %v4679
  %v4751 = vunpack.c.l.b16 %v4680
  %v4752 = vunpack.c.h.b16 %v4680
  %v4753 = vunpack.c.l.b16 %v4681
  %v4754 = vunpack.c.h.b16 %v4681
  %v4755 = vunpack.c.l.b16 %v4682
  %v4756 = vunpack.c.h.b16 %v4682
  %v4757 = vunpack.c.l.b16 %v4683
  %v4758 = vunpack.c.h.b16 %v4683
  %v4759 = vunpack.c.l.b16 %v4684
  %v4760 = vunpack.c.h.b16 %v4684
  %v4761 = vunpack.c.l.b16 %v4685
  %v4762 = vunpack.c.h.b16 %v4685
  %v4763 = vunpack.c.l.b16 %v4686
  %v4764 = vunpack.c.h.b16 %v4686
  %v4765 = vunpack.c.l.b16 %v4687
  %v4766 = vunpack.c.h.b16 %v4687
  %v4767 = vunpack.c.l.b16 %v4688
  %v4768 = vunpack.c.h.b16 %v4688
  %v4769 = vunpack.c.l.b16 %v4689
  %v4770 = vunpack.c.h.b16 %v4689
  %v4771 = vunpack.c.l.b16 %v4690
  %v4772 = vunpack.c.h.b16 %v4690
  %v4773 = vunpack.c.l.b16 %v4691
  %v4774 = vunpack.c.h.b16 %v4691
  %v4775 = vunpack.c.l.b16 %v4692
  %v4776 = vunpack.c.h.b16 %v4692
  %v4777 = vunpack.c.l.b16 %v4693
  %v4778 = vunpack.c.h.b16 %v4693
  %v4779 = vunpack.c.l.b16 %v4694
  %v4780 = vunpack.c.h.b16 %v4694
  %v4781 = vunpack.c.l.b16 %v4695
  %v4782 = vunpack.c.h.b16 %v4695
  %v4783 = vunpack.c.l.b16 %v4696
  %v4784 = vunpack.c.h.b16 %v4696
  %v4785 = vunpack.c.l.b16 %v4697
  %v4786 = vunpack.c.h.b16 %v4697
  %v4787 = vunpack.c.l.b16 %v4698
  %v4788 = vunpack.c.h.b16 %v4698
  %v4789 = vunpack.c.l.b16 %v4699
  %v4790 = vunpack.c.h.b16 %v4699
  %v4791 = vunpack.c.l.b16 %v4700
  %v4792 = vunpack.c.h.b16 %v4700
  %v4793 = vunpack.c.l.b16 %v4701
  %v4794 = vunpack.c.h.b16 %v4701
  %v4795 = vunpack.c.l.b16 %v4702
  %v4796 = vunpack.c.h.b16 %v4702
  %v4797 = vunpack.c.l.b16 %v4703
  %v4798 = vunpack.c.h.b16 %v4703
  %v4799 = vunpack.c.l.b16 %v4704
  %v4800 = vunpack.c.h.b16 %v4704
  %v4801 = vunpack.c.l.b16 %v4705
  %v4802 = vunpack.c.h.b16 %v4705
  %v4803 = vunpack.c.l.b16 %v4706
  %v4804 = vunpack.c.h.b16 %v4706
  %v4805 = vunpack.c.l.b16 %v4707
  %v4806 = vunpack.c.h.b16 %v4707
  %v4807 = vunpack.c.l.b16 %v4708
  %v4808 = vunpack.c.h.b16 %v4708
  %v4809 = vunpack.c.l.b16 %v4709
  %v4810 = vunpack.c.h.b16 %v4709
  %v4811 = vpack.c.b16 %v4751, %v4747
  %v4812 = vpack.c.b16 %v4752, %v4748
  %v4813 = vpack.c.b16 %v4753, %v4749
  %v4814 = vpack.c.b16 %v4754, %v4750
  %v4815 = vpack.c.b16 %v4759, %v4755
  %v4816 = vpack.c.b16 %v4760, %v4756
  %v4817 = vpack.c.b16 %v4761, %v4757
  %v4818 = vpack.c.b16 %v4762, %v4758
  %v4819 = vpack.c.b16 %v4767, %v4763
  %v4820 = vpack.c.b16 %v4768, %v4764
  %v4821 = vpack.c.b16 %v4769, %v4765
  %v4822 = vpack.c.b16 %v4770, %v4766
  %v4823 = vpack.c.b16 %v4775, %v4771
  %v4824 = vpack.c.b16 %v4776, %v4772
  %v4825 = vpack.c.b16 %v4777, %v4773
  %v4826 = vpack.c.b16 %v4778, %v4774
  %v4827 = vpack.c.b16 %v4783, %v4779
  %v4828 = vpack.c.b16 %v4784, %v4780
  %v4829 = vpack.c.b16 %v4785, %v4781
  %v4830 = vpack.c.b16 %v4786, %v4782
  %v4831 = vpack.c.b16 %v4791, %v4787
  %v4832 = vpack.c.b16 %v4792, %v4788
  %v4833 = vpack.c.b16 %v4793, %v4789
  %v4834 = vpack.c.b16 %v4794, %v4790
  %v4835 = vpack.c.b16 %v4799, %v4795
  %v4836 = vpack.c.b16 %v4800, %v4796
  %v4837 = vpack.c.b16 %v4801, %v4797
  %v4838 = vpack.c.b16 %v4802, %v4798
  %v4839 = vpack.c.b16 %v4807, %v4803
  %v4840 = vpack.c.b16 %v4808, %v4804
  %v4841 = vpack.c.b16 %v4809, %v4805
  %v4842 = vpack.c.b16 %v4810, %v4806
  %4875 = vmatprep.subr.bf16.mxu0 %v4812
  %4876 = vmatpush1.bf16.msra.mxu0 %v4811
  %4877 = vmatprep.subr.bf16.mxu0 %v4816
  %4878 = vmatpush1.bf16.msra.mxu0 %v4815
  %4879 = vmatprep.subr.bf16.mxu0 %v4820
  %4880 = vmatpush1.bf16.msra.mxu0 %v4819
  %4881 = vmatprep.subr.bf16.mxu0 %v4824
  %4882 = vmatpush1.bf16.msra.mxu0 %v4823
  %4883 = vmatprep.subr.bf16.mxu0 %v4828
  %4884 = vmatpush1.bf16.msra.mxu0 %v4827
  %4885 = vmatprep.subr.bf16.mxu0 %v4832
  %4886 = vmatpush1.bf16.msra.mxu0 %v4831
  %4887 = vmatprep.subr.bf16.mxu0 %v4836
  %4888 = vmatpush1.bf16.msra.mxu0 %v4835
  %4889 = vmatprep.subr.bf16.mxu0 %v4840
  %4890 = vmatpush1.bf16.msra.mxu0 %v4839
  %4891 = vmatprep.subr.bf16.mxu0 0
  %4892 = vmatpush1.bf16.msra.mxu0 0
  %4893 = vmatprep.subr.bf16.mxu0 0
  %4894 = vmatpush1.bf16.msra.mxu0 0
  %4895 = vmatprep.subr.bf16.mxu0 0
  %4896 = vmatpush1.bf16.msra.mxu0 0
  %4897 = vmatprep.subr.bf16.mxu0 0
  %4898 = vmatpush1.bf16.msra.mxu0 0
  %4899 = vmatprep.subr.bf16.mxu0 0
  %4900 = vmatpush1.bf16.msra.mxu0 0
  %4901 = vmatprep.subr.bf16.mxu0 0
  %4902 = vmatpush1.bf16.msra.mxu0 0
  %4903 = vmatprep.subr.bf16.mxu0 0
  %4904 = vmatpush1.bf16.msra.mxu0 0
  %4905 = vmatprep.subr.bf16.mxu0 0
  %4906 = vmatpush1.bf16.msra.mxu0 0
  %4907 = vmatprep.mubr.bf16.mxu0 0
  %4908 = vmatmul.mubr.bf16.gmra.mrb[0].mxu0 %v4677
  %v4909 = vpop.f32.mrb[0].mxu0
  %v4910 = vadd.f32 %v4711, %v4909
  %v4911 = vpop.f32.mrb[0].mxu0
  %v4912 = vadd.f32 %v4712, %v4911
  %v4913 = vpop.f32.mrb[0].mxu0
  %v4914 = vpop.f32.mrb[0].mxu0
  %4915 = vdwg.mxu0
  %4916 = vmatprep.subr.bf16.mxu0 %v4814
  %4917 = vmatpush1.bf16.msra.mxu0 %v4813
  %4918 = vmatprep.subr.bf16.mxu0 %v4818
  %4919 = vmatpush1.bf16.msra.mxu0 %v4817
  %4920 = vmatprep.subr.bf16.mxu0 %v4822
  %4921 = vmatpush1.bf16.msra.mxu0 %v4821
  %4922 = vmatprep.subr.bf16.mxu0 %v4826
  %4923 = vmatpush1.bf16.msra.mxu0 %v4825
  %4924 = vmatprep.subr.bf16.mxu0 %v4830
  %4925 = vmatpush1.bf16.msra.mxu0 %v4829
  %4926 = vmatprep.subr.bf16.mxu0 %v4834
  %4927 = vmatpush1.bf16.msra.mxu0 %v4833
  %4928 = vmatprep.subr.bf16.mxu0 %v4838
  %4929 = vmatpush1.bf16.msra.mxu0 %v4837
  %4930 = vmatprep.subr.bf16.mxu0 %v4842
  %4931 = vmatpush1.bf16.msra.mxu0 %v4841
  %4932 = vmatprep.subr.bf16.mxu0 0
  %4933 = vmatpush1.bf16.msra.mxu0 0
  %4934 = vmatprep.subr.bf16.mxu0 0
  %4935 = vmatpush1.bf16.msra.mxu0 0
  %4936 = vmatprep.subr.bf16.mxu0 0
  %4937 = vmatpush1.bf16.msra.mxu0 0
  %4938 = vmatprep.subr.bf16.mxu0 0
  %4939 = vmatpush1.bf16.msra.mxu0 0
  %4940 = vmatprep.subr.bf16.mxu0 0
  %4941 = vmatpush1.bf16.msra.mxu0 0
  %4942 = vmatprep.subr.bf16.mxu0 0
  %4943 = vmatpush1.bf16.msra.mxu0 0
  %4944 = vmatprep.subr.bf16.mxu0 0
  %4945 = vmatpush1.bf16.msra.mxu0 0
  %4946 = vmatprep.subr.bf16.mxu0 0
  %4947 = vmatpush1.bf16.msra.mxu0 0
  %4948 = vmatprep.mubr.bf16.mxu0 0
  %4949 = vmatmul.mubr.bf16.gmra.mrb[0].mxu0 %v4677
  %v4950 = vpop.f32.mrb[0].mxu0
  %v4951 = vadd.f32 %v4713, %v4950
  %v4952 = vpop.f32.mrb[0].mxu0
  %v4953 = vadd.f32 %v4714, %v4952
  %v4954 = vpop.f32.mrb[0].mxu0
  %v4955 = vpop.f32.mrb[0].mxu0
  %4956 = vdwg.mxu0
  %v4957 = vxor.u32 %v4910, 2147483648
  %v4958 = vmul.f32 %v4957, 1.442695
  %v4959 = vpow.pop %v4958
  %v4960 = vadd.f32 %v4959, 1.0
  %v4961 = vrcp.pop %v4960
  %v4962 = vmul.f32 1.0, %v4961
  %v4963 = vxor.u32 %v4912, 2147483648
  %v4964 = vmul.f32 %v4963, 1.442695
  %v4965 = vpow.pop %v4964
  %v4966 = vadd.f32 %v4965, 1.0
  %v4967 = vrcp.pop %v4966
  %v4968 = vmul.f32 1.0, %v4967
  %v4969 = vtanh.pop %v4951
  %v4970 = vxor.u32 %v4953, 2147483648
  %v4971 = vmul.f32 %v4970, 1.442695
  %v4972 = vpow.pop %v4971
  %v4973 = vadd.f32 %v4972, 1.0
  %v4974 = vrcp.pop %v4973
  %v4975 = vmul.f32 1.0, %v4974
  %v4976 = vld [vmem:[#allocation3] sm:$0xff]
  %v4977 = vmul.f32 %v4968, %v4976
  %v4978 = vmul.f32 %v4962, %v4969
  %v4979 = vadd.f32 %v4977, %v4978
  %v4980 = vtanh.pop %v4979
  %v4981 = vmul.f32 %v4975, %v4980
  %4982 = vst [vmem:[#allocation3] sm:$0xff] %v4979
  %4983 = vst [vmem:[#allocation2] sm:$0xff] %v4981
  %s4984 = scalar_lea.vmem %s4, 120
  %4985 = vst [vmem:[%s4984] sm:$0xff] %v4981
  // Predicated region
  $region22: #{hflstmlm_forward.6} parent=0 // pred_check
    %p4986 = pneg %p20
  $region23: #{hflstmlm_forward.6} parent=0 // pred_check_branch
    %4988 = sbr.rel (%p4986) target = $region25
  $region24: #{hflstmlm_forward.6} parent=0 // pred_region
    %v4989 = vld [vmem:[#allocation3] sm:$0xff]
    %4990 = vst [vmem:[%s5] sm:$0xff] %v4989
  $region25: #{hflstmlm_forward.6} parent=0 // pred_fallthru
    _
  // Predicated region
  $region26: #{hflstmlm_forward.6} parent=0 // pred_check
    _
  $region27: #{hflstmlm_forward.6} parent=0 // pred_check_branch
    %4992 = sbr.rel (0) target = $region29
  $region28: #{hflstmlm_forward.6} parent=0 // pred_region
    _
  $region29: #{hflstmlm_forward.6} parent=0 // pred_fallthru
    _
  // Predicated region
  $region30: #{hflstmlm_forward.6} parent=0 // pred_check
    _
  $region31: #{hflstmlm_forward.6} parent=0 // pred_check_branch
    %4994 = sbr.rel (0) target = $region33
  $region32: #{hflstmlm_forward.6} parent=0 // pred_region
    _
  $region33: #{hflstmlm_forward.6} parent=0 // pred_fallthru
    _
  // Predicated region
  $region34: #{hflstmlm_forward.6} parent=0 // pred_check
    _
  $region35: #{hflstmlm_forward.6} parent=0 // pred_check_branch
    %4996 = sbr.rel (0) target = $region37
  $region36: #{hflstmlm_forward.6} parent=0 // pred_region
    _
  $region37: #{hflstmlm_forward.6} parent=0 // pred_fallthru
    _
  // Predicated region
  $region38: #{hflstmlm_forward.6} parent=0 // pred_check
    _
  $region39: #{hflstmlm_forward.6} parent=0 // pred_check_branch
    %4998 = sbr.rel (0) target = $region41
  $region40: #{hflstmlm_forward.6} parent=0 // pred_region
    _
  $region41: #{hflstmlm_forward.6} parent=0 // pred_fallthru
    _

</llo_original>
